<compile_context>
chip_gen: v6e
topology: v6e:2x2x1
jax: 0.10.0
libtpu: 0.0.40
codegen_flags: <defaults>
</compile_context>

<pallas_src>
import functools
import math

import jax
import jax.numpy as jnp
import numpy as np
from jax.experimental import pallas as pl
from jax.experimental.pallas import tpu as pltpu

_BN_EPS = 1e-5


def _round_up(x, m):
    return ((x + m - 1) // m) * m


# ----------------------------------------------------------------------------
# Padded, row-flattened activation layout used by the kernels:
#   (N, H, W, C) -> (N, (H + 4) * Wp, C) bf16 with
#     * 2 zero rows on top and bottom (so every 3x3 tap read stays in-bounds),
#     * 1 zero column on the left, (Wp - W - 1) zero columns on the right
#       (Wp rounded up to a multiple of 8 so in-kernel stores stay aligned).
# A 3x3 stride-1 conv then becomes 9 matmuls over contiguous, statically
# shifted row slices of this flat buffer; pad-column outputs are masked to 0.
# ----------------------------------------------------------------------------
def _pad_to_flat(x_nhwc, wp):
    n, h, w, c = x_nhwc.shape
    xp = jnp.pad(x_nhwc, ((0, 0), (2, 2), (1, wp - w - 1), (0, 0)))
    return xp.astype(jnp.bfloat16).reshape(n, (h + 4) * wp, c)


def _interior_col_mask(h, w, wp):
    # 1.0 for real columns (padded col index in [1, w]), 0.0 for pad columns.
    col = np.arange(h * wp) % wp
    mask = ((col >= 1) & (col <= w)).astype(np.float32).reshape(h * wp, 1)
    return jnp.asarray(mask)


# ----------------------------------------------------------------------------
# Pallas kernel A: fused conv2 + conv3 + conv4(stride-1), one image per step.
#   x_ref    : ((H+4)*Wp, 32) bf16   padded-flat conv2 input (conv1 output)
#   mask_ref : (H*Wp, 1)      f32    interior-column mask
#   wX_ref   : (9*32, Cout)   bf16   tap-major weights (BN scale folded in)
#   bX_ref   : (1, Cout)      f32    folded BN bias
#   a2/a3    : VMEM scratch, padded-flat intermediates (never touch HBM)
#   o_ref    : (H*Wp, 32)     bf16   conv4 stride-1 output (interior rows)
# ----------------------------------------------------------------------------
def _conv234_kernel(x_ref, mask_ref, w2_ref, b2_ref, w3_ref, b3_ref,
                    w4_ref, b4_ref, o_ref, a2_ref, a3_ref, *, wp, h, cin):
    m = h * wp          # output positions per image (all padded columns)
    base = 2 * wp       # flat offset of the first real row (2 zero pad rows)

    def conv3x3(src_ref, w_ref, b_ref):
        cout = b_ref.shape[-1]
        acc = jnp.zeros((m, cout), jnp.float32)
        for di in range(3):
            for dj in range(3):
                start = (di + 1) * wp + (dj - 1)            # static offset
                tap = src_ref[pl.ds(start, m), :]           # shifted VMEM view
                wt = w_ref[pl.ds((di * 3 + dj) * cin, cin), :]
                acc = acc + jnp.dot(tap, wt, preferred_element_type=jnp.float32)
        return jnp.maximum(acc + b_ref[...], 0.0)           # folded-BN bias + ReLU

    mask = mask_ref[...]

    y2 = conv3x3(x_ref, w2_ref, b2_ref) * mask
    a2_ref[...] = jnp.zeros(a2_ref.shape, a2_ref.dtype)
    a2_ref[pl.ds(base, m), :] = y2.astype(a2_ref.dtype)

    y3 = conv3x3(a2_ref, w3_ref, b3_ref) * mask
    a3_ref[...] = jnp.zeros(a3_ref.shape, a3_ref.dtype)
    a3_ref[pl.ds(base, m), :] = y3.astype(a3_ref.dtype)

    # conv4 at stride 1; the stride-2 subsample (and pad-column discard)
    # happens outside via a cheap strided slice, so no mask needed here.
    o_ref[...] = conv3x3(a3_ref, w4_ref, b4_ref).astype(o_ref.dtype)


def _conv234_call(x2p, mask, w2, b2, w3, b3, w4, b4, *, h, wp):
    n, mpp, cin = x2p.shape
    m_out = h * wp
    cout = b4.shape[-1]
    resident = lambda i: (0, 0)
    kernel = functools.partial(_conv234_kernel, wp=wp, h=h, cin=cin)
    return pl.pallas_call(
        kernel,
        out_shape=jax.ShapeDtypeStruct((n, m_out, cout), jnp.bfloat16),
        grid=(n,),
        in_specs=[
            pl.BlockSpec((None, mpp, cin), lambda i: (i, 0, 0)),
            pl.BlockSpec(mask.shape, resident),
            pl.BlockSpec(w2.shape, resident), pl.BlockSpec(b2.shape, resident),
            pl.BlockSpec(w3.shape, resident), pl.BlockSpec(b3.shape, resident),
            pl.BlockSpec(w4.shape, resident), pl.BlockSpec(b4.shape, resident),
        ],
        out_specs=pl.BlockSpec((None, m_out, cout), lambda i: (i, 0, 0)),
        scratch_shapes=[pltpu.VMEM((mpp, cin), jnp.bfloat16),
                        pltpu.VMEM((mpp, cin), jnp.bfloat16)],
        compiler_params=pltpu.CompilerParams(
            dimension_semantics=("parallel",),
            vmem_limit_bytes=32 * 1024 * 1024),
    )(x2p, mask, w2, b2, w3, b3, w4, b4)


# ----------------------------------------------------------------------------
# Pallas kernel B: fused conv5 (3x3, 32->64) + bias-free 1x1 conv_last.
# The (M, 64) intermediate stays in f32 in VMEM; the 1x1 matmul is done in f32.
# ----------------------------------------------------------------------------
def _conv5_last_kernel(x_ref, w5_ref, b5_ref, wl_ref, o_ref, *, wp, h, cin):
    m = h * wp
    acc = jnp.zeros((m, b5_ref.shape[-1]), jnp.float32)
    for di in range(3):
        for dj in range(3):
            start = (di + 1) * wp + (dj - 1)
            tap = x_ref[pl.ds(start, m), :]
            wt = w5_ref[pl.ds((di * 3 + dj) * cin, cin), :]
            acc = acc + jnp.dot(tap, wt, preferred_element_type=jnp.float32)
    hidden = jnp.maximum(acc + b5_ref[...], 0.0)
    o_ref[...] = jnp.dot(hidden, wl_ref[...],
                         preferred_element_type=jnp.float32).astype(o_ref.dtype)


def _conv5_last_call(x4p, w5, b5, wl, *, h, wp):
    n, mpp, cin = x4p.shape
    m_out = h * wp
    fd = wl.shape[1]
    resident = lambda i: (0, 0)
    kernel = functools.partial(_conv5_last_kernel, wp=wp, h=h, cin=cin)
    return pl.pallas_call(
        kernel,
        out_shape=jax.ShapeDtypeStruct((n, m_out, fd), jnp.float32),
        grid=(n,),
        in_specs=[pl.BlockSpec((None, mpp, cin), lambda i: (i, 0, 0)),
                  pl.BlockSpec(w5.shape, resident),
                  pl.BlockSpec(b5.shape, resident),
                  pl.BlockSpec(wl.shape, resident)],
        out_specs=pl.BlockSpec((None, m_out, fd), lambda i: (i, 0, 0)),
        compiler_params=pltpu.CompilerParams(
            dimension_semantics=("parallel",),
            vmem_limit_bytes=32 * 1024 * 1024),
    )(x4p, w5, b5, wl)


# ----------------------------------------------------------------------------
# Parameters.  Conv init ~ N(0, sqrt(2/(kh*kw*Cout))); BN gamma=1, beta=0,
# running stats (0, 1) -> inference BN is an affine, folded into the conv
# weights (in f32) before the bf16 cast.
# NOTE: Pallas weights are tap-major (di, dj, cin) x cout; real PyTorch Conv2d
# weights (cout, cin, kh, kw) must be transposed to (kh, kw, cin, cout) then
# flattened exactly this way before loading.
# ----------------------------------------------------------------------------
def init_feature_extractor_params(feature_dim=32, seed=0):
    keys = jax.random.split(jax.random.PRNGKey(seed), 6)

    def conv_bn(key, cin, cout):
        std = math.sqrt(2.0 / (3 * 3 * cout))
        w = std * jax.random.normal(key, (3, 3, cin, cout), jnp.float32)
        gamma = jnp.ones((cout,), jnp.float32)
        beta = jnp.zeros((cout,), jnp.float32)
        mean = jnp.zeros((cout,), jnp.float32)
        var = jnp.ones((cout,), jnp.float32)
        s = gamma / jnp.sqrt(var + _BN_EPS)
        return w * s, (beta - mean * s).reshape(1, cout)   # folded weight, bias

    w1, b1 = conv_bn(keys[0], 3, 32)                        # conv1 stays in XLA
    params = {"conv1": (w1, b1)}
    for name, key, cin, cout in (("conv2", keys[1], 32, 32),
                                 ("conv3", keys[2], 32, 32),
                                 ("conv4", keys[3], 32, 32),
                                 ("conv5", keys[4], 32, 64)):
        w, b = conv_bn(key, cin, cout)
        params[name] = (w.reshape(9 * cin, cout).astype(jnp.bfloat16), b)
    std = math.sqrt(2.0 / (1 * 1 * feature_dim))
    params["conv_last"] = std * jax.random.normal(keys[5], (64, feature_dim),
                                                  jnp.float32)
    return params


# ----------------------------------------------------------------------------
# Forward pass (multi_scale=False path): NCHW in -> NCHW features at 1/4 scale.
# ----------------------------------------------------------------------------
def feature_extractor_forward(img_nchw, params, feature_dim=32):
    n, _, h, w = img_nchw.shape
    assert h % 4 == 0 and w % 4 == 0
    h2, w2, h4, w4 = h // 2, w // 2, h // 4, w // 4

    # conv1 (3->32, stride 2) + folded BN + ReLU: left to XLA (review item 8).
    w1, b1 = params["conv1"]
    x = jnp.transpose(img_nchw, (0, 2, 3, 1))                        # NHWC f32
    x = jax.lax.conv_general_dilated(x, w1, (2, 2), ((1, 1), (1, 1)),
                                     dimension_numbers=("NHWC", "HWIO", "NHWC"))
    x = jnp.maximum(x + b1, 0.0)                                     # (n,h2,w2,32)

    # Fused conv2 + conv3 + conv4 (stride-1) Pallas kernel, grid over batch.
    wp2 = _round_up(w2 + 2, 8)
    x2p = _pad_to_flat(x, wp2)
    mask2 = _interior_col_mask(h2, w2, wp2)
    w2_, b2_ = params["conv2"]
    w3_, b3_ = params["conv3"]
    w4_, b4_ = params["conv4"]
    y4 = _conv234_call(x2p, mask2, w2_, b2_, w3_, b3_, w4_, b4_, h=h2, wp=wp2)
    # stride-2 subsample of the stride-1 conv4 result (even rows / even cols).
    y4 = y4.reshape(n, h2, wp2, 32)[:, 0:h2:2, 1:1 + w2:2, :]        # (n,h4,w4,32)

    # Fused conv5 + bias-free 1x1 conv_last Pallas kernel.
    wp4 = _round_up(w4 + 2, 8)
    x4p = _pad_to_flat(y4, wp4)
    w5_, b5_ = params["conv5"]
    wl = params["conv_last"]
    feat = _conv5_last_call(x4p, w5_, b5_, wl, h=h4, wp=wp4)         # f32
    feat = feat.reshape(n, h4, wp4, feature_dim)[:, :, 1:1 + w4, :]
    return jnp.transpose(feat, (0, 3, 1, 2))                         # NCHW, 1/4


# ----------------------------------------------------------------------------
# Pure-XLA f32 reference (same folded / bf16-quantized weights) for validation.
# ----------------------------------------------------------------------------
def _reference_forward(img_nchw, params, feature_dim=32):
    def conv(x, w, b, stride):
        y = jax.lax.conv_general_dilated(x, w, (stride, stride), ((1, 1), (1, 1)),
                                         dimension_numbers=("NHWC", "HWIO", "NHWC"))
        return jnp.maximum(y + b, 0.0)

    x = jnp.transpose(img_nchw, (0, 2, 3, 1))
    w1, b1 = params["conv1"]
    x = conv(x, w1, b1, 2)
    for name, stride in (("conv2", 1), ("conv3", 1), ("conv4", 2), ("conv5", 1)):
        wf, b = params[name]
        cout = wf.shape[1]
        wfull = wf.astype(jnp.float32).reshape(3, 3, 32, cout)
        x = conv(x, wfull, b, stride)
    x = jnp.dot(x, params["conv_last"])
    return jnp.transpose(x, (0, 3, 1, 2))


if __name__ == "__main__":
    feature_dim = 32
    n, c, h, w = 2, 3, 16, 16  # small RGB input

    img = jax.random.normal(jax.random.PRNGKey(0), (n, c, h, w), jnp.float32)
    params = init_feature_extractor_params(feature_dim=feature_dim, seed=0)

    fwd = jax.jit(functools.partial(feature_extractor_forward,
                                    params=params, feature_dim=feature_dim))
    feat = jax.block_until_ready(fwd(img))

    assert feat.shape == (n, feature_dim, h // 4, w // 4), feat.shape
    assert feat.dtype == jnp.float32

    ref = jax.block_until_ready(
        jax.jit(functools.partial(_reference_forward,
                                  params=params, feature_dim=feature_dim))(img))
    rel = float(jnp.linalg.norm(feat - ref) / (jnp.linalg.norm(ref) + 1e-12))
    assert rel < 5e-2, f"relative error too large: {rel}"

    print("KERNEL_OK")
</pallas_src>

<mosaic_0001>
module attributes {stable_mosaic.version = 11 : i64} {
  func.func @_conv234_kernel(%arg0: i32, %arg1: memref<1x192x32xbf16, #tpu.memory_space<vmem>>, %arg2: memref<128x1xf32, #tpu.memory_space<vmem>>, %arg3: memref<288x32xbf16, #tpu.memory_space<vmem>>, %arg4: memref<1x32xf32, #tpu.memory_space<vmem>>, %arg5: memref<288x32xbf16, #tpu.memory_space<vmem>>, %arg6: memref<1x32xf32, #tpu.memory_space<vmem>>, %arg7: memref<288x32xbf16, #tpu.memory_space<vmem>>, %arg8: memref<1x32xf32, #tpu.memory_space<vmem>>, %arg9: memref<1x128x32xbf16, #tpu.memory_space<vmem>>, %arg10: memref<192x32xbf16, #tpu.memory_space<vmem>>, %arg11: memref<192x32xbf16, #tpu.memory_space<vmem>>) attributes {dimension_semantics = [#tpu.dimension_semantics<parallel>], iteration_bounds = array<i64: 2>, scalar_prefetch = 0 : i64, scratch_operands = 2 : i64, tpu.core_type = #tpu.core_type<tc>, window_params = [{transform_indices = @transform_0, window_bounds = array<i64: 1, 192, 32>}, {pipeline_mode = #tpu.pipeline_mode<synchronous>, transform_indices = @transform_1, window_bounds = array<i64: 128, 1>}, {pipeline_mode = #tpu.pipeline_mode<synchronous>, transform_indices = @transform_2, window_bounds = array<i64: 288, 32>}, {pipeline_mode = #tpu.pipeline_mode<synchronous>, transform_indices = @transform_3, window_bounds = array<i64: 1, 32>}, {pipeline_mode = #tpu.pipeline_mode<synchronous>, transform_indices = @transform_4, window_bounds = array<i64: 288, 32>}, {pipeline_mode = #tpu.pipeline_mode<synchronous>, transform_indices = @transform_5, window_bounds = array<i64: 1, 32>}, {pipeline_mode = #tpu.pipeline_mode<synchronous>, transform_indices = @transform_6, window_bounds = array<i64: 288, 32>}, {pipeline_mode = #tpu.pipeline_mode<synchronous>, transform_indices = @transform_7, window_bounds = array<i64: 1, 32>}, {transform_indices = @transform_8, window_bounds = array<i64: 1, 128, 32>}]} {
    %c0 = arith.constant 0 : index
    %c0_0 = arith.constant 0 : index
    %0 = vector.load %arg2[%c0, %c0_0] : memref<128x1xf32, #tpu.memory_space<vmem>>, vector<128x1xf32>
    %cst = arith.constant 0.000000e+00 : f32
    %1 = vector.broadcast %cst : f32 to vector<128x32xf32>
    %c0_1 = arith.constant 0 : index
    %c15 = arith.constant 15 : index
    %c0_2 = arith.constant 0 : index
    %2 = vector.load %arg1[%c0_1, %c15, %c0_2] : memref<1x192x32xbf16, #tpu.memory_space<vmem>>, vector<1x128x32xbf16>
    %3 = vector.shape_cast %2 : vector<1x128x32xbf16> to vector<128x32xbf16>
    %c0_3 = arith.constant 0 : index
    %c0_4 = arith.constant 0 : index
    %4 = vector.load %arg3[%c0_3, %c0_4] : memref<288x32xbf16, #tpu.memory_space<vmem>>, vector<32x32xbf16>
    %cst_5 = arith.constant dense<0.000000e+00> : vector<128x32xf32>
    %5 = tpu.matmul %3, %4, %cst_5 {dimension_numbers = #tpu.dot_dimension_numbers<[1], [0], [0], [1], [0, 0, 1, 1], [], []>} : vector<128x32xbf16>, vector<32x32xbf16>, vector<128x32xf32> -> vector<128x32xf32>
    %6 = arith.addf %1, %5 : vector<128x32xf32>
    %c0_6 = arith.constant 0 : index
    %c16 = arith.constant 16 : index
    %c0_7 = arith.constant 0 : index
    %7 = vector.load %arg1[%c0_6, %c16, %c0_7] : memref<1x192x32xbf16, #tpu.memory_space<vmem>>, vector<1x128x32xbf16>
    %8 = vector.shape_cast %7 : vector<1x128x32xbf16> to vector<128x32xbf16>
    %c32 = arith.constant 32 : index
    %c0_8 = arith.constant 0 : index
    %9 = vector.load %arg3[%c32, %c0_8] : memref<288x32xbf16, #tpu.memory_space<vmem>>, vector<32x32xbf16>
    %cst_9 = arith.constant dense<0.000000e+00> : vector<128x32xf32>
    %10 = tpu.matmul %8, %9, %cst_9 {dimension_numbers = #tpu.dot_dimension_numbers<[1], [0], [0], [1], [0, 0, 1, 1], [], []>} : vector<128x32xbf16>, vector<32x32xbf16>, vector<128x32xf32> -> vector<128x32xf32>
    %11 = arith.addf %6, %10 : vector<128x32xf32>
    %c0_10 = arith.constant 0 : index
    %c17 = arith.constant 17 : index
    %c0_11 = arith.constant 0 : index
    %12 = vector.load %arg1[%c0_10, %c17, %c0_11] : memref<1x192x32xbf16, #tpu.memory_space<vmem>>, vector<1x128x32xbf16>
    %13 = vector.shape_cast %12 : vector<1x128x32xbf16> to vector<128x32xbf16>
    %c64 = arith.constant 64 : index
    %c0_12 = arith.constant 0 : index
    %14 = vector.load %arg3[%c64, %c0_12] : memref<288x32xbf16, #tpu.memory_space<vmem>>, vector<32x32xbf16>
    %cst_13 = arith.constant dense<0.000000e+00> : vector<128x32xf32>
    %15 = tpu.matmul %13, %14, %cst_13 {dimension_numbers = #tpu.dot_dimension_numbers<[1], [0], [0], [1], [0, 0, 1, 1], [], []>} : vector<128x32xbf16>, vector<32x32xbf16>, vector<128x32xf32> -> vector<128x32xf32>
    %16 = arith.addf %11, %15 : vector<128x32xf32>
    %c0_14 = arith.constant 0 : index
    %c31 = arith.constant 31 : index
    %c0_15 = arith.constant 0 : index
    %17 = vector.load %arg1[%c0_14, %c31, %c0_15] : memref<1x192x32xbf16, #tpu.memory_space<vmem>>, vector<1x128x32xbf16>
    %18 = vector.shape_cast %17 : vector<1x128x32xbf16> to vector<128x32xbf16>
    %c96 = arith.constant 96 : index
    %c0_16 = arith.constant 0 : index
    %19 = vector.load %arg3[%c96, %c0_16] : memref<288x32xbf16, #tpu.memory_space<vmem>>, vector<32x32xbf16>
    %cst_17 = arith.constant dense<0.000000e+00> : vector<128x32xf32>
    %20 = tpu.matmul %18, %19, %cst_17 {dimension_numbers = #tpu.dot_dimension_numbers<[1], [0], [0], [1], [0, 0, 1, 1], [], []>} : vector<128x32xbf16>, vector<32x32xbf16>, vector<128x32xf32> -> vector<128x32xf32>
    %21 = arith.addf %16, %20 : vector<128x32xf32>
    %c0_18 = arith.constant 0 : index
    %c32_19 = arith.constant 32 : index
    %c0_20 = arith.constant 0 : index
    %22 = vector.load %arg1[%c0_18, %c32_19, %c0_20] : memref<1x192x32xbf16, #tpu.memory_space<vmem>>, vector<1x128x32xbf16>
    %23 = vector.shape_cast %22 : vector<1x128x32xbf16> to vector<128x32xbf16>
    %c128 = arith.constant 128 : index
    %c0_21 = arith.constant 0 : index
    %24 = vector.load %arg3[%c128, %c0_21] : memref<288x32xbf16, #tpu.memory_space<vmem>>, vector<32x32xbf16>
    %cst_22 = arith.constant dense<0.000000e+00> : vector<128x32xf32>
    %25 = tpu.matmul %23, %24, %cst_22 {dimension_numbers = #tpu.dot_dimension_numbers<[1], [0], [0], [1], [0, 0, 1, 1], [], []>} : vector<128x32xbf16>, vector<32x32xbf16>, vector<128x32xf32> -> vector<128x32xf32>
    %26 = arith.addf %21, %25 : vector<128x32xf32>
    %c0_23 = arith.constant 0 : index
    %c33 = arith.constant 33 : index
    %c0_24 = arith.constant 0 : index
    %27 = vector.load %arg1[%c0_23, %c33, %c0_24] : memref<1x192x32xbf16, #tpu.memory_space<vmem>>, vector<1x128x32xbf16>
    %28 = vector.shape_cast %27 : vector<1x128x32xbf16> to vector<128x32xbf16>
    %c160 = arith.constant 160 : index
    %c0_25 = arith.constant 0 : index
    %29 = vector.load %arg3[%c160, %c0_25] : memref<288x32xbf16, #tpu.memory_space<vmem>>, vector<32x32xbf16>
    %cst_26 = arith.constant dense<0.000000e+00> : vector<128x32xf32>
    %30 = tpu.matmul %28, %29, %cst_26 {dimension_numbers = #tpu.dot_dimension_numbers<[1], [0], [0], [1], [0, 0, 1, 1], [], []>} : vector<128x32xbf16>, vector<32x32xbf16>, vector<128x32xf32> -> vector<128x32xf32>
    %31 = arith.addf %26, %30 : vector<128x32xf32>
    %c0_27 = arith.constant 0 : index
    %c47 = arith.constant 47 : index
    %c0_28 = arith.constant 0 : index
    %32 = vector.load %arg1[%c0_27, %c47, %c0_28] : memref<1x192x32xbf16, #tpu.memory_space<vmem>>, vector<1x128x32xbf16>
    %33 = vector.shape_cast %32 : vector<1x128x32xbf16> to vector<128x32xbf16>
    %c192 = arith.constant 192 : index
    %c0_29 = arith.constant 0 : index
    %34 = vector.load %arg3[%c192, %c0_29] : memref<288x32xbf16, #tpu.memory_space<vmem>>, vector<32x32xbf16>
    %cst_30 = arith.constant dense<0.000000e+00> : vector<128x32xf32>
    %35 = tpu.matmul %33, %34, %cst_30 {dimension_numbers = #tpu.dot_dimension_numbers<[1], [0], [0], [1], [0, 0, 1, 1], [], []>} : vector<128x32xbf16>, vector<32x32xbf16>, vector<128x32xf32> -> vector<128x32xf32>
    %36 = arith.addf %31, %35 : vector<128x32xf32>
    %c0_31 = arith.constant 0 : index
    %c48 = arith.constant 48 : index
    %c0_32 = arith.constant 0 : index
    %37 = vector.load %arg1[%c0_31, %c48, %c0_32] : memref<1x192x32xbf16, #tpu.memory_space<vmem>>, vector<1x128x32xbf16>
    %38 = vector.shape_cast %37 : vector<1x128x32xbf16> to vector<128x32xbf16>
    %c224 = arith.constant 224 : index
    %c0_33 = arith.constant 0 : index
    %39 = vector.load %arg3[%c224, %c0_33] : memref<288x32xbf16, #tpu.memory_space<vmem>>, vector<32x32xbf16>
    %cst_34 = arith.constant dense<0.000000e+00> : vector<128x32xf32>
    %40 = tpu.matmul %38, %39, %cst_34 {dimension_numbers = #tpu.dot_dimension_numbers<[1], [0], [0], [1], [0, 0, 1, 1], [], []>} : vector<128x32xbf16>, vector<32x32xbf16>, vector<128x32xf32> -> vector<128x32xf32>
    %41 = arith.addf %36, %40 : vector<128x32xf32>
    %c0_35 = arith.constant 0 : index
    %c49 = arith.constant 49 : index
    %c0_36 = arith.constant 0 : index
    %42 = vector.load %arg1[%c0_35, %c49, %c0_36] : memref<1x192x32xbf16, #tpu.memory_space<vmem>>, vector<1x128x32xbf16>
    %43 = vector.shape_cast %42 : vector<1x128x32xbf16> to vector<128x32xbf16>
    %c256 = arith.constant 256 : index
    %c0_37 = arith.constant 0 : index
    %44 = vector.load %arg3[%c256, %c0_37] : memref<288x32xbf16, #tpu.memory_space<vmem>>, vector<32x32xbf16>
    %cst_38 = arith.constant dense<0.000000e+00> : vector<128x32xf32>
    %45 = tpu.matmul %43, %44, %cst_38 {dimension_numbers = #tpu.dot_dimension_numbers<[1], [0], [0], [1], [0, 0, 1, 1], [], []>} : vector<128x32xbf16>, vector<32x32xbf16>, vector<128x32xf32> -> vector<128x32xf32>
    %46 = arith.addf %41, %45 : vector<128x32xf32>
    %c0_39 = arith.constant 0 : index
    %c0_40 = arith.constant 0 : index
    %47 = vector.load %arg4[%c0_39, %c0_40] : memref<1x32xf32, #tpu.memory_space<vmem>>, vector<1x32xf32>
    %48 = vector.broadcast %47 : vector<1x32xf32> to vector<128x32xf32>
    %49 = arith.addf %46, %48 : vector<128x32xf32>
    %cst_41 = arith.constant 0.000000e+00 : f32
    %50 = vector.broadcast %cst_41 : f32 to vector<128x32xf32>
    %51 = arith.maximumf %49, %50 : vector<128x32xf32>
    %52 = vector.broadcast %0 : vector<128x1xf32> to vector<128x32xf32>
    %53 = arith.mulf %51, %52 : vector<128x32xf32>
    %cst_42 = arith.constant 0.000000e+00 : bf16
    %54 = vector.broadcast %cst_42 : bf16 to vector<192x32xbf16>
    %c0_43 = arith.constant 0 : index
    %c0_44 = arith.constant 0 : index
    %55 = vector.load %arg10[%c0_43, %c0_44] : memref<192x32xbf16, #tpu.memory_space<vmem>>, vector<192x32xbf16>
    tpu.vector_store %arg10[%c0_43, %c0_44], %54 {strides = array<i32>} : memref<192x32xbf16, #tpu.memory_space<vmem>>, vector<192x32xbf16>,
    %56 = arith.truncf %53 : vector<128x32xf32> to vector<128x32xbf16>
    %c32_45 = arith.constant 32 : index
    %c0_46 = arith.constant 0 : index
    %57 = vector.load %arg10[%c32_45, %c0_46] : memref<192x32xbf16, #tpu.memory_space<vmem>>, vector<128x32xbf16>
    tpu.vector_store %arg10[%c32_45, %c0_46], %56 {strides = array<i32>} : memref<192x32xbf16, #tpu.memory_space<vmem>>, vector<128x32xbf16>,
    %cst_47 = arith.constant 0.000000e+00 : f32
    %58 = vector.broadcast %cst_47 : f32 to vector<128x32xf32>
    %c15_48 = arith.constant 15 : index
    %c0_49 = arith.constant 0 : index
    %59 = vector.load %arg10[%c15_48, %c0_49] : memref<192x32xbf16, #tpu.memory_space<vmem>>, vector<128x32xbf16>
    %c0_50 = arith.constant 0 : index
    %c0_51 = arith.constant 0 : index
    %60 = vector.load %arg5[%c0_50, %c0_51] : memref<288x32xbf16, #tpu.memory_space<vmem>>, vector<32x32xbf16>
    %cst_52 = arith.constant dense<0.000000e+00> : vector<128x32xf32>
    %61 = tpu.matmul %59, %60, %cst_52 {dimension_numbers = #tpu.dot_dimension_numbers<[1], [0], [0], [1], [0, 0, 1, 1], [], []>} : vector<128x32xbf16>, vector<32x32xbf16>, vector<128x32xf32> -> vector<128x32xf32>
    %62 = arith.addf %58, %61 : vector<128x32xf32>
    %c16_53 = arith.constant 16 : index
    %c0_54 = arith.constant 0 : index
    %63 = vector.load %arg10[%c16_53, %c0_54] : memref<192x32xbf16, #tpu.memory_space<vmem>>, vector<128x32xbf16>
    %c32_55 = arith.constant 32 : index
    %c0_56 = arith.constant 0 : index
    %64 = vector.load %arg5[%c32_55, %c0_56] : memref<288x32xbf16, #tpu.memory_space<vmem>>, vector<32x32xbf16>
    %cst_57 = arith.constant dense<0.000000e+00> : vector<128x32xf32>
    %65 = tpu.matmul %63, %64, %cst_57 {dimension_numbers = #tpu.dot_dimension_numbers<[1], [0], [0], [1], [0, 0, 1, 1], [], []>} : vector<128x32xbf16>, vector<32x32xbf16>, vector<128x32xf32> -> vector<128x32xf32>
    %66 = arith.addf %62, %65 : vector<128x32xf32>
    %c17_58 = arith.constant 17 : index
    %c0_59 = arith.constant 0 : index
    %67 = vector.load %arg10[%c17_58, %c0_59] : memref<192x32xbf16, #tpu.memory_space<vmem>>, vector<128x32xbf16>
    %c64_60 = arith.constant 64 : index
    %c0_61 = arith.constant 0 : index
    %68 = vector.load %arg5[%c64_60, %c0_61] : memref<288x32xbf16, #tpu.memory_space<vmem>>, vector<32x32xbf16>
    %cst_62 = arith.constant dense<0.000000e+00> : vector<128x32xf32>
    %69 = tpu.matmul %67, %68, %cst_62 {dimension_numbers = #tpu.dot_dimension_numbers<[1], [0], [0], [1], [0, 0, 1, 1], [], []>} : vector<128x32xbf16>, vector<32x32xbf16>, vector<128x32xf32> -> vector<128x32xf32>
    %70 = arith.addf %66, %69 : vector<128x32xf32>
    %c31_63 = arith.constant 31 : index
    %c0_64 = arith.constant 0 : index
    %71 = vector.load %arg10[%c31_63, %c0_64] : memref<192x32xbf16, #tpu.memory_space<vmem>>, vector<128x32xbf16>
    %c96_65 = arith.constant 96 : index
    %c0_66 = arith.constant 0 : index
    %72 = vector.load %arg5[%c96_65, %c0_66] : memref<288x32xbf16, #tpu.memory_space<vmem>>, vector<32x32xbf16>
    %cst_67 = arith.constant dense<0.000000e+00> : vector<128x32xf32>
    %73 = tpu.matmul %71, %72, %cst_67 {dimension_numbers = #tpu.dot_dimension_numbers<[1], [0], [0], [1], [0, 0, 1, 1], [], []>} : vector<128x32xbf16>, vector<32x32xbf16>, vector<128x32xf32> -> vector<128x32xf32>
    %74 = arith.addf %70, %73 : vector<128x32xf32>
    %c32_68 = arith.constant 32 : index
    %c0_69 = arith.constant 0 : index
    %75 = vector.load %arg10[%c32_68, %c0_69] : memref<192x32xbf16, #tpu.memory_space<vmem>>, vector<128x32xbf16>
    %c128_70 = arith.constant 128 : index
    %c0_71 = arith.constant 0 : index
    %76 = vector.load %arg5[%c128_70, %c0_71] : memref<288x32xbf16, #tpu.memory_space<vmem>>, vector<32x32xbf16>
    %cst_72 = arith.constant dense<0.000000e+00> : vector<128x32xf32>
    %77 = tpu.matmul %75, %76, %cst_72 {dimension_numbers = #tpu.dot_dimension_numbers<[1], [0], [0], [1], [0, 0, 1, 1], [], []>} : vector<128x32xbf16>, vector<32x32xbf16>, vector<128x32xf32> -> vector<128x32xf32>
    %78 = arith.addf %74, %77 : vector<128x32xf32>
    %c33_73 = arith.constant 33 : index
    %c0_74 = arith.constant 0 : index
    %79 = vector.load %arg10[%c33_73, %c0_74] : memref<192x32xbf16, #tpu.memory_space<vmem>>, vector<128x32xbf16>
    %c160_75 = arith.constant 160 : index
    %c0_76 = arith.constant 0 : index
    %80 = vector.load %arg5[%c160_75, %c0_76] : memref<288x32xbf16, #tpu.memory_space<vmem>>, vector<32x32xbf16>
    %cst_77 = arith.constant dense<0.000000e+00> : vector<128x32xf32>
    %81 = tpu.matmul %79, %80, %cst_77 {dimension_numbers = #tpu.dot_dimension_numbers<[1], [0], [0], [1], [0, 0, 1, 1], [], []>} : vector<128x32xbf16>, vector<32x32xbf16>, vector<128x32xf32> -> vector<128x32xf32>
    %82 = arith.addf %78, %81 : vector<128x32xf32>
    %c47_78 = arith.constant 47 : index
    %c0_79 = arith.constant 0 : index
    %83 = vector.load %arg10[%c47_78, %c0_79] : memref<192x32xbf16, #tpu.memory_space<vmem>>, vector<128x32xbf16>
    %c192_80 = arith.constant 192 : index
    %c0_81 = arith.constant 0 : index
    %84 = vector.load %arg5[%c192_80, %c0_81] : memref<288x32xbf16, #tpu.memory_space<vmem>>, vector<32x32xbf16>
    %cst_82 = arith.constant dense<0.000000e+00> : vector<128x32xf32>
    %85 = tpu.matmul %83, %84, %cst_82 {dimension_numbers = #tpu.dot_dimension_numbers<[1], [0], [0], [1], [0, 0, 1, 1], [], []>} : vector<128x32xbf16>, vector<32x32xbf16>, vector<128x32xf32> -> vector<128x32xf32>
    %86 = arith.addf %82, %85 : vector<128x32xf32>
    %c48_83 = arith.constant 48 : index
    %c0_84 = arith.constant 0 : index
    %87 = vector.load %arg10[%c48_83, %c0_84] : memref<192x32xbf16, #tpu.memory_space<vmem>>, vector<128x32xbf16>
    %c224_85 = arith.constant 224 : index
    %c0_86 = arith.constant 0 : index
    %88 = vector.load %arg5[%c224_85, %c0_86] : memref<288x32xbf16, #tpu.memory_space<vmem>>, vector<32x32xbf16>
    %cst_87 = arith.constant dense<0.000000e+00> : vector<128x32xf32>
    %89 = tpu.matmul %87, %88, %cst_87 {dimension_numbers = #tpu.dot_dimension_numbers<[1], [0], [0], [1], [0, 0, 1, 1], [], []>} : vector<128x32xbf16>, vector<32x32xbf16>, vector<128x32xf32> -> vector<128x32xf32>
    %90 = arith.addf %86, %89 : vector<128x32xf32>
    %c49_88 = arith.constant 49 : index
    %c0_89 = arith.constant 0 : index
    %91 = vector.load %arg10[%c49_88, %c0_89] : memref<192x32xbf16, #tpu.memory_space<vmem>>, vector<128x32xbf16>
    %c256_90 = arith.constant 256 : index
    %c0_91 = arith.constant 0 : index
    %92 = vector.load %arg5[%c256_90, %c0_91] : memref<288x32xbf16, #tpu.memory_space<vmem>>, vector<32x32xbf16>
    %cst_92 = arith.constant dense<0.000000e+00> : vector<128x32xf32>
    %93 = tpu.matmul %91, %92, %cst_92 {dimension_numbers = #tpu.dot_dimension_numbers<[1], [0], [0], [1], [0, 0, 1, 1], [], []>} : vector<128x32xbf16>, vector<32x32xbf16>, vector<128x32xf32> -> vector<128x32xf32>
    %94 = arith.addf %90, %93 : vector<128x32xf32>
    %c0_93 = arith.constant 0 : index
    %c0_94 = arith.constant 0 : index
    %95 = vector.load %arg6[%c0_93, %c0_94] : memref<1x32xf32, #tpu.memory_space<vmem>>, vector<1x32xf32>
    %96 = vector.broadcast %95 : vector<1x32xf32> to vector<128x32xf32>
    %97 = arith.addf %94, %96 : vector<128x32xf32>
    %cst_95 = arith.constant 0.000000e+00 : f32
    %98 = vector.broadcast %cst_95 : f32 to vector<128x32xf32>
    %99 = arith.maximumf %97, %98 : vector<128x32xf32>
    %100 = vector.broadcast %0 : vector<128x1xf32> to vector<128x32xf32>
    %101 = arith.mulf %99, %100 : vector<128x32xf32>
    %cst_96 = arith.constant 0.000000e+00 : bf16
    %102 = vector.broadcast %cst_96 : bf16 to vector<192x32xbf16>
    %c0_97 = arith.constant 0 : index
    %c0_98 = arith.constant 0 : index
    %103 = vector.load %arg11[%c0_97, %c0_98] : memref<192x32xbf16, #tpu.memory_space<vmem>>, vector<192x32xbf16>
    tpu.vector_store %arg11[%c0_97, %c0_98], %102 {strides = array<i32>} : memref<192x32xbf16, #tpu.memory_space<vmem>>, vector<192x32xbf16>,
    %104 = arith.truncf %101 : vector<128x32xf32> to vector<128x32xbf16>
    %c32_99 = arith.constant 32 : index
    %c0_100 = arith.constant 0 : index
    %105 = vector.load %arg11[%c32_99, %c0_100] : memref<192x32xbf16, #tpu.memory_space<vmem>>, vector<128x32xbf16>
    tpu.vector_store %arg11[%c32_99, %c0_100], %104 {strides = array<i32>} : memref<192x32xbf16, #tpu.memory_space<vmem>>, vector<128x32xbf16>,
    %cst_101 = arith.constant 0.000000e+00 : f32
    %106 = vector.broadcast %cst_101 : f32 to vector<128x32xf32>
    %c15_102 = arith.constant 15 : index
    %c0_103 = arith.constant 0 : index
    %107 = vector.load %arg11[%c15_102, %c0_103] : memref<192x32xbf16, #tpu.memory_space<vmem>>, vector<128x32xbf16>
    %c0_104 = arith.constant 0 : index
    %c0_105 = arith.constant 0 : index
    %108 = vector.load %arg7[%c0_104, %c0_105] : memref<288x32xbf16, #tpu.memory_space<vmem>>, vector<32x32xbf16>
    %cst_106 = arith.constant dense<0.000000e+00> : vector<128x32xf32>
    %109 = tpu.matmul %107, %108, %cst_106 {dimension_numbers = #tpu.dot_dimension_numbers<[1], [0], [0], [1], [0, 0, 1, 1], [], []>} : vector<128x32xbf16>, vector<32x32xbf16>, vector<128x32xf32> -> vector<128x32xf32>
    %110 = arith.addf %106, %109 : vector<128x32xf32>
    %c16_107 = arith.constant 16 : index
    %c0_108 = arith.constant 0 : index
    %111 = vector.load %arg11[%c16_107, %c0_108] : memref<192x32xbf16, #tpu.memory_space<vmem>>, vector<128x32xbf16>
    %c32_109 = arith.constant 32 : index
    %c0_110 = arith.constant 0 : index
    %112 = vector.load %arg7[%c32_109, %c0_110] : memref<288x32xbf16, #tpu.memory_space<vmem>>, vector<32x32xbf16>
    %cst_111 = arith.constant dense<0.000000e+00> : vector<128x32xf32>
    %113 = tpu.matmul %111, %112, %cst_111 {dimension_numbers = #tpu.dot_dimension_numbers<[1], [0], [0], [1], [0, 0, 1, 1], [], []>} : vector<128x32xbf16>, vector<32x32xbf16>, vector<128x32xf32> -> vector<128x32xf32>
    %114 = arith.addf %110, %113 : vector<128x32xf32>
    %c17_112 = arith.constant 17 : index
    %c0_113 = arith.constant 0 : index
    %115 = vector.load %arg11[%c17_112, %c0_113] : memref<192x32xbf16, #tpu.memory_space<vmem>>, vector<128x32xbf16>
    %c64_114 = arith.constant 64 : index
    %c0_115 = arith.constant 0 : index
    %116 = vector.load %arg7[%c64_114, %c0_115] : memref<288x32xbf16, #tpu.memory_space<vmem>>, vector<32x32xbf16>
    %cst_116 = arith.constant dense<0.000000e+00> : vector<128x32xf32>
    %117 = tpu.matmul %115, %116, %cst_116 {dimension_numbers = #tpu.dot_dimension_numbers<[1], [0], [0], [1], [0, 0, 1, 1], [], []>} : vector<128x32xbf16>, vector<32x32xbf16>, vector<128x32xf32> -> vector<128x32xf32>
    %118 = arith.addf %114, %117 : vector<128x32xf32>
    %c31_117 = arith.constant 31 : index
    %c0_118 = arith.constant 0 : index
    %119 = vector.load %arg11[%c31_117, %c0_118] : memref<192x32xbf16, #tpu.memory_space<vmem>>, vector<128x32xbf16>
    %c96_119 = arith.constant 96 : index
    %c0_120 = arith.constant 0 : index
    %120 = vector.load %arg7[%c96_119, %c0_120] : memref<288x32xbf16, #tpu.memory_space<vmem>>, vector<32x32xbf16>
    %cst_121 = arith.constant dense<0.000000e+00> : vector<128x32xf32>
    %121 = tpu.matmul %119, %120, %cst_121 {dimension_numbers = #tpu.dot_dimension_numbers<[1], [0], [0], [1], [0, 0, 1, 1], [], []>} : vector<128x32xbf16>, vector<32x32xbf16>, vector<128x32xf32> -> vector<128x32xf32>
    %122 = arith.addf %118, %121 : vector<128x32xf32>
    %c32_122 = arith.constant 32 : index
    %c0_123 = arith.constant 0 : index
    %123 = vector.load %arg11[%c32_122, %c0_123] : memref<192x32xbf16, #tpu.memory_space<vmem>>, vector<128x32xbf16>
    %c128_124 = arith.constant 128 : index
    %c0_125 = arith.constant 0 : index
    %124 = vector.load %arg7[%c128_124, %c0_125] : memref<288x32xbf16, #tpu.memory_space<vmem>>, vector<32x32xbf16>
    %cst_126 = arith.constant dense<0.000000e+00> : vector<128x32xf32>
    %125 = tpu.matmul %123, %124, %cst_126 {dimension_numbers = #tpu.dot_dimension_numbers<[1], [0], [0], [1], [0, 0, 1, 1], [], []>} : vector<128x32xbf16>, vector<32x32xbf16>, vector<128x32xf32> -> vector<128x32xf32>
    %126 = arith.addf %122, %125 : vector<128x32xf32>
    %c33_127 = arith.constant 33 : index
    %c0_128 = arith.constant 0 : index
    %127 = vector.load %arg11[%c33_127, %c0_128] : memref<192x32xbf16, #tpu.memory_space<vmem>>, vector<128x32xbf16>
    %c160_129 = arith.constant 160 : index
    %c0_130 = arith.constant 0 : index
    %128 = vector.load %arg7[%c160_129, %c0_130] : memref<288x32xbf16, #tpu.memory_space<vmem>>, vector<32x32xbf16>
    %cst_131 = arith.constant dense<0.000000e+00> : vector<128x32xf32>
    %129 = tpu.matmul %127, %128, %cst_131 {dimension_numbers = #tpu.dot_dimension_numbers<[1], [0], [0], [1], [0, 0, 1, 1], [], []>} : vector<128x32xbf16>, vector<32x32xbf16>, vector<128x32xf32> -> vector<128x32xf32>
    %130 = arith.addf %126, %129 : vector<128x32xf32>
    %c47_132 = arith.constant 47 : index
    %c0_133 = arith.constant 0 : index
    %131 = vector.load %arg11[%c47_132, %c0_133] : memref<192x32xbf16, #tpu.memory_space<vmem>>, vector<128x32xbf16>
    %c192_134 = arith.constant 192 : index
    %c0_135 = arith.constant 0 : index
    %132 = vector.load %arg7[%c192_134, %c0_135] : memref<288x32xbf16, #tpu.memory_space<vmem>>, vector<32x32xbf16>
    %cst_136 = arith.constant dense<0.000000e+00> : vector<128x32xf32>
    %133 = tpu.matmul %131, %132, %cst_136 {dimension_numbers = #tpu.dot_dimension_numbers<[1], [0], [0], [1], [0, 0, 1, 1], [], []>} : vector<128x32xbf16>, vector<32x32xbf16>, vector<128x32xf32> -> vector<128x32xf32>
    %134 = arith.addf %130, %133 : vector<128x32xf32>
    %c48_137 = arith.constant 48 : index
    %c0_138 = arith.constant 0 : index
    %135 = vector.load %arg11[%c48_137, %c0_138] : memref<192x32xbf16, #tpu.memory_space<vmem>>, vector<128x32xbf16>
    %c224_139 = arith.constant 224 : index
    %c0_140 = arith.constant 0 : index
    %136 = vector.load %arg7[%c224_139, %c0_140] : memref<288x32xbf16, #tpu.memory_space<vmem>>, vector<32x32xbf16>
    %cst_141 = arith.constant dense<0.000000e+00> : vector<128x32xf32>
    %137 = tpu.matmul %135, %136, %cst_141 {dimension_numbers = #tpu.dot_dimension_numbers<[1], [0], [0], [1], [0, 0, 1, 1], [], []>} : vector<128x32xbf16>, vector<32x32xbf16>, vector<128x32xf32> -> vector<128x32xf32>
    %138 = arith.addf %134, %137 : vector<128x32xf32>
    %c49_142 = arith.constant 49 : index
    %c0_143 = arith.constant 0 : index
    %139 = vector.load %arg11[%c49_142, %c0_143] : memref<192x32xbf16, #tpu.memory_space<vmem>>, vector<128x32xbf16>
    %c256_144 = arith.constant 256 : index
    %c0_145 = arith.constant 0 : index
    %140 = vector.load %arg7[%c256_144, %c0_145] : memref<288x32xbf16, #tpu.memory_space<vmem>>, vector<32x32xbf16>
    %cst_146 = arith.constant dense<0.000000e+00> : vector<128x32xf32>
    %141 = tpu.matmul %139, %140, %cst_146 {dimension_numbers = #tpu.dot_dimension_numbers<[1], [0], [0], [1], [0, 0, 1, 1], [], []>} : vector<128x32xbf16>, vector<32x32xbf16>, vector<128x32xf32> -> vector<128x32xf32>
    %142 = arith.addf %138, %141 : vector<128x32xf32>
    %c0_147 = arith.constant 0 : index
    %c0_148 = arith.constant 0 : index
    %143 = vector.load %arg8[%c0_147, %c0_148] : memref<1x32xf32, #tpu.memory_space<vmem>>, vector<1x32xf32>
    %144 = vector.broadcast %143 : vector<1x32xf32> to vector<128x32xf32>
    %145 = arith.addf %142, %144 : vector<128x32xf32>
    %cst_149 = arith.constant 0.000000e+00 : f32
    %146 = vector.broadcast %cst_149 : f32 to vector<128x32xf32>
    %147 = arith.maximumf %145, %146 : vector<128x32xf32>
    %148 = arith.truncf %147 : vector<128x32xf32> to vector<128x32xbf16>
    %c0_150 = arith.constant 0 : index
    %c0_151 = arith.constant 0 : index
    %c0_152 = arith.constant 0 : index
    %149 = vector.load %arg9[%c0_150, %c0_151, %c0_152] : memref<1x128x32xbf16, #tpu.memory_space<vmem>>, vector<1x128x32xbf16>
    %150 = vector.shape_cast %149 : vector<1x128x32xbf16> to vector<128x32xbf16>
    %151 = vector.shape_cast %148 : vector<128x32xbf16> to vector<1x128x32xbf16>
    tpu.vector_store %arg9[%c0_150, %c0_151, %c0_152], %151 {strides = array<i32>} : memref<1x128x32xbf16, #tpu.memory_space<vmem>>, vector<1x128x32xbf16>,
    return
  }
  func.func @transform_0(%arg0: i32) -> (i32, i32, i32) {
    %c0_i32 = arith.constant 0 : i32
    %c0_i32_0 = arith.constant 0 : i32
    %c0_i32_1 = arith.constant 0 : i32
    return %arg0, %c0_i32, %c0_i32_0 : i32, i32, i32
  }
  func.func @transform_1(%arg0: i32) -> (i32, i32) {
    %c0_i32 = arith.constant 0 : i32
    %c0_i32_0 = arith.constant 0 : i32
    %c0_i32_1 = arith.constant 0 : i32
    return %c0_i32, %c0_i32_0 : i32, i32
  }
  func.func @transform_2(%arg0: i32) -> (i32, i32) {
    %c0_i32 = arith.constant 0 : i32
    %c0_i32_0 = arith.constant 0 : i32
    %c0_i32_1 = arith.constant 0 : i32
    return %c0_i32, %c0_i32_0 : i32, i32
  }
  func.func @transform_3(%arg0: i32) -> (i32, i32) {
    %c0_i32 = arith.constant 0 : i32
    %c0_i32_0 = arith.constant 0 : i32
    %c0_i32_1 = arith.constant 0 : i32
    return %c0_i32, %c0_i32_0 : i32, i32
  }
  func.func @transform_4(%arg0: i32) -> (i32, i32) {
    %c0_i32 = arith.constant 0 : i32
    %c0_i32_0 = arith.constant 0 : i32
    %c0_i32_1 = arith.constant 0 : i32
    return %c0_i32, %c0_i32_0 : i32, i32
  }
  func.func @transform_5(%arg0: i32) -> (i32, i32) {
    %c0_i32 = arith.constant 0 : i32
    %c0_i32_0 = arith.constant 0 : i32
    %c0_i32_1 = arith.constant 0 : i32
    return %c0_i32, %c0_i32_0 : i32, i32
  }
  func.func @transform_6(%arg0: i32) -> (i32, i32) {
    %c0_i32 = arith.constant 0 : i32
    %c0_i32_0 = arith.constant 0 : i32
    %c0_i32_1 = arith.constant 0 : i32
    return %c0_i32, %c0_i32_0 : i32, i32
  }
  func.func @transform_7(%arg0: i32) -> (i32, i32) {
    %c0_i32 = arith.constant 0 : i32
    %c0_i32_0 = arith.constant 0 : i32
    %c0_i32_1 = arith.constant 0 : i32
    return %c0_i32, %c0_i32_0 : i32, i32
  }
  func.func @transform_8(%arg0: i32) -> (i32, i32, i32) {
    %c0_i32 = arith.constant 0 : i32
    %c0_i32_0 = arith.constant 0 : i32
    %c0_i32_1 = arith.constant 0 : i32
    return %arg0, %c0_i32, %c0_i32_0 : i32, i32, i32
  }
}

module attributes {stable_mosaic.version = 11 : i64} {
  func.func @_conv5_last_kernel(%arg0: i32, %arg1: memref<1x64x32xbf16, #tpu.memory_space<vmem>>, %arg2: memref<288x64xbf16, #tpu.memory_space<vmem>>, %arg3: memref<1x64xf32, #tpu.memory_space<vmem>>, %arg4: memref<64x32xf32, #tpu.memory_space<vmem>>, %arg5: memref<1x32x32xf32, #tpu.memory_space<vmem>>) attributes {dimension_semantics = [#tpu.dimension_semantics<parallel>], iteration_bounds = array<i64: 2>, scalar_prefetch = 0 : i64, scratch_operands = 0 : i64, tpu.core_type = #tpu.core_type<tc>, window_params = [{transform_indices = @transform_0, window_bounds = array<i64: 1, 64, 32>}, {pipeline_mode = #tpu.pipeline_mode<synchronous>, transform_indices = @transform_1, window_bounds = array<i64: 288, 64>}, {pipeline_mode = #tpu.pipeline_mode<synchronous>, transform_indices = @transform_2, window_bounds = array<i64: 1, 64>}, {pipeline_mode = #tpu.pipeline_mode<synchronous>, transform_indices = @transform_3, window_bounds = array<i64: 64, 32>}, {transform_indices = @transform_4, window_bounds = array<i64: 1, 32, 32>}]} {
    %cst = arith.constant 0.000000e+00 : f32
    %0 = vector.broadcast %cst : f32 to vector<32x64xf32>
    %c0 = arith.constant 0 : index
    %c7 = arith.constant 7 : index
    %c0_0 = arith.constant 0 : index
    %1 = vector.load %arg1[%c0, %c7, %c0_0] : memref<1x64x32xbf16, #tpu.memory_space<vmem>>, vector<1x32x32xbf16>
    %2 = vector.shape_cast %1 : vector<1x32x32xbf16> to vector<32x32xbf16>
    %c0_1 = arith.constant 0 : index
    %c0_2 = arith.constant 0 : index
    %3 = vector.load %arg2[%c0_1, %c0_2] : memref<288x64xbf16, #tpu.memory_space<vmem>>, vector<32x64xbf16>
    %cst_3 = arith.constant dense<0.000000e+00> : vector<32x64xf32>
    %4 = tpu.matmul %2, %3, %cst_3 {dimension_numbers = #tpu.dot_dimension_numbers<[1], [0], [0], [1], [0, 0, 1, 1], [], []>} : vector<32x32xbf16>, vector<32x64xbf16>, vector<32x64xf32> -> vector<32x64xf32>
    %5 = arith.addf %0, %4 : vector<32x64xf32>
    %c0_4 = arith.constant 0 : index
    %c8 = arith.constant 8 : index
    %c0_5 = arith.constant 0 : index
    %6 = vector.load %arg1[%c0_4, %c8, %c0_5] : memref<1x64x32xbf16, #tpu.memory_space<vmem>>, vector<1x32x32xbf16>
    %7 = vector.shape_cast %6 : vector<1x32x32xbf16> to vector<32x32xbf16>
    %c32 = arith.constant 32 : index
    %c0_6 = arith.constant 0 : index
    %8 = vector.load %arg2[%c32, %c0_6] : memref<288x64xbf16, #tpu.memory_space<vmem>>, vector<32x64xbf16>
    %cst_7 = arith.constant dense<0.000000e+00> : vector<32x64xf32>
    %9 = tpu.matmul %7, %8, %cst_7 {dimension_numbers = #tpu.dot_dimension_numbers<[1], [0], [0], [1], [0, 0, 1, 1], [], []>} : vector<32x32xbf16>, vector<32x64xbf16>, vector<32x64xf32> -> vector<32x64xf32>
    %10 = arith.addf %5, %9 : vector<32x64xf32>
    %c0_8 = arith.constant 0 : index
    %c9 = arith.constant 9 : index
    %c0_9 = arith.constant 0 : index
    %11 = vector.load %arg1[%c0_8, %c9, %c0_9] : memref<1x64x32xbf16, #tpu.memory_space<vmem>>, vector<1x32x32xbf16>
    %12 = vector.shape_cast %11 : vector<1x32x32xbf16> to vector<32x32xbf16>
    %c64 = arith.constant 64 : index
    %c0_10 = arith.constant 0 : index
    %13 = vector.load %arg2[%c64, %c0_10] : memref<288x64xbf16, #tpu.memory_space<vmem>>, vector<32x64xbf16>
    %cst_11 = arith.constant dense<0.000000e+00> : vector<32x64xf32>
    %14 = tpu.matmul %12, %13, %cst_11 {dimension_numbers = #tpu.dot_dimension_numbers<[1], [0], [0], [1], [0, 0, 1, 1], [], []>} : vector<32x32xbf16>, vector<32x64xbf16>, vector<32x64xf32> -> vector<32x64xf32>
    %15 = arith.addf %10, %14 : vector<32x64xf32>
    %c0_12 = arith.constant 0 : index
    %c15 = arith.constant 15 : index
    %c0_13 = arith.constant 0 : index
    %16 = vector.load %arg1[%c0_12, %c15, %c0_13] : memref<1x64x32xbf16, #tpu.memory_space<vmem>>, vector<1x32x32xbf16>
    %17 = vector.shape_cast %16 : vector<1x32x32xbf16> to vector<32x32xbf16>
    %c96 = arith.constant 96 : index
    %c0_14 = arith.constant 0 : index
    %18 = vector.load %arg2[%c96, %c0_14] : memref<288x64xbf16, #tpu.memory_space<vmem>>, vector<32x64xbf16>
    %cst_15 = arith.constant dense<0.000000e+00> : vector<32x64xf32>
    %19 = tpu.matmul %17, %18, %cst_15 {dimension_numbers = #tpu.dot_dimension_numbers<[1], [0], [0], [1], [0, 0, 1, 1], [], []>} : vector<32x32xbf16>, vector<32x64xbf16>, vector<32x64xf32> -> vector<32x64xf32>
    %20 = arith.addf %15, %19 : vector<32x64xf32>
    %c0_16 = arith.constant 0 : index
    %c16 = arith.constant 16 : index
    %c0_17 = arith.constant 0 : index
    %21 = vector.load %arg1[%c0_16, %c16, %c0_17] : memref<1x64x32xbf16, #tpu.memory_space<vmem>>, vector<1x32x32xbf16>
    %22 = vector.shape_cast %21 : vector<1x32x32xbf16> to vector<32x32xbf16>
    %c128 = arith.constant 128 : index
    %c0_18 = arith.constant 0 : index
    %23 = vector.load %arg2[%c128, %c0_18] : memref<288x64xbf16, #tpu.memory_space<vmem>>, vector<32x64xbf16>
    %cst_19 = arith.constant dense<0.000000e+00> : vector<32x64xf32>
    %24 = tpu.matmul %22, %23, %cst_19 {dimension_numbers = #tpu.dot_dimension_numbers<[1], [0], [0], [1], [0, 0, 1, 1], [], []>} : vector<32x32xbf16>, vector<32x64xbf16>, vector<32x64xf32> -> vector<32x64xf32>
    %25 = arith.addf %20, %24 : vector<32x64xf32>
    %c0_20 = arith.constant 0 : index
    %c17 = arith.constant 17 : index
    %c0_21 = arith.constant 0 : index
    %26 = vector.load %arg1[%c0_20, %c17, %c0_21] : memref<1x64x32xbf16, #tpu.memory_space<vmem>>, vector<1x32x32xbf16>
    %27 = vector.shape_cast %26 : vector<1x32x32xbf16> to vector<32x32xbf16>
    %c160 = arith.constant 160 : index
    %c0_22 = arith.constant 0 : index
    %28 = vector.load %arg2[%c160, %c0_22] : memref<288x64xbf16, #tpu.memory_space<vmem>>, vector<32x64xbf16>
    %cst_23 = arith.constant dense<0.000000e+00> : vector<32x64xf32>
    %29 = tpu.matmul %27, %28, %cst_23 {dimension_numbers = #tpu.dot_dimension_numbers<[1], [0], [0], [1], [0, 0, 1, 1], [], []>} : vector<32x32xbf16>, vector<32x64xbf16>, vector<32x64xf32> -> vector<32x64xf32>
    %30 = arith.addf %25, %29 : vector<32x64xf32>
    %c0_24 = arith.constant 0 : index
    %c23 = arith.constant 23 : index
    %c0_25 = arith.constant 0 : index
    %31 = vector.load %arg1[%c0_24, %c23, %c0_25] : memref<1x64x32xbf16, #tpu.memory_space<vmem>>, vector<1x32x32xbf16>
    %32 = vector.shape_cast %31 : vector<1x32x32xbf16> to vector<32x32xbf16>
    %c192 = arith.constant 192 : index
    %c0_26 = arith.constant 0 : index
    %33 = vector.load %arg2[%c192, %c0_26] : memref<288x64xbf16, #tpu.memory_space<vmem>>, vector<32x64xbf16>
    %cst_27 = arith.constant dense<0.000000e+00> : vector<32x64xf32>
    %34 = tpu.matmul %32, %33, %cst_27 {dimension_numbers = #tpu.dot_dimension_numbers<[1], [0], [0], [1], [0, 0, 1, 1], [], []>} : vector<32x32xbf16>, vector<32x64xbf16>, vector<32x64xf32> -> vector<32x64xf32>
    %35 = arith.addf %30, %34 : vector<32x64xf32>
    %c0_28 = arith.constant 0 : index
    %c24 = arith.constant 24 : index
    %c0_29 = arith.constant 0 : index
    %36 = vector.load %arg1[%c0_28, %c24, %c0_29] : memref<1x64x32xbf16, #tpu.memory_space<vmem>>, vector<1x32x32xbf16>
    %37 = vector.shape_cast %36 : vector<1x32x32xbf16> to vector<32x32xbf16>
    %c224 = arith.constant 224 : index
    %c0_30 = arith.constant 0 : index
    %38 = vector.load %arg2[%c224, %c0_30] : memref<288x64xbf16, #tpu.memory_space<vmem>>, vector<32x64xbf16>
    %cst_31 = arith.constant dense<0.000000e+00> : vector<32x64xf32>
    %39 = tpu.matmul %37, %38, %cst_31 {dimension_numbers = #tpu.dot_dimension_numbers<[1], [0], [0], [1], [0, 0, 1, 1], [], []>} : vector<32x32xbf16>, vector<32x64xbf16>, vector<32x64xf32> -> vector<32x64xf32>
    %40 = arith.addf %35, %39 : vector<32x64xf32>
    %c0_32 = arith.constant 0 : index
    %c25 = arith.constant 25 : index
    %c0_33 = arith.constant 0 : index
    %41 = vector.load %arg1[%c0_32, %c25, %c0_33] : memref<1x64x32xbf16, #tpu.memory_space<vmem>>, vector<1x32x32xbf16>
    %42 = vector.shape_cast %41 : vector<1x32x32xbf16> to vector<32x32xbf16>
    %c256 = arith.constant 256 : index
    %c0_34 = arith.constant 0 : index
    %43 = vector.load %arg2[%c256, %c0_34] : memref<288x64xbf16, #tpu.memory_space<vmem>>, vector<32x64xbf16>
    %cst_35 = arith.constant dense<0.000000e+00> : vector<32x64xf32>
    %44 = tpu.matmul %42, %43, %cst_35 {dimension_numbers = #tpu.dot_dimension_numbers<[1], [0], [0], [1], [0, 0, 1, 1], [], []>} : vector<32x32xbf16>, vector<32x64xbf16>, vector<32x64xf32> -> vector<32x64xf32>
    %45 = arith.addf %40, %44 : vector<32x64xf32>
    %c0_36 = arith.constant 0 : index
    %c0_37 = arith.constant 0 : index
    %46 = vector.load %arg3[%c0_36, %c0_37] : memref<1x64xf32, #tpu.memory_space<vmem>>, vector<1x64xf32>
    %47 = vector.broadcast %46 : vector<1x64xf32> to vector<32x64xf32>
    %48 = arith.addf %45, %47 : vector<32x64xf32>
    %cst_38 = arith.constant 0.000000e+00 : f32
    %49 = vector.broadcast %cst_38 : f32 to vector<32x64xf32>
    %50 = arith.maximumf %48, %49 : vector<32x64xf32>
    %c0_39 = arith.constant 0 : index
    %c0_40 = arith.constant 0 : index
    %51 = vector.load %arg4[%c0_39, %c0_40] : memref<64x32xf32, #tpu.memory_space<vmem>>, vector<64x32xf32>
    %cst_41 = arith.constant dense<0.000000e+00> : vector<32x32xf32>
    %52 = tpu.matmul %50, %51, %cst_41 {dimension_numbers = #tpu.dot_dimension_numbers<[1], [0], [0], [1], [0, 0, 1, 1], [], []>} : vector<32x64xf32>, vector<64x32xf32>, vector<32x32xf32> -> vector<32x32xf32>
    %c0_42 = arith.constant 0 : index
    %c0_43 = arith.constant 0 : index
    %c0_44 = arith.constant 0 : index
    %53 = vector.load %arg5[%c0_42, %c0_43, %c0_44] : memref<1x32x32xf32, #tpu.memory_space<vmem>>, vector<1x32x32xf32>
    %54 = vector.shape_cast %53 : vector<1x32x32xf32> to vector<32x32xf32>
    %55 = vector.shape_cast %52 : vector<32x32xf32> to vector<1x32x32xf32>
    tpu.vector_store %arg5[%c0_42, %c0_43, %c0_44], %55 {strides = array<i32>} : memref<1x32x32xf32, #tpu.memory_space<vmem>>, vector<1x32x32xf32>,
    return
  }
  func.func @transform_0(%arg0: i32) -> (i32, i32, i32) {
    %c0_i32 = arith.constant 0 : i32
    %c0_i32_0 = arith.constant 0 : i32
    %c0_i32_1 = arith.constant 0 : i32
    return %arg0, %c0_i32, %c0_i32_0 : i32, i32, i32
  }
  func.func @transform_1(%arg0: i32) -> (i32, i32) {
    %c0_i32 = arith.constant 0 : i32
    %c0_i32_0 = arith.constant 0 : i32
    %c0_i32_1 = arith.constant 0 : i32
    return %c0_i32, %c0_i32_0 : i32, i32
  }
  func.func @transform_2(%arg0: i32) -> (i32, i32) {
    %c0_i32 = arith.constant 0 : i32
    %c0_i32_0 = arith.constant 0 : i32
    %c0_i32_1 = arith.constant 0 : i32
    return %c0_i32, %c0_i32_0 : i32, i32
  }
  func.func @transform_3(%arg0: i32) -> (i32, i32) {
    %c0_i32 = arith.constant 0 : i32
    %c0_i32_0 = arith.constant 0 : i32
    %c0_i32_1 = arith.constant 0 : i32
    return %c0_i32, %c0_i32_0 : i32, i32
  }
  func.func @transform_4(%arg0: i32) -> (i32, i32, i32) {
    %c0_i32 = arith.constant 0 : i32
    %c0_i32_0 = arith.constant 0 : i32
    %c0_i32_1 = arith.constant 0 : i32
    return %arg0, %c0_i32, %c0_i32_0 : i32, i32, i32
  }
}

</mosaic_0001>

<llo_original>
// kernel: feature_extractor_forward.3
$region0: #{feature_extractor_forward.3}
  #allocation0 [shape = 'u32[]', space=smem, size = 0x4, offset = 0x4, fixed_abs, tag = 'smem constant byte address 0x4 - core index']
  #allocation1 [shape = 'u32[144,128]{1,0:T(1,128)}', space=vmem, size = 0x12000, scoped, tag = 'internal scratch']
  %s0 = inlined_call_operand.vmem [shape: bf16[2,64,32], index: 0, kind: input, shape index: {}]
  %s1 = inlined_call_operand.vmem [shape: bf16[288,64], index: 1, kind: input, shape index: {}]
  %s2 = inlined_call_operand.vmem [shape: f32[1,64], index: 2, kind: input, shape index: {}]
  %s3 = inlined_call_operand.vmem [shape: f32[64,32], index: 3, kind: input, shape index: {}]
  %s4 = inlined_call_operand.vmem [shape: f32[2,32,32], index: 4, kind: output, shape index: {}]
  %s5 = sld [smem:[#allocation0]]
  $region49: #{feature_extractor_forward.3} parent=0
    _
  %s7 = ssub.s32 1, %s5
  %s8 = scalar_select 0, %s7, %s5
  loop: start=0, step=1, limit=4
  $region2: #{feature_extractor_forward.3} parent=0 // loop_pre_header
    _
  $region3: #{feature_extractor_forward.3} parent=0 // loop_header
    %s10 = sphi 0, %s14
    %p11 = scmp.ge.s32.totalorder %s10, 4
    %s20 = sphi 0, %s22
    %s23 = sphi 0, %s20
    %s24 = sphi 0, %s23
    %s40 = sphi 0, %s24
    %s44 = sphi 0, %s44
    %s46 = sphi 0, %s44
    %s47 = sphi 0, %s46
    %s61 = sphi 0, %s47
    %s65 = sphi 0, %s65
    %s67 = sphi 0, %s65
    %s68 = sphi 0, %s67
    %s82 = sphi 0, %s68
    %s86 = sphi 0, %s86
    %s88 = sphi 0, %s86
    %s89 = sphi 0, %s88
    %s103 = sphi 0, %s89
    %s109 = sphi 0, %s111
    %s112 = sphi 0, %s109
    %s113 = sphi 0, %s112
    %s129 = sphi 0, %s113
  $region4: #{feature_extractor_forward.3} parent=0 // loop_header_branch
    %13 = sbr.rel (%p11) target = $region8
  $region5: #{feature_extractor_forward.3} parent=0 // loop_body
    %s15 = ssub.s32 %s10, 1
    %s16 = ssub.s32 %s10, 2
    %s17 = sadd.s32 %s10, 1
    %s18 = ssub.s32 %s10, %s17
    %p19 = scmp.eq.s32.totalorder %s18, 0
    %s21 = sadd.s32 %s20, 1
    %s22 = scalar_select %p19, %s20, %s21
    %p25 = pneg %p19
    %p26 = scmp.eq.s32.totalorder %s10, 1
    %p27 = por %p25, %p26
    %p28 = scmp.ne.s32.totalorder %s20, %s23
    %p29 = scmp.eq.s32.totalorder %s10, 0
    %p30 = por %p28, %p29
    %p31 = scmp.ne.s32.totalorder %s20, %s23
    %p32 = scmp.eq.s32.totalorder %s15, 1
    %p33 = por %p31, %p32
    %p34 = scmp.ne.s32.totalorder %s23, %s24
    %p35 = scmp.eq.s32.totalorder %s15, 0
    %p36 = por %p34, %p35
    %p37 = scmp.ne.s32.totalorder %s23, %s24
    %p38 = scmp.eq.s32.totalorder %s16, 1
    %p39 = por %p37, %p38
    %p41 = scmp.ne.s32.totalorder %s24, %s40
    %p42 = scmp.eq.s32.totalorder %s16, 0
    %p43 = por %p41, %p42
    %s45 = sadd.s32 %s44, 1
    %p48 = scmp.eq.s32.totalorder %s10, 1
    %p49 = scmp.ne.s32.totalorder %s44, %s46
    %p50 = scmp.eq.s32.totalorder %s10, 0
    %p51 = por %p49, %p50
    %p52 = scmp.ne.s32.totalorder %s44, %s46
    %p53 = scmp.eq.s32.totalorder %s15, 1
    %p54 = por %p52, %p53
    %p55 = scmp.ne.s32.totalorder %s46, %s47
    %p56 = scmp.eq.s32.totalorder %s15, 0
    %p57 = por %p55, %p56
    %p58 = scmp.ne.s32.totalorder %s46, %s47
    %p59 = scmp.eq.s32.totalorder %s16, 1
    %p60 = por %p58, %p59
    %p62 = scmp.ne.s32.totalorder %s47, %s61
    %p63 = scmp.eq.s32.totalorder %s16, 0
    %p64 = por %p62, %p63
    %s66 = sadd.s32 %s65, 1
    %p69 = scmp.eq.s32.totalorder %s10, 1
    %p70 = scmp.ne.s32.totalorder %s65, %s67
    %p71 = scmp.eq.s32.totalorder %s10, 0
    %p72 = por %p70, %p71
    %p73 = scmp.ne.s32.totalorder %s65, %s67
    %p74 = scmp.eq.s32.totalorder %s15, 1
    %p75 = por %p73, %p74
    %p76 = scmp.ne.s32.totalorder %s67, %s68
    %p77 = scmp.eq.s32.totalorder %s15, 0
    %p78 = por %p76, %p77
    %p79 = scmp.ne.s32.totalorder %s67, %s68
    %p80 = scmp.eq.s32.totalorder %s16, 1
    %p81 = por %p79, %p80
    %p83 = scmp.ne.s32.totalorder %s68, %s82
    %p84 = scmp.eq.s32.totalorder %s16, 0
    %p85 = por %p83, %p84
    %s87 = sadd.s32 %s86, 1
    %p90 = scmp.eq.s32.totalorder %s10, 1
    %p91 = scmp.ne.s32.totalorder %s86, %s88
    %p92 = scmp.eq.s32.totalorder %s10, 0
    %p93 = por %p91, %p92
    %p94 = scmp.ne.s32.totalorder %s86, %s88
    %p95 = scmp.eq.s32.totalorder %s15, 1
    %p96 = por %p94, %p95
    %p97 = scmp.ne.s32.totalorder %s88, %s89
    %p98 = scmp.eq.s32.totalorder %s15, 0
    %p99 = por %p97, %p98
    %p100 = scmp.ne.s32.totalorder %s88, %s89
    %p101 = scmp.eq.s32.totalorder %s16, 1
    %p102 = por %p100, %p101
    %p104 = scmp.ne.s32.totalorder %s89, %s103
    %p105 = scmp.eq.s32.totalorder %s16, 0
    %p106 = por %p104, %p105
    %s107 = ssub.s32 %s10, %s17
    %p108 = scmp.eq.s32.totalorder %s107, 0
    %s110 = sadd.s32 %s109, 1
    %s111 = scalar_select %p108, %s109, %s110
    %p114 = pneg %p108
    %p115 = scmp.eq.s32.totalorder %s10, 1
    %p116 = por %p114, %p115
    %p117 = scmp.ne.s32.totalorder %s109, %s112
    %p118 = scmp.eq.s32.totalorder %s10, 0
    %p119 = por %p117, %p118
    %p120 = scmp.ne.s32.totalorder %s109, %s112
    %p121 = scmp.eq.s32.totalorder %s15, 1
    %p122 = por %p120, %p121
    %p123 = scmp.ne.s32.totalorder %s112, %s113
    %p124 = scmp.eq.s32.totalorder %s15, 0
    %p125 = por %p123, %p124
    %p126 = scmp.ne.s32.totalorder %s112, %s113
    %p127 = scmp.eq.s32.totalorder %s16, 1
    %p128 = por %p126, %p127
    %p130 = scmp.ne.s32.totalorder %s113, %s129
    %p131 = scmp.eq.s32.totalorder %s16, 0
    %p132 = por %p130, %p131
    %p133 = scmp.le.s32.totalorder 1, %s10
    %p134 = scmp.lt.s32.totalorder %s10, 3
    %p135 = pnand %p133, %p134
    %p136 = pneg %p135
    // Predicated region
    $region9: #{feature_extractor_forward.3} parent=5 // pred_check
      _
    $region10: #{feature_extractor_forward.3} parent=5 // pred_check_branch
      %138 = sbr.rel (%p135) target = $region12
    $region11: #{feature_extractor_forward.3} parent=5 // pred_region
      %s139 = ssub.s32 %s10, 1
      // Predicated region
      $region13: #{feature_extractor_forward.3} parent=11 // pred_check
        %p140 = pneg %p57
      $region14: #{feature_extractor_forward.3} parent=11 // pred_check_branch
        %142 = sbr.rel (%p140) target = $region16
      $region15: #{feature_extractor_forward.3} parent=11 // pred_region
        _
      $region16: #{feature_extractor_forward.3} parent=11 // pred_fallthru
        _
      // Predicated region
      $region17: #{feature_extractor_forward.3} parent=11 // pred_check
        %p143 = pneg %p78
      $region18: #{feature_extractor_forward.3} parent=11 // pred_check_branch
        %145 = sbr.rel (%p143) target = $region20
      $region19: #{feature_extractor_forward.3} parent=11 // pred_region
        _
      $region20: #{feature_extractor_forward.3} parent=11 // pred_fallthru
        _
      // Predicated region
      $region21: #{feature_extractor_forward.3} parent=11 // pred_check
        %p146 = pneg %p99
      $region22: #{feature_extractor_forward.3} parent=11 // pred_check_branch
        %148 = sbr.rel (%p146) target = $region24
      $region23: #{feature_extractor_forward.3} parent=11 // pred_region
        _
      $region24: #{feature_extractor_forward.3} parent=11 // pred_fallthru
        _
    $region12: #{feature_extractor_forward.3} parent=5 // pred_fallthru
      _
    %p149 = scmp.lt.s32.totalorder %s10, 2
    // Predicated region
    $region25: #{feature_extractor_forward.3} parent=5 // pred_check
      %p150 = pneg %p149
    $region26: #{feature_extractor_forward.3} parent=5 // pred_check_branch
      %152 = sbr.rel (%p150) target = $region28
    $region27: #{feature_extractor_forward.3} parent=5 // pred_region
      // Predicated region
      $region29: #{feature_extractor_forward.3} parent=27 // pred_check
        %p153 = pneg %p30
      $region30: #{feature_extractor_forward.3} parent=27 // pred_check_branch
        %155 = sbr.rel (%p153) target = $region32
      $region31: #{feature_extractor_forward.3} parent=27 // pred_region
        %p156 = scmp.lt.s32.totalorder %s10, 1
        %s157 = scalar_select %p156, %s10, 1
        %s158 = smul.addr %s157, 8
        %s159 = smul.addr %s158, 4
        %s160 = scalar_lea.vmem %s0, %s159
      $region32: #{feature_extractor_forward.3} parent=27 // pred_fallthru
        _
    $region28: #{feature_extractor_forward.3} parent=5 // pred_fallthru
      _
    %p161 = scmp.le.s32.totalorder 1, %s10
    %p162 = scmp.lt.s32.totalorder %s10, 3
    %p163 = pnand %p161, %p162
    %p164 = pneg %p163
    // Predicated region
    $region33: #{feature_extractor_forward.3} parent=5 // pred_check
      _
    $region34: #{feature_extractor_forward.3} parent=5 // pred_check_branch
      %166 = sbr.rel (%p163) target = $region36
    $region35: #{feature_extractor_forward.3} parent=5 // pred_region
      %s167 = ssub.s32 %s10, 1
      %p168 = scmp.lt.s32.totalorder %s15, 1
      %s169 = scalar_select %p168, %s15, 1
      %s170 = smul.addr %s169, 8
      %s171 = smul.addr %s170, 4
      %s172 = scalar_lea.vmem %s0, %s171
      %p173 = pneg %p36
      %p174 = pneg %p33
      %p175 = pneg %p57
      %p176 = pneg %p54
      %p177 = pneg %p78
      %p178 = pneg %p75
      %p179 = pneg %p99
      %p180 = pneg %p96
      %p181 = pneg %p125
      %p182 = pneg %p122
      %p183 = scmp.lt.s32.totalorder %s15, 1
      %s184 = scalar_select %p183, %s15, 1
      %s185 = smul.addr %s184, 4
      %s186 = smul.addr %s185, 8
      %s187 = scalar_lea.vmem %s4, %s186
      %p188 = scmp.lt.s32.totalorder %s15, 1
      %s189 = scalar_select %p188, %s15, 1
      %s190 = smul.addr %s189, 8
      %s191 = smul.addr %s190, 4
      %s192 = scalar_lea.vmem %s0, %s191
      %p193 = scmp.lt.s32.totalorder %s15, 1
      %s194 = scalar_select %p193, %s15, 1
      %s195 = smul.addr %s194, 4
      %s196 = smul.addr %s195, 8
      %s197 = scalar_lea.vmem %s4, %s196
      %v199 = vld [vmem:[%s192] sm:$0x8]
      %v200 = vld [vmem:[%s192 + $0x4] sm:$0xf]
      %v201 = vld [vmem:[%s192 + $0x8] sm:$0xf]
      %v202 = vld [vmem:[%s192 + $0xc] sm:$0xf]
      %v203 = vld [vmem:[%s192 + $0x10] sm:$0xf]
      %v204 = vld [vmem:[%s1] sm:$0xf]
      %v205 = vld [vmem:[%s1 + $0x4] sm:$0xf]
      %v206 = vld [vmem:[%s1 + $0x8] sm:$0xf]
      %v207 = vld [vmem:[%s1 + $0xc] sm:$0xf]
      %v208 = vld [vmem:[%s1 + $0x10] sm:$0xf]
      %v209 = vld [vmem:[%s1 + $0x14] sm:$0xf]
      %v210 = vld [vmem:[%s1 + $0x18] sm:$0xf]
      %v211 = vld [vmem:[%s1 + $0x1c] sm:$0xf]
      %v216 = vunpack.c.l.b16 %v200
      %v217 = vunpack.c.l.b16 %v201
      %v218 = vunpack.c.l.b16 %v202
      %v219 = vunpack.c.l.b16 %v203
      %v220 = vpack.c.b16 %v217, %v216
      %v221 = vpack.c.b16 %v219, %v218
      %v226 = vunpack.c.l.b16 %v208
      %v227 = vunpack.c.l.b16 %v209
      %v228 = vunpack.c.l.b16 %v210
      %v229 = vunpack.c.l.b16 %v211
      %v230 = vpack.c.b16 %v227, %v226
      %v231 = vpack.c.b16 %v229, %v228
      %vm234 = vcmask 261120
      %v236 = vsel %vm234, %v220, 0
      %v239 = vsel %vm234, %v221, 0
      %241 = vmatprep.subr.bf16.mxu0 0
      %242 = vmatpush1.bf16.msra.mxu0 0
      %243 = vmatprep.subr.bf16.mxu0 0
      %244 = vmatpush1.bf16.msra.mxu0 0
      %245 = vmatprep.subr.bf16.mxu0 0
      %246 = vmatpush1.bf16.msra.mxu0 0
      %247 = vmatprep.subr.bf16.mxu0 0
      %248 = vmatpush1.bf16.msra.mxu0 0
      %249 = vmatprep.subr.bf16.mxu0 0
      %250 = vmatpush1.bf16.msra.mxu0 0
      %251 = vmatprep.subr.bf16.mxu0 0
      %252 = vmatpush1.bf16.msra.mxu0 0
      %253 = vmatprep.subr.bf16.mxu0 0
      %254 = vmatpush1.bf16.msra.mxu0 %v231
      %255 = vmatprep.subr.bf16.mxu0 0
      %256 = vmatpush1.bf16.msra.mxu0 %v230
      %257 = vmatprep.subr.bf16.mxu0 0
      %258 = vmatpush2.bf16.msra.mxu0 0
      %259 = vmatprep.subr.bf16.mxu0 0
      %260 = vmatpush2.bf16.msra.mxu0 0
      %261 = vmatprep.subr.bf16.mxu0 0
      %262 = vmatpush2.bf16.msra.mxu0 0
      %263 = vmatprep.subr.bf16.mxu0 0
      %264 = vmatpush2.bf16.msra.mxu0 0
      %265 = vmatprep.subr.bf16.mxu0 0
      %266 = vmatpush2.bf16.msra.mxu0 0
      %267 = vmatprep.subr.bf16.mxu0 0
      %268 = vmatpush2.bf16.msra.mxu0 0
      %269 = vmatprep.subr.bf16.mxu0 0
      %270 = vmatpush2.bf16.msra.mxu0 0
      %271 = vmatprep.subr.bf16.mxu0 0
      %272 = vmatpush2.bf16.msra.mxu0 0
      %273 = vmatprep.mubr.bf16.mxu0 0
      %274 = vmatmul.mubr.bf16.gmra.mxu0 %v236
      %v275 = vpop.f32.mrf.mxu0
      %v276 = vadd.f32 0.0, %v275
      %v277 = vpop.f32.mrf.mxu0
      %v278 = vpop.f32.mrf.mxu0
      %v279 = vadd.f32 0.0, %v278
      %v280 = vpop.f32.mrf.mxu0
      %281 = vmatprep.mubr.bf16.mxu0 0
      %282 = vmatmul.mubr.bf16.gmra.mxu0 %v239
      %v283 = vpop.f32.mrf.mxu0
      %v284 = vadd.f32 0.0, %v283
      %v285 = vpop.f32.mrf.mxu0
      %v286 = vpop.f32.mrf.mxu0
      %v287 = vadd.f32 0.0, %v286
      %v288 = vpop.f32.mrf.mxu0
      %289 = vdwg.mxu0
      %v291 = vunpack.c.l.b16 %v199
      %v292 = vpack.c.b16 %v216, %v291
      %v293 = vpack.c.b16 %v218, %v217
      %v294 = vpack.c.b16 %v219, %v219
      %vm295 = vsmask.f32 4352
      %v297 = vshrl.u32 %v292, 16
      %v299 = vrot.slane %v297, 3
      %v300 = vshll.u32 %v292, 16
      %v302 = vrot.slane %v300, 4
      %v303 = vor.u32 %v299, %v302
      %v305 = vshrl.u32 %v293, 16
      %v307 = vrot.slane %v305, 3
      %v308 = vshll.u32 %v293, 16
      %v310 = vrot.slane %v308, 4
      %v311 = vor.u32 %v307, %v310
      %v312 = vsel %vm295, %v303, %v311
      %v314 = vshrl.u32 %v294, 16
      %v316 = vrot.slane %v314, 3
      %v317 = vshll.u32 %v294, 16
      %v319 = vrot.slane %v317, 4
      %v320 = vor.u32 %v316, %v319
      %v321 = vsel %vm295, %v311, %v320
      %v326 = vunpack.c.l.b16 %v204
      %v327 = vunpack.c.l.b16 %v205
      %v328 = vunpack.c.l.b16 %v206
      %v329 = vunpack.c.l.b16 %v207
      %v330 = vpack.c.b16 %v327, %v326
      %v331 = vpack.c.b16 %v329, %v328
      %v335 = vsel %vm234, %v312, 0
      %v338 = vsel %vm234, %v321, 0
      %340 = vmatprep.subr.bf16.mxu0 0
      %341 = vmatpush1.bf16.msra.mxu0 0
      %342 = vmatprep.subr.bf16.mxu0 0
      %343 = vmatpush1.bf16.msra.mxu0 0
      %344 = vmatprep.subr.bf16.mxu0 0
      %345 = vmatpush1.bf16.msra.mxu0 0
      %346 = vmatprep.subr.bf16.mxu0 0
      %347 = vmatpush1.bf16.msra.mxu0 0
      %348 = vmatprep.subr.bf16.mxu0 0
      %349 = vmatpush1.bf16.msra.mxu0 0
      %350 = vmatprep.subr.bf16.mxu0 0
      %351 = vmatpush1.bf16.msra.mxu0 0
      %352 = vmatprep.subr.bf16.mxu0 0
      %353 = vmatpush1.bf16.msra.mxu0 %v331
      %354 = vmatprep.subr.bf16.mxu0 0
      %355 = vmatpush1.bf16.msra.mxu0 %v330
      %356 = vmatprep.subr.bf16.mxu0 0
      %357 = vmatpush2.bf16.msra.mxu0 0
      %358 = vmatprep.subr.bf16.mxu0 0
      %359 = vmatpush2.bf16.msra.mxu0 0
      %360 = vmatprep.subr.bf16.mxu0 0
      %361 = vmatpush2.bf16.msra.mxu0 0
      %362 = vmatprep.subr.bf16.mxu0 0
      %363 = vmatpush2.bf16.msra.mxu0 0
      %364 = vmatprep.subr.bf16.mxu0 0
      %365 = vmatpush2.bf16.msra.mxu0 0
      %366 = vmatprep.subr.bf16.mxu0 0
      %367 = vmatpush2.bf16.msra.mxu0 0
      %368 = vmatprep.subr.bf16.mxu0 0
      %369 = vmatpush2.bf16.msra.mxu0 0
      %370 = vmatprep.subr.bf16.mxu0 0
      %371 = vmatpush2.bf16.msra.mxu0 0
      %372 = vmatprep.mubr.bf16.mxu0 0
      %373 = vmatmul.mubr.bf16.gmra.mxu0 %v335
      %v374 = vpop.f32.mrf.mxu0
      %v375 = vadd.f32 %v276, %v374
      %v376 = vpop.f32.mrf.mxu0
      %v377 = vpop.f32.mrf.mxu0
      %v378 = vadd.f32 %v279, %v377
      %v379 = vpop.f32.mrf.mxu0
      %380 = vmatprep.mubr.bf16.mxu0 0
      %381 = vmatmul.mubr.bf16.gmra.mxu0 %v338
      %v382 = vpop.f32.mrf.mxu0
      %v383 = vadd.f32 %v284, %v382
      %v384 = vpop.f32.mrf.mxu0
      %v385 = vpop.f32.mrf.mxu0
      %v386 = vadd.f32 %v287, %v385
      %v387 = vpop.f32.mrf.mxu0
      %388 = vdwg.mxu0
      %v389 = vld [vmem:[%s192 + $0x4] sm:$0xf]
      %v390 = vld [vmem:[%s192 + $0x8] sm:$0xf]
      %v391 = vld [vmem:[%s192 + $0xc] sm:$0xf]
      %v392 = vld [vmem:[%s192 + $0x10] sm:$0xf]
      %v393 = vld [vmem:[%s192 + $0x14] sm:$0x1]
      %v394 = vld [vmem:[%s1 + $0x20] sm:$0xf]
      %v395 = vld [vmem:[%s1 + $0x24] sm:$0xf]
      %v396 = vld [vmem:[%s1 + $0x28] sm:$0xf]
      %v397 = vld [vmem:[%s1 + $0x2c] sm:$0xf]
      %v403 = vunpack.c.l.b16 %v389
      %v404 = vunpack.c.l.b16 %v390
      %v405 = vunpack.c.l.b16 %v391
      %v406 = vunpack.c.l.b16 %v392
      %v407 = vunpack.c.l.b16 %v393
      %v408 = vpack.c.b16 %v404, %v403
      %v409 = vpack.c.b16 %v406, %v405
      %v410 = vpack.c.b16 %v407, %v407
      %vm411 = vsmask.f32 7424
      %v413 = vshrl.u32 %v408, 16
      %v415 = vshll.u32 %v408, 16
      %v417 = vrot.slane %v415, 1
      %v418 = vor.u32 %v413, %v417
      %v420 = vshll.u32 %v409, 16
      %v422 = vrot.slane %v420, 1
      %v423 = vsel %vm411, %v418, %v422
      %v424 = vshrl.u32 %v409, 16
      %v426 = vor.u32 %v424, %v422
      %v428 = vshll.u32 %v410, 16
      %v430 = vrot.slane %v428, 1
      %v431 = vsel %vm411, %v426, %v430
      %v436 = vunpack.c.l.b16 %v394
      %v437 = vunpack.c.l.b16 %v395
      %v438 = vunpack.c.l.b16 %v396
      %v439 = vunpack.c.l.b16 %v397
      %v440 = vpack.c.b16 %v437, %v436
      %v441 = vpack.c.b16 %v439, %v438
      %v445 = vsel %vm234, %v423, 0
      %v448 = vsel %vm234, %v431, 0
      %450 = vmatprep.subr.bf16.mxu0 0
      %451 = vmatpush1.bf16.msra.mxu0 0
      %452 = vmatprep.subr.bf16.mxu0 0
      %453 = vmatpush1.bf16.msra.mxu0 0
      %454 = vmatprep.subr.bf16.mxu0 0
      %455 = vmatpush1.bf16.msra.mxu0 0
      %456 = vmatprep.subr.bf16.mxu0 0
      %457 = vmatpush1.bf16.msra.mxu0 0
      %458 = vmatprep.subr.bf16.mxu0 0
      %459 = vmatpush1.bf16.msra.mxu0 0
      %460 = vmatprep.subr.bf16.mxu0 0
      %461 = vmatpush1.bf16.msra.mxu0 0
      %462 = vmatprep.subr.bf16.mxu0 0
      %463 = vmatpush1.bf16.msra.mxu0 %v441
      %464 = vmatprep.subr.bf16.mxu0 0
      %465 = vmatpush1.bf16.msra.mxu0 %v440
      %466 = vmatprep.subr.bf16.mxu0 0
      %467 = vmatpush2.bf16.msra.mxu0 0
      %468 = vmatprep.subr.bf16.mxu0 0
      %469 = vmatpush2.bf16.msra.mxu0 0
      %470 = vmatprep.subr.bf16.mxu0 0
      %471 = vmatpush2.bf16.msra.mxu0 0
      %472 = vmatprep.subr.bf16.mxu0 0
      %473 = vmatpush2.bf16.msra.mxu0 0
      %474 = vmatprep.subr.bf16.mxu0 0
      %475 = vmatpush2.bf16.msra.mxu0 0
      %476 = vmatprep.subr.bf16.mxu0 0
      %477 = vmatpush2.bf16.msra.mxu0 0
      %478 = vmatprep.subr.bf16.mxu0 0
      %479 = vmatpush2.bf16.msra.mxu0 0
      %480 = vmatprep.subr.bf16.mxu0 0
      %481 = vmatpush2.bf16.msra.mxu0 0
      %482 = vmatprep.mubr.bf16.mxu0 0
      %483 = vmatmul.mubr.bf16.gmra.mxu0 %v445
      %v484 = vpop.f32.mrf.mxu0
      %v485 = vadd.f32 0.0, %v484
      %v486 = vpop.f32.mrf.mxu0
      %v487 = vpop.f32.mrf.mxu0
      %v488 = vadd.f32 0.0, %v487
      %v489 = vpop.f32.mrf.mxu0
      %490 = vmatprep.mubr.bf16.mxu0 0
      %491 = vmatmul.mubr.bf16.gmra.mxu0 %v448
      %v492 = vpop.f32.mrf.mxu0
      %v493 = vadd.f32 0.0, %v492
      %v494 = vpop.f32.mrf.mxu0
      %v495 = vpop.f32.mrf.mxu0
      %v496 = vadd.f32 0.0, %v495
      %v497 = vpop.f32.mrf.mxu0
      %498 = vdwg.mxu0
      %v499 = vadd.f32 %v375, %v485
      %v500 = vadd.f32 %v378, %v488
      %v501 = vadd.f32 %v383, %v493
      %v502 = vadd.f32 %v386, %v496
      %v503 = vld [vmem:[%s192 + $0x4] sm:$0x8]
      %v504 = vld [vmem:[%s192 + $0x14] sm:$0xf]
      %v505 = vld [vmem:[%s1 + $0x30] sm:$0xf]
      %v506 = vld [vmem:[%s1 + $0x34] sm:$0xf]
      %v507 = vld [vmem:[%s1 + $0x38] sm:$0xf]
      %v508 = vld [vmem:[%s1 + $0x3c] sm:$0xf]
      %v511 = vunpack.c.l.b16 %v503
      %v512 = vunpack.c.l.b16 %v504
      %v513 = vpack.c.b16 %v404, %v511
      %v514 = vpack.c.b16 %v512, %v512
      %v516 = vshrl.u32 %v513, 16
      %v518 = vrot.slane %v516, 3
      %v519 = vshll.u32 %v513, 16
      %v521 = vrot.slane %v519, 4
      %v522 = vor.u32 %v518, %v521
      %v523 = vrot.slane %v424, 3
      %v524 = vrot.slane %v420, 4
      %v525 = vor.u32 %v523, %v524
      %v526 = vsel %vm295, %v522, %v525
      %v528 = vshrl.u32 %v514, 16
      %v530 = vrot.slane %v528, 3
      %v531 = vshll.u32 %v514, 16
      %v533 = vrot.slane %v531, 4
      %v534 = vor.u32 %v530, %v533
      %v535 = vsel %vm295, %v525, %v534
      %v540 = vunpack.c.l.b16 %v505
      %v541 = vunpack.c.l.b16 %v506
      %v542 = vunpack.c.l.b16 %v507
      %v543 = vunpack.c.l.b16 %v508
      %v544 = vpack.c.b16 %v541, %v540
      %v545 = vpack.c.b16 %v543, %v542
      %v549 = vsel %vm234, %v526, 0
      %v552 = vsel %vm234, %v535, 0
      %554 = vmatprep.subr.bf16.mxu0 0
      %555 = vmatpush1.bf16.msra.mxu0 0
      %556 = vmatprep.subr.bf16.mxu0 0
      %557 = vmatpush1.bf16.msra.mxu0 0
      %558 = vmatprep.subr.bf16.mxu0 0
      %559 = vmatpush1.bf16.msra.mxu0 0
      %560 = vmatprep.subr.bf16.mxu0 0
      %561 = vmatpush1.bf16.msra.mxu0 0
      %562 = vmatprep.subr.bf16.mxu0 0
      %563 = vmatpush1.bf16.msra.mxu0 0
      %564 = vmatprep.subr.bf16.mxu0 0
      %565 = vmatpush1.bf16.msra.mxu0 0
      %566 = vmatprep.subr.bf16.mxu0 0
      %567 = vmatpush1.bf16.msra.mxu0 %v545
      %568 = vmatprep.subr.bf16.mxu0 0
      %569 = vmatpush1.bf16.msra.mxu0 %v544
      %570 = vmatprep.subr.bf16.mxu0 0
      %571 = vmatpush2.bf16.msra.mxu0 0
      %572 = vmatprep.subr.bf16.mxu0 0
      %573 = vmatpush2.bf16.msra.mxu0 0
      %574 = vmatprep.subr.bf16.mxu0 0
      %575 = vmatpush2.bf16.msra.mxu0 0
      %576 = vmatprep.subr.bf16.mxu0 0
      %577 = vmatpush2.bf16.msra.mxu0 0
      %578 = vmatprep.subr.bf16.mxu0 0
      %579 = vmatpush2.bf16.msra.mxu0 0
      %580 = vmatprep.subr.bf16.mxu0 0
      %581 = vmatpush2.bf16.msra.mxu0 0
      %582 = vmatprep.subr.bf16.mxu0 0
      %583 = vmatpush2.bf16.msra.mxu0 0
      %584 = vmatprep.subr.bf16.mxu0 0
      %585 = vmatpush2.bf16.msra.mxu0 0
      %586 = vmatprep.mubr.bf16.mxu0 0
      %587 = vmatmul.mubr.bf16.gmra.mxu0 %v549
      %v588 = vpop.f32.mrf.mxu0
      %v589 = vadd.f32 0.0, %v588
      %v590 = vpop.f32.mrf.mxu0
      %v591 = vpop.f32.mrf.mxu0
      %v592 = vadd.f32 0.0, %v591
      %v593 = vpop.f32.mrf.mxu0
      %594 = vmatprep.mubr.bf16.mxu0 0
      %595 = vmatmul.mubr.bf16.gmra.mxu0 %v552
      %v596 = vpop.f32.mrf.mxu0
      %v597 = vadd.f32 0.0, %v596
      %v598 = vpop.f32.mrf.mxu0
      %v599 = vpop.f32.mrf.mxu0
      %v600 = vadd.f32 0.0, %v599
      %v601 = vpop.f32.mrf.mxu0
      %602 = vdwg.mxu0
      %v603 = vadd.f32 %v499, %v589
      %v604 = vadd.f32 %v500, %v592
      %v605 = vadd.f32 %v501, %v597
      %v606 = vadd.f32 %v502, %v600
      %v607 = vld [vmem:[%s1 + $0x40] sm:$0xf]
      %v608 = vld [vmem:[%s1 + $0x44] sm:$0xf]
      %v609 = vld [vmem:[%s1 + $0x48] sm:$0xf]
      %v610 = vld [vmem:[%s1 + $0x4c] sm:$0xf]
      %v611 = vpack.c.b16 %v405, %v404
      %v612 = vpack.c.b16 %v512, %v406
      %v617 = vunpack.c.l.b16 %v607
      %v618 = vunpack.c.l.b16 %v608
      %v619 = vunpack.c.l.b16 %v609
      %v620 = vunpack.c.l.b16 %v610
      %v621 = vpack.c.b16 %v618, %v617
      %v622 = vpack.c.b16 %v620, %v619
      %v626 = vsel %vm234, %v611, 0
      %v629 = vsel %vm234, %v612, 0
      %631 = vmatprep.subr.bf16.mxu0 0
      %632 = vmatpush1.bf16.msra.mxu0 0
      %633 = vmatprep.subr.bf16.mxu0 0
      %634 = vmatpush1.bf16.msra.mxu0 0
      %635 = vmatprep.subr.bf16.mxu0 0
      %636 = vmatpush1.bf16.msra.mxu0 0
      %637 = vmatprep.subr.bf16.mxu0 0
      %638 = vmatpush1.bf16.msra.mxu0 0
      %639 = vmatprep.subr.bf16.mxu0 0
      %640 = vmatpush1.bf16.msra.mxu0 0
      %641 = vmatprep.subr.bf16.mxu0 0
      %642 = vmatpush1.bf16.msra.mxu0 0
      %643 = vmatprep.subr.bf16.mxu0 0
      %644 = vmatpush1.bf16.msra.mxu0 %v622
      %645 = vmatprep.subr.bf16.mxu0 0
      %646 = vmatpush1.bf16.msra.mxu0 %v621
      %647 = vmatprep.subr.bf16.mxu0 0
      %648 = vmatpush2.bf16.msra.mxu0 0
      %649 = vmatprep.subr.bf16.mxu0 0
      %650 = vmatpush2.bf16.msra.mxu0 0
      %651 = vmatprep.subr.bf16.mxu0 0
      %652 = vmatpush2.bf16.msra.mxu0 0
      %653 = vmatprep.subr.bf16.mxu0 0
      %654 = vmatpush2.bf16.msra.mxu0 0
      %655 = vmatprep.subr.bf16.mxu0 0
      %656 = vmatpush2.bf16.msra.mxu0 0
      %657 = vmatprep.subr.bf16.mxu0 0
      %658 = vmatpush2.bf16.msra.mxu0 0
      %659 = vmatprep.subr.bf16.mxu0 0
      %660 = vmatpush2.bf16.msra.mxu0 0
      %661 = vmatprep.subr.bf16.mxu0 0
      %662 = vmatpush2.bf16.msra.mxu0 0
      %663 = vmatprep.mubr.bf16.mxu0 0
      %664 = vmatmul.mubr.bf16.gmra.mxu0 %v626
      %v665 = vpop.f32.mrf.mxu0
      %v666 = vadd.f32 0.0, %v665
      %v667 = vpop.f32.mrf.mxu0
      %v668 = vpop.f32.mrf.mxu0
      %v669 = vadd.f32 0.0, %v668
      %v670 = vpop.f32.mrf.mxu0
      %671 = vmatprep.mubr.bf16.mxu0 0
      %672 = vmatmul.mubr.bf16.gmra.mxu0 %v629
      %v673 = vpop.f32.mrf.mxu0
      %v674 = vadd.f32 0.0, %v673
      %v675 = vpop.f32.mrf.mxu0
      %v676 = vpop.f32.mrf.mxu0
      %v677 = vadd.f32 0.0, %v676
      %v678 = vpop.f32.mrf.mxu0
      %679 = vdwg.mxu0
      %v680 = vadd.f32 %v603, %v666
      %v681 = vadd.f32 %v604, %v669
      %v682 = vadd.f32 %v605, %v674
      %v683 = vadd.f32 %v606, %v677
      %v684 = vld [vmem:[%s192 + $0x8] sm:$0xf]
      %v685 = vld [vmem:[%s192 + $0xc] sm:$0xf]
      %v686 = vld [vmem:[%s192 + $0x10] sm:$0xf]
      %v687 = vld [vmem:[%s192 + $0x14] sm:$0xf]
      %v688 = vld [vmem:[%s192 + $0x18] sm:$0x1]
      %v689 = vld [vmem:[%s1 + $0x50] sm:$0xf]
      %v690 = vld [vmem:[%s1 + $0x54] sm:$0xf]
      %v691 = vld [vmem:[%s1 + $0x58] sm:$0xf]
      %v692 = vld [vmem:[%s1 + $0x5c] sm:$0xf]
      %v698 = vunpack.c.l.b16 %v684
      %v699 = vunpack.c.l.b16 %v685
      %v700 = vunpack.c.l.b16 %v686
      %v701 = vunpack.c.l.b16 %v687
      %v702 = vunpack.c.l.b16 %v688
      %v703 = vpack.c.b16 %v699, %v698
      %v704 = vpack.c.b16 %v701, %v700
      %v705 = vpack.c.b16 %v702, %v702
      %v707 = vshrl.u32 %v703, 16
      %v709 = vshll.u32 %v703, 16
      %v711 = vrot.slane %v709, 1
      %v712 = vor.u32 %v707, %v711
      %v714 = vshll.u32 %v704, 16
      %v716 = vrot.slane %v714, 1
      %v717 = vsel %vm411, %v712, %v716
      %v718 = vshrl.u32 %v704, 16
      %v720 = vor.u32 %v718, %v716
      %v722 = vshll.u32 %v705, 16
      %v724 = vrot.slane %v722, 1
      %v725 = vsel %vm411, %v720, %v724
      %v730 = vunpack.c.l.b16 %v689
      %v731 = vunpack.c.l.b16 %v690
      %v732 = vunpack.c.l.b16 %v691
      %v733 = vunpack.c.l.b16 %v692
      %v734 = vpack.c.b16 %v731, %v730
      %v735 = vpack.c.b16 %v733, %v732
      %v739 = vsel %vm234, %v717, 0
      %v742 = vsel %vm234, %v725, 0
      %744 = vmatprep.subr.bf16.mxu0 0
      %745 = vmatpush1.bf16.msra.mxu0 0
      %746 = vmatprep.subr.bf16.mxu0 0
      %747 = vmatpush1.bf16.msra.mxu0 0
      %748 = vmatprep.subr.bf16.mxu0 0
      %749 = vmatpush1.bf16.msra.mxu0 0
      %750 = vmatprep.subr.bf16.mxu0 0
      %751 = vmatpush1.bf16.msra.mxu0 0
      %752 = vmatprep.subr.bf16.mxu0 0
      %753 = vmatpush1.bf16.msra.mxu0 0
      %754 = vmatprep.subr.bf16.mxu0 0
      %755 = vmatpush1.bf16.msra.mxu0 0
      %756 = vmatprep.subr.bf16.mxu0 0
      %757 = vmatpush1.bf16.msra.mxu0 %v735
      %758 = vmatprep.subr.bf16.mxu0 0
      %759 = vmatpush1.bf16.msra.mxu0 %v734
      %760 = vmatprep.subr.bf16.mxu0 0
      %761 = vmatpush2.bf16.msra.mxu0 0
      %762 = vmatprep.subr.bf16.mxu0 0
      %763 = vmatpush2.bf16.msra.mxu0 0
      %764 = vmatprep.subr.bf16.mxu0 0
      %765 = vmatpush2.bf16.msra.mxu0 0
      %766 = vmatprep.subr.bf16.mxu0 0
      %767 = vmatpush2.bf16.msra.mxu0 0
      %768 = vmatprep.subr.bf16.mxu0 0
      %769 = vmatpush2.bf16.msra.mxu0 0
      %770 = vmatprep.subr.bf16.mxu0 0
      %771 = vmatpush2.bf16.msra.mxu0 0
      %772 = vmatprep.subr.bf16.mxu0 0
      %773 = vmatpush2.bf16.msra.mxu0 0
      %774 = vmatprep.subr.bf16.mxu0 0
      %775 = vmatpush2.bf16.msra.mxu0 0
      %776 = vmatprep.mubr.bf16.mxu0 0
      %777 = vmatmul.mubr.bf16.gmra.mxu0 %v739
      %v778 = vpop.f32.mrf.mxu0
      %v779 = vadd.f32 0.0, %v778
      %v780 = vpop.f32.mrf.mxu0
      %v781 = vpop.f32.mrf.mxu0
      %v782 = vadd.f32 0.0, %v781
      %v783 = vpop.f32.mrf.mxu0
      %784 = vmatprep.mubr.bf16.mxu0 0
      %785 = vmatmul.mubr.bf16.gmra.mxu0 %v742
      %v786 = vpop.f32.mrf.mxu0
      %v787 = vadd.f32 0.0, %v786
      %v788 = vpop.f32.mrf.mxu0
      %v789 = vpop.f32.mrf.mxu0
      %v790 = vadd.f32 0.0, %v789
      %v791 = vpop.f32.mrf.mxu0
      %792 = vdwg.mxu0
      %v793 = vadd.f32 %v680, %v779
      %v794 = vadd.f32 %v681, %v782
      %v795 = vadd.f32 %v682, %v787
      %v796 = vadd.f32 %v683, %v790
      %v797 = vld [vmem:[%s192 + $0x8] sm:$0x8]
      %v798 = vld [vmem:[%s192 + $0x18] sm:$0xf]
      %v799 = vld [vmem:[%s1 + $0x60] sm:$0xf]
      %v800 = vld [vmem:[%s1 + $0x64] sm:$0xf]
      %v801 = vld [vmem:[%s1 + $0x68] sm:$0xf]
      %v802 = vld [vmem:[%s1 + $0x6c] sm:$0xf]
      %v805 = vunpack.c.l.b16 %v797
      %v806 = vunpack.c.l.b16 %v798
      %v807 = vpack.c.b16 %v699, %v805
      %v808 = vpack.c.b16 %v806, %v806
      %v810 = vshrl.u32 %v807, 16
      %v812 = vrot.slane %v810, 3
      %v813 = vshll.u32 %v807, 16
      %v815 = vrot.slane %v813, 4
      %v816 = vor.u32 %v812, %v815
      %v817 = vrot.slane %v718, 3
      %v818 = vrot.slane %v714, 4
      %v819 = vor.u32 %v817, %v818
      %v820 = vsel %vm295, %v816, %v819
      %v822 = vshrl.u32 %v808, 16
      %v824 = vrot.slane %v822, 3
      %v825 = vshll.u32 %v808, 16
      %v827 = vrot.slane %v825, 4
      %v828 = vor.u32 %v824, %v827
      %v829 = vsel %vm295, %v819, %v828
      %v834 = vunpack.c.l.b16 %v799
      %v835 = vunpack.c.l.b16 %v800
      %v836 = vunpack.c.l.b16 %v801
      %v837 = vunpack.c.l.b16 %v802
      %v838 = vpack.c.b16 %v835, %v834
      %v839 = vpack.c.b16 %v837, %v836
      %v843 = vsel %vm234, %v820, 0
      %v846 = vsel %vm234, %v829, 0
      %848 = vmatprep.subr.bf16.mxu0 0
      %849 = vmatpush1.bf16.msra.mxu0 0
      %850 = vmatprep.subr.bf16.mxu0 0
      %851 = vmatpush1.bf16.msra.mxu0 0
      %852 = vmatprep.subr.bf16.mxu0 0
      %853 = vmatpush1.bf16.msra.mxu0 0
      %854 = vmatprep.subr.bf16.mxu0 0
      %855 = vmatpush1.bf16.msra.mxu0 0
      %856 = vmatprep.subr.bf16.mxu0 0
      %857 = vmatpush1.bf16.msra.mxu0 0
      %858 = vmatprep.subr.bf16.mxu0 0
      %859 = vmatpush1.bf16.msra.mxu0 0
      %860 = vmatprep.subr.bf16.mxu0 0
      %861 = vmatpush1.bf16.msra.mxu0 %v839
      %862 = vmatprep.subr.bf16.mxu0 0
      %863 = vmatpush1.bf16.msra.mxu0 %v838
      %864 = vmatprep.subr.bf16.mxu0 0
      %865 = vmatpush2.bf16.msra.mxu0 0
      %866 = vmatprep.subr.bf16.mxu0 0
      %867 = vmatpush2.bf16.msra.mxu0 0
      %868 = vmatprep.subr.bf16.mxu0 0
      %869 = vmatpush2.bf16.msra.mxu0 0
      %870 = vmatprep.subr.bf16.mxu0 0
      %871 = vmatpush2.bf16.msra.mxu0 0
      %872 = vmatprep.subr.bf16.mxu0 0
      %873 = vmatpush2.bf16.msra.mxu0 0
      %874 = vmatprep.subr.bf16.mxu0 0
      %875 = vmatpush2.bf16.msra.mxu0 0
      %876 = vmatprep.subr.bf16.mxu0 0
      %877 = vmatpush2.bf16.msra.mxu0 0
      %878 = vmatprep.subr.bf16.mxu0 0
      %879 = vmatpush2.bf16.msra.mxu0 0
      %880 = vmatprep.mubr.bf16.mxu0 0
      %881 = vmatmul.mubr.bf16.gmra.mxu0 %v843
      %v882 = vpop.f32.mrf.mxu0
      %v883 = vadd.f32 0.0, %v882
      %v884 = vpop.f32.mrf.mxu0
      %v885 = vpop.f32.mrf.mxu0
      %v886 = vadd.f32 0.0, %v885
      %v887 = vpop.f32.mrf.mxu0
      %888 = vmatprep.mubr.bf16.mxu0 0
      %889 = vmatmul.mubr.bf16.gmra.mxu0 %v846
      %v890 = vpop.f32.mrf.mxu0
      %v891 = vadd.f32 0.0, %v890
      %v892 = vpop.f32.mrf.mxu0
      %v893 = vpop.f32.mrf.mxu0
      %v894 = vadd.f32 0.0, %v893
      %v895 = vpop.f32.mrf.mxu0
      %896 = vdwg.mxu0
      %v897 = vadd.f32 %v793, %v883
      %v898 = vadd.f32 %v794, %v886
      %v899 = vadd.f32 %v795, %v891
      %v900 = vadd.f32 %v796, %v894
      %v901 = vld [vmem:[%s1 + $0x70] sm:$0xf]
      %v902 = vld [vmem:[%s1 + $0x74] sm:$0xf]
      %v903 = vld [vmem:[%s1 + $0x78] sm:$0xf]
      %v904 = vld [vmem:[%s1 + $0x7c] sm:$0xf]
      %v905 = vpack.c.b16 %v700, %v699
      %v906 = vpack.c.b16 %v806, %v701
      %v911 = vunpack.c.l.b16 %v901
      %v912 = vunpack.c.l.b16 %v902
      %v913 = vunpack.c.l.b16 %v903
      %v914 = vunpack.c.l.b16 %v904
      %v915 = vpack.c.b16 %v912, %v911
      %v916 = vpack.c.b16 %v914, %v913
      %v920 = vsel %vm234, %v905, 0
      %v923 = vsel %vm234, %v906, 0
      %925 = vmatprep.subr.bf16.mxu0 0
      %926 = vmatpush1.bf16.msra.mxu0 0
      %927 = vmatprep.subr.bf16.mxu0 0
      %928 = vmatpush1.bf16.msra.mxu0 0
      %929 = vmatprep.subr.bf16.mxu0 0
      %930 = vmatpush1.bf16.msra.mxu0 0
      %931 = vmatprep.subr.bf16.mxu0 0
      %932 = vmatpush1.bf16.msra.mxu0 0
      %933 = vmatprep.subr.bf16.mxu0 0
      %934 = vmatpush1.bf16.msra.mxu0 0
      %935 = vmatprep.subr.bf16.mxu0 0
      %936 = vmatpush1.bf16.msra.mxu0 0
      %937 = vmatprep.subr.bf16.mxu0 0
      %938 = vmatpush1.bf16.msra.mxu0 %v916
      %939 = vmatprep.subr.bf16.mxu0 0
      %940 = vmatpush1.bf16.msra.mxu0 %v915
      %941 = vmatprep.subr.bf16.mxu0 0
      %942 = vmatpush2.bf16.msra.mxu0 0
      %943 = vmatprep.subr.bf16.mxu0 0
      %944 = vmatpush2.bf16.msra.mxu0 0
      %945 = vmatprep.subr.bf16.mxu0 0
      %946 = vmatpush2.bf16.msra.mxu0 0
      %947 = vmatprep.subr.bf16.mxu0 0
      %948 = vmatpush2.bf16.msra.mxu0 0
      %949 = vmatprep.subr.bf16.mxu0 0
      %950 = vmatpush2.bf16.msra.mxu0 0
      %951 = vmatprep.subr.bf16.mxu0 0
      %952 = vmatpush2.bf16.msra.mxu0 0
      %953 = vmatprep.subr.bf16.mxu0 0
      %954 = vmatpush2.bf16.msra.mxu0 0
      %955 = vmatprep.subr.bf16.mxu0 0
      %956 = vmatpush2.bf16.msra.mxu0 0
      %957 = vmatprep.mubr.bf16.mxu0 0
      %958 = vmatmul.mubr.bf16.gmra.mxu0 %v920
      %v959 = vpop.f32.mrf.mxu0
      %v960 = vadd.f32 0.0, %v959
      %v961 = vpop.f32.mrf.mxu0
      %v962 = vpop.f32.mrf.mxu0
      %v963 = vadd.f32 0.0, %v962
      %v964 = vpop.f32.mrf.mxu0
      %965 = vmatprep.mubr.bf16.mxu0 0
      %966 = vmatmul.mubr.bf16.gmra.mxu0 %v923
      %v967 = vpop.f32.mrf.mxu0
      %v968 = vadd.f32 0.0, %v967
      %v969 = vpop.f32.mrf.mxu0
      %v970 = vpop.f32.mrf.mxu0
      %v971 = vadd.f32 0.0, %v970
      %v972 = vpop.f32.mrf.mxu0
      %973 = vdwg.mxu0
      %v974 = vadd.f32 %v897, %v960
      %v975 = vadd.f32 %v898, %v963
      %v976 = vadd.f32 %v899, %v968
      %v977 = vadd.f32 %v900, %v971
      %v978 = vld [vmem:[%s192 + $0xc] sm:$0xf]
      %v979 = vld [vmem:[%s192 + $0x10] sm:$0xf]
      %v980 = vld [vmem:[%s192 + $0x14] sm:$0xf]
      %v981 = vld [vmem:[%s192 + $0x18] sm:$0xf]
      %v982 = vld [vmem:[%s192 + $0x1c] sm:$0x1]
      %v983 = vld [vmem:[%s1 + $0x80] sm:$0xf]
      %v984 = vld [vmem:[%s1 + $0x84] sm:$0xf]
      %v985 = vld [vmem:[%s1 + $0x88] sm:$0xf]
      %v986 = vld [vmem:[%s1 + $0x8c] sm:$0xf]
      %v992 = vunpack.c.l.b16 %v978
      %v993 = vunpack.c.l.b16 %v979
      %v994 = vunpack.c.l.b16 %v980
      %v995 = vunpack.c.l.b16 %v981
      %v996 = vunpack.c.l.b16 %v982
      %v997 = vpack.c.b16 %v993, %v992
      %v998 = vpack.c.b16 %v995, %v994
      %v999 = vpack.c.b16 %v996, %v996
      %v1001 = vshrl.u32 %v997, 16
      %v1003 = vshll.u32 %v997, 16
      %v1005 = vrot.slane %v1003, 1
      %v1006 = vor.u32 %v1001, %v1005
      %v1008 = vshll.u32 %v998, 16
      %v1010 = vrot.slane %v1008, 1
      %v1011 = vsel %vm411, %v1006, %v1010
      %v1012 = vshrl.u32 %v998, 16
      %v1014 = vor.u32 %v1012, %v1010
      %v1016 = vshll.u32 %v999, 16
      %v1018 = vrot.slane %v1016, 1
      %v1019 = vsel %vm411, %v1014, %v1018
      %v1024 = vunpack.c.l.b16 %v983
      %v1025 = vunpack.c.l.b16 %v984
      %v1026 = vunpack.c.l.b16 %v985
      %v1027 = vunpack.c.l.b16 %v986
      %v1028 = vpack.c.b16 %v1025, %v1024
      %v1029 = vpack.c.b16 %v1027, %v1026
      %v1033 = vsel %vm234, %v1011, 0
      %v1036 = vsel %vm234, %v1019, 0
      %1038 = vmatprep.subr.bf16.mxu0 0
      %1039 = vmatpush1.bf16.msra.mxu0 0
      %1040 = vmatprep.subr.bf16.mxu0 0
      %1041 = vmatpush1.bf16.msra.mxu0 0
      %1042 = vmatprep.subr.bf16.mxu0 0
      %1043 = vmatpush1.bf16.msra.mxu0 0
      %1044 = vmatprep.subr.bf16.mxu0 0
      %1045 = vmatpush1.bf16.msra.mxu0 0
      %1046 = vmatprep.subr.bf16.mxu0 0
      %1047 = vmatpush1.bf16.msra.mxu0 0
      %1048 = vmatprep.subr.bf16.mxu0 0
      %1049 = vmatpush1.bf16.msra.mxu0 0
      %1050 = vmatprep.subr.bf16.mxu0 0
      %1051 = vmatpush1.bf16.msra.mxu0 %v1029
      %1052 = vmatprep.subr.bf16.mxu0 0
      %1053 = vmatpush1.bf16.msra.mxu0 %v1028
      %1054 = vmatprep.subr.bf16.mxu0 0
      %1055 = vmatpush2.bf16.msra.mxu0 0
      %1056 = vmatprep.subr.bf16.mxu0 0
      %1057 = vmatpush2.bf16.msra.mxu0 0
      %1058 = vmatprep.subr.bf16.mxu0 0
      %1059 = vmatpush2.bf16.msra.mxu0 0
      %1060 = vmatprep.subr.bf16.mxu0 0
      %1061 = vmatpush2.bf16.msra.mxu0 0
      %1062 = vmatprep.subr.bf16.mxu0 0
      %1063 = vmatpush2.bf16.msra.mxu0 0
      %1064 = vmatprep.subr.bf16.mxu0 0
      %1065 = vmatpush2.bf16.msra.mxu0 0
      %1066 = vmatprep.subr.bf16.mxu0 0
      %1067 = vmatpush2.bf16.msra.mxu0 0
      %1068 = vmatprep.subr.bf16.mxu0 0
      %1069 = vmatpush2.bf16.msra.mxu0 0
      %1070 = vmatprep.mubr.bf16.mxu0 0
      %1071 = vmatmul.mubr.bf16.gmra.mxu0 %v1033
      %v1072 = vpop.f32.mrf.mxu0
      %v1073 = vadd.f32 0.0, %v1072
      %v1074 = vpop.f32.mrf.mxu0
      %v1075 = vpop.f32.mrf.mxu0
      %v1076 = vadd.f32 0.0, %v1075
      %v1077 = vpop.f32.mrf.mxu0
      %1078 = vmatprep.mubr.bf16.mxu0 0
      %1079 = vmatmul.mubr.bf16.gmra.mxu0 %v1036
      %v1080 = vpop.f32.mrf.mxu0
      %v1081 = vadd.f32 0.0, %v1080
      %v1082 = vpop.f32.mrf.mxu0
      %v1083 = vpop.f32.mrf.mxu0
      %v1084 = vadd.f32 0.0, %v1083
      %v1085 = vpop.f32.mrf.mxu0
      %1086 = vdwg.mxu0
      %v1087 = vadd.f32 %v974, %v1073
      %v1088 = vadd.f32 %v975, %v1076
      %v1089 = vadd.f32 %v976, %v1081
      %v1090 = vadd.f32 %v977, %v1084
      %v1091 = vld [vmem:[%s2] sm:$0x1]
      %v1093 = vlaneseq
      %v1094 = vshrl.u32 %v1093, 7
      %v1095 = vsub.s32 0, %v1094
      %v1096 = vrot.slane %v1091, %v1095
      %v1098 = vadd.f32 %v1087, %v1096
      %v1099 = vadd.f32 %v1088, %v1096
      %v1100 = vadd.f32 %v1089, %v1096
      %v1101 = vadd.f32 %v1090, %v1096
      %v1102 = vmax.f32 %v1098, 0.0
      %v1103 = vmax.f32 %v1099, 0.0
      %v1104 = vmax.f32 %v1100, 0.0
      %v1105 = vmax.f32 %v1101, 0.0
      %v1106 = vld [vmem:[%s3] sm:$0xff]
      %v1107 = vld [vmem:[%s3 + $0x8] sm:$0xff]
      %v1108 = vld [vmem:[%s3 + $0x10] sm:$0xff]
      %v1109 = vld [vmem:[%s3 + $0x18] sm:$0xff]
      %v1110 = vld [vmem:[%s3 + $0x20] sm:$0xff]
      %v1111 = vld [vmem:[%s3 + $0x28] sm:$0xff]
      %v1112 = vld [vmem:[%s3 + $0x30] sm:$0xff]
      %v1113 = vld [vmem:[%s3 + $0x38] sm:$0xff]
      %vm1114 = vcmask 523264
      %v1116 = vsel %vm1114, %v1102, 0
      %v1119 = vsel %vm1114, %v1103, 0
      %v1122 = vsel %vm1114, %v1104, 0
      %v1125 = vsel %vm1114, %v1105, 0
      %1127 = vmatprep.subr.mxu0 0.0
      %1128 = vmatpush1.msra.mxu0 0.0
      %1129 = vmatprep.subr.mxu0 0.0
      %1130 = vmatpush1.msra.mxu0 0.0
      %1131 = vmatprep.subr.mxu0 0.0
      %1132 = vmatpush1.msra.mxu0 0.0
      %1133 = vmatprep.subr.mxu0 0.0
      %1134 = vmatpush1.msra.mxu0 0.0
      %1135 = vmatprep.subr.mxu0 0.0
      %1136 = vmatpush1.msra.mxu0 0.0
      %1137 = vmatprep.subr.mxu0 0.0
      %1138 = vmatpush1.msra.mxu0 0.0
      %1139 = vmatprep.subr.mxu0 0.0
      %1140 = vmatpush1.msra.mxu0 0.0
      %1141 = vmatprep.subr.mxu0 0.0
      %1142 = vmatpush1.msra.mxu0 0.0
      %1143 = vmatprep.subr.mxu0 0.0
      %1144 = vmatpush1.msra.mxu0 %v1113
      %1145 = vmatprep.subr.mxu0 0.0
      %1146 = vmatpush1.msra.mxu0 %v1112
      %1147 = vmatprep.subr.mxu0 0.0
      %1148 = vmatpush1.msra.mxu0 %v1111
      %1149 = vmatprep.subr.mxu0 0.0
      %1150 = vmatpush1.msra.mxu0 %v1110
      %1151 = vmatprep.subr.mxu0 0.0
      %1152 = vmatpush1.msra.mxu0 %v1109
      %1153 = vmatprep.subr.mxu0 0.0
      %1154 = vmatpush1.msra.mxu0 %v1108
      %1155 = vmatprep.subr.mxu0 0.0
      %1156 = vmatpush1.msra.mxu0 %v1107
      %1157 = vmatprep.subr.mxu0 0.0
      %1158 = vmatpush1.msra.mxu0 %v1106
      %1159 = vmatprep.subr.mxu0 0.0
      %1160 = vmatpush2.msra.mxu0 0.0
      %1161 = vmatprep.subr.mxu0 0.0
      %1162 = vmatpush2.msra.mxu0 0.0
      %1163 = vmatprep.subr.mxu0 0.0
      %1164 = vmatpush2.msra.mxu0 0.0
      %1165 = vmatprep.subr.mxu0 0.0
      %1166 = vmatpush2.msra.mxu0 0.0
      %1167 = vmatprep.subr.mxu0 0.0
      %1168 = vmatpush2.msra.mxu0 0.0
      %1169 = vmatprep.subr.mxu0 0.0
      %1170 = vmatpush2.msra.mxu0 0.0
      %1171 = vmatprep.subr.mxu0 0.0
      %1172 = vmatpush2.msra.mxu0 0.0
      %1173 = vmatprep.subr.mxu0 0.0
      %1174 = vmatpush2.msra.mxu0 0.0
      %1175 = vmatprep.subr.mxu0 0.0
      %1176 = vmatpush2.msra.mxu0 0.0
      %1177 = vmatprep.subr.mxu0 0.0
      %1178 = vmatpush2.msra.mxu0 0.0
      %1179 = vmatprep.subr.mxu0 0.0
      %1180 = vmatpush2.msra.mxu0 0.0
      %1181 = vmatprep.subr.mxu0 0.0
      %1182 = vmatpush2.msra.mxu0 0.0
      %1183 = vmatprep.subr.mxu0 0.0
      %1184 = vmatpush2.msra.mxu0 0.0
      %1185 = vmatprep.subr.mxu0 0.0
      %1186 = vmatpush2.msra.mxu0 0.0
      %1187 = vmatprep.subr.mxu0 0.0
      %1188 = vmatpush2.msra.mxu0 0.0
      %1189 = vmatprep.subr.mxu0 0.0
      %1190 = vmatpush2.msra.mxu0 0.0
      %1191 = vmatprep.mubr.f32.mxu0 0.0
      %1192 = vmatmul.mubr.f32.gmra.mxu0 %v1116
      %v1193 = vpop.f32.mrf.mxu0
      %v1194 = vadd.f32 0.0, %v1193
      %v1195 = vpop.f32.mrf.mxu0
      %1196 = vmatprep.mubr.f32.mxu0 0.0
      %1197 = vmatmul.mubr.f32.gmra.mxu0 %v1119
      %v1198 = vpop.f32.mrf.mxu0
      %v1199 = vadd.f32 0.0, %v1198
      %v1200 = vpop.f32.mrf.mxu0
      %1201 = vmatprep.mubr.f32.mxu0 0.0
      %1202 = vmatmul.mubr.f32.gmra.mxu0 %v1122
      %v1203 = vpop.f32.mrf.mxu0
      %v1204 = vadd.f32 0.0, %v1203
      %v1205 = vpop.f32.mrf.mxu0
      %1206 = vmatprep.mubr.f32.mxu0 0.0
      %1207 = vmatmul.mubr.f32.gmra.mxu0 %v1125
      %v1208 = vpop.f32.mrf.mxu0
      %v1209 = vadd.f32 0.0, %v1208
      %v1210 = vpop.f32.mrf.mxu0
      %1211 = vdwg.mxu0
      %1212 = vst.msk [vmem:[%s197] sm:$0xff] %vm234, %v1194
      %1213 = vst.msk [vmem:[%s197 + $0x8] sm:$0xff] %vm234, %v1199
      %1214 = vst.msk [vmem:[%s197 + $0x10] sm:$0xff] %vm234, %v1204
      %1215 = vst.msk [vmem:[%s197 + $0x18] sm:$0xff] %vm234, %v1209
      %p1216 = scmp.lt.s32.totalorder %s15, 1
      %s1217 = scalar_select %p1216, %s15, 1
      %s1218 = smul.addr %s1217, 4
      %s1219 = smul.addr %s1218, 8
      %s1220 = scalar_lea.vmem %s4, %s1219
      // Predicated region
      $region37: #{feature_extractor_forward.3} parent=35 // pred_check
        %p1221 = pneg %p122
      $region38: #{feature_extractor_forward.3} parent=35 // pred_check_branch
        %1223 = sbr.rel (%p1221) target = $region40
      $region39: #{feature_extractor_forward.3} parent=35 // pred_region
        _
      $region40: #{feature_extractor_forward.3} parent=35 // pred_fallthru
        _
    $region36: #{feature_extractor_forward.3} parent=5 // pred_fallthru
      _
    %p1224 = scmp.le.s32.totalorder 2, %s10
    // Predicated region
    $region41: #{feature_extractor_forward.3} parent=5 // pred_check
      %p1225 = pneg %p1224
    $region42: #{feature_extractor_forward.3} parent=5 // pred_check_branch
      %1227 = sbr.rel (%p1225) target = $region44
    $region43: #{feature_extractor_forward.3} parent=5 // pred_region
      %s1228 = ssub.s32 %s10, 2
      // Predicated region
      $region45: #{feature_extractor_forward.3} parent=43 // pred_check
        %p1229 = pneg %p128
      $region46: #{feature_extractor_forward.3} parent=43 // pred_check_branch
        %1231 = sbr.rel (%p1229) target = $region48
      $region47: #{feature_extractor_forward.3} parent=43 // pred_region
        %p1232 = scmp.lt.s32.totalorder %s16, 1
        %s1233 = scalar_select %p1232, %s16, 1
        %s1234 = smul.addr %s1233, 4
        %s1235 = smul.addr %s1234, 8
        %s1236 = scalar_lea.vmem %s4, %s1235
      $region48: #{feature_extractor_forward.3} parent=43 // pred_fallthru
        _
    $region44: #{feature_extractor_forward.3} parent=5 // pred_fallthru
      _
  $region6: #{feature_extractor_forward.3} parent=0 // loop_footer
    %s14 = sadd.s32 1, %s10
  $region7: #{feature_extractor_forward.3} parent=0 // loop_footer_branch
    %9 = sbr.rel target = $region3
  $region8: #{feature_extractor_forward.3} parent=0 // loop_exit
    _

// kernel: feature_extractor_forward.2
$region0: #{feature_extractor_forward.2}
  #allocation0 [shape = 'u32[]', space=smem, size = 0x4, offset = 0x4, fixed_abs, tag = 'smem constant byte address 0x4 - core index']
  #allocation1 [shape = 'u32[144,128]{1,0:T(1,128)}', space=vmem, size = 0x12000, scoped, tag = 'internal scratch']
  #allocation2 [shape = 'bf16[192,32]{1,0:T(8,128)(2,1)}', space=vmem, size = 0xc000, scoped, tag = 'scratch operand']
  #allocation3 [shape = 'bf16[192,32]{1,0:T(8,128)(2,1)}', space=vmem, size = 0xc000, scoped, tag = 'scratch operand']
  %s0 = inlined_call_operand.vmem [shape: bf16[2,192,32], index: 0, kind: input, shape index: {}]
  %s1 = inlined_call_operand.vmem [shape: f32[128,1], index: 1, kind: input, shape index: {}]
  %s2 = inlined_call_operand.vmem [shape: bf16[288,32], index: 2, kind: input, shape index: {}]
  %s3 = inlined_call_operand.vmem [shape: f32[1,32], index: 3, kind: input, shape index: {}, may-alias: {3,5,7}]
  %s4 = inlined_call_operand.vmem [shape: bf16[288,32], index: 4, kind: input, shape index: {}]
  %s5 = inlined_call_operand.vmem [shape: f32[1,32], index: 5, kind: input, shape index: {}, may-alias: {3,5,7}]
  %s6 = inlined_call_operand.vmem [shape: bf16[288,32], index: 6, kind: input, shape index: {}]
  %s7 = inlined_call_operand.vmem [shape: f32[1,32], index: 7, kind: input, shape index: {}, may-alias: {3,5,7}]
  %s8 = inlined_call_operand.vmem [shape: bf16[2,128,32], index: 8, kind: output, shape index: {}]
  %s9 = sld [smem:[#allocation0]]
  $region65: #{feature_extractor_forward.2} parent=0
    _
  %s11 = ssub.s32 1, %s9
  %s12 = scalar_select 0, %s11, %s9
  loop: start=0, step=1, limit=4
  $region2: #{feature_extractor_forward.2} parent=0 // loop_pre_header
    _
  $region3: #{feature_extractor_forward.2} parent=0 // loop_header
    %s14 = sphi 0, %s18
    %p15 = scmp.ge.s32.totalorder %s14, 4
    %s24 = sphi 0, %s26
    %s27 = sphi 0, %s24
    %s28 = sphi 0, %s27
    %s44 = sphi 0, %s28
    %s48 = sphi 0, %s48
    %s50 = sphi 0, %s48
    %s51 = sphi 0, %s50
    %s65 = sphi 0, %s51
    %s69 = sphi 0, %s69
    %s71 = sphi 0, %s69
    %s72 = sphi 0, %s71
    %s86 = sphi 0, %s72
    %s90 = sphi 0, %s90
    %s92 = sphi 0, %s90
    %s93 = sphi 0, %s92
    %s107 = sphi 0, %s93
    %s111 = sphi 0, %s111
    %s113 = sphi 0, %s111
    %s114 = sphi 0, %s113
    %s128 = sphi 0, %s114
    %s132 = sphi 0, %s132
    %s134 = sphi 0, %s132
    %s135 = sphi 0, %s134
    %s149 = sphi 0, %s135
    %s153 = sphi 0, %s153
    %s155 = sphi 0, %s153
    %s156 = sphi 0, %s155
    %s170 = sphi 0, %s156
    %s174 = sphi 0, %s174
    %s176 = sphi 0, %s174
    %s177 = sphi 0, %s176
    %s191 = sphi 0, %s177
    %s197 = sphi 0, %s199
    %s200 = sphi 0, %s197
    %s201 = sphi 0, %s200
    %s217 = sphi 0, %s201
  $region4: #{feature_extractor_forward.2} parent=0 // loop_header_branch
    %17 = sbr.rel (%p15) target = $region8
  $region5: #{feature_extractor_forward.2} parent=0 // loop_body
    %s19 = ssub.s32 %s14, 1
    %s20 = ssub.s32 %s14, 2
    %s21 = sadd.s32 %s14, 1
    %s22 = ssub.s32 %s14, %s21
    %p23 = scmp.eq.s32.totalorder %s22, 0
    %s25 = sadd.s32 %s24, 1
    %s26 = scalar_select %p23, %s24, %s25
    %p29 = pneg %p23
    %p30 = scmp.eq.s32.totalorder %s14, 1
    %p31 = por %p29, %p30
    %p32 = scmp.ne.s32.totalorder %s24, %s27
    %p33 = scmp.eq.s32.totalorder %s14, 0
    %p34 = por %p32, %p33
    %p35 = scmp.ne.s32.totalorder %s24, %s27
    %p36 = scmp.eq.s32.totalorder %s19, 1
    %p37 = por %p35, %p36
    %p38 = scmp.ne.s32.totalorder %s27, %s28
    %p39 = scmp.eq.s32.totalorder %s19, 0
    %p40 = por %p38, %p39
    %p41 = scmp.ne.s32.totalorder %s27, %s28
    %p42 = scmp.eq.s32.totalorder %s20, 1
    %p43 = por %p41, %p42
    %p45 = scmp.ne.s32.totalorder %s28, %s44
    %p46 = scmp.eq.s32.totalorder %s20, 0
    %p47 = por %p45, %p46
    %s49 = sadd.s32 %s48, 1
    %p52 = scmp.eq.s32.totalorder %s14, 1
    %p53 = scmp.ne.s32.totalorder %s48, %s50
    %p54 = scmp.eq.s32.totalorder %s14, 0
    %p55 = por %p53, %p54
    %p56 = scmp.ne.s32.totalorder %s48, %s50
    %p57 = scmp.eq.s32.totalorder %s19, 1
    %p58 = por %p56, %p57
    %p59 = scmp.ne.s32.totalorder %s50, %s51
    %p60 = scmp.eq.s32.totalorder %s19, 0
    %p61 = por %p59, %p60
    %p62 = scmp.ne.s32.totalorder %s50, %s51
    %p63 = scmp.eq.s32.totalorder %s20, 1
    %p64 = por %p62, %p63
    %p66 = scmp.ne.s32.totalorder %s51, %s65
    %p67 = scmp.eq.s32.totalorder %s20, 0
    %p68 = por %p66, %p67
    %s70 = sadd.s32 %s69, 1
    %p73 = scmp.eq.s32.totalorder %s14, 1
    %p74 = scmp.ne.s32.totalorder %s69, %s71
    %p75 = scmp.eq.s32.totalorder %s14, 0
    %p76 = por %p74, %p75
    %p77 = scmp.ne.s32.totalorder %s69, %s71
    %p78 = scmp.eq.s32.totalorder %s19, 1
    %p79 = por %p77, %p78
    %p80 = scmp.ne.s32.totalorder %s71, %s72
    %p81 = scmp.eq.s32.totalorder %s19, 0
    %p82 = por %p80, %p81
    %p83 = scmp.ne.s32.totalorder %s71, %s72
    %p84 = scmp.eq.s32.totalorder %s20, 1
    %p85 = por %p83, %p84
    %p87 = scmp.ne.s32.totalorder %s72, %s86
    %p88 = scmp.eq.s32.totalorder %s20, 0
    %p89 = por %p87, %p88
    %s91 = sadd.s32 %s90, 1
    %p94 = scmp.eq.s32.totalorder %s14, 1
    %p95 = scmp.ne.s32.totalorder %s90, %s92
    %p96 = scmp.eq.s32.totalorder %s14, 0
    %p97 = por %p95, %p96
    %p98 = scmp.ne.s32.totalorder %s90, %s92
    %p99 = scmp.eq.s32.totalorder %s19, 1
    %p100 = por %p98, %p99
    %p101 = scmp.ne.s32.totalorder %s92, %s93
    %p102 = scmp.eq.s32.totalorder %s19, 0
    %p103 = por %p101, %p102
    %p104 = scmp.ne.s32.totalorder %s92, %s93
    %p105 = scmp.eq.s32.totalorder %s20, 1
    %p106 = por %p104, %p105
    %p108 = scmp.ne.s32.totalorder %s93, %s107
    %p109 = scmp.eq.s32.totalorder %s20, 0
    %p110 = por %p108, %p109
    %s112 = sadd.s32 %s111, 1
    %p115 = scmp.eq.s32.totalorder %s14, 1
    %p116 = scmp.ne.s32.totalorder %s111, %s113
    %p117 = scmp.eq.s32.totalorder %s14, 0
    %p118 = por %p116, %p117
    %p119 = scmp.ne.s32.totalorder %s111, %s113
    %p120 = scmp.eq.s32.totalorder %s19, 1
    %p121 = por %p119, %p120
    %p122 = scmp.ne.s32.totalorder %s113, %s114
    %p123 = scmp.eq.s32.totalorder %s19, 0
    %p124 = por %p122, %p123
    %p125 = scmp.ne.s32.totalorder %s113, %s114
    %p126 = scmp.eq.s32.totalorder %s20, 1
    %p127 = por %p125, %p126
    %p129 = scmp.ne.s32.totalorder %s114, %s128
    %p130 = scmp.eq.s32.totalorder %s20, 0
    %p131 = por %p129, %p130
    %s133 = sadd.s32 %s132, 1
    %p136 = scmp.eq.s32.totalorder %s14, 1
    %p137 = scmp.ne.s32.totalorder %s132, %s134
    %p138 = scmp.eq.s32.totalorder %s14, 0
    %p139 = por %p137, %p138
    %p140 = scmp.ne.s32.totalorder %s132, %s134
    %p141 = scmp.eq.s32.totalorder %s19, 1
    %p142 = por %p140, %p141
    %p143 = scmp.ne.s32.totalorder %s134, %s135
    %p144 = scmp.eq.s32.totalorder %s19, 0
    %p145 = por %p143, %p144
    %p146 = scmp.ne.s32.totalorder %s134, %s135
    %p147 = scmp.eq.s32.totalorder %s20, 1
    %p148 = por %p146, %p147
    %p150 = scmp.ne.s32.totalorder %s135, %s149
    %p151 = scmp.eq.s32.totalorder %s20, 0
    %p152 = por %p150, %p151
    %s154 = sadd.s32 %s153, 1
    %p157 = scmp.eq.s32.totalorder %s14, 1
    %p158 = scmp.ne.s32.totalorder %s153, %s155
    %p159 = scmp.eq.s32.totalorder %s14, 0
    %p160 = por %p158, %p159
    %p161 = scmp.ne.s32.totalorder %s153, %s155
    %p162 = scmp.eq.s32.totalorder %s19, 1
    %p163 = por %p161, %p162
    %p164 = scmp.ne.s32.totalorder %s155, %s156
    %p165 = scmp.eq.s32.totalorder %s19, 0
    %p166 = por %p164, %p165
    %p167 = scmp.ne.s32.totalorder %s155, %s156
    %p168 = scmp.eq.s32.totalorder %s20, 1
    %p169 = por %p167, %p168
    %p171 = scmp.ne.s32.totalorder %s156, %s170
    %p172 = scmp.eq.s32.totalorder %s20, 0
    %p173 = por %p171, %p172
    %s175 = sadd.s32 %s174, 1
    %p178 = scmp.eq.s32.totalorder %s14, 1
    %p179 = scmp.ne.s32.totalorder %s174, %s176
    %p180 = scmp.eq.s32.totalorder %s14, 0
    %p181 = por %p179, %p180
    %p182 = scmp.ne.s32.totalorder %s174, %s176
    %p183 = scmp.eq.s32.totalorder %s19, 1
    %p184 = por %p182, %p183
    %p185 = scmp.ne.s32.totalorder %s176, %s177
    %p186 = scmp.eq.s32.totalorder %s19, 0
    %p187 = por %p185, %p186
    %p188 = scmp.ne.s32.totalorder %s176, %s177
    %p189 = scmp.eq.s32.totalorder %s20, 1
    %p190 = por %p188, %p189
    %p192 = scmp.ne.s32.totalorder %s177, %s191
    %p193 = scmp.eq.s32.totalorder %s20, 0
    %p194 = por %p192, %p193
    %s195 = ssub.s32 %s14, %s21
    %p196 = scmp.eq.s32.totalorder %s195, 0
    %s198 = sadd.s32 %s197, 1
    %s199 = scalar_select %p196, %s197, %s198
    %p202 = pneg %p196
    %p203 = scmp.eq.s32.totalorder %s14, 1
    %p204 = por %p202, %p203
    %p205 = scmp.ne.s32.totalorder %s197, %s200
    %p206 = scmp.eq.s32.totalorder %s14, 0
    %p207 = por %p205, %p206
    %p208 = scmp.ne.s32.totalorder %s197, %s200
    %p209 = scmp.eq.s32.totalorder %s19, 1
    %p210 = por %p208, %p209
    %p211 = scmp.ne.s32.totalorder %s200, %s201
    %p212 = scmp.eq.s32.totalorder %s19, 0
    %p213 = por %p211, %p212
    %p214 = scmp.ne.s32.totalorder %s200, %s201
    %p215 = scmp.eq.s32.totalorder %s20, 1
    %p216 = por %p214, %p215
    %p218 = scmp.ne.s32.totalorder %s201, %s217
    %p219 = scmp.eq.s32.totalorder %s20, 0
    %p220 = por %p218, %p219
    %p221 = scmp.le.s32.totalorder 1, %s14
    %p222 = scmp.lt.s32.totalorder %s14, 3
    %p223 = pnand %p221, %p222
    %p224 = pneg %p223
    // Predicated region
    $region9: #{feature_extractor_forward.2} parent=5 // pred_check
      _
    $region10: #{feature_extractor_forward.2} parent=5 // pred_check_branch
      %226 = sbr.rel (%p223) target = $region12
    $region11: #{feature_extractor_forward.2} parent=5 // pred_region
      %s227 = ssub.s32 %s14, 1
      // Predicated region
      $region13: #{feature_extractor_forward.2} parent=11 // pred_check
        %p228 = pneg %p61
      $region14: #{feature_extractor_forward.2} parent=11 // pred_check_branch
        %230 = sbr.rel (%p228) target = $region16
      $region15: #{feature_extractor_forward.2} parent=11 // pred_region
        _
      $region16: #{feature_extractor_forward.2} parent=11 // pred_fallthru
        _
      // Predicated region
      $region17: #{feature_extractor_forward.2} parent=11 // pred_check
        %p231 = pneg %p82
      $region18: #{feature_extractor_forward.2} parent=11 // pred_check_branch
        %233 = sbr.rel (%p231) target = $region20
      $region19: #{feature_extractor_forward.2} parent=11 // pred_region
        _
      $region20: #{feature_extractor_forward.2} parent=11 // pred_fallthru
        _
      // Predicated region
      $region21: #{feature_extractor_forward.2} parent=11 // pred_check
        %p234 = pneg %p103
      $region22: #{feature_extractor_forward.2} parent=11 // pred_check_branch
        %236 = sbr.rel (%p234) target = $region24
      $region23: #{feature_extractor_forward.2} parent=11 // pred_region
        _
      $region24: #{feature_extractor_forward.2} parent=11 // pred_fallthru
        _
      // Predicated region
      $region25: #{feature_extractor_forward.2} parent=11 // pred_check
        %p237 = pneg %p124
      $region26: #{feature_extractor_forward.2} parent=11 // pred_check_branch
        %239 = sbr.rel (%p237) target = $region28
      $region27: #{feature_extractor_forward.2} parent=11 // pred_region
        _
      $region28: #{feature_extractor_forward.2} parent=11 // pred_fallthru
        _
      // Predicated region
      $region29: #{feature_extractor_forward.2} parent=11 // pred_check
        %p240 = pneg %p145
      $region30: #{feature_extractor_forward.2} parent=11 // pred_check_branch
        %242 = sbr.rel (%p240) target = $region32
      $region31: #{feature_extractor_forward.2} parent=11 // pred_region
        _
      $region32: #{feature_extractor_forward.2} parent=11 // pred_fallthru
        _
      // Predicated region
      $region33: #{feature_extractor_forward.2} parent=11 // pred_check
        %p243 = pneg %p166
      $region34: #{feature_extractor_forward.2} parent=11 // pred_check_branch
        %245 = sbr.rel (%p243) target = $region36
      $region35: #{feature_extractor_forward.2} parent=11 // pred_region
        _
      $region36: #{feature_extractor_forward.2} parent=11 // pred_fallthru
        _
      // Predicated region
      $region37: #{feature_extractor_forward.2} parent=11 // pred_check
        %p246 = pneg %p187
      $region38: #{feature_extractor_forward.2} parent=11 // pred_check_branch
        %248 = sbr.rel (%p246) target = $region40
      $region39: #{feature_extractor_forward.2} parent=11 // pred_region
        _
      $region40: #{feature_extractor_forward.2} parent=11 // pred_fallthru
        _
    $region12: #{feature_extractor_forward.2} parent=5 // pred_fallthru
      _
    %p249 = scmp.lt.s32.totalorder %s14, 2
    // Predicated region
    $region41: #{feature_extractor_forward.2} parent=5 // pred_check
      %p250 = pneg %p249
    $region42: #{feature_extractor_forward.2} parent=5 // pred_check_branch
      %252 = sbr.rel (%p250) target = $region44
    $region43: #{feature_extractor_forward.2} parent=5 // pred_region
      // Predicated region
      $region45: #{feature_extractor_forward.2} parent=43 // pred_check
        %p253 = pneg %p34
      $region46: #{feature_extractor_forward.2} parent=43 // pred_check_branch
        %255 = sbr.rel (%p253) target = $region48
      $region47: #{feature_extractor_forward.2} parent=43 // pred_region
        %p256 = scmp.lt.s32.totalorder %s14, 1
        %s257 = scalar_select %p256, %s14, 1
        %s258 = smul.addr %s257, 24
        %s259 = smul.addr %s258, 4
        %s260 = scalar_lea.vmem %s0, %s259
      $region48: #{feature_extractor_forward.2} parent=43 // pred_fallthru
        _
    $region44: #{feature_extractor_forward.2} parent=5 // pred_fallthru
      _
    %p261 = scmp.le.s32.totalorder 1, %s14
    %p262 = scmp.lt.s32.totalorder %s14, 3
    %p263 = pnand %p261, %p262
    %p264 = pneg %p263
    // Predicated region
    $region49: #{feature_extractor_forward.2} parent=5 // pred_check
      _
    $region50: #{feature_extractor_forward.2} parent=5 // pred_check_branch
      %266 = sbr.rel (%p263) target = $region52
    $region51: #{feature_extractor_forward.2} parent=5 // pred_region
      %s267 = ssub.s32 %s14, 1
      %p268 = scmp.lt.s32.totalorder %s19, 1
      %s269 = scalar_select %p268, %s19, 1
      %s270 = smul.addr %s269, 24
      %s271 = smul.addr %s270, 4
      %s272 = scalar_lea.vmem %s0, %s271
      %p273 = pneg %p40
      %p274 = pneg %p37
      %p275 = pneg %p61
      %p276 = pneg %p58
      %p277 = pneg %p82
      %p278 = pneg %p79
      %p279 = pneg %p103
      %p280 = pneg %p100
      %p281 = pneg %p124
      %p282 = pneg %p121
      %p283 = pneg %p145
      %p284 = pneg %p142
      %p285 = pneg %p166
      %p286 = pneg %p163
      %p287 = pneg %p187
      %p288 = pneg %p184
      %p289 = pneg %p213
      %p290 = pneg %p210
      %p291 = scmp.lt.s32.totalorder %s19, 1
      %s292 = scalar_select %p291, %s19, 1
      %s293 = smul.addr %s292, 16
      %s294 = smul.addr %s293, 4
      %s295 = scalar_lea.vmem %s8, %s294
      %p296 = scmp.lt.s32.totalorder %s19, 1
      %s297 = scalar_select %p296, %s19, 1
      %s298 = smul.addr %s297, 24
      %s299 = smul.addr %s298, 4
      %s300 = scalar_lea.vmem %s0, %s299
      %p301 = scmp.lt.s32.totalorder %s19, 1
      %s302 = scalar_select %p301, %s19, 1
      %s303 = smul.addr %s302, 16
      %s304 = smul.addr %s303, 4
      %s305 = scalar_lea.vmem %s8, %s304
      %v307 = vld [vmem:[%s1] sm:$0xff]
      %v308 = vld [vmem:[%s1 + $0x8] sm:$0xff]
      %v309 = vld [vmem:[%s1 + $0x10] sm:$0xff]
      %v310 = vld [vmem:[%s1 + $0x18] sm:$0xff]
      %v311 = vld [vmem:[%s1 + $0x20] sm:$0xff]
      %v312 = vld [vmem:[%s1 + $0x28] sm:$0xff]
      %v313 = vld [vmem:[%s1 + $0x30] sm:$0xff]
      %v314 = vld [vmem:[%s1 + $0x38] sm:$0xff]
      %v315 = vld [vmem:[%s1 + $0x40] sm:$0xff]
      %v316 = vld [vmem:[%s1 + $0x48] sm:$0xff]
      %v317 = vld [vmem:[%s1 + $0x50] sm:$0xff]
      %v318 = vld [vmem:[%s1 + $0x58] sm:$0xff]
      %v319 = vld [vmem:[%s1 + $0x60] sm:$0xff]
      %v320 = vld [vmem:[%s1 + $0x68] sm:$0xff]
      %v321 = vld [vmem:[%s1 + $0x70] sm:$0xff]
      %v322 = vld [vmem:[%s1 + $0x78] sm:$0xff]
      %v323 = vld [vmem:[%s300 + $0x4] sm:$0x8]
      %v324 = vld [vmem:[%s300 + $0x8] sm:$0xf]
      %v325 = vld [vmem:[%s300 + $0xc] sm:$0xf]
      %v326 = vld [vmem:[%s300 + $0x10] sm:$0xf]
      %v327 = vld [vmem:[%s300 + $0x14] sm:$0xf]
      %v328 = vld [vmem:[%s300 + $0x18] sm:$0xf]
      %v329 = vld [vmem:[%s300 + $0x1c] sm:$0xf]
      %v330 = vld [vmem:[%s300 + $0x20] sm:$0xf]
      %v331 = vld [vmem:[%s300 + $0x24] sm:$0xf]
      %v332 = vld [vmem:[%s300 + $0x28] sm:$0xf]
      %v333 = vld [vmem:[%s300 + $0x2c] sm:$0xf]
      %v334 = vld [vmem:[%s300 + $0x30] sm:$0xf]
      %v335 = vld [vmem:[%s300 + $0x34] sm:$0xf]
      %v336 = vld [vmem:[%s300 + $0x38] sm:$0xf]
      %v337 = vld [vmem:[%s300 + $0x3c] sm:$0xf]
      %v338 = vld [vmem:[%s300 + $0x40] sm:$0xf]
      %v339 = vld [vmem:[%s300 + $0x44] sm:$0xf]
      %v340 = vld [vmem:[%s2] sm:$0xf]
      %v341 = vld [vmem:[%s2 + $0x4] sm:$0xf]
      %v342 = vld [vmem:[%s2 + $0x8] sm:$0xf]
      %v343 = vld [vmem:[%s2 + $0xc] sm:$0xf]
      %v344 = vld [vmem:[%s2 + $0x10] sm:$0xf]
      %v345 = vld [vmem:[%s2 + $0x14] sm:$0xf]
      %v346 = vld [vmem:[%s2 + $0x18] sm:$0xf]
      %v347 = vld [vmem:[%s2 + $0x1c] sm:$0xf]
      %v364 = vunpack.c.l.b16 %v324
      %v365 = vunpack.c.l.b16 %v325
      %v366 = vunpack.c.l.b16 %v326
      %v367 = vunpack.c.l.b16 %v327
      %v368 = vunpack.c.l.b16 %v328
      %v369 = vunpack.c.l.b16 %v329
      %v370 = vunpack.c.l.b16 %v330
      %v371 = vunpack.c.l.b16 %v331
      %v372 = vunpack.c.l.b16 %v332
      %v373 = vunpack.c.l.b16 %v333
      %v374 = vunpack.c.l.b16 %v334
      %v375 = vunpack.c.l.b16 %v335
      %v376 = vunpack.c.l.b16 %v336
      %v377 = vunpack.c.l.b16 %v337
      %v378 = vunpack.c.l.b16 %v338
      %v379 = vunpack.c.l.b16 %v339
      %v380 = vpack.c.b16 %v365, %v364
      %v381 = vpack.c.b16 %v367, %v366
      %v382 = vpack.c.b16 %v369, %v368
      %v383 = vpack.c.b16 %v371, %v370
      %v384 = vpack.c.b16 %v373, %v372
      %v385 = vpack.c.b16 %v375, %v374
      %v386 = vpack.c.b16 %v377, %v376
      %v387 = vpack.c.b16 %v379, %v378
      %v392 = vunpack.c.l.b16 %v344
      %v393 = vunpack.c.l.b16 %v345
      %v394 = vunpack.c.l.b16 %v346
      %v395 = vunpack.c.l.b16 %v347
      %v396 = vpack.c.b16 %v393, %v392
      %v397 = vpack.c.b16 %v395, %v394
      %vm400 = vcmask 261120
      %v402 = vsel %vm400, %v380, 0
      %v405 = vsel %vm400, %v381, 0
      %v408 = vsel %vm400, %v382, 0
      %v411 = vsel %vm400, %v383, 0
      %v414 = vsel %vm400, %v384, 0
      %v417 = vsel %vm400, %v385, 0
      %v420 = vsel %vm400, %v386, 0
      %v423 = vsel %vm400, %v387, 0
      %425 = vmatprep.subr.bf16.mxu0 0
      %426 = vmatpush1.bf16.msra.mxu0 0
      %427 = vmatprep.subr.bf16.mxu0 0
      %428 = vmatpush1.bf16.msra.mxu0 0
      %429 = vmatprep.subr.bf16.mxu0 0
      %430 = vmatpush1.bf16.msra.mxu0 0
      %431 = vmatprep.subr.bf16.mxu0 0
      %432 = vmatpush1.bf16.msra.mxu0 0
      %433 = vmatprep.subr.bf16.mxu0 0
      %434 = vmatpush1.bf16.msra.mxu0 0
      %435 = vmatprep.subr.bf16.mxu0 0
      %436 = vmatpush1.bf16.msra.mxu0 0
      %437 = vmatprep.subr.bf16.mxu0 0
      %438 = vmatpush1.bf16.msra.mxu0 %v397
      %439 = vmatprep.subr.bf16.mxu0 0
      %440 = vmatpush1.bf16.msra.mxu0 %v396
      %441 = vmatprep.subr.bf16.mxu0 0
      %442 = vmatpush2.bf16.msra.mxu0 0
      %443 = vmatprep.subr.bf16.mxu0 0
      %444 = vmatpush2.bf16.msra.mxu0 0
      %445 = vmatprep.subr.bf16.mxu0 0
      %446 = vmatpush2.bf16.msra.mxu0 0
      %447 = vmatprep.subr.bf16.mxu0 0
      %448 = vmatpush2.bf16.msra.mxu0 0
      %449 = vmatprep.subr.bf16.mxu0 0
      %450 = vmatpush2.bf16.msra.mxu0 0
      %451 = vmatprep.subr.bf16.mxu0 0
      %452 = vmatpush2.bf16.msra.mxu0 0
      %453 = vmatprep.subr.bf16.mxu0 0
      %454 = vmatpush2.bf16.msra.mxu0 0
      %455 = vmatprep.subr.bf16.mxu0 0
      %456 = vmatpush2.bf16.msra.mxu0 0
      %457 = vmatprep.mubr.bf16.mxu0 0
      %458 = vmatmul.mubr.bf16.gmra.mxu0 %v402
      %v459 = vpop.f32.mrf.mxu0
      %v460 = vadd.f32 0.0, %v459
      %v461 = vpop.f32.mrf.mxu0
      %v462 = vpop.f32.mrf.mxu0
      %v463 = vadd.f32 0.0, %v462
      %v464 = vpop.f32.mrf.mxu0
      %465 = vmatprep.mubr.bf16.mxu0 0
      %466 = vmatmul.mubr.bf16.gmra.mxu0 %v405
      %v467 = vpop.f32.mrf.mxu0
      %v468 = vadd.f32 0.0, %v467
      %v469 = vpop.f32.mrf.mxu0
      %v470 = vpop.f32.mrf.mxu0
      %v471 = vadd.f32 0.0, %v470
      %v472 = vpop.f32.mrf.mxu0
      %473 = vmatprep.mubr.bf16.mxu0 0
      %474 = vmatmul.mubr.bf16.gmra.mxu0 %v408
      %v475 = vpop.f32.mrf.mxu0
      %v476 = vadd.f32 0.0, %v475
      %v477 = vpop.f32.mrf.mxu0
      %v478 = vpop.f32.mrf.mxu0
      %v479 = vadd.f32 0.0, %v478
      %v480 = vpop.f32.mrf.mxu0
      %481 = vmatprep.mubr.bf16.mxu0 0
      %482 = vmatmul.mubr.bf16.gmra.mxu0 %v411
      %v483 = vpop.f32.mrf.mxu0
      %v484 = vadd.f32 0.0, %v483
      %v485 = vpop.f32.mrf.mxu0
      %v486 = vpop.f32.mrf.mxu0
      %v487 = vadd.f32 0.0, %v486
      %v488 = vpop.f32.mrf.mxu0
      %489 = vmatprep.mubr.bf16.mxu0 0
      %490 = vmatmul.mubr.bf16.gmra.mxu0 %v414
      %v491 = vpop.f32.mrf.mxu0
      %v492 = vadd.f32 0.0, %v491
      %v493 = vpop.f32.mrf.mxu0
      %v494 = vpop.f32.mrf.mxu0
      %v495 = vadd.f32 0.0, %v494
      %v496 = vpop.f32.mrf.mxu0
      %497 = vmatprep.mubr.bf16.mxu0 0
      %498 = vmatmul.mubr.bf16.gmra.mxu0 %v417
      %v499 = vpop.f32.mrf.mxu0
      %v500 = vadd.f32 0.0, %v499
      %v501 = vpop.f32.mrf.mxu0
      %v502 = vpop.f32.mrf.mxu0
      %v503 = vadd.f32 0.0, %v502
      %v504 = vpop.f32.mrf.mxu0
      %505 = vmatprep.mubr.bf16.mxu0 0
      %506 = vmatmul.mubr.bf16.gmra.mxu0 %v420
      %v507 = vpop.f32.mrf.mxu0
      %v508 = vadd.f32 0.0, %v507
      %v509 = vpop.f32.mrf.mxu0
      %v510 = vpop.f32.mrf.mxu0
      %v511 = vadd.f32 0.0, %v510
      %v512 = vpop.f32.mrf.mxu0
      %513 = vmatprep.mubr.bf16.mxu0 0
      %514 = vmatmul.mubr.bf16.gmra.mxu0 %v423
      %v515 = vpop.f32.mrf.mxu0
      %v516 = vadd.f32 0.0, %v515
      %v517 = vpop.f32.mrf.mxu0
      %v518 = vpop.f32.mrf.mxu0
      %v519 = vadd.f32 0.0, %v518
      %v520 = vpop.f32.mrf.mxu0
      %521 = vdwg.mxu0
      %v523 = vunpack.c.l.b16 %v323
      %v524 = vpack.c.b16 %v364, %v523
      %v525 = vpack.c.b16 %v366, %v365
      %v526 = vpack.c.b16 %v368, %v367
      %v527 = vpack.c.b16 %v370, %v369
      %v528 = vpack.c.b16 %v372, %v371
      %v529 = vpack.c.b16 %v374, %v373
      %v530 = vpack.c.b16 %v376, %v375
      %v531 = vpack.c.b16 %v378, %v377
      %v532 = vpack.c.b16 %v379, %v379
      %vm533 = vsmask.f32 4352
      %v535 = vshrl.u32 %v524, 16
      %v537 = vrot.slane %v535, 3
      %v538 = vshll.u32 %v524, 16
      %v540 = vrot.slane %v538, 4
      %v541 = vor.u32 %v537, %v540
      %v543 = vshrl.u32 %v525, 16
      %v545 = vrot.slane %v543, 3
      %v546 = vshll.u32 %v525, 16
      %v548 = vrot.slane %v546, 4
      %v549 = vor.u32 %v545, %v548
      %v550 = vsel %vm533, %v541, %v549
      %v552 = vshrl.u32 %v526, 16
      %v554 = vrot.slane %v552, 3
      %v555 = vshll.u32 %v526, 16
      %v557 = vrot.slane %v555, 4
      %v558 = vor.u32 %v554, %v557
      %v559 = vsel %vm533, %v549, %v558
      %v561 = vshrl.u32 %v527, 16
      %v563 = vrot.slane %v561, 3
      %v564 = vshll.u32 %v527, 16
      %v566 = vrot.slane %v564, 4
      %v567 = vor.u32 %v563, %v566
      %v568 = vsel %vm533, %v558, %v567
      %v570 = vshrl.u32 %v528, 16
      %v572 = vrot.slane %v570, 3
      %v573 = vshll.u32 %v528, 16
      %v575 = vrot.slane %v573, 4
      %v576 = vor.u32 %v572, %v575
      %v577 = vsel %vm533, %v567, %v576
      %v579 = vshrl.u32 %v529, 16
      %v581 = vrot.slane %v579, 3
      %v582 = vshll.u32 %v529, 16
      %v584 = vrot.slane %v582, 4
      %v585 = vor.u32 %v581, %v584
      %v586 = vsel %vm533, %v576, %v585
      %v588 = vshrl.u32 %v530, 16
      %v590 = vrot.slane %v588, 3
      %v591 = vshll.u32 %v530, 16
      %v593 = vrot.slane %v591, 4
      %v594 = vor.u32 %v590, %v593
      %v595 = vsel %vm533, %v585, %v594
      %v597 = vshrl.u32 %v531, 16
      %v599 = vrot.slane %v597, 3
      %v600 = vshll.u32 %v531, 16
      %v602 = vrot.slane %v600, 4
      %v603 = vor.u32 %v599, %v602
      %v604 = vsel %vm533, %v594, %v603
      %v606 = vshrl.u32 %v532, 16
      %v608 = vrot.slane %v606, 3
      %v609 = vshll.u32 %v532, 16
      %v611 = vrot.slane %v609, 4
      %v612 = vor.u32 %v608, %v611
      %v613 = vsel %vm533, %v603, %v612
      %v618 = vunpack.c.l.b16 %v340
      %v619 = vunpack.c.l.b16 %v341
      %v620 = vunpack.c.l.b16 %v342
      %v621 = vunpack.c.l.b16 %v343
      %v622 = vpack.c.b16 %v619, %v618
      %v623 = vpack.c.b16 %v621, %v620
      %v627 = vsel %vm400, %v550, 0
      %v630 = vsel %vm400, %v559, 0
      %v633 = vsel %vm400, %v568, 0
      %v636 = vsel %vm400, %v577, 0
      %v639 = vsel %vm400, %v586, 0
      %v642 = vsel %vm400, %v595, 0
      %v645 = vsel %vm400, %v604, 0
      %v648 = vsel %vm400, %v613, 0
      %650 = vmatprep.subr.bf16.mxu0 0
      %651 = vmatpush1.bf16.msra.mxu0 0
      %652 = vmatprep.subr.bf16.mxu0 0
      %653 = vmatpush1.bf16.msra.mxu0 0
      %654 = vmatprep.subr.bf16.mxu0 0
      %655 = vmatpush1.bf16.msra.mxu0 0
      %656 = vmatprep.subr.bf16.mxu0 0
      %657 = vmatpush1.bf16.msra.mxu0 0
      %658 = vmatprep.subr.bf16.mxu0 0
      %659 = vmatpush1.bf16.msra.mxu0 0
      %660 = vmatprep.subr.bf16.mxu0 0
      %661 = vmatpush1.bf16.msra.mxu0 0
      %662 = vmatprep.subr.bf16.mxu0 0
      %663 = vmatpush1.bf16.msra.mxu0 %v623
      %664 = vmatprep.subr.bf16.mxu0 0
      %665 = vmatpush1.bf16.msra.mxu0 %v622
      %666 = vmatprep.subr.bf16.mxu0 0
      %667 = vmatpush2.bf16.msra.mxu0 0
      %668 = vmatprep.subr.bf16.mxu0 0
      %669 = vmatpush2.bf16.msra.mxu0 0
      %670 = vmatprep.subr.bf16.mxu0 0
      %671 = vmatpush2.bf16.msra.mxu0 0
      %672 = vmatprep.subr.bf16.mxu0 0
      %673 = vmatpush2.bf16.msra.mxu0 0
      %674 = vmatprep.subr.bf16.mxu0 0
      %675 = vmatpush2.bf16.msra.mxu0 0
      %676 = vmatprep.subr.bf16.mxu0 0
      %677 = vmatpush2.bf16.msra.mxu0 0
      %678 = vmatprep.subr.bf16.mxu0 0
      %679 = vmatpush2.bf16.msra.mxu0 0
      %680 = vmatprep.subr.bf16.mxu0 0
      %681 = vmatpush2.bf16.msra.mxu0 0
      %682 = vmatprep.mubr.bf16.mxu0 0
      %683 = vmatmul.mubr.bf16.gmra.mxu0 %v627
      %v684 = vpop.f32.mrf.mxu0
      %v685 = vadd.f32 %v460, %v684
      %v686 = vpop.f32.mrf.mxu0
      %v687 = vpop.f32.mrf.mxu0
      %v688 = vadd.f32 %v463, %v687
      %v689 = vpop.f32.mrf.mxu0
      %690 = vmatprep.mubr.bf16.mxu0 0
      %691 = vmatmul.mubr.bf16.gmra.mxu0 %v630
      %v692 = vpop.f32.mrf.mxu0
      %v693 = vadd.f32 %v468, %v692
      %v694 = vpop.f32.mrf.mxu0
      %v695 = vpop.f32.mrf.mxu0
      %v696 = vadd.f32 %v471, %v695
      %v697 = vpop.f32.mrf.mxu0
      %698 = vmatprep.mubr.bf16.mxu0 0
      %699 = vmatmul.mubr.bf16.gmra.mxu0 %v633
      %v700 = vpop.f32.mrf.mxu0
      %v701 = vadd.f32 %v476, %v700
      %v702 = vpop.f32.mrf.mxu0
      %v703 = vpop.f32.mrf.mxu0
      %v704 = vadd.f32 %v479, %v703
      %v705 = vpop.f32.mrf.mxu0
      %706 = vmatprep.mubr.bf16.mxu0 0
      %707 = vmatmul.mubr.bf16.gmra.mxu0 %v636
      %v708 = vpop.f32.mrf.mxu0
      %v709 = vadd.f32 %v484, %v708
      %v710 = vpop.f32.mrf.mxu0
      %v711 = vpop.f32.mrf.mxu0
      %v712 = vadd.f32 %v487, %v711
      %v713 = vpop.f32.mrf.mxu0
      %714 = vmatprep.mubr.bf16.mxu0 0
      %715 = vmatmul.mubr.bf16.gmra.mxu0 %v639
      %v716 = vpop.f32.mrf.mxu0
      %v717 = vadd.f32 %v492, %v716
      %v718 = vpop.f32.mrf.mxu0
      %v719 = vpop.f32.mrf.mxu0
      %v720 = vadd.f32 %v495, %v719
      %v721 = vpop.f32.mrf.mxu0
      %722 = vmatprep.mubr.bf16.mxu0 0
      %723 = vmatmul.mubr.bf16.gmra.mxu0 %v642
      %v724 = vpop.f32.mrf.mxu0
      %v725 = vadd.f32 %v500, %v724
      %v726 = vpop.f32.mrf.mxu0
      %v727 = vpop.f32.mrf.mxu0
      %v728 = vadd.f32 %v503, %v727
      %v729 = vpop.f32.mrf.mxu0
      %730 = vmatprep.mubr.bf16.mxu0 0
      %731 = vmatmul.mubr.bf16.gmra.mxu0 %v645
      %v732 = vpop.f32.mrf.mxu0
      %v733 = vadd.f32 %v508, %v732
      %v734 = vpop.f32.mrf.mxu0
      %v735 = vpop.f32.mrf.mxu0
      %v736 = vadd.f32 %v511, %v735
      %v737 = vpop.f32.mrf.mxu0
      %738 = vmatprep.mubr.bf16.mxu0 0
      %739 = vmatmul.mubr.bf16.gmra.mxu0 %v648
      %v740 = vpop.f32.mrf.mxu0
      %v741 = vadd.f32 %v516, %v740
      %v742 = vpop.f32.mrf.mxu0
      %v743 = vpop.f32.mrf.mxu0
      %v744 = vadd.f32 %v519, %v743
      %v745 = vpop.f32.mrf.mxu0
      %746 = vdwg.mxu0
      %v747 = vld [vmem:[%s300 + $0x8] sm:$0xf]
      %v748 = vld [vmem:[%s300 + $0xc] sm:$0xf]
      %v749 = vld [vmem:[%s300 + $0x10] sm:$0xf]
      %v750 = vld [vmem:[%s300 + $0x14] sm:$0xf]
      %v751 = vld [vmem:[%s300 + $0x18] sm:$0xf]
      %v752 = vld [vmem:[%s300 + $0x1c] sm:$0xf]
      %v753 = vld [vmem:[%s300 + $0x20] sm:$0xf]
      %v754 = vld [vmem:[%s300 + $0x24] sm:$0xf]
      %v755 = vld [vmem:[%s300 + $0x28] sm:$0xf]
      %v756 = vld [vmem:[%s300 + $0x2c] sm:$0xf]
      %v757 = vld [vmem:[%s300 + $0x30] sm:$0xf]
      %v758 = vld [vmem:[%s300 + $0x34] sm:$0xf]
      %v759 = vld [vmem:[%s300 + $0x38] sm:$0xf]
      %v760 = vld [vmem:[%s300 + $0x3c] sm:$0xf]
      %v761 = vld [vmem:[%s300 + $0x40] sm:$0xf]
      %v762 = vld [vmem:[%s300 + $0x44] sm:$0xf]
      %v763 = vld [vmem:[%s300 + $0x48] sm:$0x1]
      %v764 = vld [vmem:[%s2 + $0x20] sm:$0xf]
      %v765 = vld [vmem:[%s2 + $0x24] sm:$0xf]
      %v766 = vld [vmem:[%s2 + $0x28] sm:$0xf]
      %v767 = vld [vmem:[%s2 + $0x2c] sm:$0xf]
      %v785 = vunpack.c.l.b16 %v747
      %v786 = vunpack.c.l.b16 %v748
      %v787 = vunpack.c.l.b16 %v749
      %v788 = vunpack.c.l.b16 %v750
      %v789 = vunpack.c.l.b16 %v751
      %v790 = vunpack.c.l.b16 %v752
      %v791 = vunpack.c.l.b16 %v753
      %v792 = vunpack.c.l.b16 %v754
      %v793 = vunpack.c.l.b16 %v755
      %v794 = vunpack.c.l.b16 %v756
      %v795 = vunpack.c.l.b16 %v757
      %v796 = vunpack.c.l.b16 %v758
      %v797 = vunpack.c.l.b16 %v759
      %v798 = vunpack.c.l.b16 %v760
      %v799 = vunpack.c.l.b16 %v761
      %v800 = vunpack.c.l.b16 %v762
      %v801 = vunpack.c.l.b16 %v763
      %v802 = vpack.c.b16 %v786, %v785
      %v803 = vpack.c.b16 %v788, %v787
      %v804 = vpack.c.b16 %v790, %v789
      %v805 = vpack.c.b16 %v792, %v791
      %v806 = vpack.c.b16 %v794, %v793
      %v807 = vpack.c.b16 %v796, %v795
      %v808 = vpack.c.b16 %v798, %v797
      %v809 = vpack.c.b16 %v800, %v799
      %v810 = vpack.c.b16 %v801, %v801
      %vm811 = vsmask.f32 7424
      %v813 = vshrl.u32 %v802, 16
      %v815 = vshll.u32 %v802, 16
      %v817 = vrot.slane %v815, 1
      %v818 = vor.u32 %v813, %v817
      %v820 = vshll.u32 %v803, 16
      %v822 = vrot.slane %v820, 1
      %v823 = vsel %vm811, %v818, %v822
      %v824 = vshrl.u32 %v803, 16
      %v826 = vor.u32 %v824, %v822
      %v828 = vshll.u32 %v804, 16
      %v830 = vrot.slane %v828, 1
      %v831 = vsel %vm811, %v826, %v830
      %v832 = vshrl.u32 %v804, 16
      %v834 = vor.u32 %v832, %v830
      %v836 = vshll.u32 %v805, 16
      %v838 = vrot.slane %v836, 1
      %v839 = vsel %vm811, %v834, %v838
      %v840 = vshrl.u32 %v805, 16
      %v842 = vor.u32 %v840, %v838
      %v844 = vshll.u32 %v806, 16
      %v846 = vrot.slane %v844, 1
      %v847 = vsel %vm811, %v842, %v846
      %v848 = vshrl.u32 %v806, 16
      %v850 = vor.u32 %v848, %v846
      %v852 = vshll.u32 %v807, 16
      %v854 = vrot.slane %v852, 1
      %v855 = vsel %vm811, %v850, %v854
      %v856 = vshrl.u32 %v807, 16
      %v858 = vor.u32 %v856, %v854
      %v860 = vshll.u32 %v808, 16
      %v862 = vrot.slane %v860, 1
      %v863 = vsel %vm811, %v858, %v862
      %v864 = vshrl.u32 %v808, 16
      %v866 = vor.u32 %v864, %v862
      %v868 = vshll.u32 %v809, 16
      %v870 = vrot.slane %v868, 1
      %v871 = vsel %vm811, %v866, %v870
      %v872 = vshrl.u32 %v809, 16
      %v874 = vor.u32 %v872, %v870
      %v876 = vshll.u32 %v810, 16
      %v878 = vrot.slane %v876, 1
      %v879 = vsel %vm811, %v874, %v878
      %v884 = vunpack.c.l.b16 %v764
      %v885 = vunpack.c.l.b16 %v765
      %v886 = vunpack.c.l.b16 %v766
      %v887 = vunpack.c.l.b16 %v767
      %v888 = vpack.c.b16 %v885, %v884
      %v889 = vpack.c.b16 %v887, %v886
      %v893 = vsel %vm400, %v823, 0
      %v896 = vsel %vm400, %v831, 0
      %v899 = vsel %vm400, %v839, 0
      %v902 = vsel %vm400, %v847, 0
      %v905 = vsel %vm400, %v855, 0
      %v908 = vsel %vm400, %v863, 0
      %v911 = vsel %vm400, %v871, 0
      %v914 = vsel %vm400, %v879, 0
      %916 = vmatprep.subr.bf16.mxu0 0
      %917 = vmatpush1.bf16.msra.mxu0 0
      %918 = vmatprep.subr.bf16.mxu0 0
      %919 = vmatpush1.bf16.msra.mxu0 0
      %920 = vmatprep.subr.bf16.mxu0 0
      %921 = vmatpush1.bf16.msra.mxu0 0
      %922 = vmatprep.subr.bf16.mxu0 0
      %923 = vmatpush1.bf16.msra.mxu0 0
      %924 = vmatprep.subr.bf16.mxu0 0
      %925 = vmatpush1.bf16.msra.mxu0 0
      %926 = vmatprep.subr.bf16.mxu0 0
      %927 = vmatpush1.bf16.msra.mxu0 0
      %928 = vmatprep.subr.bf16.mxu0 0
      %929 = vmatpush1.bf16.msra.mxu0 %v889
      %930 = vmatprep.subr.bf16.mxu0 0
      %931 = vmatpush1.bf16.msra.mxu0 %v888
      %932 = vmatprep.subr.bf16.mxu0 0
      %933 = vmatpush2.bf16.msra.mxu0 0
      %934 = vmatprep.subr.bf16.mxu0 0
      %935 = vmatpush2.bf16.msra.mxu0 0
      %936 = vmatprep.subr.bf16.mxu0 0
      %937 = vmatpush2.bf16.msra.mxu0 0
      %938 = vmatprep.subr.bf16.mxu0 0
      %939 = vmatpush2.bf16.msra.mxu0 0
      %940 = vmatprep.subr.bf16.mxu0 0
      %941 = vmatpush2.bf16.msra.mxu0 0
      %942 = vmatprep.subr.bf16.mxu0 0
      %943 = vmatpush2.bf16.msra.mxu0 0
      %944 = vmatprep.subr.bf16.mxu0 0
      %945 = vmatpush2.bf16.msra.mxu0 0
      %946 = vmatprep.subr.bf16.mxu0 0
      %947 = vmatpush2.bf16.msra.mxu0 0
      %948 = vmatprep.mubr.bf16.mxu0 0
      %949 = vmatmul.mubr.bf16.gmra.mxu0 %v893
      %v950 = vpop.f32.mrf.mxu0
      %v951 = vadd.f32 0.0, %v950
      %v952 = vpop.f32.mrf.mxu0
      %v953 = vpop.f32.mrf.mxu0
      %v954 = vadd.f32 0.0, %v953
      %v955 = vpop.f32.mrf.mxu0
      %956 = vmatprep.mubr.bf16.mxu0 0
      %957 = vmatmul.mubr.bf16.gmra.mxu0 %v896
      %v958 = vpop.f32.mrf.mxu0
      %v959 = vadd.f32 0.0, %v958
      %v960 = vpop.f32.mrf.mxu0
      %v961 = vpop.f32.mrf.mxu0
      %v962 = vadd.f32 0.0, %v961
      %v963 = vpop.f32.mrf.mxu0
      %964 = vmatprep.mubr.bf16.mxu0 0
      %965 = vmatmul.mubr.bf16.gmra.mxu0 %v899
      %v966 = vpop.f32.mrf.mxu0
      %v967 = vadd.f32 0.0, %v966
      %v968 = vpop.f32.mrf.mxu0
      %v969 = vpop.f32.mrf.mxu0
      %v970 = vadd.f32 0.0, %v969
      %v971 = vpop.f32.mrf.mxu0
      %972 = vmatprep.mubr.bf16.mxu0 0
      %973 = vmatmul.mubr.bf16.gmra.mxu0 %v902
      %v974 = vpop.f32.mrf.mxu0
      %v975 = vadd.f32 0.0, %v974
      %v976 = vpop.f32.mrf.mxu0
      %v977 = vpop.f32.mrf.mxu0
      %v978 = vadd.f32 0.0, %v977
      %v979 = vpop.f32.mrf.mxu0
      %980 = vmatprep.mubr.bf16.mxu0 0
      %981 = vmatmul.mubr.bf16.gmra.mxu0 %v905
      %v982 = vpop.f32.mrf.mxu0
      %v983 = vadd.f32 0.0, %v982
      %v984 = vpop.f32.mrf.mxu0
      %v985 = vpop.f32.mrf.mxu0
      %v986 = vadd.f32 0.0, %v985
      %v987 = vpop.f32.mrf.mxu0
      %988 = vmatprep.mubr.bf16.mxu0 0
      %989 = vmatmul.mubr.bf16.gmra.mxu0 %v908
      %v990 = vpop.f32.mrf.mxu0
      %v991 = vadd.f32 0.0, %v990
      %v992 = vpop.f32.mrf.mxu0
      %v993 = vpop.f32.mrf.mxu0
      %v994 = vadd.f32 0.0, %v993
      %v995 = vpop.f32.mrf.mxu0
      %996 = vmatprep.mubr.bf16.mxu0 0
      %997 = vmatmul.mubr.bf16.gmra.mxu0 %v911
      %v998 = vpop.f32.mrf.mxu0
      %v999 = vadd.f32 0.0, %v998
      %v1000 = vpop.f32.mrf.mxu0
      %v1001 = vpop.f32.mrf.mxu0
      %v1002 = vadd.f32 0.0, %v1001
      %v1003 = vpop.f32.mrf.mxu0
      %1004 = vmatprep.mubr.bf16.mxu0 0
      %1005 = vmatmul.mubr.bf16.gmra.mxu0 %v914
      %v1006 = vpop.f32.mrf.mxu0
      %v1007 = vadd.f32 0.0, %v1006
      %v1008 = vpop.f32.mrf.mxu0
      %v1009 = vpop.f32.mrf.mxu0
      %v1010 = vadd.f32 0.0, %v1009
      %v1011 = vpop.f32.mrf.mxu0
      %1012 = vdwg.mxu0
      %v1013 = vadd.f32 %v685, %v951
      %v1014 = vadd.f32 %v688, %v954
      %v1015 = vadd.f32 %v693, %v959
      %v1016 = vadd.f32 %v696, %v962
      %v1017 = vadd.f32 %v701, %v967
      %v1018 = vadd.f32 %v704, %v970
      %v1019 = vadd.f32 %v709, %v975
      %v1020 = vadd.f32 %v712, %v978
      %v1021 = vadd.f32 %v717, %v983
      %v1022 = vadd.f32 %v720, %v986
      %v1023 = vadd.f32 %v725, %v991
      %v1024 = vadd.f32 %v728, %v994
      %v1025 = vadd.f32 %v733, %v999
      %v1026 = vadd.f32 %v736, %v1002
      %v1027 = vadd.f32 %v741, %v1007
      %v1028 = vadd.f32 %v744, %v1010
      %v1029 = vld [vmem:[%s300 + $0xc] sm:$0x8]
      %v1030 = vld [vmem:[%s300 + $0x10] sm:$0xf]
      %v1031 = vld [vmem:[%s300 + $0x14] sm:$0xf]
      %v1032 = vld [vmem:[%s300 + $0x18] sm:$0xf]
      %v1033 = vld [vmem:[%s300 + $0x1c] sm:$0xf]
      %v1034 = vld [vmem:[%s300 + $0x20] sm:$0xf]
      %v1035 = vld [vmem:[%s300 + $0x24] sm:$0xf]
      %v1036 = vld [vmem:[%s300 + $0x28] sm:$0xf]
      %v1037 = vld [vmem:[%s300 + $0x2c] sm:$0xf]
      %v1038 = vld [vmem:[%s300 + $0x30] sm:$0xf]
      %v1039 = vld [vmem:[%s300 + $0x34] sm:$0xf]
      %v1040 = vld [vmem:[%s300 + $0x38] sm:$0xf]
      %v1041 = vld [vmem:[%s300 + $0x3c] sm:$0xf]
      %v1042 = vld [vmem:[%s300 + $0x40] sm:$0xf]
      %v1043 = vld [vmem:[%s300 + $0x44] sm:$0xf]
      %v1044 = vld [vmem:[%s300 + $0x48] sm:$0xf]
      %v1045 = vld [vmem:[%s300 + $0x4c] sm:$0xf]
      %v1046 = vld [vmem:[%s2 + $0x30] sm:$0xf]
      %v1047 = vld [vmem:[%s2 + $0x34] sm:$0xf]
      %v1048 = vld [vmem:[%s2 + $0x38] sm:$0xf]
      %v1049 = vld [vmem:[%s2 + $0x3c] sm:$0xf]
      %v1067 = vunpack.c.l.b16 %v1029
      %v1068 = vunpack.c.l.b16 %v1030
      %v1069 = vunpack.c.l.b16 %v1031
      %v1070 = vunpack.c.l.b16 %v1032
      %v1071 = vunpack.c.l.b16 %v1033
      %v1072 = vunpack.c.l.b16 %v1034
      %v1073 = vunpack.c.l.b16 %v1035
      %v1074 = vunpack.c.l.b16 %v1036
      %v1075 = vunpack.c.l.b16 %v1037
      %v1076 = vunpack.c.l.b16 %v1038
      %v1077 = vunpack.c.l.b16 %v1039
      %v1078 = vunpack.c.l.b16 %v1040
      %v1079 = vunpack.c.l.b16 %v1041
      %v1080 = vunpack.c.l.b16 %v1042
      %v1081 = vunpack.c.l.b16 %v1043
      %v1082 = vunpack.c.l.b16 %v1044
      %v1083 = vunpack.c.l.b16 %v1045
      %v1084 = vpack.c.b16 %v1068, %v1067
      %v1085 = vpack.c.b16 %v1070, %v1069
      %v1086 = vpack.c.b16 %v1072, %v1071
      %v1087 = vpack.c.b16 %v1074, %v1073
      %v1088 = vpack.c.b16 %v1076, %v1075
      %v1089 = vpack.c.b16 %v1078, %v1077
      %v1090 = vpack.c.b16 %v1080, %v1079
      %v1091 = vpack.c.b16 %v1082, %v1081
      %v1092 = vpack.c.b16 %v1083, %v1083
      %v1094 = vshrl.u32 %v1084, 16
      %v1096 = vrot.slane %v1094, 3
      %v1097 = vshll.u32 %v1084, 16
      %v1099 = vrot.slane %v1097, 4
      %v1100 = vor.u32 %v1096, %v1099
      %v1102 = vshrl.u32 %v1085, 16
      %v1104 = vrot.slane %v1102, 3
      %v1105 = vshll.u32 %v1085, 16
      %v1107 = vrot.slane %v1105, 4
      %v1108 = vor.u32 %v1104, %v1107
      %v1109 = vsel %vm533, %v1100, %v1108
      %v1111 = vshrl.u32 %v1086, 16
      %v1113 = vrot.slane %v1111, 3
      %v1114 = vshll.u32 %v1086, 16
      %v1116 = vrot.slane %v1114, 4
      %v1117 = vor.u32 %v1113, %v1116
      %v1118 = vsel %vm533, %v1108, %v1117
      %v1120 = vshrl.u32 %v1087, 16
      %v1122 = vrot.slane %v1120, 3
      %v1123 = vshll.u32 %v1087, 16
      %v1125 = vrot.slane %v1123, 4
      %v1126 = vor.u32 %v1122, %v1125
      %v1127 = vsel %vm533, %v1117, %v1126
      %v1129 = vshrl.u32 %v1088, 16
      %v1131 = vrot.slane %v1129, 3
      %v1132 = vshll.u32 %v1088, 16
      %v1134 = vrot.slane %v1132, 4
      %v1135 = vor.u32 %v1131, %v1134
      %v1136 = vsel %vm533, %v1126, %v1135
      %v1138 = vshrl.u32 %v1089, 16
      %v1140 = vrot.slane %v1138, 3
      %v1141 = vshll.u32 %v1089, 16
      %v1143 = vrot.slane %v1141, 4
      %v1144 = vor.u32 %v1140, %v1143
      %v1145 = vsel %vm533, %v1135, %v1144
      %v1147 = vshrl.u32 %v1090, 16
      %v1149 = vrot.slane %v1147, 3
      %v1150 = vshll.u32 %v1090, 16
      %v1152 = vrot.slane %v1150, 4
      %v1153 = vor.u32 %v1149, %v1152
      %v1154 = vsel %vm533, %v1144, %v1153
      %v1156 = vshrl.u32 %v1091, 16
      %v1158 = vrot.slane %v1156, 3
      %v1159 = vshll.u32 %v1091, 16
      %v1161 = vrot.slane %v1159, 4
      %v1162 = vor.u32 %v1158, %v1161
      %v1163 = vsel %vm533, %v1153, %v1162
      %v1165 = vshrl.u32 %v1092, 16
      %v1167 = vrot.slane %v1165, 3
      %v1168 = vshll.u32 %v1092, 16
      %v1170 = vrot.slane %v1168, 4
      %v1171 = vor.u32 %v1167, %v1170
      %v1172 = vsel %vm533, %v1162, %v1171
      %v1177 = vunpack.c.l.b16 %v1046
      %v1178 = vunpack.c.l.b16 %v1047
      %v1179 = vunpack.c.l.b16 %v1048
      %v1180 = vunpack.c.l.b16 %v1049
      %v1181 = vpack.c.b16 %v1178, %v1177
      %v1182 = vpack.c.b16 %v1180, %v1179
      %v1186 = vsel %vm400, %v1109, 0
      %v1189 = vsel %vm400, %v1118, 0
      %v1192 = vsel %vm400, %v1127, 0
      %v1195 = vsel %vm400, %v1136, 0
      %v1198 = vsel %vm400, %v1145, 0
      %v1201 = vsel %vm400, %v1154, 0
      %v1204 = vsel %vm400, %v1163, 0
      %v1207 = vsel %vm400, %v1172, 0
      %1209 = vmatprep.subr.bf16.mxu0 0
      %1210 = vmatpush1.bf16.msra.mxu0 0
      %1211 = vmatprep.subr.bf16.mxu0 0
      %1212 = vmatpush1.bf16.msra.mxu0 0
      %1213 = vmatprep.subr.bf16.mxu0 0
      %1214 = vmatpush1.bf16.msra.mxu0 0
      %1215 = vmatprep.subr.bf16.mxu0 0
      %1216 = vmatpush1.bf16.msra.mxu0 0
      %1217 = vmatprep.subr.bf16.mxu0 0
      %1218 = vmatpush1.bf16.msra.mxu0 0
      %1219 = vmatprep.subr.bf16.mxu0 0
      %1220 = vmatpush1.bf16.msra.mxu0 0
      %1221 = vmatprep.subr.bf16.mxu0 0
      %1222 = vmatpush1.bf16.msra.mxu0 %v1182
      %1223 = vmatprep.subr.bf16.mxu0 0
      %1224 = vmatpush1.bf16.msra.mxu0 %v1181
      %1225 = vmatprep.subr.bf16.mxu0 0
      %1226 = vmatpush2.bf16.msra.mxu0 0
      %1227 = vmatprep.subr.bf16.mxu0 0
      %1228 = vmatpush2.bf16.msra.mxu0 0
      %1229 = vmatprep.subr.bf16.mxu0 0
      %1230 = vmatpush2.bf16.msra.mxu0 0
      %1231 = vmatprep.subr.bf16.mxu0 0
      %1232 = vmatpush2.bf16.msra.mxu0 0
      %1233 = vmatprep.subr.bf16.mxu0 0
      %1234 = vmatpush2.bf16.msra.mxu0 0
      %1235 = vmatprep.subr.bf16.mxu0 0
      %1236 = vmatpush2.bf16.msra.mxu0 0
      %1237 = vmatprep.subr.bf16.mxu0 0
      %1238 = vmatpush2.bf16.msra.mxu0 0
      %1239 = vmatprep.subr.bf16.mxu0 0
      %1240 = vmatpush2.bf16.msra.mxu0 0
      %1241 = vmatprep.mubr.bf16.mxu0 0
      %1242 = vmatmul.mubr.bf16.gmra.mxu0 %v1186
      %v1243 = vpop.f32.mrf.mxu0
      %v1244 = vadd.f32 0.0, %v1243
      %v1245 = vpop.f32.mrf.mxu0
      %v1246 = vpop.f32.mrf.mxu0
      %v1247 = vadd.f32 0.0, %v1246
      %v1248 = vpop.f32.mrf.mxu0
      %1249 = vmatprep.mubr.bf16.mxu0 0
      %1250 = vmatmul.mubr.bf16.gmra.mxu0 %v1189
      %v1251 = vpop.f32.mrf.mxu0
      %v1252 = vadd.f32 0.0, %v1251
      %v1253 = vpop.f32.mrf.mxu0
      %v1254 = vpop.f32.mrf.mxu0
      %v1255 = vadd.f32 0.0, %v1254
      %v1256 = vpop.f32.mrf.mxu0
      %1257 = vmatprep.mubr.bf16.mxu0 0
      %1258 = vmatmul.mubr.bf16.gmra.mxu0 %v1192
      %v1259 = vpop.f32.mrf.mxu0
      %v1260 = vadd.f32 0.0, %v1259
      %v1261 = vpop.f32.mrf.mxu0
      %v1262 = vpop.f32.mrf.mxu0
      %v1263 = vadd.f32 0.0, %v1262
      %v1264 = vpop.f32.mrf.mxu0
      %1265 = vmatprep.mubr.bf16.mxu0 0
      %1266 = vmatmul.mubr.bf16.gmra.mxu0 %v1195
      %v1267 = vpop.f32.mrf.mxu0
      %v1268 = vadd.f32 0.0, %v1267
      %v1269 = vpop.f32.mrf.mxu0
      %v1270 = vpop.f32.mrf.mxu0
      %v1271 = vadd.f32 0.0, %v1270
      %v1272 = vpop.f32.mrf.mxu0
      %1273 = vmatprep.mubr.bf16.mxu0 0
      %1274 = vmatmul.mubr.bf16.gmra.mxu0 %v1198
      %v1275 = vpop.f32.mrf.mxu0
      %v1276 = vadd.f32 0.0, %v1275
      %v1277 = vpop.f32.mrf.mxu0
      %v1278 = vpop.f32.mrf.mxu0
      %v1279 = vadd.f32 0.0, %v1278
      %v1280 = vpop.f32.mrf.mxu0
      %1281 = vmatprep.mubr.bf16.mxu0 0
      %1282 = vmatmul.mubr.bf16.gmra.mxu0 %v1201
      %v1283 = vpop.f32.mrf.mxu0
      %v1284 = vadd.f32 0.0, %v1283
      %v1285 = vpop.f32.mrf.mxu0
      %v1286 = vpop.f32.mrf.mxu0
      %v1287 = vadd.f32 0.0, %v1286
      %v1288 = vpop.f32.mrf.mxu0
      %1289 = vmatprep.mubr.bf16.mxu0 0
      %1290 = vmatmul.mubr.bf16.gmra.mxu0 %v1204
      %v1291 = vpop.f32.mrf.mxu0
      %v1292 = vadd.f32 0.0, %v1291
      %v1293 = vpop.f32.mrf.mxu0
      %v1294 = vpop.f32.mrf.mxu0
      %v1295 = vadd.f32 0.0, %v1294
      %v1296 = vpop.f32.mrf.mxu0
      %1297 = vmatprep.mubr.bf16.mxu0 0
      %1298 = vmatmul.mubr.bf16.gmra.mxu0 %v1207
      %v1299 = vpop.f32.mrf.mxu0
      %v1300 = vadd.f32 0.0, %v1299
      %v1301 = vpop.f32.mrf.mxu0
      %v1302 = vpop.f32.mrf.mxu0
      %v1303 = vadd.f32 0.0, %v1302
      %v1304 = vpop.f32.mrf.mxu0
      %1305 = vdwg.mxu0
      %v1306 = vadd.f32 %v1013, %v1244
      %v1307 = vadd.f32 %v1014, %v1247
      %v1308 = vadd.f32 %v1015, %v1252
      %v1309 = vadd.f32 %v1016, %v1255
      %v1310 = vadd.f32 %v1017, %v1260
      %v1311 = vadd.f32 %v1018, %v1263
      %v1312 = vadd.f32 %v1019, %v1268
      %v1313 = vadd.f32 %v1020, %v1271
      %v1314 = vadd.f32 %v1021, %v1276
      %v1315 = vadd.f32 %v1022, %v1279
      %v1316 = vadd.f32 %v1023, %v1284
      %v1317 = vadd.f32 %v1024, %v1287
      %v1318 = vadd.f32 %v1025, %v1292
      %v1319 = vadd.f32 %v1026, %v1295
      %v1320 = vadd.f32 %v1027, %v1300
      %v1321 = vadd.f32 %v1028, %v1303
      %v1322 = vld [vmem:[%s2 + $0x40] sm:$0xf]
      %v1323 = vld [vmem:[%s2 + $0x44] sm:$0xf]
      %v1324 = vld [vmem:[%s2 + $0x48] sm:$0xf]
      %v1325 = vld [vmem:[%s2 + $0x4c] sm:$0xf]
      %v1326 = vpack.c.b16 %v1069, %v1068
      %v1327 = vpack.c.b16 %v1071, %v1070
      %v1328 = vpack.c.b16 %v1073, %v1072
      %v1329 = vpack.c.b16 %v1075, %v1074
      %v1330 = vpack.c.b16 %v1077, %v1076
      %v1331 = vpack.c.b16 %v1079, %v1078
      %v1332 = vpack.c.b16 %v1081, %v1080
      %v1333 = vpack.c.b16 %v1083, %v1082
      %v1338 = vunpack.c.l.b16 %v1322
      %v1339 = vunpack.c.l.b16 %v1323
      %v1340 = vunpack.c.l.b16 %v1324
      %v1341 = vunpack.c.l.b16 %v1325
      %v1342 = vpack.c.b16 %v1339, %v1338
      %v1343 = vpack.c.b16 %v1341, %v1340
      %v1347 = vsel %vm400, %v1326, 0
      %v1350 = vsel %vm400, %v1327, 0
      %v1353 = vsel %vm400, %v1328, 0
      %v1356 = vsel %vm400, %v1329, 0
      %v1359 = vsel %vm400, %v1330, 0
      %v1362 = vsel %vm400, %v1331, 0
      %v1365 = vsel %vm400, %v1332, 0
      %v1368 = vsel %vm400, %v1333, 0
      %1370 = vmatprep.subr.bf16.mxu0 0
      %1371 = vmatpush1.bf16.msra.mxu0 0
      %1372 = vmatprep.subr.bf16.mxu0 0
      %1373 = vmatpush1.bf16.msra.mxu0 0
      %1374 = vmatprep.subr.bf16.mxu0 0
      %1375 = vmatpush1.bf16.msra.mxu0 0
      %1376 = vmatprep.subr.bf16.mxu0 0
      %1377 = vmatpush1.bf16.msra.mxu0 0
      %1378 = vmatprep.subr.bf16.mxu0 0
      %1379 = vmatpush1.bf16.msra.mxu0 0
      %1380 = vmatprep.subr.bf16.mxu0 0
      %1381 = vmatpush1.bf16.msra.mxu0 0
      %1382 = vmatprep.subr.bf16.mxu0 0
      %1383 = vmatpush1.bf16.msra.mxu0 %v1343
      %1384 = vmatprep.subr.bf16.mxu0 0
      %1385 = vmatpush1.bf16.msra.mxu0 %v1342
      %1386 = vmatprep.subr.bf16.mxu0 0
      %1387 = vmatpush2.bf16.msra.mxu0 0
      %1388 = vmatprep.subr.bf16.mxu0 0
      %1389 = vmatpush2.bf16.msra.mxu0 0
      %1390 = vmatprep.subr.bf16.mxu0 0
      %1391 = vmatpush2.bf16.msra.mxu0 0
      %1392 = vmatprep.subr.bf16.mxu0 0
      %1393 = vmatpush2.bf16.msra.mxu0 0
      %1394 = vmatprep.subr.bf16.mxu0 0
      %1395 = vmatpush2.bf16.msra.mxu0 0
      %1396 = vmatprep.subr.bf16.mxu0 0
      %1397 = vmatpush2.bf16.msra.mxu0 0
      %1398 = vmatprep.subr.bf16.mxu0 0
      %1399 = vmatpush2.bf16.msra.mxu0 0
      %1400 = vmatprep.subr.bf16.mxu0 0
      %1401 = vmatpush2.bf16.msra.mxu0 0
      %1402 = vmatprep.mubr.bf16.mxu0 0
      %1403 = vmatmul.mubr.bf16.gmra.mxu0 %v1347
      %v1404 = vpop.f32.mrf.mxu0
      %v1405 = vadd.f32 0.0, %v1404
      %v1406 = vpop.f32.mrf.mxu0
      %v1407 = vpop.f32.mrf.mxu0
      %v1408 = vadd.f32 0.0, %v1407
      %v1409 = vpop.f32.mrf.mxu0
      %1410 = vmatprep.mubr.bf16.mxu0 0
      %1411 = vmatmul.mubr.bf16.gmra.mxu0 %v1350
      %v1412 = vpop.f32.mrf.mxu0
      %v1413 = vadd.f32 0.0, %v1412
      %v1414 = vpop.f32.mrf.mxu0
      %v1415 = vpop.f32.mrf.mxu0
      %v1416 = vadd.f32 0.0, %v1415
      %v1417 = vpop.f32.mrf.mxu0
      %1418 = vmatprep.mubr.bf16.mxu0 0
      %1419 = vmatmul.mubr.bf16.gmra.mxu0 %v1353
      %v1420 = vpop.f32.mrf.mxu0
      %v1421 = vadd.f32 0.0, %v1420
      %v1422 = vpop.f32.mrf.mxu0
      %v1423 = vpop.f32.mrf.mxu0
      %v1424 = vadd.f32 0.0, %v1423
      %v1425 = vpop.f32.mrf.mxu0
      %1426 = vmatprep.mubr.bf16.mxu0 0
      %1427 = vmatmul.mubr.bf16.gmra.mxu0 %v1356
      %v1428 = vpop.f32.mrf.mxu0
      %v1429 = vadd.f32 0.0, %v1428
      %v1430 = vpop.f32.mrf.mxu0
      %v1431 = vpop.f32.mrf.mxu0
      %v1432 = vadd.f32 0.0, %v1431
      %v1433 = vpop.f32.mrf.mxu0
      %1434 = vmatprep.mubr.bf16.mxu0 0
      %1435 = vmatmul.mubr.bf16.gmra.mxu0 %v1359
      %v1436 = vpop.f32.mrf.mxu0
      %v1437 = vadd.f32 0.0, %v1436
      %v1438 = vpop.f32.mrf.mxu0
      %v1439 = vpop.f32.mrf.mxu0
      %v1440 = vadd.f32 0.0, %v1439
      %v1441 = vpop.f32.mrf.mxu0
      %1442 = vmatprep.mubr.bf16.mxu0 0
      %1443 = vmatmul.mubr.bf16.gmra.mxu0 %v1362
      %v1444 = vpop.f32.mrf.mxu0
      %v1445 = vadd.f32 0.0, %v1444
      %v1446 = vpop.f32.mrf.mxu0
      %v1447 = vpop.f32.mrf.mxu0
      %v1448 = vadd.f32 0.0, %v1447
      %v1449 = vpop.f32.mrf.mxu0
      %1450 = vmatprep.mubr.bf16.mxu0 0
      %1451 = vmatmul.mubr.bf16.gmra.mxu0 %v1365
      %v1452 = vpop.f32.mrf.mxu0
      %v1453 = vadd.f32 0.0, %v1452
      %v1454 = vpop.f32.mrf.mxu0
      %v1455 = vpop.f32.mrf.mxu0
      %v1456 = vadd.f32 0.0, %v1455
      %v1457 = vpop.f32.mrf.mxu0
      %1458 = vmatprep.mubr.bf16.mxu0 0
      %1459 = vmatmul.mubr.bf16.gmra.mxu0 %v1368
      %v1460 = vpop.f32.mrf.mxu0
      %v1461 = vadd.f32 0.0, %v1460
      %v1462 = vpop.f32.mrf.mxu0
      %v1463 = vpop.f32.mrf.mxu0
      %v1464 = vadd.f32 0.0, %v1463
      %v1465 = vpop.f32.mrf.mxu0
      %1466 = vdwg.mxu0
      %v1467 = vadd.f32 %v1306, %v1405
      %v1468 = vadd.f32 %v1307, %v1408
      %v1469 = vadd.f32 %v1308, %v1413
      %v1470 = vadd.f32 %v1309, %v1416
      %v1471 = vadd.f32 %v1310, %v1421
      %v1472 = vadd.f32 %v1311, %v1424
      %v1473 = vadd.f32 %v1312, %v1429
      %v1474 = vadd.f32 %v1313, %v1432
      %v1475 = vadd.f32 %v1314, %v1437
      %v1476 = vadd.f32 %v1315, %v1440
      %v1477 = vadd.f32 %v1316, %v1445
      %v1478 = vadd.f32 %v1317, %v1448
      %v1479 = vadd.f32 %v1318, %v1453
      %v1480 = vadd.f32 %v1319, %v1456
      %v1481 = vadd.f32 %v1320, %v1461
      %v1482 = vadd.f32 %v1321, %v1464
      %v1483 = vld [vmem:[%s300 + $0x10] sm:$0xf]
      %v1484 = vld [vmem:[%s300 + $0x14] sm:$0xf]
      %v1485 = vld [vmem:[%s300 + $0x18] sm:$0xf]
      %v1486 = vld [vmem:[%s300 + $0x1c] sm:$0xf]
      %v1487 = vld [vmem:[%s300 + $0x20] sm:$0xf]
      %v1488 = vld [vmem:[%s300 + $0x24] sm:$0xf]
      %v1489 = vld [vmem:[%s300 + $0x28] sm:$0xf]
      %v1490 = vld [vmem:[%s300 + $0x2c] sm:$0xf]
      %v1491 = vld [vmem:[%s300 + $0x30] sm:$0xf]
      %v1492 = vld [vmem:[%s300 + $0x34] sm:$0xf]
      %v1493 = vld [vmem:[%s300 + $0x38] sm:$0xf]
      %v1494 = vld [vmem:[%s300 + $0x3c] sm:$0xf]
      %v1495 = vld [vmem:[%s300 + $0x40] sm:$0xf]
      %v1496 = vld [vmem:[%s300 + $0x44] sm:$0xf]
      %v1497 = vld [vmem:[%s300 + $0x48] sm:$0xf]
      %v1498 = vld [vmem:[%s300 + $0x4c] sm:$0xf]
      %v1499 = vld [vmem:[%s300 + $0x50] sm:$0x1]
      %v1500 = vld [vmem:[%s2 + $0x50] sm:$0xf]
      %v1501 = vld [vmem:[%s2 + $0x54] sm:$0xf]
      %v1502 = vld [vmem:[%s2 + $0x58] sm:$0xf]
      %v1503 = vld [vmem:[%s2 + $0x5c] sm:$0xf]
      %v1521 = vunpack.c.l.b16 %v1483
      %v1522 = vunpack.c.l.b16 %v1484
      %v1523 = vunpack.c.l.b16 %v1485
      %v1524 = vunpack.c.l.b16 %v1486
      %v1525 = vunpack.c.l.b16 %v1487
      %v1526 = vunpack.c.l.b16 %v1488
      %v1527 = vunpack.c.l.b16 %v1489
      %v1528 = vunpack.c.l.b16 %v1490
      %v1529 = vunpack.c.l.b16 %v1491
      %v1530 = vunpack.c.l.b16 %v1492
      %v1531 = vunpack.c.l.b16 %v1493
      %v1532 = vunpack.c.l.b16 %v1494
      %v1533 = vunpack.c.l.b16 %v1495
      %v1534 = vunpack.c.l.b16 %v1496
      %v1535 = vunpack.c.l.b16 %v1497
      %v1536 = vunpack.c.l.b16 %v1498
      %v1537 = vunpack.c.l.b16 %v1499
      %v1538 = vpack.c.b16 %v1522, %v1521
      %v1539 = vpack.c.b16 %v1524, %v1523
      %v1540 = vpack.c.b16 %v1526, %v1525
      %v1541 = vpack.c.b16 %v1528, %v1527
      %v1542 = vpack.c.b16 %v1530, %v1529
      %v1543 = vpack.c.b16 %v1532, %v1531
      %v1544 = vpack.c.b16 %v1534, %v1533
      %v1545 = vpack.c.b16 %v1536, %v1535
      %v1546 = vpack.c.b16 %v1537, %v1537
      %v1548 = vshrl.u32 %v1538, 16
      %v1550 = vshll.u32 %v1538, 16
      %v1552 = vrot.slane %v1550, 1
      %v1553 = vor.u32 %v1548, %v1552
      %v1555 = vshll.u32 %v1539, 16
      %v1557 = vrot.slane %v1555, 1
      %v1558 = vsel %vm811, %v1553, %v1557
      %v1559 = vshrl.u32 %v1539, 16
      %v1561 = vor.u32 %v1559, %v1557
      %v1563 = vshll.u32 %v1540, 16
      %v1565 = vrot.slane %v1563, 1
      %v1566 = vsel %vm811, %v1561, %v1565
      %v1567 = vshrl.u32 %v1540, 16
      %v1569 = vor.u32 %v1567, %v1565
      %v1571 = vshll.u32 %v1541, 16
      %v1573 = vrot.slane %v1571, 1
      %v1574 = vsel %vm811, %v1569, %v1573
      %v1575 = vshrl.u32 %v1541, 16
      %v1577 = vor.u32 %v1575, %v1573
      %v1579 = vshll.u32 %v1542, 16
      %v1581 = vrot.slane %v1579, 1
      %v1582 = vsel %vm811, %v1577, %v1581
      %v1583 = vshrl.u32 %v1542, 16
      %v1585 = vor.u32 %v1583, %v1581
      %v1587 = vshll.u32 %v1543, 16
      %v1589 = vrot.slane %v1587, 1
      %v1590 = vsel %vm811, %v1585, %v1589
      %v1591 = vshrl.u32 %v1543, 16
      %v1593 = vor.u32 %v1591, %v1589
      %v1595 = vshll.u32 %v1544, 16
      %v1597 = vrot.slane %v1595, 1
      %v1598 = vsel %vm811, %v1593, %v1597
      %v1599 = vshrl.u32 %v1544, 16
      %v1601 = vor.u32 %v1599, %v1597
      %v1603 = vshll.u32 %v1545, 16
      %v1605 = vrot.slane %v1603, 1
      %v1606 = vsel %vm811, %v1601, %v1605
      %v1607 = vshrl.u32 %v1545, 16
      %v1609 = vor.u32 %v1607, %v1605
      %v1611 = vshll.u32 %v1546, 16
      %v1613 = vrot.slane %v1611, 1
      %v1614 = vsel %vm811, %v1609, %v1613
      %v1619 = vunpack.c.l.b16 %v1500
      %v1620 = vunpack.c.l.b16 %v1501
      %v1621 = vunpack.c.l.b16 %v1502
      %v1622 = vunpack.c.l.b16 %v1503
      %v1623 = vpack.c.b16 %v1620, %v1619
      %v1624 = vpack.c.b16 %v1622, %v1621
      %v1628 = vsel %vm400, %v1558, 0
      %v1631 = vsel %vm400, %v1566, 0
      %v1634 = vsel %vm400, %v1574, 0
      %v1637 = vsel %vm400, %v1582, 0
      %v1640 = vsel %vm400, %v1590, 0
      %v1643 = vsel %vm400, %v1598, 0
      %v1646 = vsel %vm400, %v1606, 0
      %v1649 = vsel %vm400, %v1614, 0
      %1651 = vmatprep.subr.bf16.mxu0 0
      %1652 = vmatpush1.bf16.msra.mxu0 0
      %1653 = vmatprep.subr.bf16.mxu0 0
      %1654 = vmatpush1.bf16.msra.mxu0 0
      %1655 = vmatprep.subr.bf16.mxu0 0
      %1656 = vmatpush1.bf16.msra.mxu0 0
      %1657 = vmatprep.subr.bf16.mxu0 0
      %1658 = vmatpush1.bf16.msra.mxu0 0
      %1659 = vmatprep.subr.bf16.mxu0 0
      %1660 = vmatpush1.bf16.msra.mxu0 0
      %1661 = vmatprep.subr.bf16.mxu0 0
      %1662 = vmatpush1.bf16.msra.mxu0 0
      %1663 = vmatprep.subr.bf16.mxu0 0
      %1664 = vmatpush1.bf16.msra.mxu0 %v1624
      %1665 = vmatprep.subr.bf16.mxu0 0
      %1666 = vmatpush1.bf16.msra.mxu0 %v1623
      %1667 = vmatprep.subr.bf16.mxu0 0
      %1668 = vmatpush2.bf16.msra.mxu0 0
      %1669 = vmatprep.subr.bf16.mxu0 0
      %1670 = vmatpush2.bf16.msra.mxu0 0
      %1671 = vmatprep.subr.bf16.mxu0 0
      %1672 = vmatpush2.bf16.msra.mxu0 0
      %1673 = vmatprep.subr.bf16.mxu0 0
      %1674 = vmatpush2.bf16.msra.mxu0 0
      %1675 = vmatprep.subr.bf16.mxu0 0
      %1676 = vmatpush2.bf16.msra.mxu0 0
      %1677 = vmatprep.subr.bf16.mxu0 0
      %1678 = vmatpush2.bf16.msra.mxu0 0
      %1679 = vmatprep.subr.bf16.mxu0 0
      %1680 = vmatpush2.bf16.msra.mxu0 0
      %1681 = vmatprep.subr.bf16.mxu0 0
      %1682 = vmatpush2.bf16.msra.mxu0 0
      %1683 = vmatprep.mubr.bf16.mxu0 0
      %1684 = vmatmul.mubr.bf16.gmra.mxu0 %v1628
      %v1685 = vpop.f32.mrf.mxu0
      %v1686 = vadd.f32 0.0, %v1685
      %v1687 = vpop.f32.mrf.mxu0
      %v1688 = vpop.f32.mrf.mxu0
      %v1689 = vadd.f32 0.0, %v1688
      %v1690 = vpop.f32.mrf.mxu0
      %1691 = vmatprep.mubr.bf16.mxu0 0
      %1692 = vmatmul.mubr.bf16.gmra.mxu0 %v1631
      %v1693 = vpop.f32.mrf.mxu0
      %v1694 = vadd.f32 0.0, %v1693
      %v1695 = vpop.f32.mrf.mxu0
      %v1696 = vpop.f32.mrf.mxu0
      %v1697 = vadd.f32 0.0, %v1696
      %v1698 = vpop.f32.mrf.mxu0
      %1699 = vmatprep.mubr.bf16.mxu0 0
      %1700 = vmatmul.mubr.bf16.gmra.mxu0 %v1634
      %v1701 = vpop.f32.mrf.mxu0
      %v1702 = vadd.f32 0.0, %v1701
      %v1703 = vpop.f32.mrf.mxu0
      %v1704 = vpop.f32.mrf.mxu0
      %v1705 = vadd.f32 0.0, %v1704
      %v1706 = vpop.f32.mrf.mxu0
      %1707 = vmatprep.mubr.bf16.mxu0 0
      %1708 = vmatmul.mubr.bf16.gmra.mxu0 %v1637
      %v1709 = vpop.f32.mrf.mxu0
      %v1710 = vadd.f32 0.0, %v1709
      %v1711 = vpop.f32.mrf.mxu0
      %v1712 = vpop.f32.mrf.mxu0
      %v1713 = vadd.f32 0.0, %v1712
      %v1714 = vpop.f32.mrf.mxu0
      %1715 = vmatprep.mubr.bf16.mxu0 0
      %1716 = vmatmul.mubr.bf16.gmra.mxu0 %v1640
      %v1717 = vpop.f32.mrf.mxu0
      %v1718 = vadd.f32 0.0, %v1717
      %v1719 = vpop.f32.mrf.mxu0
      %v1720 = vpop.f32.mrf.mxu0
      %v1721 = vadd.f32 0.0, %v1720
      %v1722 = vpop.f32.mrf.mxu0
      %1723 = vmatprep.mubr.bf16.mxu0 0
      %1724 = vmatmul.mubr.bf16.gmra.mxu0 %v1643
      %v1725 = vpop.f32.mrf.mxu0
      %v1726 = vadd.f32 0.0, %v1725
      %v1727 = vpop.f32.mrf.mxu0
      %v1728 = vpop.f32.mrf.mxu0
      %v1729 = vadd.f32 0.0, %v1728
      %v1730 = vpop.f32.mrf.mxu0
      %1731 = vmatprep.mubr.bf16.mxu0 0
      %1732 = vmatmul.mubr.bf16.gmra.mxu0 %v1646
      %v1733 = vpop.f32.mrf.mxu0
      %v1734 = vadd.f32 0.0, %v1733
      %v1735 = vpop.f32.mrf.mxu0
      %v1736 = vpop.f32.mrf.mxu0
      %v1737 = vadd.f32 0.0, %v1736
      %v1738 = vpop.f32.mrf.mxu0
      %1739 = vmatprep.mubr.bf16.mxu0 0
      %1740 = vmatmul.mubr.bf16.gmra.mxu0 %v1649
      %v1741 = vpop.f32.mrf.mxu0
      %v1742 = vadd.f32 0.0, %v1741
      %v1743 = vpop.f32.mrf.mxu0
      %v1744 = vpop.f32.mrf.mxu0
      %v1745 = vadd.f32 0.0, %v1744
      %v1746 = vpop.f32.mrf.mxu0
      %1747 = vdwg.mxu0
      %v1748 = vadd.f32 %v1467, %v1686
      %v1749 = vadd.f32 %v1468, %v1689
      %v1750 = vadd.f32 %v1469, %v1694
      %v1751 = vadd.f32 %v1470, %v1697
      %v1752 = vadd.f32 %v1471, %v1702
      %v1753 = vadd.f32 %v1472, %v1705
      %v1754 = vadd.f32 %v1473, %v1710
      %v1755 = vadd.f32 %v1474, %v1713
      %v1756 = vadd.f32 %v1475, %v1718
      %v1757 = vadd.f32 %v1476, %v1721
      %v1758 = vadd.f32 %v1477, %v1726
      %v1759 = vadd.f32 %v1478, %v1729
      %v1760 = vadd.f32 %v1479, %v1734
      %v1761 = vadd.f32 %v1480, %v1737
      %v1762 = vadd.f32 %v1481, %v1742
      %v1763 = vadd.f32 %v1482, %v1745
      %v1764 = vld [vmem:[%s300 + $0x14] sm:$0x8]
      %v1765 = vld [vmem:[%s300 + $0x18] sm:$0xf]
      %v1766 = vld [vmem:[%s300 + $0x1c] sm:$0xf]
      %v1767 = vld [vmem:[%s300 + $0x20] sm:$0xf]
      %v1768 = vld [vmem:[%s300 + $0x24] sm:$0xf]
      %v1769 = vld [vmem:[%s300 + $0x28] sm:$0xf]
      %v1770 = vld [vmem:[%s300 + $0x2c] sm:$0xf]
      %v1771 = vld [vmem:[%s300 + $0x30] sm:$0xf]
      %v1772 = vld [vmem:[%s300 + $0x34] sm:$0xf]
      %v1773 = vld [vmem:[%s300 + $0x38] sm:$0xf]
      %v1774 = vld [vmem:[%s300 + $0x3c] sm:$0xf]
      %v1775 = vld [vmem:[%s300 + $0x40] sm:$0xf]
      %v1776 = vld [vmem:[%s300 + $0x44] sm:$0xf]
      %v1777 = vld [vmem:[%s300 + $0x48] sm:$0xf]
      %v1778 = vld [vmem:[%s300 + $0x4c] sm:$0xf]
      %v1779 = vld [vmem:[%s300 + $0x50] sm:$0xf]
      %v1780 = vld [vmem:[%s300 + $0x54] sm:$0xf]
      %v1781 = vld [vmem:[%s2 + $0x60] sm:$0xf]
      %v1782 = vld [vmem:[%s2 + $0x64] sm:$0xf]
      %v1783 = vld [vmem:[%s2 + $0x68] sm:$0xf]
      %v1784 = vld [vmem:[%s2 + $0x6c] sm:$0xf]
      %v1802 = vunpack.c.l.b16 %v1764
      %v1803 = vunpack.c.l.b16 %v1765
      %v1804 = vunpack.c.l.b16 %v1766
      %v1805 = vunpack.c.l.b16 %v1767
      %v1806 = vunpack.c.l.b16 %v1768
      %v1807 = vunpack.c.l.b16 %v1769
      %v1808 = vunpack.c.l.b16 %v1770
      %v1809 = vunpack.c.l.b16 %v1771
      %v1810 = vunpack.c.l.b16 %v1772
      %v1811 = vunpack.c.l.b16 %v1773
      %v1812 = vunpack.c.l.b16 %v1774
      %v1813 = vunpack.c.l.b16 %v1775
      %v1814 = vunpack.c.l.b16 %v1776
      %v1815 = vunpack.c.l.b16 %v1777
      %v1816 = vunpack.c.l.b16 %v1778
      %v1817 = vunpack.c.l.b16 %v1779
      %v1818 = vunpack.c.l.b16 %v1780
      %v1819 = vpack.c.b16 %v1803, %v1802
      %v1820 = vpack.c.b16 %v1805, %v1804
      %v1821 = vpack.c.b16 %v1807, %v1806
      %v1822 = vpack.c.b16 %v1809, %v1808
      %v1823 = vpack.c.b16 %v1811, %v1810
      %v1824 = vpack.c.b16 %v1813, %v1812
      %v1825 = vpack.c.b16 %v1815, %v1814
      %v1826 = vpack.c.b16 %v1817, %v1816
      %v1827 = vpack.c.b16 %v1818, %v1818
      %v1829 = vshrl.u32 %v1819, 16
      %v1831 = vrot.slane %v1829, 3
      %v1832 = vshll.u32 %v1819, 16
      %v1834 = vrot.slane %v1832, 4
      %v1835 = vor.u32 %v1831, %v1834
      %v1837 = vshrl.u32 %v1820, 16
      %v1839 = vrot.slane %v1837, 3
      %v1840 = vshll.u32 %v1820, 16
      %v1842 = vrot.slane %v1840, 4
      %v1843 = vor.u32 %v1839, %v1842
      %v1844 = vsel %vm533, %v1835, %v1843
      %v1846 = vshrl.u32 %v1821, 16
      %v1848 = vrot.slane %v1846, 3
      %v1849 = vshll.u32 %v1821, 16
      %v1851 = vrot.slane %v1849, 4
      %v1852 = vor.u32 %v1848, %v1851
      %v1853 = vsel %vm533, %v1843, %v1852
      %v1855 = vshrl.u32 %v1822, 16
      %v1857 = vrot.slane %v1855, 3
      %v1858 = vshll.u32 %v1822, 16
      %v1860 = vrot.slane %v1858, 4
      %v1861 = vor.u32 %v1857, %v1860
      %v1862 = vsel %vm533, %v1852, %v1861
      %v1864 = vshrl.u32 %v1823, 16
      %v1866 = vrot.slane %v1864, 3
      %v1867 = vshll.u32 %v1823, 16
      %v1869 = vrot.slane %v1867, 4
      %v1870 = vor.u32 %v1866, %v1869
      %v1871 = vsel %vm533, %v1861, %v1870
      %v1873 = vshrl.u32 %v1824, 16
      %v1875 = vrot.slane %v1873, 3
      %v1876 = vshll.u32 %v1824, 16
      %v1878 = vrot.slane %v1876, 4
      %v1879 = vor.u32 %v1875, %v1878
      %v1880 = vsel %vm533, %v1870, %v1879
      %v1882 = vshrl.u32 %v1825, 16
      %v1884 = vrot.slane %v1882, 3
      %v1885 = vshll.u32 %v1825, 16
      %v1887 = vrot.slane %v1885, 4
      %v1888 = vor.u32 %v1884, %v1887
      %v1889 = vsel %vm533, %v1879, %v1888
      %v1891 = vshrl.u32 %v1826, 16
      %v1893 = vrot.slane %v1891, 3
      %v1894 = vshll.u32 %v1826, 16
      %v1896 = vrot.slane %v1894, 4
      %v1897 = vor.u32 %v1893, %v1896
      %v1898 = vsel %vm533, %v1888, %v1897
      %v1900 = vshrl.u32 %v1827, 16
      %v1902 = vrot.slane %v1900, 3
      %v1903 = vshll.u32 %v1827, 16
      %v1905 = vrot.slane %v1903, 4
      %v1906 = vor.u32 %v1902, %v1905
      %v1907 = vsel %vm533, %v1897, %v1906
      %v1912 = vunpack.c.l.b16 %v1781
      %v1913 = vunpack.c.l.b16 %v1782
      %v1914 = vunpack.c.l.b16 %v1783
      %v1915 = vunpack.c.l.b16 %v1784
      %v1916 = vpack.c.b16 %v1913, %v1912
      %v1917 = vpack.c.b16 %v1915, %v1914
      %v1921 = vsel %vm400, %v1844, 0
      %v1924 = vsel %vm400, %v1853, 0
      %v1927 = vsel %vm400, %v1862, 0
      %v1930 = vsel %vm400, %v1871, 0
      %v1933 = vsel %vm400, %v1880, 0
      %v1936 = vsel %vm400, %v1889, 0
      %v1939 = vsel %vm400, %v1898, 0
      %v1942 = vsel %vm400, %v1907, 0
      %1944 = vmatprep.subr.bf16.mxu0 0
      %1945 = vmatpush1.bf16.msra.mxu0 0
      %1946 = vmatprep.subr.bf16.mxu0 0
      %1947 = vmatpush1.bf16.msra.mxu0 0
      %1948 = vmatprep.subr.bf16.mxu0 0
      %1949 = vmatpush1.bf16.msra.mxu0 0
      %1950 = vmatprep.subr.bf16.mxu0 0
      %1951 = vmatpush1.bf16.msra.mxu0 0
      %1952 = vmatprep.subr.bf16.mxu0 0
      %1953 = vmatpush1.bf16.msra.mxu0 0
      %1954 = vmatprep.subr.bf16.mxu0 0
      %1955 = vmatpush1.bf16.msra.mxu0 0
      %1956 = vmatprep.subr.bf16.mxu0 0
      %1957 = vmatpush1.bf16.msra.mxu0 %v1917
      %1958 = vmatprep.subr.bf16.mxu0 0
      %1959 = vmatpush1.bf16.msra.mxu0 %v1916
      %1960 = vmatprep.subr.bf16.mxu0 0
      %1961 = vmatpush2.bf16.msra.mxu0 0
      %1962 = vmatprep.subr.bf16.mxu0 0
      %1963 = vmatpush2.bf16.msra.mxu0 0
      %1964 = vmatprep.subr.bf16.mxu0 0
      %1965 = vmatpush2.bf16.msra.mxu0 0
      %1966 = vmatprep.subr.bf16.mxu0 0
      %1967 = vmatpush2.bf16.msra.mxu0 0
      %1968 = vmatprep.subr.bf16.mxu0 0
      %1969 = vmatpush2.bf16.msra.mxu0 0
      %1970 = vmatprep.subr.bf16.mxu0 0
      %1971 = vmatpush2.bf16.msra.mxu0 0
      %1972 = vmatprep.subr.bf16.mxu0 0
      %1973 = vmatpush2.bf16.msra.mxu0 0
      %1974 = vmatprep.subr.bf16.mxu0 0
      %1975 = vmatpush2.bf16.msra.mxu0 0
      %1976 = vmatprep.mubr.bf16.mxu0 0
      %1977 = vmatmul.mubr.bf16.gmra.mxu0 %v1921
      %v1978 = vpop.f32.mrf.mxu0
      %v1979 = vadd.f32 0.0, %v1978
      %v1980 = vpop.f32.mrf.mxu0
      %v1981 = vpop.f32.mrf.mxu0
      %v1982 = vadd.f32 0.0, %v1981
      %v1983 = vpop.f32.mrf.mxu0
      %1984 = vmatprep.mubr.bf16.mxu0 0
      %1985 = vmatmul.mubr.bf16.gmra.mxu0 %v1924
      %v1986 = vpop.f32.mrf.mxu0
      %v1987 = vadd.f32 0.0, %v1986
      %v1988 = vpop.f32.mrf.mxu0
      %v1989 = vpop.f32.mrf.mxu0
      %v1990 = vadd.f32 0.0, %v1989
      %v1991 = vpop.f32.mrf.mxu0
      %1992 = vmatprep.mubr.bf16.mxu0 0
      %1993 = vmatmul.mubr.bf16.gmra.mxu0 %v1927
      %v1994 = vpop.f32.mrf.mxu0
      %v1995 = vadd.f32 0.0, %v1994
      %v1996 = vpop.f32.mrf.mxu0
      %v1997 = vpop.f32.mrf.mxu0
      %v1998 = vadd.f32 0.0, %v1997
      %v1999 = vpop.f32.mrf.mxu0
      %2000 = vmatprep.mubr.bf16.mxu0 0
      %2001 = vmatmul.mubr.bf16.gmra.mxu0 %v1930
      %v2002 = vpop.f32.mrf.mxu0
      %v2003 = vadd.f32 0.0, %v2002
      %v2004 = vpop.f32.mrf.mxu0
      %v2005 = vpop.f32.mrf.mxu0
      %v2006 = vadd.f32 0.0, %v2005
      %v2007 = vpop.f32.mrf.mxu0
      %2008 = vmatprep.mubr.bf16.mxu0 0
      %2009 = vmatmul.mubr.bf16.gmra.mxu0 %v1933
      %v2010 = vpop.f32.mrf.mxu0
      %v2011 = vadd.f32 0.0, %v2010
      %v2012 = vpop.f32.mrf.mxu0
      %v2013 = vpop.f32.mrf.mxu0
      %v2014 = vadd.f32 0.0, %v2013
      %v2015 = vpop.f32.mrf.mxu0
      %2016 = vmatprep.mubr.bf16.mxu0 0
      %2017 = vmatmul.mubr.bf16.gmra.mxu0 %v1936
      %v2018 = vpop.f32.mrf.mxu0
      %v2019 = vadd.f32 0.0, %v2018
      %v2020 = vpop.f32.mrf.mxu0
      %v2021 = vpop.f32.mrf.mxu0
      %v2022 = vadd.f32 0.0, %v2021
      %v2023 = vpop.f32.mrf.mxu0
      %2024 = vmatprep.mubr.bf16.mxu0 0
      %2025 = vmatmul.mubr.bf16.gmra.mxu0 %v1939
      %v2026 = vpop.f32.mrf.mxu0
      %v2027 = vadd.f32 0.0, %v2026
      %v2028 = vpop.f32.mrf.mxu0
      %v2029 = vpop.f32.mrf.mxu0
      %v2030 = vadd.f32 0.0, %v2029
      %v2031 = vpop.f32.mrf.mxu0
      %2032 = vmatprep.mubr.bf16.mxu0 0
      %2033 = vmatmul.mubr.bf16.gmra.mxu0 %v1942
      %v2034 = vpop.f32.mrf.mxu0
      %v2035 = vadd.f32 0.0, %v2034
      %v2036 = vpop.f32.mrf.mxu0
      %v2037 = vpop.f32.mrf.mxu0
      %v2038 = vadd.f32 0.0, %v2037
      %v2039 = vpop.f32.mrf.mxu0
      %2040 = vdwg.mxu0
      %v2041 = vadd.f32 %v1748, %v1979
      %v2042 = vadd.f32 %v1749, %v1982
      %v2043 = vadd.f32 %v1750, %v1987
      %v2044 = vadd.f32 %v1751, %v1990
      %v2045 = vadd.f32 %v1752, %v1995
      %v2046 = vadd.f32 %v1753, %v1998
      %v2047 = vadd.f32 %v1754, %v2003
      %v2048 = vadd.f32 %v1755, %v2006
      %v2049 = vadd.f32 %v1756, %v2011
      %v2050 = vadd.f32 %v1757, %v2014
      %v2051 = vadd.f32 %v1758, %v2019
      %v2052 = vadd.f32 %v1759, %v2022
      %v2053 = vadd.f32 %v1760, %v2027
      %v2054 = vadd.f32 %v1761, %v2030
      %v2055 = vadd.f32 %v1762, %v2035
      %v2056 = vadd.f32 %v1763, %v2038
      %v2057 = vld [vmem:[%s2 + $0x70] sm:$0xf]
      %v2058 = vld [vmem:[%s2 + $0x74] sm:$0xf]
      %v2059 = vld [vmem:[%s2 + $0x78] sm:$0xf]
      %v2060 = vld [vmem:[%s2 + $0x7c] sm:$0xf]
      %v2061 = vpack.c.b16 %v1804, %v1803
      %v2062 = vpack.c.b16 %v1806, %v1805
      %v2063 = vpack.c.b16 %v1808, %v1807
      %v2064 = vpack.c.b16 %v1810, %v1809
      %v2065 = vpack.c.b16 %v1812, %v1811
      %v2066 = vpack.c.b16 %v1814, %v1813
      %v2067 = vpack.c.b16 %v1816, %v1815
      %v2068 = vpack.c.b16 %v1818, %v1817
      %v2073 = vunpack.c.l.b16 %v2057
      %v2074 = vunpack.c.l.b16 %v2058
      %v2075 = vunpack.c.l.b16 %v2059
      %v2076 = vunpack.c.l.b16 %v2060
      %v2077 = vpack.c.b16 %v2074, %v2073
      %v2078 = vpack.c.b16 %v2076, %v2075
      %v2082 = vsel %vm400, %v2061, 0
      %v2085 = vsel %vm400, %v2062, 0
      %v2088 = vsel %vm400, %v2063, 0
      %v2091 = vsel %vm400, %v2064, 0
      %v2094 = vsel %vm400, %v2065, 0
      %v2097 = vsel %vm400, %v2066, 0
      %v2100 = vsel %vm400, %v2067, 0
      %v2103 = vsel %vm400, %v2068, 0
      %2105 = vmatprep.subr.bf16.mxu0 0
      %2106 = vmatpush1.bf16.msra.mxu0 0
      %2107 = vmatprep.subr.bf16.mxu0 0
      %2108 = vmatpush1.bf16.msra.mxu0 0
      %2109 = vmatprep.subr.bf16.mxu0 0
      %2110 = vmatpush1.bf16.msra.mxu0 0
      %2111 = vmatprep.subr.bf16.mxu0 0
      %2112 = vmatpush1.bf16.msra.mxu0 0
      %2113 = vmatprep.subr.bf16.mxu0 0
      %2114 = vmatpush1.bf16.msra.mxu0 0
      %2115 = vmatprep.subr.bf16.mxu0 0
      %2116 = vmatpush1.bf16.msra.mxu0 0
      %2117 = vmatprep.subr.bf16.mxu0 0
      %2118 = vmatpush1.bf16.msra.mxu0 %v2078
      %2119 = vmatprep.subr.bf16.mxu0 0
      %2120 = vmatpush1.bf16.msra.mxu0 %v2077
      %2121 = vmatprep.subr.bf16.mxu0 0
      %2122 = vmatpush2.bf16.msra.mxu0 0
      %2123 = vmatprep.subr.bf16.mxu0 0
      %2124 = vmatpush2.bf16.msra.mxu0 0
      %2125 = vmatprep.subr.bf16.mxu0 0
      %2126 = vmatpush2.bf16.msra.mxu0 0
      %2127 = vmatprep.subr.bf16.mxu0 0
      %2128 = vmatpush2.bf16.msra.mxu0 0
      %2129 = vmatprep.subr.bf16.mxu0 0
      %2130 = vmatpush2.bf16.msra.mxu0 0
      %2131 = vmatprep.subr.bf16.mxu0 0
      %2132 = vmatpush2.bf16.msra.mxu0 0
      %2133 = vmatprep.subr.bf16.mxu0 0
      %2134 = vmatpush2.bf16.msra.mxu0 0
      %2135 = vmatprep.subr.bf16.mxu0 0
      %2136 = vmatpush2.bf16.msra.mxu0 0
      %2137 = vmatprep.mubr.bf16.mxu0 0
      %2138 = vmatmul.mubr.bf16.gmra.mxu0 %v2082
      %v2139 = vpop.f32.mrf.mxu0
      %v2140 = vadd.f32 0.0, %v2139
      %v2141 = vpop.f32.mrf.mxu0
      %v2142 = vpop.f32.mrf.mxu0
      %v2143 = vadd.f32 0.0, %v2142
      %v2144 = vpop.f32.mrf.mxu0
      %2145 = vmatprep.mubr.bf16.mxu0 0
      %2146 = vmatmul.mubr.bf16.gmra.mxu0 %v2085
      %v2147 = vpop.f32.mrf.mxu0
      %v2148 = vadd.f32 0.0, %v2147
      %v2149 = vpop.f32.mrf.mxu0
      %v2150 = vpop.f32.mrf.mxu0
      %v2151 = vadd.f32 0.0, %v2150
      %v2152 = vpop.f32.mrf.mxu0
      %2153 = vmatprep.mubr.bf16.mxu0 0
      %2154 = vmatmul.mubr.bf16.gmra.mxu0 %v2088
      %v2155 = vpop.f32.mrf.mxu0
      %v2156 = vadd.f32 0.0, %v2155
      %v2157 = vpop.f32.mrf.mxu0
      %v2158 = vpop.f32.mrf.mxu0
      %v2159 = vadd.f32 0.0, %v2158
      %v2160 = vpop.f32.mrf.mxu0
      %2161 = vmatprep.mubr.bf16.mxu0 0
      %2162 = vmatmul.mubr.bf16.gmra.mxu0 %v2091
      %v2163 = vpop.f32.mrf.mxu0
      %v2164 = vadd.f32 0.0, %v2163
      %v2165 = vpop.f32.mrf.mxu0
      %v2166 = vpop.f32.mrf.mxu0
      %v2167 = vadd.f32 0.0, %v2166
      %v2168 = vpop.f32.mrf.mxu0
      %2169 = vmatprep.mubr.bf16.mxu0 0
      %2170 = vmatmul.mubr.bf16.gmra.mxu0 %v2094
      %v2171 = vpop.f32.mrf.mxu0
      %v2172 = vadd.f32 0.0, %v2171
      %v2173 = vpop.f32.mrf.mxu0
      %v2174 = vpop.f32.mrf.mxu0
      %v2175 = vadd.f32 0.0, %v2174
      %v2176 = vpop.f32.mrf.mxu0
      %2177 = vmatprep.mubr.bf16.mxu0 0
      %2178 = vmatmul.mubr.bf16.gmra.mxu0 %v2097
      %v2179 = vpop.f32.mrf.mxu0
      %v2180 = vadd.f32 0.0, %v2179
      %v2181 = vpop.f32.mrf.mxu0
      %v2182 = vpop.f32.mrf.mxu0
      %v2183 = vadd.f32 0.0, %v2182
      %v2184 = vpop.f32.mrf.mxu0
      %2185 = vmatprep.mubr.bf16.mxu0 0
      %2186 = vmatmul.mubr.bf16.gmra.mxu0 %v2100
      %v2187 = vpop.f32.mrf.mxu0
      %v2188 = vadd.f32 0.0, %v2187
      %v2189 = vpop.f32.mrf.mxu0
      %v2190 = vpop.f32.mrf.mxu0
      %v2191 = vadd.f32 0.0, %v2190
      %v2192 = vpop.f32.mrf.mxu0
      %2193 = vmatprep.mubr.bf16.mxu0 0
      %2194 = vmatmul.mubr.bf16.gmra.mxu0 %v2103
      %v2195 = vpop.f32.mrf.mxu0
      %v2196 = vadd.f32 0.0, %v2195
      %v2197 = vpop.f32.mrf.mxu0
      %v2198 = vpop.f32.mrf.mxu0
      %v2199 = vadd.f32 0.0, %v2198
      %v2200 = vpop.f32.mrf.mxu0
      %2201 = vdwg.mxu0
      %v2202 = vadd.f32 %v2041, %v2140
      %v2203 = vadd.f32 %v2042, %v2143
      %v2204 = vadd.f32 %v2043, %v2148
      %v2205 = vadd.f32 %v2044, %v2151
      %v2206 = vadd.f32 %v2045, %v2156
      %v2207 = vadd.f32 %v2046, %v2159
      %v2208 = vadd.f32 %v2047, %v2164
      %v2209 = vadd.f32 %v2048, %v2167
      %v2210 = vadd.f32 %v2049, %v2172
      %v2211 = vadd.f32 %v2050, %v2175
      %v2212 = vadd.f32 %v2051, %v2180
      %v2213 = vadd.f32 %v2052, %v2183
      %v2214 = vadd.f32 %v2053, %v2188
      %v2215 = vadd.f32 %v2054, %v2191
      %v2216 = vadd.f32 %v2055, %v2196
      %v2217 = vadd.f32 %v2056, %v2199
      %v2218 = vld [vmem:[%s300 + $0x18] sm:$0xf]
      %v2219 = vld [vmem:[%s300 + $0x1c] sm:$0xf]
      %v2220 = vld [vmem:[%s300 + $0x20] sm:$0xf]
      %v2221 = vld [vmem:[%s300 + $0x24] sm:$0xf]
      %v2222 = vld [vmem:[%s300 + $0x28] sm:$0xf]
      %v2223 = vld [vmem:[%s300 + $0x2c] sm:$0xf]
      %v2224 = vld [vmem:[%s300 + $0x30] sm:$0xf]
      %v2225 = vld [vmem:[%s300 + $0x34] sm:$0xf]
      %v2226 = vld [vmem:[%s300 + $0x38] sm:$0xf]
      %v2227 = vld [vmem:[%s300 + $0x3c] sm:$0xf]
      %v2228 = vld [vmem:[%s300 + $0x40] sm:$0xf]
      %v2229 = vld [vmem:[%s300 + $0x44] sm:$0xf]
      %v2230 = vld [vmem:[%s300 + $0x48] sm:$0xf]
      %v2231 = vld [vmem:[%s300 + $0x4c] sm:$0xf]
      %v2232 = vld [vmem:[%s300 + $0x50] sm:$0xf]
      %v2233 = vld [vmem:[%s300 + $0x54] sm:$0xf]
      %v2234 = vld [vmem:[%s300 + $0x58] sm:$0x1]
      %v2235 = vld [vmem:[%s2 + $0x80] sm:$0xf]
      %v2236 = vld [vmem:[%s2 + $0x84] sm:$0xf]
      %v2237 = vld [vmem:[%s2 + $0x88] sm:$0xf]
      %v2238 = vld [vmem:[%s2 + $0x8c] sm:$0xf]
      %v2256 = vunpack.c.l.b16 %v2218
      %v2257 = vunpack.c.l.b16 %v2219
      %v2258 = vunpack.c.l.b16 %v2220
      %v2259 = vunpack.c.l.b16 %v2221
      %v2260 = vunpack.c.l.b16 %v2222
      %v2261 = vunpack.c.l.b16 %v2223
      %v2262 = vunpack.c.l.b16 %v2224
      %v2263 = vunpack.c.l.b16 %v2225
      %v2264 = vunpack.c.l.b16 %v2226
      %v2265 = vunpack.c.l.b16 %v2227
      %v2266 = vunpack.c.l.b16 %v2228
      %v2267 = vunpack.c.l.b16 %v2229
      %v2268 = vunpack.c.l.b16 %v2230
      %v2269 = vunpack.c.l.b16 %v2231
      %v2270 = vunpack.c.l.b16 %v2232
      %v2271 = vunpack.c.l.b16 %v2233
      %v2272 = vunpack.c.l.b16 %v2234
      %v2273 = vpack.c.b16 %v2257, %v2256
      %v2274 = vpack.c.b16 %v2259, %v2258
      %v2275 = vpack.c.b16 %v2261, %v2260
      %v2276 = vpack.c.b16 %v2263, %v2262
      %v2277 = vpack.c.b16 %v2265, %v2264
      %v2278 = vpack.c.b16 %v2267, %v2266
      %v2279 = vpack.c.b16 %v2269, %v2268
      %v2280 = vpack.c.b16 %v2271, %v2270
      %v2281 = vpack.c.b16 %v2272, %v2272
      %v2283 = vshrl.u32 %v2273, 16
      %v2285 = vshll.u32 %v2273, 16
      %v2287 = vrot.slane %v2285, 1
      %v2288 = vor.u32 %v2283, %v2287
      %v2290 = vshll.u32 %v2274, 16
      %v2292 = vrot.slane %v2290, 1
      %v2293 = vsel %vm811, %v2288, %v2292
      %v2294 = vshrl.u32 %v2274, 16
      %v2296 = vor.u32 %v2294, %v2292
      %v2298 = vshll.u32 %v2275, 16
      %v2300 = vrot.slane %v2298, 1
      %v2301 = vsel %vm811, %v2296, %v2300
      %v2302 = vshrl.u32 %v2275, 16
      %v2304 = vor.u32 %v2302, %v2300
      %v2306 = vshll.u32 %v2276, 16
      %v2308 = vrot.slane %v2306, 1
      %v2309 = vsel %vm811, %v2304, %v2308
      %v2310 = vshrl.u32 %v2276, 16
      %v2312 = vor.u32 %v2310, %v2308
      %v2314 = vshll.u32 %v2277, 16
      %v2316 = vrot.slane %v2314, 1
      %v2317 = vsel %vm811, %v2312, %v2316
      %v2318 = vshrl.u32 %v2277, 16
      %v2320 = vor.u32 %v2318, %v2316
      %v2322 = vshll.u32 %v2278, 16
      %v2324 = vrot.slane %v2322, 1
      %v2325 = vsel %vm811, %v2320, %v2324
      %v2326 = vshrl.u32 %v2278, 16
      %v2328 = vor.u32 %v2326, %v2324
      %v2330 = vshll.u32 %v2279, 16
      %v2332 = vrot.slane %v2330, 1
      %v2333 = vsel %vm811, %v2328, %v2332
      %v2334 = vshrl.u32 %v2279, 16
      %v2336 = vor.u32 %v2334, %v2332
      %v2338 = vshll.u32 %v2280, 16
      %v2340 = vrot.slane %v2338, 1
      %v2341 = vsel %vm811, %v2336, %v2340
      %v2342 = vshrl.u32 %v2280, 16
      %v2344 = vor.u32 %v2342, %v2340
      %v2346 = vshll.u32 %v2281, 16
      %v2348 = vrot.slane %v2346, 1
      %v2349 = vsel %vm811, %v2344, %v2348
      %v2354 = vunpack.c.l.b16 %v2235
      %v2355 = vunpack.c.l.b16 %v2236
      %v2356 = vunpack.c.l.b16 %v2237
      %v2357 = vunpack.c.l.b16 %v2238
      %v2358 = vpack.c.b16 %v2355, %v2354
      %v2359 = vpack.c.b16 %v2357, %v2356
      %v2363 = vsel %vm400, %v2293, 0
      %v2366 = vsel %vm400, %v2301, 0
      %v2369 = vsel %vm400, %v2309, 0
      %v2372 = vsel %vm400, %v2317, 0
      %v2375 = vsel %vm400, %v2325, 0
      %v2378 = vsel %vm400, %v2333, 0
      %v2381 = vsel %vm400, %v2341, 0
      %v2384 = vsel %vm400, %v2349, 0
      %2386 = vmatprep.subr.bf16.mxu0 0
      %2387 = vmatpush1.bf16.msra.mxu0 0
      %2388 = vmatprep.subr.bf16.mxu0 0
      %2389 = vmatpush1.bf16.msra.mxu0 0
      %2390 = vmatprep.subr.bf16.mxu0 0
      %2391 = vmatpush1.bf16.msra.mxu0 0
      %2392 = vmatprep.subr.bf16.mxu0 0
      %2393 = vmatpush1.bf16.msra.mxu0 0
      %2394 = vmatprep.subr.bf16.mxu0 0
      %2395 = vmatpush1.bf16.msra.mxu0 0
      %2396 = vmatprep.subr.bf16.mxu0 0
      %2397 = vmatpush1.bf16.msra.mxu0 0
      %2398 = vmatprep.subr.bf16.mxu0 0
      %2399 = vmatpush1.bf16.msra.mxu0 %v2359
      %2400 = vmatprep.subr.bf16.mxu0 0
      %2401 = vmatpush1.bf16.msra.mxu0 %v2358
      %2402 = vmatprep.subr.bf16.mxu0 0
      %2403 = vmatpush2.bf16.msra.mxu0 0
      %2404 = vmatprep.subr.bf16.mxu0 0
      %2405 = vmatpush2.bf16.msra.mxu0 0
      %2406 = vmatprep.subr.bf16.mxu0 0
      %2407 = vmatpush2.bf16.msra.mxu0 0
      %2408 = vmatprep.subr.bf16.mxu0 0
      %2409 = vmatpush2.bf16.msra.mxu0 0
      %2410 = vmatprep.subr.bf16.mxu0 0
      %2411 = vmatpush2.bf16.msra.mxu0 0
      %2412 = vmatprep.subr.bf16.mxu0 0
      %2413 = vmatpush2.bf16.msra.mxu0 0
      %2414 = vmatprep.subr.bf16.mxu0 0
      %2415 = vmatpush2.bf16.msra.mxu0 0
      %2416 = vmatprep.subr.bf16.mxu0 0
      %2417 = vmatpush2.bf16.msra.mxu0 0
      %2418 = vmatprep.mubr.bf16.mxu0 0
      %2419 = vmatmul.mubr.bf16.gmra.mxu0 %v2363
      %v2420 = vpop.f32.mrf.mxu0
      %v2421 = vadd.f32 0.0, %v2420
      %v2422 = vpop.f32.mrf.mxu0
      %v2423 = vpop.f32.mrf.mxu0
      %v2424 = vadd.f32 0.0, %v2423
      %v2425 = vpop.f32.mrf.mxu0
      %2426 = vmatprep.mubr.bf16.mxu0 0
      %2427 = vmatmul.mubr.bf16.gmra.mxu0 %v2366
      %v2428 = vpop.f32.mrf.mxu0
      %v2429 = vadd.f32 0.0, %v2428
      %v2430 = vpop.f32.mrf.mxu0
      %v2431 = vpop.f32.mrf.mxu0
      %v2432 = vadd.f32 0.0, %v2431
      %v2433 = vpop.f32.mrf.mxu0
      %2434 = vmatprep.mubr.bf16.mxu0 0
      %2435 = vmatmul.mubr.bf16.gmra.mxu0 %v2369
      %v2436 = vpop.f32.mrf.mxu0
      %v2437 = vadd.f32 0.0, %v2436
      %v2438 = vpop.f32.mrf.mxu0
      %v2439 = vpop.f32.mrf.mxu0
      %v2440 = vadd.f32 0.0, %v2439
      %v2441 = vpop.f32.mrf.mxu0
      %2442 = vmatprep.mubr.bf16.mxu0 0
      %2443 = vmatmul.mubr.bf16.gmra.mxu0 %v2372
      %v2444 = vpop.f32.mrf.mxu0
      %v2445 = vadd.f32 0.0, %v2444
      %v2446 = vpop.f32.mrf.mxu0
      %v2447 = vpop.f32.mrf.mxu0
      %v2448 = vadd.f32 0.0, %v2447
      %v2449 = vpop.f32.mrf.mxu0
      %2450 = vmatprep.mubr.bf16.mxu0 0
      %2451 = vmatmul.mubr.bf16.gmra.mxu0 %v2375
      %v2452 = vpop.f32.mrf.mxu0
      %v2453 = vadd.f32 0.0, %v2452
      %v2454 = vpop.f32.mrf.mxu0
      %v2455 = vpop.f32.mrf.mxu0
      %v2456 = vadd.f32 0.0, %v2455
      %v2457 = vpop.f32.mrf.mxu0
      %2458 = vmatprep.mubr.bf16.mxu0 0
      %2459 = vmatmul.mubr.bf16.gmra.mxu0 %v2378
      %v2460 = vpop.f32.mrf.mxu0
      %v2461 = vadd.f32 0.0, %v2460
      %v2462 = vpop.f32.mrf.mxu0
      %v2463 = vpop.f32.mrf.mxu0
      %v2464 = vadd.f32 0.0, %v2463
      %v2465 = vpop.f32.mrf.mxu0
      %2466 = vmatprep.mubr.bf16.mxu0 0
      %2467 = vmatmul.mubr.bf16.gmra.mxu0 %v2381
      %v2468 = vpop.f32.mrf.mxu0
      %v2469 = vadd.f32 0.0, %v2468
      %v2470 = vpop.f32.mrf.mxu0
      %v2471 = vpop.f32.mrf.mxu0
      %v2472 = vadd.f32 0.0, %v2471
      %v2473 = vpop.f32.mrf.mxu0
      %2474 = vmatprep.mubr.bf16.mxu0 0
      %2475 = vmatmul.mubr.bf16.gmra.mxu0 %v2384
      %v2476 = vpop.f32.mrf.mxu0
      %v2477 = vadd.f32 0.0, %v2476
      %v2478 = vpop.f32.mrf.mxu0
      %v2479 = vpop.f32.mrf.mxu0
      %v2480 = vadd.f32 0.0, %v2479
      %v2481 = vpop.f32.mrf.mxu0
      %2482 = vdwg.mxu0
      %v2483 = vadd.f32 %v2202, %v2421
      %v2484 = vadd.f32 %v2203, %v2424
      %v2485 = vadd.f32 %v2204, %v2429
      %v2486 = vadd.f32 %v2205, %v2432
      %v2487 = vadd.f32 %v2206, %v2437
      %v2488 = vadd.f32 %v2207, %v2440
      %v2489 = vadd.f32 %v2208, %v2445
      %v2490 = vadd.f32 %v2209, %v2448
      %v2491 = vadd.f32 %v2210, %v2453
      %v2492 = vadd.f32 %v2211, %v2456
      %v2493 = vadd.f32 %v2212, %v2461
      %v2494 = vadd.f32 %v2213, %v2464
      %v2495 = vadd.f32 %v2214, %v2469
      %v2496 = vadd.f32 %v2215, %v2472
      %v2497 = vadd.f32 %v2216, %v2477
      %v2498 = vadd.f32 %v2217, %v2480
      %v2499 = vld [vmem:[%s3] sm:$0x1]
      %v2501 = vlaneseq
      %v2502 = vshrl.u32 %v2501, 7
      %v2503 = vsub.s32 0, %v2502
      %v2504 = vrot.slane %v2499, %v2503
      %v2506 = vadd.f32 %v2483, %v2504
      %v2507 = vadd.f32 %v2484, %v2504
      %v2508 = vadd.f32 %v2485, %v2504
      %v2509 = vadd.f32 %v2486, %v2504
      %v2510 = vadd.f32 %v2487, %v2504
      %v2511 = vadd.f32 %v2488, %v2504
      %v2512 = vadd.f32 %v2489, %v2504
      %v2513 = vadd.f32 %v2490, %v2504
      %v2514 = vadd.f32 %v2491, %v2504
      %v2515 = vadd.f32 %v2492, %v2504
      %v2516 = vadd.f32 %v2493, %v2504
      %v2517 = vadd.f32 %v2494, %v2504
      %v2518 = vadd.f32 %v2495, %v2504
      %v2519 = vadd.f32 %v2496, %v2504
      %v2520 = vadd.f32 %v2497, %v2504
      %v2521 = vadd.f32 %v2498, %v2504
      %v2522 = vmax.f32 %v2506, 0.0
      %v2523 = vmax.f32 %v2507, 0.0
      %v2524 = vmax.f32 %v2508, 0.0
      %v2525 = vmax.f32 %v2509, 0.0
      %v2526 = vmax.f32 %v2510, 0.0
      %v2527 = vmax.f32 %v2511, 0.0
      %v2528 = vmax.f32 %v2512, 0.0
      %v2529 = vmax.f32 %v2513, 0.0
      %v2530 = vmax.f32 %v2514, 0.0
      %v2531 = vmax.f32 %v2515, 0.0
      %v2532 = vmax.f32 %v2516, 0.0
      %v2533 = vmax.f32 %v2517, 0.0
      %v2534 = vmax.f32 %v2518, 0.0
      %v2535 = vmax.f32 %v2519, 0.0
      %v2536 = vmax.f32 %v2520, 0.0
      %v2537 = vmax.f32 %v2521, 0.0
      %2539 = vset.pattern.permute.xlu0 0
      %2540 = vperm.xlu0 %2539, %v307
      %v2541 = vpop.permute.xlu0 %2540
      %2544 = vset.pattern.permute.xlu0 0
      %2545 = vperm.xlu0 %2544, %v308
      %v2546 = vpop.permute.xlu0 %2545
      %2549 = vset.pattern.permute.xlu0 0
      %2550 = vperm.xlu0 %2549, %v309
      %v2551 = vpop.permute.xlu0 %2550
      %2554 = vset.pattern.permute.xlu0 0
      %2555 = vperm.xlu0 %2554, %v310
      %v2556 = vpop.permute.xlu0 %2555
      %2559 = vset.pattern.permute.xlu0 0
      %2560 = vperm.xlu0 %2559, %v311
      %v2561 = vpop.permute.xlu0 %2560
      %2564 = vset.pattern.permute.xlu0 0
      %2565 = vperm.xlu0 %2564, %v312
      %v2566 = vpop.permute.xlu0 %2565
      %2569 = vset.pattern.permute.xlu0 0
      %2570 = vperm.xlu0 %2569, %v313
      %v2571 = vpop.permute.xlu0 %2570
      %2574 = vset.pattern.permute.xlu0 0
      %2575 = vperm.xlu0 %2574, %v314
      %v2576 = vpop.permute.xlu0 %2575
      %2579 = vset.pattern.permute.xlu0 0
      %2580 = vperm.xlu0 %2579, %v315
      %v2581 = vpop.permute.xlu0 %2580
      %2584 = vset.pattern.permute.xlu0 0
      %2585 = vperm.xlu0 %2584, %v316
      %v2586 = vpop.permute.xlu0 %2585
      %2589 = vset.pattern.permute.xlu0 0
      %2590 = vperm.xlu0 %2589, %v317
      %v2591 = vpop.permute.xlu0 %2590
      %2594 = vset.pattern.permute.xlu0 0
      %2595 = vperm.xlu0 %2594, %v318
      %v2596 = vpop.permute.xlu0 %2595
      %2599 = vset.pattern.permute.xlu0 0
      %2600 = vperm.xlu0 %2599, %v319
      %v2601 = vpop.permute.xlu0 %2600
      %2604 = vset.pattern.permute.xlu0 0
      %2605 = vperm.xlu0 %2604, %v320
      %v2606 = vpop.permute.xlu0 %2605
      %2609 = vset.pattern.permute.xlu0 0
      %2610 = vperm.xlu0 %2609, %v321
      %v2611 = vpop.permute.xlu0 %2610
      %2614 = vset.pattern.permute.xlu0 0
      %2615 = vperm.xlu0 %2614, %v322
      %v2616 = vpop.permute.xlu0 %2615
      %v2618 = vmul.f32 %v2522, %v2541
      %v2619 = vmul.f32 %v2523, %v2546
      %v2620 = vmul.f32 %v2524, %v2551
      %v2621 = vmul.f32 %v2525, %v2556
      %v2622 = vmul.f32 %v2526, %v2561
      %v2623 = vmul.f32 %v2527, %v2566
      %v2624 = vmul.f32 %v2528, %v2571
      %v2625 = vmul.f32 %v2529, %v2576
      %v2626 = vmul.f32 %v2530, %v2581
      %v2627 = vmul.f32 %v2531, %v2586
      %v2628 = vmul.f32 %v2532, %v2591
      %v2629 = vmul.f32 %v2533, %v2596
      %v2630 = vmul.f32 %v2534, %v2601
      %v2631 = vmul.f32 %v2535, %v2606
      %v2632 = vmul.f32 %v2536, %v2611
      %v2633 = vmul.f32 %v2537, %v2616
      %vm2634 = vcmask 257024
      %2635 = vst.msk [vmem:[#allocation2] sm:$0xf] %vm2634, 0
      %2636 = vst.msk [vmem:[#allocation2 + $0x4] sm:$0xf] %vm2634, 0
      %2637 = vst.msk [vmem:[#allocation2 + $0x8] sm:$0xf] %vm2634, 0
      %2638 = vst.msk [vmem:[#allocation2 + $0xc] sm:$0xf] %vm2634, 0
      %2639 = vst.msk [vmem:[#allocation2 + $0x10] sm:$0xf] %vm2634, 0
      %2640 = vst.msk [vmem:[#allocation2 + $0x14] sm:$0xf] %vm2634, 0
      %2641 = vst.msk [vmem:[#allocation2 + $0x18] sm:$0xf] %vm2634, 0
      %2642 = vst.msk [vmem:[#allocation2 + $0x1c] sm:$0xf] %vm2634, 0
      %2643 = vst.msk [vmem:[#allocation2 + $0x20] sm:$0xf] %vm2634, 0
      %2644 = vst.msk [vmem:[#allocation2 + $0x24] sm:$0xf] %vm2634, 0
      %2645 = vst.msk [vmem:[#allocation2 + $0x28] sm:$0xf] %vm2634, 0
      %2646 = vst.msk [vmem:[#allocation2 + $0x2c] sm:$0xf] %vm2634, 0
      %2647 = vst.msk [vmem:[#allocation2 + $0x30] sm:$0xf] %vm2634, 0
      %2648 = vst.msk [vmem:[#allocation2 + $0x34] sm:$0xf] %vm2634, 0
      %2649 = vst.msk [vmem:[#allocation2 + $0x38] sm:$0xf] %vm2634, 0
      %2650 = vst.msk [vmem:[#allocation2 + $0x3c] sm:$0xf] %vm2634, 0
      %2651 = vst.msk [vmem:[#allocation2 + $0x40] sm:$0xf] %vm2634, 0
      %2652 = vst.msk [vmem:[#allocation2 + $0x44] sm:$0xf] %vm2634, 0
      %2653 = vst.msk [vmem:[#allocation2 + $0x48] sm:$0xf] %vm2634, 0
      %2654 = vst.msk [vmem:[#allocation2 + $0x4c] sm:$0xf] %vm2634, 0
      %2655 = vst.msk [vmem:[#allocation2 + $0x50] sm:$0xf] %vm2634, 0
      %2656 = vst.msk [vmem:[#allocation2 + $0x54] sm:$0xf] %vm2634, 0
      %2657 = vst.msk [vmem:[#allocation2 + $0x58] sm:$0xf] %vm2634, 0
      %2658 = vst.msk [vmem:[#allocation2 + $0x5c] sm:$0xf] %vm2634, 0
      %v2659 = vpack.c.bf16 %v2619, %v2618
      %v2660 = vpack.c.bf16 %v2621, %v2620
      %v2661 = vpack.c.bf16 %v2623, %v2622
      %v2662 = vpack.c.bf16 %v2625, %v2624
      %v2663 = vpack.c.bf16 %v2627, %v2626
      %v2664 = vpack.c.bf16 %v2629, %v2628
      %v2665 = vpack.c.bf16 %v2631, %v2630
      %v2666 = vpack.c.bf16 %v2633, %v2632
      %v2675 = vunpack.c.l.b16 %v2659
      %v2676 = vunpack.c.h.b16 %v2659
      %v2677 = vunpack.c.l.b16 %v2660
      %v2678 = vunpack.c.h.b16 %v2660
      %v2679 = vunpack.c.l.b16 %v2661
      %v2680 = vunpack.c.h.b16 %v2661
      %v2681 = vunpack.c.l.b16 %v2662
      %v2682 = vunpack.c.h.b16 %v2662
      %v2683 = vunpack.c.l.b16 %v2663
      %v2684 = vunpack.c.h.b16 %v2663
      %v2685 = vunpack.c.l.b16 %v2664
      %v2686 = vunpack.c.h.b16 %v2664
      %v2687 = vunpack.c.l.b16 %v2665
      %v2688 = vunpack.c.h.b16 %v2665
      %v2689 = vunpack.c.l.b16 %v2666
      %v2690 = vunpack.c.h.b16 %v2666
      %v2691 = vpack.c.b16 %v2675, %v2675
      %v2692 = vpack.c.b16 %v2676, %v2676
      %v2693 = vpack.c.b16 %v2677, %v2677
      %v2694 = vpack.c.b16 %v2678, %v2678
      %v2695 = vpack.c.b16 %v2679, %v2679
      %v2696 = vpack.c.b16 %v2680, %v2680
      %v2697 = vpack.c.b16 %v2681, %v2681
      %v2698 = vpack.c.b16 %v2682, %v2682
      %v2699 = vpack.c.b16 %v2683, %v2683
      %v2700 = vpack.c.b16 %v2684, %v2684
      %v2701 = vpack.c.b16 %v2685, %v2685
      %v2702 = vpack.c.b16 %v2686, %v2686
      %v2703 = vpack.c.b16 %v2687, %v2687
      %v2704 = vpack.c.b16 %v2688, %v2688
      %v2705 = vpack.c.b16 %v2689, %v2689
      %v2706 = vpack.c.b16 %v2690, %v2690
      %2723 = vst.msk [vmem:[#allocation2 + $0x10] sm:$0xf] %vm2634, %v2691
      %2724 = vst.msk [vmem:[#allocation2 + $0x14] sm:$0xf] %vm2634, %v2692
      %2725 = vst.msk [vmem:[#allocation2 + $0x18] sm:$0xf] %vm2634, %v2693
      %2726 = vst.msk [vmem:[#allocation2 + $0x1c] sm:$0xf] %vm2634, %v2694
      %2727 = vst.msk [vmem:[#allocation2 + $0x20] sm:$0xf] %vm2634, %v2695
      %2728 = vst.msk [vmem:[#allocation2 + $0x24] sm:$0xf] %vm2634, %v2696
      %2729 = vst.msk [vmem:[#allocation2 + $0x28] sm:$0xf] %vm2634, %v2697
      %2730 = vst.msk [vmem:[#allocation2 + $0x2c] sm:$0xf] %vm2634, %v2698
      %2731 = vst.msk [vmem:[#allocation2 + $0x30] sm:$0xf] %vm2634, %v2699
      %2732 = vst.msk [vmem:[#allocation2 + $0x34] sm:$0xf] %vm2634, %v2700
      %2733 = vst.msk [vmem:[#allocation2 + $0x38] sm:$0xf] %vm2634, %v2701
      %2734 = vst.msk [vmem:[#allocation2 + $0x3c] sm:$0xf] %vm2634, %v2702
      %2735 = vst.msk [vmem:[#allocation2 + $0x40] sm:$0xf] %vm2634, %v2703
      %2736 = vst.msk [vmem:[#allocation2 + $0x44] sm:$0xf] %vm2634, %v2704
      %2737 = vst.msk [vmem:[#allocation2 + $0x48] sm:$0xf] %vm2634, %v2705
      %2738 = vst.msk [vmem:[#allocation2 + $0x4c] sm:$0xf] %vm2634, %v2706
      %v2739 = vld [vmem:[#allocation2 + $0x4] sm:$0x8]
      %v2740 = vld [vmem:[#allocation2 + $0x8] sm:$0xf]
      %v2741 = vld [vmem:[#allocation2 + $0xc] sm:$0xf]
      %v2742 = vld [vmem:[#allocation2 + $0x10] sm:$0xf]
      %v2743 = vld [vmem:[#allocation2 + $0x14] sm:$0xf]
      %v2744 = vld [vmem:[#allocation2 + $0x18] sm:$0xf]
      %v2745 = vld [vmem:[#allocation2 + $0x1c] sm:$0xf]
      %v2746 = vld [vmem:[#allocation2 + $0x20] sm:$0xf]
      %v2747 = vld [vmem:[#allocation2 + $0x24] sm:$0xf]
      %v2748 = vld [vmem:[#allocation2 + $0x28] sm:$0xf]
      %v2749 = vld [vmem:[#allocation2 + $0x2c] sm:$0xf]
      %v2750 = vld [vmem:[#allocation2 + $0x30] sm:$0xf]
      %v2751 = vld [vmem:[#allocation2 + $0x34] sm:$0xf]
      %v2752 = vld [vmem:[#allocation2 + $0x38] sm:$0xf]
      %v2753 = vld [vmem:[#allocation2 + $0x3c] sm:$0xf]
      %v2754 = vld [vmem:[#allocation2 + $0x40] sm:$0xf]
      %v2755 = vld [vmem:[#allocation2 + $0x44] sm:$0xf]
      %v2756 = vld [vmem:[%s4] sm:$0xf]
      %v2757 = vld [vmem:[%s4 + $0x4] sm:$0xf]
      %v2758 = vld [vmem:[%s4 + $0x8] sm:$0xf]
      %v2759 = vld [vmem:[%s4 + $0xc] sm:$0xf]
      %v2760 = vld [vmem:[%s4 + $0x10] sm:$0xf]
      %v2761 = vld [vmem:[%s4 + $0x14] sm:$0xf]
      %v2762 = vld [vmem:[%s4 + $0x18] sm:$0xf]
      %v2763 = vld [vmem:[%s4 + $0x1c] sm:$0xf]
      %v2780 = vunpack.c.l.b16 %v2740
      %v2781 = vunpack.c.l.b16 %v2741
      %v2782 = vunpack.c.l.b16 %v2742
      %v2783 = vunpack.c.l.b16 %v2743
      %v2784 = vunpack.c.l.b16 %v2744
      %v2785 = vunpack.c.l.b16 %v2745
      %v2786 = vunpack.c.l.b16 %v2746
      %v2787 = vunpack.c.l.b16 %v2747
      %v2788 = vunpack.c.l.b16 %v2748
      %v2789 = vunpack.c.l.b16 %v2749
      %v2790 = vunpack.c.l.b16 %v2750
      %v2791 = vunpack.c.l.b16 %v2751
      %v2792 = vunpack.c.l.b16 %v2752
      %v2793 = vunpack.c.l.b16 %v2753
      %v2794 = vunpack.c.l.b16 %v2754
      %v2795 = vunpack.c.l.b16 %v2755
      %v2796 = vpack.c.b16 %v2781, %v2780
      %v2797 = vpack.c.b16 %v2783, %v2782
      %v2798 = vpack.c.b16 %v2785, %v2784
      %v2799 = vpack.c.b16 %v2787, %v2786
      %v2800 = vpack.c.b16 %v2789, %v2788
      %v2801 = vpack.c.b16 %v2791, %v2790
      %v2802 = vpack.c.b16 %v2793, %v2792
      %v2803 = vpack.c.b16 %v2795, %v2794
      %v2808 = vunpack.c.l.b16 %v2760
      %v2809 = vunpack.c.l.b16 %v2761
      %v2810 = vunpack.c.l.b16 %v2762
      %v2811 = vunpack.c.l.b16 %v2763
      %v2812 = vpack.c.b16 %v2809, %v2808
      %v2813 = vpack.c.b16 %v2811, %v2810
      %v2817 = vsel %vm400, %v2796, 0
      %v2820 = vsel %vm400, %v2797, 0
      %v2823 = vsel %vm400, %v2798, 0
      %v2826 = vsel %vm400, %v2799, 0
      %v2829 = vsel %vm400, %v2800, 0
      %v2832 = vsel %vm400, %v2801, 0
      %v2835 = vsel %vm400, %v2802, 0
      %v2838 = vsel %vm400, %v2803, 0
      %2840 = vmatprep.subr.bf16.mxu0 0
      %2841 = vmatpush1.bf16.msra.mxu0 0
      %2842 = vmatprep.subr.bf16.mxu0 0
      %2843 = vmatpush1.bf16.msra.mxu0 0
      %2844 = vmatprep.subr.bf16.mxu0 0
      %2845 = vmatpush1.bf16.msra.mxu0 0
      %2846 = vmatprep.subr.bf16.mxu0 0
      %2847 = vmatpush1.bf16.msra.mxu0 0
      %2848 = vmatprep.subr.bf16.mxu0 0
      %2849 = vmatpush1.bf16.msra.mxu0 0
      %2850 = vmatprep.subr.bf16.mxu0 0
      %2851 = vmatpush1.bf16.msra.mxu0 0
      %2852 = vmatprep.subr.bf16.mxu0 0
      %2853 = vmatpush1.bf16.msra.mxu0 %v2813
      %2854 = vmatprep.subr.bf16.mxu0 0
      %2855 = vmatpush1.bf16.msra.mxu0 %v2812
      %2856 = vmatprep.subr.bf16.mxu0 0
      %2857 = vmatpush2.bf16.msra.mxu0 0
      %2858 = vmatprep.subr.bf16.mxu0 0
      %2859 = vmatpush2.bf16.msra.mxu0 0
      %2860 = vmatprep.subr.bf16.mxu0 0
      %2861 = vmatpush2.bf16.msra.mxu0 0
      %2862 = vmatprep.subr.bf16.mxu0 0
      %2863 = vmatpush2.bf16.msra.mxu0 0
      %2864 = vmatprep.subr.bf16.mxu0 0
      %2865 = vmatpush2.bf16.msra.mxu0 0
      %2866 = vmatprep.subr.bf16.mxu0 0
      %2867 = vmatpush2.bf16.msra.mxu0 0
      %2868 = vmatprep.subr.bf16.mxu0 0
      %2869 = vmatpush2.bf16.msra.mxu0 0
      %2870 = vmatprep.subr.bf16.mxu0 0
      %2871 = vmatpush2.bf16.msra.mxu0 0
      %2872 = vmatprep.mubr.bf16.mxu0 0
      %2873 = vmatmul.mubr.bf16.gmra.mxu0 %v2817
      %v2874 = vpop.f32.mrf.mxu0
      %v2875 = vadd.f32 0.0, %v2874
      %v2876 = vpop.f32.mrf.mxu0
      %v2877 = vpop.f32.mrf.mxu0
      %v2878 = vadd.f32 0.0, %v2877
      %v2879 = vpop.f32.mrf.mxu0
      %2880 = vmatprep.mubr.bf16.mxu0 0
      %2881 = vmatmul.mubr.bf16.gmra.mxu0 %v2820
      %v2882 = vpop.f32.mrf.mxu0
      %v2883 = vadd.f32 0.0, %v2882
      %v2884 = vpop.f32.mrf.mxu0
      %v2885 = vpop.f32.mrf.mxu0
      %v2886 = vadd.f32 0.0, %v2885
      %v2887 = vpop.f32.mrf.mxu0
      %2888 = vmatprep.mubr.bf16.mxu0 0
      %2889 = vmatmul.mubr.bf16.gmra.mxu0 %v2823
      %v2890 = vpop.f32.mrf.mxu0
      %v2891 = vadd.f32 0.0, %v2890
      %v2892 = vpop.f32.mrf.mxu0
      %v2893 = vpop.f32.mrf.mxu0
      %v2894 = vadd.f32 0.0, %v2893
      %v2895 = vpop.f32.mrf.mxu0
      %2896 = vmatprep.mubr.bf16.mxu0 0
      %2897 = vmatmul.mubr.bf16.gmra.mxu0 %v2826
      %v2898 = vpop.f32.mrf.mxu0
      %v2899 = vadd.f32 0.0, %v2898
      %v2900 = vpop.f32.mrf.mxu0
      %v2901 = vpop.f32.mrf.mxu0
      %v2902 = vadd.f32 0.0, %v2901
      %v2903 = vpop.f32.mrf.mxu0
      %2904 = vmatprep.mubr.bf16.mxu0 0
      %2905 = vmatmul.mubr.bf16.gmra.mxu0 %v2829
      %v2906 = vpop.f32.mrf.mxu0
      %v2907 = vadd.f32 0.0, %v2906
      %v2908 = vpop.f32.mrf.mxu0
      %v2909 = vpop.f32.mrf.mxu0
      %v2910 = vadd.f32 0.0, %v2909
      %v2911 = vpop.f32.mrf.mxu0
      %2912 = vmatprep.mubr.bf16.mxu0 0
      %2913 = vmatmul.mubr.bf16.gmra.mxu0 %v2832
      %v2914 = vpop.f32.mrf.mxu0
      %v2915 = vadd.f32 0.0, %v2914
      %v2916 = vpop.f32.mrf.mxu0
      %v2917 = vpop.f32.mrf.mxu0
      %v2918 = vadd.f32 0.0, %v2917
      %v2919 = vpop.f32.mrf.mxu0
      %2920 = vmatprep.mubr.bf16.mxu0 0
      %2921 = vmatmul.mubr.bf16.gmra.mxu0 %v2835
      %v2922 = vpop.f32.mrf.mxu0
      %v2923 = vadd.f32 0.0, %v2922
      %v2924 = vpop.f32.mrf.mxu0
      %v2925 = vpop.f32.mrf.mxu0
      %v2926 = vadd.f32 0.0, %v2925
      %v2927 = vpop.f32.mrf.mxu0
      %2928 = vmatprep.mubr.bf16.mxu0 0
      %2929 = vmatmul.mubr.bf16.gmra.mxu0 %v2838
      %v2930 = vpop.f32.mrf.mxu0
      %v2931 = vadd.f32 0.0, %v2930
      %v2932 = vpop.f32.mrf.mxu0
      %v2933 = vpop.f32.mrf.mxu0
      %v2934 = vadd.f32 0.0, %v2933
      %v2935 = vpop.f32.mrf.mxu0
      %2936 = vdwg.mxu0
      %v2938 = vunpack.c.l.b16 %v2739
      %v2939 = vpack.c.b16 %v2780, %v2938
      %v2940 = vpack.c.b16 %v2782, %v2781
      %v2941 = vpack.c.b16 %v2784, %v2783
      %v2942 = vpack.c.b16 %v2786, %v2785
      %v2943 = vpack.c.b16 %v2788, %v2787
      %v2944 = vpack.c.b16 %v2790, %v2789
      %v2945 = vpack.c.b16 %v2792, %v2791
      %v2946 = vpack.c.b16 %v2794, %v2793
      %v2947 = vpack.c.b16 %v2795, %v2795
      %v2949 = vshrl.u32 %v2939, 16
      %v2951 = vrot.slane %v2949, 3
      %v2952 = vshll.u32 %v2939, 16
      %v2954 = vrot.slane %v2952, 4
      %v2955 = vor.u32 %v2951, %v2954
      %v2957 = vshrl.u32 %v2940, 16
      %v2959 = vrot.slane %v2957, 3
      %v2960 = vshll.u32 %v2940, 16
      %v2962 = vrot.slane %v2960, 4
      %v2963 = vor.u32 %v2959, %v2962
      %v2964 = vsel %vm533, %v2955, %v2963
      %v2966 = vshrl.u32 %v2941, 16
      %v2968 = vrot.slane %v2966, 3
      %v2969 = vshll.u32 %v2941, 16
      %v2971 = vrot.slane %v2969, 4
      %v2972 = vor.u32 %v2968, %v2971
      %v2973 = vsel %vm533, %v2963, %v2972
      %v2975 = vshrl.u32 %v2942, 16
      %v2977 = vrot.slane %v2975, 3
      %v2978 = vshll.u32 %v2942, 16
      %v2980 = vrot.slane %v2978, 4
      %v2981 = vor.u32 %v2977, %v2980
      %v2982 = vsel %vm533, %v2972, %v2981
      %v2984 = vshrl.u32 %v2943, 16
      %v2986 = vrot.slane %v2984, 3
      %v2987 = vshll.u32 %v2943, 16
      %v2989 = vrot.slane %v2987, 4
      %v2990 = vor.u32 %v2986, %v2989
      %v2991 = vsel %vm533, %v2981, %v2990
      %v2993 = vshrl.u32 %v2944, 16
      %v2995 = vrot.slane %v2993, 3
      %v2996 = vshll.u32 %v2944, 16
      %v2998 = vrot.slane %v2996, 4
      %v2999 = vor.u32 %v2995, %v2998
      %v3000 = vsel %vm533, %v2990, %v2999
      %v3002 = vshrl.u32 %v2945, 16
      %v3004 = vrot.slane %v3002, 3
      %v3005 = vshll.u32 %v2945, 16
      %v3007 = vrot.slane %v3005, 4
      %v3008 = vor.u32 %v3004, %v3007
      %v3009 = vsel %vm533, %v2999, %v3008
      %v3011 = vshrl.u32 %v2946, 16
      %v3013 = vrot.slane %v3011, 3
      %v3014 = vshll.u32 %v2946, 16
      %v3016 = vrot.slane %v3014, 4
      %v3017 = vor.u32 %v3013, %v3016
      %v3018 = vsel %vm533, %v3008, %v3017
      %v3020 = vshrl.u32 %v2947, 16
      %v3022 = vrot.slane %v3020, 3
      %v3023 = vshll.u32 %v2947, 16
      %v3025 = vrot.slane %v3023, 4
      %v3026 = vor.u32 %v3022, %v3025
      %v3027 = vsel %vm533, %v3017, %v3026
      %v3032 = vunpack.c.l.b16 %v2756
      %v3033 = vunpack.c.l.b16 %v2757
      %v3034 = vunpack.c.l.b16 %v2758
      %v3035 = vunpack.c.l.b16 %v2759
      %v3036 = vpack.c.b16 %v3033, %v3032
      %v3037 = vpack.c.b16 %v3035, %v3034
      %v3041 = vsel %vm400, %v2964, 0
      %v3044 = vsel %vm400, %v2973, 0
      %v3047 = vsel %vm400, %v2982, 0
      %v3050 = vsel %vm400, %v2991, 0
      %v3053 = vsel %vm400, %v3000, 0
      %v3056 = vsel %vm400, %v3009, 0
      %v3059 = vsel %vm400, %v3018, 0
      %v3062 = vsel %vm400, %v3027, 0
      %3064 = vmatprep.subr.bf16.mxu0 0
      %3065 = vmatpush1.bf16.msra.mxu0 0
      %3066 = vmatprep.subr.bf16.mxu0 0
      %3067 = vmatpush1.bf16.msra.mxu0 0
      %3068 = vmatprep.subr.bf16.mxu0 0
      %3069 = vmatpush1.bf16.msra.mxu0 0
      %3070 = vmatprep.subr.bf16.mxu0 0
      %3071 = vmatpush1.bf16.msra.mxu0 0
      %3072 = vmatprep.subr.bf16.mxu0 0
      %3073 = vmatpush1.bf16.msra.mxu0 0
      %3074 = vmatprep.subr.bf16.mxu0 0
      %3075 = vmatpush1.bf16.msra.mxu0 0
      %3076 = vmatprep.subr.bf16.mxu0 0
      %3077 = vmatpush1.bf16.msra.mxu0 %v3037
      %3078 = vmatprep.subr.bf16.mxu0 0
      %3079 = vmatpush1.bf16.msra.mxu0 %v3036
      %3080 = vmatprep.subr.bf16.mxu0 0
      %3081 = vmatpush2.bf16.msra.mxu0 0
      %3082 = vmatprep.subr.bf16.mxu0 0
      %3083 = vmatpush2.bf16.msra.mxu0 0
      %3084 = vmatprep.subr.bf16.mxu0 0
      %3085 = vmatpush2.bf16.msra.mxu0 0
      %3086 = vmatprep.subr.bf16.mxu0 0
      %3087 = vmatpush2.bf16.msra.mxu0 0
      %3088 = vmatprep.subr.bf16.mxu0 0
      %3089 = vmatpush2.bf16.msra.mxu0 0
      %3090 = vmatprep.subr.bf16.mxu0 0
      %3091 = vmatpush2.bf16.msra.mxu0 0
      %3092 = vmatprep.subr.bf16.mxu0 0
      %3093 = vmatpush2.bf16.msra.mxu0 0
      %3094 = vmatprep.subr.bf16.mxu0 0
      %3095 = vmatpush2.bf16.msra.mxu0 0
      %3096 = vmatprep.mubr.bf16.mxu0 0
      %3097 = vmatmul.mubr.bf16.gmra.mxu0 %v3041
      %v3098 = vpop.f32.mrf.mxu0
      %v3099 = vadd.f32 %v2875, %v3098
      %v3100 = vpop.f32.mrf.mxu0
      %v3101 = vpop.f32.mrf.mxu0
      %v3102 = vadd.f32 %v2878, %v3101
      %v3103 = vpop.f32.mrf.mxu0
      %3104 = vmatprep.mubr.bf16.mxu0 0
      %3105 = vmatmul.mubr.bf16.gmra.mxu0 %v3044
      %v3106 = vpop.f32.mrf.mxu0
      %v3107 = vadd.f32 %v2883, %v3106
      %v3108 = vpop.f32.mrf.mxu0
      %v3109 = vpop.f32.mrf.mxu0
      %v3110 = vadd.f32 %v2886, %v3109
      %v3111 = vpop.f32.mrf.mxu0
      %3112 = vmatprep.mubr.bf16.mxu0 0
      %3113 = vmatmul.mubr.bf16.gmra.mxu0 %v3047
      %v3114 = vpop.f32.mrf.mxu0
      %v3115 = vadd.f32 %v2891, %v3114
      %v3116 = vpop.f32.mrf.mxu0
      %v3117 = vpop.f32.mrf.mxu0
      %v3118 = vadd.f32 %v2894, %v3117
      %v3119 = vpop.f32.mrf.mxu0
      %3120 = vmatprep.mubr.bf16.mxu0 0
      %3121 = vmatmul.mubr.bf16.gmra.mxu0 %v3050
      %v3122 = vpop.f32.mrf.mxu0
      %v3123 = vadd.f32 %v2899, %v3122
      %v3124 = vpop.f32.mrf.mxu0
      %v3125 = vpop.f32.mrf.mxu0
      %v3126 = vadd.f32 %v2902, %v3125
      %v3127 = vpop.f32.mrf.mxu0
      %3128 = vmatprep.mubr.bf16.mxu0 0
      %3129 = vmatmul.mubr.bf16.gmra.mxu0 %v3053
      %v3130 = vpop.f32.mrf.mxu0
      %v3131 = vadd.f32 %v2907, %v3130
      %v3132 = vpop.f32.mrf.mxu0
      %v3133 = vpop.f32.mrf.mxu0
      %v3134 = vadd.f32 %v2910, %v3133
      %v3135 = vpop.f32.mrf.mxu0
      %3136 = vmatprep.mubr.bf16.mxu0 0
      %3137 = vmatmul.mubr.bf16.gmra.mxu0 %v3056
      %v3138 = vpop.f32.mrf.mxu0
      %v3139 = vadd.f32 %v2915, %v3138
      %v3140 = vpop.f32.mrf.mxu0
      %v3141 = vpop.f32.mrf.mxu0
      %v3142 = vadd.f32 %v2918, %v3141
      %v3143 = vpop.f32.mrf.mxu0
      %3144 = vmatprep.mubr.bf16.mxu0 0
      %3145 = vmatmul.mubr.bf16.gmra.mxu0 %v3059
      %v3146 = vpop.f32.mrf.mxu0
      %v3147 = vadd.f32 %v2923, %v3146
      %v3148 = vpop.f32.mrf.mxu0
      %v3149 = vpop.f32.mrf.mxu0
      %v3150 = vadd.f32 %v2926, %v3149
      %v3151 = vpop.f32.mrf.mxu0
      %3152 = vmatprep.mubr.bf16.mxu0 0
      %3153 = vmatmul.mubr.bf16.gmra.mxu0 %v3062
      %v3154 = vpop.f32.mrf.mxu0
      %v3155 = vadd.f32 %v2931, %v3154
      %v3156 = vpop.f32.mrf.mxu0
      %v3157 = vpop.f32.mrf.mxu0
      %v3158 = vadd.f32 %v2934, %v3157
      %v3159 = vpop.f32.mrf.mxu0
      %3160 = vdwg.mxu0
      %v3161 = vld [vmem:[#allocation2 + $0x8] sm:$0xf]
      %v3162 = vld [vmem:[#allocation2 + $0xc] sm:$0xf]
      %v3163 = vld [vmem:[#allocation2 + $0x10] sm:$0xf]
      %v3164 = vld [vmem:[#allocation2 + $0x14] sm:$0xf]
      %v3165 = vld [vmem:[#allocation2 + $0x18] sm:$0xf]
      %v3166 = vld [vmem:[#allocation2 + $0x1c] sm:$0xf]
      %v3167 = vld [vmem:[#allocation2 + $0x20] sm:$0xf]
      %v3168 = vld [vmem:[#allocation2 + $0x24] sm:$0xf]
      %v3169 = vld [vmem:[#allocation2 + $0x28] sm:$0xf]
      %v3170 = vld [vmem:[#allocation2 + $0x2c] sm:$0xf]
      %v3171 = vld [vmem:[#allocation2 + $0x30] sm:$0xf]
      %v3172 = vld [vmem:[#allocation2 + $0x34] sm:$0xf]
      %v3173 = vld [vmem:[#allocation2 + $0x38] sm:$0xf]
      %v3174 = vld [vmem:[#allocation2 + $0x3c] sm:$0xf]
      %v3175 = vld [vmem:[#allocation2 + $0x40] sm:$0xf]
      %v3176 = vld [vmem:[#allocation2 + $0x44] sm:$0xf]
      %v3177 = vld [vmem:[#allocation2 + $0x48] sm:$0x1]
      %v3178 = vld [vmem:[%s4 + $0x20] sm:$0xf]
      %v3179 = vld [vmem:[%s4 + $0x24] sm:$0xf]
      %v3180 = vld [vmem:[%s4 + $0x28] sm:$0xf]
      %v3181 = vld [vmem:[%s4 + $0x2c] sm:$0xf]
      %v3199 = vunpack.c.l.b16 %v3161
      %v3200 = vunpack.c.l.b16 %v3162
      %v3201 = vunpack.c.l.b16 %v3163
      %v3202 = vunpack.c.l.b16 %v3164
      %v3203 = vunpack.c.l.b16 %v3165
      %v3204 = vunpack.c.l.b16 %v3166
      %v3205 = vunpack.c.l.b16 %v3167
      %v3206 = vunpack.c.l.b16 %v3168
      %v3207 = vunpack.c.l.b16 %v3169
      %v3208 = vunpack.c.l.b16 %v3170
      %v3209 = vunpack.c.l.b16 %v3171
      %v3210 = vunpack.c.l.b16 %v3172
      %v3211 = vunpack.c.l.b16 %v3173
      %v3212 = vunpack.c.l.b16 %v3174
      %v3213 = vunpack.c.l.b16 %v3175
      %v3214 = vunpack.c.l.b16 %v3176
      %v3215 = vunpack.c.l.b16 %v3177
      %v3216 = vpack.c.b16 %v3200, %v3199
      %v3217 = vpack.c.b16 %v3202, %v3201
      %v3218 = vpack.c.b16 %v3204, %v3203
      %v3219 = vpack.c.b16 %v3206, %v3205
      %v3220 = vpack.c.b16 %v3208, %v3207
      %v3221 = vpack.c.b16 %v3210, %v3209
      %v3222 = vpack.c.b16 %v3212, %v3211
      %v3223 = vpack.c.b16 %v3214, %v3213
      %v3224 = vpack.c.b16 %v3215, %v3215
      %v3226 = vshrl.u32 %v3216, 16
      %v3228 = vshll.u32 %v3216, 16
      %v3230 = vrot.slane %v3228, 1
      %v3231 = vor.u32 %v3226, %v3230
      %v3233 = vshll.u32 %v3217, 16
      %v3235 = vrot.slane %v3233, 1
      %v3236 = vsel %vm811, %v3231, %v3235
      %v3237 = vshrl.u32 %v3217, 16
      %v3239 = vor.u32 %v3237, %v3235
      %v3241 = vshll.u32 %v3218, 16
      %v3243 = vrot.slane %v3241, 1
      %v3244 = vsel %vm811, %v3239, %v3243
      %v3245 = vshrl.u32 %v3218, 16
      %v3247 = vor.u32 %v3245, %v3243
      %v3249 = vshll.u32 %v3219, 16
      %v3251 = vrot.slane %v3249, 1
      %v3252 = vsel %vm811, %v3247, %v3251
      %v3253 = vshrl.u32 %v3219, 16
      %v3255 = vor.u32 %v3253, %v3251
      %v3257 = vshll.u32 %v3220, 16
      %v3259 = vrot.slane %v3257, 1
      %v3260 = vsel %vm811, %v3255, %v3259
      %v3261 = vshrl.u32 %v3220, 16
      %v3263 = vor.u32 %v3261, %v3259
      %v3265 = vshll.u32 %v3221, 16
      %v3267 = vrot.slane %v3265, 1
      %v3268 = vsel %vm811, %v3263, %v3267
      %v3269 = vshrl.u32 %v3221, 16
      %v3271 = vor.u32 %v3269, %v3267
      %v3273 = vshll.u32 %v3222, 16
      %v3275 = vrot.slane %v3273, 1
      %v3276 = vsel %vm811, %v3271, %v3275
      %v3277 = vshrl.u32 %v3222, 16
      %v3279 = vor.u32 %v3277, %v3275
      %v3281 = vshll.u32 %v3223, 16
      %v3283 = vrot.slane %v3281, 1
      %v3284 = vsel %vm811, %v3279, %v3283
      %v3285 = vshrl.u32 %v3223, 16
      %v3287 = vor.u32 %v3285, %v3283
      %v3289 = vshll.u32 %v3224, 16
      %v3291 = vrot.slane %v3289, 1
      %v3292 = vsel %vm811, %v3287, %v3291
      %v3297 = vunpack.c.l.b16 %v3178
      %v3298 = vunpack.c.l.b16 %v3179
      %v3299 = vunpack.c.l.b16 %v3180
      %v3300 = vunpack.c.l.b16 %v3181
      %v3301 = vpack.c.b16 %v3298, %v3297
      %v3302 = vpack.c.b16 %v3300, %v3299
      %v3306 = vsel %vm400, %v3236, 0
      %v3309 = vsel %vm400, %v3244, 0
      %v3312 = vsel %vm400, %v3252, 0
      %v3315 = vsel %vm400, %v3260, 0
      %v3318 = vsel %vm400, %v3268, 0
      %v3321 = vsel %vm400, %v3276, 0
      %v3324 = vsel %vm400, %v3284, 0
      %v3327 = vsel %vm400, %v3292, 0
      %3329 = vmatprep.subr.bf16.mxu0 0
      %3330 = vmatpush1.bf16.msra.mxu0 0
      %3331 = vmatprep.subr.bf16.mxu0 0
      %3332 = vmatpush1.bf16.msra.mxu0 0
      %3333 = vmatprep.subr.bf16.mxu0 0
      %3334 = vmatpush1.bf16.msra.mxu0 0
      %3335 = vmatprep.subr.bf16.mxu0 0
      %3336 = vmatpush1.bf16.msra.mxu0 0
      %3337 = vmatprep.subr.bf16.mxu0 0
      %3338 = vmatpush1.bf16.msra.mxu0 0
      %3339 = vmatprep.subr.bf16.mxu0 0
      %3340 = vmatpush1.bf16.msra.mxu0 0
      %3341 = vmatprep.subr.bf16.mxu0 0
      %3342 = vmatpush1.bf16.msra.mxu0 %v3302
      %3343 = vmatprep.subr.bf16.mxu0 0
      %3344 = vmatpush1.bf16.msra.mxu0 %v3301
      %3345 = vmatprep.subr.bf16.mxu0 0
      %3346 = vmatpush2.bf16.msra.mxu0 0
      %3347 = vmatprep.subr.bf16.mxu0 0
      %3348 = vmatpush2.bf16.msra.mxu0 0
      %3349 = vmatprep.subr.bf16.mxu0 0
      %3350 = vmatpush2.bf16.msra.mxu0 0
      %3351 = vmatprep.subr.bf16.mxu0 0
      %3352 = vmatpush2.bf16.msra.mxu0 0
      %3353 = vmatprep.subr.bf16.mxu0 0
      %3354 = vmatpush2.bf16.msra.mxu0 0
      %3355 = vmatprep.subr.bf16.mxu0 0
      %3356 = vmatpush2.bf16.msra.mxu0 0
      %3357 = vmatprep.subr.bf16.mxu0 0
      %3358 = vmatpush2.bf16.msra.mxu0 0
      %3359 = vmatprep.subr.bf16.mxu0 0
      %3360 = vmatpush2.bf16.msra.mxu0 0
      %3361 = vmatprep.mubr.bf16.mxu0 0
      %3362 = vmatmul.mubr.bf16.gmra.mxu0 %v3306
      %v3363 = vpop.f32.mrf.mxu0
      %v3364 = vadd.f32 0.0, %v3363
      %v3365 = vpop.f32.mrf.mxu0
      %v3366 = vpop.f32.mrf.mxu0
      %v3367 = vadd.f32 0.0, %v3366
      %v3368 = vpop.f32.mrf.mxu0
      %3369 = vmatprep.mubr.bf16.mxu0 0
      %3370 = vmatmul.mubr.bf16.gmra.mxu0 %v3309
      %v3371 = vpop.f32.mrf.mxu0
      %v3372 = vadd.f32 0.0, %v3371
      %v3373 = vpop.f32.mrf.mxu0
      %v3374 = vpop.f32.mrf.mxu0
      %v3375 = vadd.f32 0.0, %v3374
      %v3376 = vpop.f32.mrf.mxu0
      %3377 = vmatprep.mubr.bf16.mxu0 0
      %3378 = vmatmul.mubr.bf16.gmra.mxu0 %v3312
      %v3379 = vpop.f32.mrf.mxu0
      %v3380 = vadd.f32 0.0, %v3379
      %v3381 = vpop.f32.mrf.mxu0
      %v3382 = vpop.f32.mrf.mxu0
      %v3383 = vadd.f32 0.0, %v3382
      %v3384 = vpop.f32.mrf.mxu0
      %3385 = vmatprep.mubr.bf16.mxu0 0
      %3386 = vmatmul.mubr.bf16.gmra.mxu0 %v3315
      %v3387 = vpop.f32.mrf.mxu0
      %v3388 = vadd.f32 0.0, %v3387
      %v3389 = vpop.f32.mrf.mxu0
      %v3390 = vpop.f32.mrf.mxu0
      %v3391 = vadd.f32 0.0, %v3390
      %v3392 = vpop.f32.mrf.mxu0
      %3393 = vmatprep.mubr.bf16.mxu0 0
      %3394 = vmatmul.mubr.bf16.gmra.mxu0 %v3318
      %v3395 = vpop.f32.mrf.mxu0
      %v3396 = vadd.f32 0.0, %v3395
      %v3397 = vpop.f32.mrf.mxu0
      %v3398 = vpop.f32.mrf.mxu0
      %v3399 = vadd.f32 0.0, %v3398
      %v3400 = vpop.f32.mrf.mxu0
      %3401 = vmatprep.mubr.bf16.mxu0 0
      %3402 = vmatmul.mubr.bf16.gmra.mxu0 %v3321
      %v3403 = vpop.f32.mrf.mxu0
      %v3404 = vadd.f32 0.0, %v3403
      %v3405 = vpop.f32.mrf.mxu0
      %v3406 = vpop.f32.mrf.mxu0
      %v3407 = vadd.f32 0.0, %v3406
      %v3408 = vpop.f32.mrf.mxu0
      %3409 = vmatprep.mubr.bf16.mxu0 0
      %3410 = vmatmul.mubr.bf16.gmra.mxu0 %v3324
      %v3411 = vpop.f32.mrf.mxu0
      %v3412 = vadd.f32 0.0, %v3411
      %v3413 = vpop.f32.mrf.mxu0
      %v3414 = vpop.f32.mrf.mxu0
      %v3415 = vadd.f32 0.0, %v3414
      %v3416 = vpop.f32.mrf.mxu0
      %3417 = vmatprep.mubr.bf16.mxu0 0
      %3418 = vmatmul.mubr.bf16.gmra.mxu0 %v3327
      %v3419 = vpop.f32.mrf.mxu0
      %v3420 = vadd.f32 0.0, %v3419
      %v3421 = vpop.f32.mrf.mxu0
      %v3422 = vpop.f32.mrf.mxu0
      %v3423 = vadd.f32 0.0, %v3422
      %v3424 = vpop.f32.mrf.mxu0
      %3425 = vdwg.mxu0
      %v3426 = vadd.f32 %v3099, %v3364
      %v3427 = vadd.f32 %v3102, %v3367
      %v3428 = vadd.f32 %v3107, %v3372
      %v3429 = vadd.f32 %v3110, %v3375
      %v3430 = vadd.f32 %v3115, %v3380
      %v3431 = vadd.f32 %v3118, %v3383
      %v3432 = vadd.f32 %v3123, %v3388
      %v3433 = vadd.f32 %v3126, %v3391
      %v3434 = vadd.f32 %v3131, %v3396
      %v3435 = vadd.f32 %v3134, %v3399
      %v3436 = vadd.f32 %v3139, %v3404
      %v3437 = vadd.f32 %v3142, %v3407
      %v3438 = vadd.f32 %v3147, %v3412
      %v3439 = vadd.f32 %v3150, %v3415
      %v3440 = vadd.f32 %v3155, %v3420
      %v3441 = vadd.f32 %v3158, %v3423
      %v3442 = vld [vmem:[#allocation2 + $0xc] sm:$0x8]
      %v3443 = vld [vmem:[#allocation2 + $0x10] sm:$0xf]
      %v3444 = vld [vmem:[#allocation2 + $0x14] sm:$0xf]
      %v3445 = vld [vmem:[#allocation2 + $0x18] sm:$0xf]
      %v3446 = vld [vmem:[#allocation2 + $0x1c] sm:$0xf]
      %v3447 = vld [vmem:[#allocation2 + $0x20] sm:$0xf]
      %v3448 = vld [vmem:[#allocation2 + $0x24] sm:$0xf]
      %v3449 = vld [vmem:[#allocation2 + $0x28] sm:$0xf]
      %v3450 = vld [vmem:[#allocation2 + $0x2c] sm:$0xf]
      %v3451 = vld [vmem:[#allocation2 + $0x30] sm:$0xf]
      %v3452 = vld [vmem:[#allocation2 + $0x34] sm:$0xf]
      %v3453 = vld [vmem:[#allocation2 + $0x38] sm:$0xf]
      %v3454 = vld [vmem:[#allocation2 + $0x3c] sm:$0xf]
      %v3455 = vld [vmem:[#allocation2 + $0x40] sm:$0xf]
      %v3456 = vld [vmem:[#allocation2 + $0x44] sm:$0xf]
      %v3457 = vld [vmem:[#allocation2 + $0x48] sm:$0xf]
      %v3458 = vld [vmem:[#allocation2 + $0x4c] sm:$0xf]
      %v3459 = vld [vmem:[%s4 + $0x30] sm:$0xf]
      %v3460 = vld [vmem:[%s4 + $0x34] sm:$0xf]
      %v3461 = vld [vmem:[%s4 + $0x38] sm:$0xf]
      %v3462 = vld [vmem:[%s4 + $0x3c] sm:$0xf]
      %v3480 = vunpack.c.l.b16 %v3442
      %v3481 = vunpack.c.l.b16 %v3443
      %v3482 = vunpack.c.l.b16 %v3444
      %v3483 = vunpack.c.l.b16 %v3445
      %v3484 = vunpack.c.l.b16 %v3446
      %v3485 = vunpack.c.l.b16 %v3447
      %v3486 = vunpack.c.l.b16 %v3448
      %v3487 = vunpack.c.l.b16 %v3449
      %v3488 = vunpack.c.l.b16 %v3450
      %v3489 = vunpack.c.l.b16 %v3451
      %v3490 = vunpack.c.l.b16 %v3452
      %v3491 = vunpack.c.l.b16 %v3453
      %v3492 = vunpack.c.l.b16 %v3454
      %v3493 = vunpack.c.l.b16 %v3455
      %v3494 = vunpack.c.l.b16 %v3456
      %v3495 = vunpack.c.l.b16 %v3457
      %v3496 = vunpack.c.l.b16 %v3458
      %v3497 = vpack.c.b16 %v3481, %v3480
      %v3498 = vpack.c.b16 %v3483, %v3482
      %v3499 = vpack.c.b16 %v3485, %v3484
      %v3500 = vpack.c.b16 %v3487, %v3486
      %v3501 = vpack.c.b16 %v3489, %v3488
      %v3502 = vpack.c.b16 %v3491, %v3490
      %v3503 = vpack.c.b16 %v3493, %v3492
      %v3504 = vpack.c.b16 %v3495, %v3494
      %v3505 = vpack.c.b16 %v3496, %v3496
      %v3507 = vshrl.u32 %v3497, 16
      %v3509 = vrot.slane %v3507, 3
      %v3510 = vshll.u32 %v3497, 16
      %v3512 = vrot.slane %v3510, 4
      %v3513 = vor.u32 %v3509, %v3512
      %v3515 = vshrl.u32 %v3498, 16
      %v3517 = vrot.slane %v3515, 3
      %v3518 = vshll.u32 %v3498, 16
      %v3520 = vrot.slane %v3518, 4
      %v3521 = vor.u32 %v3517, %v3520
      %v3522 = vsel %vm533, %v3513, %v3521
      %v3524 = vshrl.u32 %v3499, 16
      %v3526 = vrot.slane %v3524, 3
      %v3527 = vshll.u32 %v3499, 16
      %v3529 = vrot.slane %v3527, 4
      %v3530 = vor.u32 %v3526, %v3529
      %v3531 = vsel %vm533, %v3521, %v3530
      %v3533 = vshrl.u32 %v3500, 16
      %v3535 = vrot.slane %v3533, 3
      %v3536 = vshll.u32 %v3500, 16
      %v3538 = vrot.slane %v3536, 4
      %v3539 = vor.u32 %v3535, %v3538
      %v3540 = vsel %vm533, %v3530, %v3539
      %v3542 = vshrl.u32 %v3501, 16
      %v3544 = vrot.slane %v3542, 3
      %v3545 = vshll.u32 %v3501, 16
      %v3547 = vrot.slane %v3545, 4
      %v3548 = vor.u32 %v3544, %v3547
      %v3549 = vsel %vm533, %v3539, %v3548
      %v3551 = vshrl.u32 %v3502, 16
      %v3553 = vrot.slane %v3551, 3
      %v3554 = vshll.u32 %v3502, 16
      %v3556 = vrot.slane %v3554, 4
      %v3557 = vor.u32 %v3553, %v3556
      %v3558 = vsel %vm533, %v3548, %v3557
      %v3560 = vshrl.u32 %v3503, 16
      %v3562 = vrot.slane %v3560, 3
      %v3563 = vshll.u32 %v3503, 16
      %v3565 = vrot.slane %v3563, 4
      %v3566 = vor.u32 %v3562, %v3565
      %v3567 = vsel %vm533, %v3557, %v3566
      %v3569 = vshrl.u32 %v3504, 16
      %v3571 = vrot.slane %v3569, 3
      %v3572 = vshll.u32 %v3504, 16
      %v3574 = vrot.slane %v3572, 4
      %v3575 = vor.u32 %v3571, %v3574
      %v3576 = vsel %vm533, %v3566, %v3575
      %v3578 = vshrl.u32 %v3505, 16
      %v3580 = vrot.slane %v3578, 3
      %v3581 = vshll.u32 %v3505, 16
      %v3583 = vrot.slane %v3581, 4
      %v3584 = vor.u32 %v3580, %v3583
      %v3585 = vsel %vm533, %v3575, %v3584
      %v3590 = vunpack.c.l.b16 %v3459
      %v3591 = vunpack.c.l.b16 %v3460
      %v3592 = vunpack.c.l.b16 %v3461
      %v3593 = vunpack.c.l.b16 %v3462
      %v3594 = vpack.c.b16 %v3591, %v3590
      %v3595 = vpack.c.b16 %v3593, %v3592
      %v3599 = vsel %vm400, %v3522, 0
      %v3602 = vsel %vm400, %v3531, 0
      %v3605 = vsel %vm400, %v3540, 0
      %v3608 = vsel %vm400, %v3549, 0
      %v3611 = vsel %vm400, %v3558, 0
      %v3614 = vsel %vm400, %v3567, 0
      %v3617 = vsel %vm400, %v3576, 0
      %v3620 = vsel %vm400, %v3585, 0
      %3622 = vmatprep.subr.bf16.mxu0 0
      %3623 = vmatpush1.bf16.msra.mxu0 0
      %3624 = vmatprep.subr.bf16.mxu0 0
      %3625 = vmatpush1.bf16.msra.mxu0 0
      %3626 = vmatprep.subr.bf16.mxu0 0
      %3627 = vmatpush1.bf16.msra.mxu0 0
      %3628 = vmatprep.subr.bf16.mxu0 0
      %3629 = vmatpush1.bf16.msra.mxu0 0
      %3630 = vmatprep.subr.bf16.mxu0 0
      %3631 = vmatpush1.bf16.msra.mxu0 0
      %3632 = vmatprep.subr.bf16.mxu0 0
      %3633 = vmatpush1.bf16.msra.mxu0 0
      %3634 = vmatprep.subr.bf16.mxu0 0
      %3635 = vmatpush1.bf16.msra.mxu0 %v3595
      %3636 = vmatprep.subr.bf16.mxu0 0
      %3637 = vmatpush1.bf16.msra.mxu0 %v3594
      %3638 = vmatprep.subr.bf16.mxu0 0
      %3639 = vmatpush2.bf16.msra.mxu0 0
      %3640 = vmatprep.subr.bf16.mxu0 0
      %3641 = vmatpush2.bf16.msra.mxu0 0
      %3642 = vmatprep.subr.bf16.mxu0 0
      %3643 = vmatpush2.bf16.msra.mxu0 0
      %3644 = vmatprep.subr.bf16.mxu0 0
      %3645 = vmatpush2.bf16.msra.mxu0 0
      %3646 = vmatprep.subr.bf16.mxu0 0
      %3647 = vmatpush2.bf16.msra.mxu0 0
      %3648 = vmatprep.subr.bf16.mxu0 0
      %3649 = vmatpush2.bf16.msra.mxu0 0
      %3650 = vmatprep.subr.bf16.mxu0 0
      %3651 = vmatpush2.bf16.msra.mxu0 0
      %3652 = vmatprep.subr.bf16.mxu0 0
      %3653 = vmatpush2.bf16.msra.mxu0 0
      %3654 = vmatprep.mubr.bf16.mxu0 0
      %3655 = vmatmul.mubr.bf16.gmra.mxu0 %v3599
      %v3656 = vpop.f32.mrf.mxu0
      %v3657 = vadd.f32 0.0, %v3656
      %v3658 = vpop.f32.mrf.mxu0
      %v3659 = vpop.f32.mrf.mxu0
      %v3660 = vadd.f32 0.0, %v3659
      %v3661 = vpop.f32.mrf.mxu0
      %3662 = vmatprep.mubr.bf16.mxu0 0
      %3663 = vmatmul.mubr.bf16.gmra.mxu0 %v3602
      %v3664 = vpop.f32.mrf.mxu0
      %v3665 = vadd.f32 0.0, %v3664
      %v3666 = vpop.f32.mrf.mxu0
      %v3667 = vpop.f32.mrf.mxu0
      %v3668 = vadd.f32 0.0, %v3667
      %v3669 = vpop.f32.mrf.mxu0
      %3670 = vmatprep.mubr.bf16.mxu0 0
      %3671 = vmatmul.mubr.bf16.gmra.mxu0 %v3605
      %v3672 = vpop.f32.mrf.mxu0
      %v3673 = vadd.f32 0.0, %v3672
      %v3674 = vpop.f32.mrf.mxu0
      %v3675 = vpop.f32.mrf.mxu0
      %v3676 = vadd.f32 0.0, %v3675
      %v3677 = vpop.f32.mrf.mxu0
      %3678 = vmatprep.mubr.bf16.mxu0 0
      %3679 = vmatmul.mubr.bf16.gmra.mxu0 %v3608
      %v3680 = vpop.f32.mrf.mxu0
      %v3681 = vadd.f32 0.0, %v3680
      %v3682 = vpop.f32.mrf.mxu0
      %v3683 = vpop.f32.mrf.mxu0
      %v3684 = vadd.f32 0.0, %v3683
      %v3685 = vpop.f32.mrf.mxu0
      %3686 = vmatprep.mubr.bf16.mxu0 0
      %3687 = vmatmul.mubr.bf16.gmra.mxu0 %v3611
      %v3688 = vpop.f32.mrf.mxu0
      %v3689 = vadd.f32 0.0, %v3688
      %v3690 = vpop.f32.mrf.mxu0
      %v3691 = vpop.f32.mrf.mxu0
      %v3692 = vadd.f32 0.0, %v3691
      %v3693 = vpop.f32.mrf.mxu0
      %3694 = vmatprep.mubr.bf16.mxu0 0
      %3695 = vmatmul.mubr.bf16.gmra.mxu0 %v3614
      %v3696 = vpop.f32.mrf.mxu0
      %v3697 = vadd.f32 0.0, %v3696
      %v3698 = vpop.f32.mrf.mxu0
      %v3699 = vpop.f32.mrf.mxu0
      %v3700 = vadd.f32 0.0, %v3699
      %v3701 = vpop.f32.mrf.mxu0
      %3702 = vmatprep.mubr.bf16.mxu0 0
      %3703 = vmatmul.mubr.bf16.gmra.mxu0 %v3617
      %v3704 = vpop.f32.mrf.mxu0
      %v3705 = vadd.f32 0.0, %v3704
      %v3706 = vpop.f32.mrf.mxu0
      %v3707 = vpop.f32.mrf.mxu0
      %v3708 = vadd.f32 0.0, %v3707
      %v3709 = vpop.f32.mrf.mxu0
      %3710 = vmatprep.mubr.bf16.mxu0 0
      %3711 = vmatmul.mubr.bf16.gmra.mxu0 %v3620
      %v3712 = vpop.f32.mrf.mxu0
      %v3713 = vadd.f32 0.0, %v3712
      %v3714 = vpop.f32.mrf.mxu0
      %v3715 = vpop.f32.mrf.mxu0
      %v3716 = vadd.f32 0.0, %v3715
      %v3717 = vpop.f32.mrf.mxu0
      %3718 = vdwg.mxu0
      %v3719 = vadd.f32 %v3426, %v3657
      %v3720 = vadd.f32 %v3427, %v3660
      %v3721 = vadd.f32 %v3428, %v3665
      %v3722 = vadd.f32 %v3429, %v3668
      %v3723 = vadd.f32 %v3430, %v3673
      %v3724 = vadd.f32 %v3431, %v3676
      %v3725 = vadd.f32 %v3432, %v3681
      %v3726 = vadd.f32 %v3433, %v3684
      %v3727 = vadd.f32 %v3434, %v3689
      %v3728 = vadd.f32 %v3435, %v3692
      %v3729 = vadd.f32 %v3436, %v3697
      %v3730 = vadd.f32 %v3437, %v3700
      %v3731 = vadd.f32 %v3438, %v3705
      %v3732 = vadd.f32 %v3439, %v3708
      %v3733 = vadd.f32 %v3440, %v3713
      %v3734 = vadd.f32 %v3441, %v3716
      %v3735 = vld [vmem:[%s4 + $0x40] sm:$0xf]
      %v3736 = vld [vmem:[%s4 + $0x44] sm:$0xf]
      %v3737 = vld [vmem:[%s4 + $0x48] sm:$0xf]
      %v3738 = vld [vmem:[%s4 + $0x4c] sm:$0xf]
      %v3739 = vpack.c.b16 %v3482, %v3481
      %v3740 = vpack.c.b16 %v3484, %v3483
      %v3741 = vpack.c.b16 %v3486, %v3485
      %v3742 = vpack.c.b16 %v3488, %v3487
      %v3743 = vpack.c.b16 %v3490, %v3489
      %v3744 = vpack.c.b16 %v3492, %v3491
      %v3745 = vpack.c.b16 %v3494, %v3493
      %v3746 = vpack.c.b16 %v3496, %v3495
      %v3751 = vunpack.c.l.b16 %v3735
      %v3752 = vunpack.c.l.b16 %v3736
      %v3753 = vunpack.c.l.b16 %v3737
      %v3754 = vunpack.c.l.b16 %v3738
      %v3755 = vpack.c.b16 %v3752, %v3751
      %v3756 = vpack.c.b16 %v3754, %v3753
      %v3760 = vsel %vm400, %v3739, 0
      %v3763 = vsel %vm400, %v3740, 0
      %v3766 = vsel %vm400, %v3741, 0
      %v3769 = vsel %vm400, %v3742, 0
      %v3772 = vsel %vm400, %v3743, 0
      %v3775 = vsel %vm400, %v3744, 0
      %v3778 = vsel %vm400, %v3745, 0
      %v3781 = vsel %vm400, %v3746, 0
      %3783 = vmatprep.subr.bf16.mxu0 0
      %3784 = vmatpush1.bf16.msra.mxu0 0
      %3785 = vmatprep.subr.bf16.mxu0 0
      %3786 = vmatpush1.bf16.msra.mxu0 0
      %3787 = vmatprep.subr.bf16.mxu0 0
      %3788 = vmatpush1.bf16.msra.mxu0 0
      %3789 = vmatprep.subr.bf16.mxu0 0
      %3790 = vmatpush1.bf16.msra.mxu0 0
      %3791 = vmatprep.subr.bf16.mxu0 0
      %3792 = vmatpush1.bf16.msra.mxu0 0
      %3793 = vmatprep.subr.bf16.mxu0 0
      %3794 = vmatpush1.bf16.msra.mxu0 0
      %3795 = vmatprep.subr.bf16.mxu0 0
      %3796 = vmatpush1.bf16.msra.mxu0 %v3756
      %3797 = vmatprep.subr.bf16.mxu0 0
      %3798 = vmatpush1.bf16.msra.mxu0 %v3755
      %3799 = vmatprep.subr.bf16.mxu0 0
      %3800 = vmatpush2.bf16.msra.mxu0 0
      %3801 = vmatprep.subr.bf16.mxu0 0
      %3802 = vmatpush2.bf16.msra.mxu0 0
      %3803 = vmatprep.subr.bf16.mxu0 0
      %3804 = vmatpush2.bf16.msra.mxu0 0
      %3805 = vmatprep.subr.bf16.mxu0 0
      %3806 = vmatpush2.bf16.msra.mxu0 0
      %3807 = vmatprep.subr.bf16.mxu0 0
      %3808 = vmatpush2.bf16.msra.mxu0 0
      %3809 = vmatprep.subr.bf16.mxu0 0
      %3810 = vmatpush2.bf16.msra.mxu0 0
      %3811 = vmatprep.subr.bf16.mxu0 0
      %3812 = vmatpush2.bf16.msra.mxu0 0
      %3813 = vmatprep.subr.bf16.mxu0 0
      %3814 = vmatpush2.bf16.msra.mxu0 0
      %3815 = vmatprep.mubr.bf16.mxu0 0
      %3816 = vmatmul.mubr.bf16.gmra.mxu0 %v3760
      %v3817 = vpop.f32.mrf.mxu0
      %v3818 = vadd.f32 0.0, %v3817
      %v3819 = vpop.f32.mrf.mxu0
      %v3820 = vpop.f32.mrf.mxu0
      %v3821 = vadd.f32 0.0, %v3820
      %v3822 = vpop.f32.mrf.mxu0
      %3823 = vmatprep.mubr.bf16.mxu0 0
      %3824 = vmatmul.mubr.bf16.gmra.mxu0 %v3763
      %v3825 = vpop.f32.mrf.mxu0
      %v3826 = vadd.f32 0.0, %v3825
      %v3827 = vpop.f32.mrf.mxu0
      %v3828 = vpop.f32.mrf.mxu0
      %v3829 = vadd.f32 0.0, %v3828
      %v3830 = vpop.f32.mrf.mxu0
      %3831 = vmatprep.mubr.bf16.mxu0 0
      %3832 = vmatmul.mubr.bf16.gmra.mxu0 %v3766
      %v3833 = vpop.f32.mrf.mxu0
      %v3834 = vadd.f32 0.0, %v3833
      %v3835 = vpop.f32.mrf.mxu0
      %v3836 = vpop.f32.mrf.mxu0
      %v3837 = vadd.f32 0.0, %v3836
      %v3838 = vpop.f32.mrf.mxu0
      %3839 = vmatprep.mubr.bf16.mxu0 0
      %3840 = vmatmul.mubr.bf16.gmra.mxu0 %v3769
      %v3841 = vpop.f32.mrf.mxu0
      %v3842 = vadd.f32 0.0, %v3841
      %v3843 = vpop.f32.mrf.mxu0
      %v3844 = vpop.f32.mrf.mxu0
      %v3845 = vadd.f32 0.0, %v3844
      %v3846 = vpop.f32.mrf.mxu0
      %3847 = vmatprep.mubr.bf16.mxu0 0
      %3848 = vmatmul.mubr.bf16.gmra.mxu0 %v3772
      %v3849 = vpop.f32.mrf.mxu0
      %v3850 = vadd.f32 0.0, %v3849
      %v3851 = vpop.f32.mrf.mxu0
      %v3852 = vpop.f32.mrf.mxu0
      %v3853 = vadd.f32 0.0, %v3852
      %v3854 = vpop.f32.mrf.mxu0
      %3855 = vmatprep.mubr.bf16.mxu0 0
      %3856 = vmatmul.mubr.bf16.gmra.mxu0 %v3775
      %v3857 = vpop.f32.mrf.mxu0
      %v3858 = vadd.f32 0.0, %v3857
      %v3859 = vpop.f32.mrf.mxu0
      %v3860 = vpop.f32.mrf.mxu0
      %v3861 = vadd.f32 0.0, %v3860
      %v3862 = vpop.f32.mrf.mxu0
      %3863 = vmatprep.mubr.bf16.mxu0 0
      %3864 = vmatmul.mubr.bf16.gmra.mxu0 %v3778
      %v3865 = vpop.f32.mrf.mxu0
      %v3866 = vadd.f32 0.0, %v3865
      %v3867 = vpop.f32.mrf.mxu0
      %v3868 = vpop.f32.mrf.mxu0
      %v3869 = vadd.f32 0.0, %v3868
      %v3870 = vpop.f32.mrf.mxu0
      %3871 = vmatprep.mubr.bf16.mxu0 0
      %3872 = vmatmul.mubr.bf16.gmra.mxu0 %v3781
      %v3873 = vpop.f32.mrf.mxu0
      %v3874 = vadd.f32 0.0, %v3873
      %v3875 = vpop.f32.mrf.mxu0
      %v3876 = vpop.f32.mrf.mxu0
      %v3877 = vadd.f32 0.0, %v3876
      %v3878 = vpop.f32.mrf.mxu0
      %3879 = vdwg.mxu0
      %v3880 = vadd.f32 %v3719, %v3818
      %v3881 = vadd.f32 %v3720, %v3821
      %v3882 = vadd.f32 %v3721, %v3826
      %v3883 = vadd.f32 %v3722, %v3829
      %v3884 = vadd.f32 %v3723, %v3834
      %v3885 = vadd.f32 %v3724, %v3837
      %v3886 = vadd.f32 %v3725, %v3842
      %v3887 = vadd.f32 %v3726, %v3845
      %v3888 = vadd.f32 %v3727, %v3850
      %v3889 = vadd.f32 %v3728, %v3853
      %v3890 = vadd.f32 %v3729, %v3858
      %v3891 = vadd.f32 %v3730, %v3861
      %v3892 = vadd.f32 %v3731, %v3866
      %v3893 = vadd.f32 %v3732, %v3869
      %v3894 = vadd.f32 %v3733, %v3874
      %v3895 = vadd.f32 %v3734, %v3877
      %v3896 = vld [vmem:[#allocation2 + $0x10] sm:$0xf]
      %v3897 = vld [vmem:[#allocation2 + $0x14] sm:$0xf]
      %v3898 = vld [vmem:[#allocation2 + $0x18] sm:$0xf]
      %v3899 = vld [vmem:[#allocation2 + $0x1c] sm:$0xf]
      %v3900 = vld [vmem:[#allocation2 + $0x20] sm:$0xf]
      %v3901 = vld [vmem:[#allocation2 + $0x24] sm:$0xf]
      %v3902 = vld [vmem:[#allocation2 + $0x28] sm:$0xf]
      %v3903 = vld [vmem:[#allocation2 + $0x2c] sm:$0xf]
      %v3904 = vld [vmem:[#allocation2 + $0x30] sm:$0xf]
      %v3905 = vld [vmem:[#allocation2 + $0x34] sm:$0xf]
      %v3906 = vld [vmem:[#allocation2 + $0x38] sm:$0xf]
      %v3907 = vld [vmem:[#allocation2 + $0x3c] sm:$0xf]
      %v3908 = vld [vmem:[#allocation2 + $0x40] sm:$0xf]
      %v3909 = vld [vmem:[#allocation2 + $0x44] sm:$0xf]
      %v3910 = vld [vmem:[#allocation2 + $0x48] sm:$0xf]
      %v3911 = vld [vmem:[#allocation2 + $0x4c] sm:$0xf]
      %v3912 = vld [vmem:[#allocation2 + $0x50] sm:$0x1]
      %v3913 = vld [vmem:[%s4 + $0x50] sm:$0xf]
      %v3914 = vld [vmem:[%s4 + $0x54] sm:$0xf]
      %v3915 = vld [vmem:[%s4 + $0x58] sm:$0xf]
      %v3916 = vld [vmem:[%s4 + $0x5c] sm:$0xf]
      %v3934 = vunpack.c.l.b16 %v3896
      %v3935 = vunpack.c.l.b16 %v3897
      %v3936 = vunpack.c.l.b16 %v3898
      %v3937 = vunpack.c.l.b16 %v3899
      %v3938 = vunpack.c.l.b16 %v3900
      %v3939 = vunpack.c.l.b16 %v3901
      %v3940 = vunpack.c.l.b16 %v3902
      %v3941 = vunpack.c.l.b16 %v3903
      %v3942 = vunpack.c.l.b16 %v3904
      %v3943 = vunpack.c.l.b16 %v3905
      %v3944 = vunpack.c.l.b16 %v3906
      %v3945 = vunpack.c.l.b16 %v3907
      %v3946 = vunpack.c.l.b16 %v3908
      %v3947 = vunpack.c.l.b16 %v3909
      %v3948 = vunpack.c.l.b16 %v3910
      %v3949 = vunpack.c.l.b16 %v3911
      %v3950 = vunpack.c.l.b16 %v3912
      %v3951 = vpack.c.b16 %v3935, %v3934
      %v3952 = vpack.c.b16 %v3937, %v3936
      %v3953 = vpack.c.b16 %v3939, %v3938
      %v3954 = vpack.c.b16 %v3941, %v3940
      %v3955 = vpack.c.b16 %v3943, %v3942
      %v3956 = vpack.c.b16 %v3945, %v3944
      %v3957 = vpack.c.b16 %v3947, %v3946
      %v3958 = vpack.c.b16 %v3949, %v3948
      %v3959 = vpack.c.b16 %v3950, %v3950
      %v3961 = vshrl.u32 %v3951, 16
      %v3963 = vshll.u32 %v3951, 16
      %v3965 = vrot.slane %v3963, 1
      %v3966 = vor.u32 %v3961, %v3965
      %v3968 = vshll.u32 %v3952, 16
      %v3970 = vrot.slane %v3968, 1
      %v3971 = vsel %vm811, %v3966, %v3970
      %v3972 = vshrl.u32 %v3952, 16
      %v3974 = vor.u32 %v3972, %v3970
      %v3976 = vshll.u32 %v3953, 16
      %v3978 = vrot.slane %v3976, 1
      %v3979 = vsel %vm811, %v3974, %v3978
      %v3980 = vshrl.u32 %v3953, 16
      %v3982 = vor.u32 %v3980, %v3978
      %v3984 = vshll.u32 %v3954, 16
      %v3986 = vrot.slane %v3984, 1
      %v3987 = vsel %vm811, %v3982, %v3986
      %v3988 = vshrl.u32 %v3954, 16
      %v3990 = vor.u32 %v3988, %v3986
      %v3992 = vshll.u32 %v3955, 16
      %v3994 = vrot.slane %v3992, 1
      %v3995 = vsel %vm811, %v3990, %v3994
      %v3996 = vshrl.u32 %v3955, 16
      %v3998 = vor.u32 %v3996, %v3994
      %v4000 = vshll.u32 %v3956, 16
      %v4002 = vrot.slane %v4000, 1
      %v4003 = vsel %vm811, %v3998, %v4002
      %v4004 = vshrl.u32 %v3956, 16
      %v4006 = vor.u32 %v4004, %v4002
      %v4008 = vshll.u32 %v3957, 16
      %v4010 = vrot.slane %v4008, 1
      %v4011 = vsel %vm811, %v4006, %v4010
      %v4012 = vshrl.u32 %v3957, 16
      %v4014 = vor.u32 %v4012, %v4010
      %v4016 = vshll.u32 %v3958, 16
      %v4018 = vrot.slane %v4016, 1
      %v4019 = vsel %vm811, %v4014, %v4018
      %v4020 = vshrl.u32 %v3958, 16
      %v4022 = vor.u32 %v4020, %v4018
      %v4024 = vshll.u32 %v3959, 16
      %v4026 = vrot.slane %v4024, 1
      %v4027 = vsel %vm811, %v4022, %v4026
      %v4032 = vunpack.c.l.b16 %v3913
      %v4033 = vunpack.c.l.b16 %v3914
      %v4034 = vunpack.c.l.b16 %v3915
      %v4035 = vunpack.c.l.b16 %v3916
      %v4036 = vpack.c.b16 %v4033, %v4032
      %v4037 = vpack.c.b16 %v4035, %v4034
      %v4041 = vsel %vm400, %v3971, 0
      %v4044 = vsel %vm400, %v3979, 0
      %v4047 = vsel %vm400, %v3987, 0
      %v4050 = vsel %vm400, %v3995, 0
      %v4053 = vsel %vm400, %v4003, 0
      %v4056 = vsel %vm400, %v4011, 0
      %v4059 = vsel %vm400, %v4019, 0
      %v4062 = vsel %vm400, %v4027, 0
      %4064 = vmatprep.subr.bf16.mxu0 0
      %4065 = vmatpush1.bf16.msra.mxu0 0
      %4066 = vmatprep.subr.bf16.mxu0 0
      %4067 = vmatpush1.bf16.msra.mxu0 0
      %4068 = vmatprep.subr.bf16.mxu0 0
      %4069 = vmatpush1.bf16.msra.mxu0 0
      %4070 = vmatprep.subr.bf16.mxu0 0
      %4071 = vmatpush1.bf16.msra.mxu0 0
      %4072 = vmatprep.subr.bf16.mxu0 0
      %4073 = vmatpush1.bf16.msra.mxu0 0
      %4074 = vmatprep.subr.bf16.mxu0 0
      %4075 = vmatpush1.bf16.msra.mxu0 0
      %4076 = vmatprep.subr.bf16.mxu0 0
      %4077 = vmatpush1.bf16.msra.mxu0 %v4037
      %4078 = vmatprep.subr.bf16.mxu0 0
      %4079 = vmatpush1.bf16.msra.mxu0 %v4036
      %4080 = vmatprep.subr.bf16.mxu0 0
      %4081 = vmatpush2.bf16.msra.mxu0 0
      %4082 = vmatprep.subr.bf16.mxu0 0
      %4083 = vmatpush2.bf16.msra.mxu0 0
      %4084 = vmatprep.subr.bf16.mxu0 0
      %4085 = vmatpush2.bf16.msra.mxu0 0
      %4086 = vmatprep.subr.bf16.mxu0 0
      %4087 = vmatpush2.bf16.msra.mxu0 0
      %4088 = vmatprep.subr.bf16.mxu0 0
      %4089 = vmatpush2.bf16.msra.mxu0 0
      %4090 = vmatprep.subr.bf16.mxu0 0
      %4091 = vmatpush2.bf16.msra.mxu0 0
      %4092 = vmatprep.subr.bf16.mxu0 0
      %4093 = vmatpush2.bf16.msra.mxu0 0
      %4094 = vmatprep.subr.bf16.mxu0 0
      %4095 = vmatpush2.bf16.msra.mxu0 0
      %4096 = vmatprep.mubr.bf16.mxu0 0
      %4097 = vmatmul.mubr.bf16.gmra.mxu0 %v4041
      %v4098 = vpop.f32.mrf.mxu0
      %v4099 = vadd.f32 0.0, %v4098
      %v4100 = vpop.f32.mrf.mxu0
      %v4101 = vpop.f32.mrf.mxu0
      %v4102 = vadd.f32 0.0, %v4101
      %v4103 = vpop.f32.mrf.mxu0
      %4104 = vmatprep.mubr.bf16.mxu0 0
      %4105 = vmatmul.mubr.bf16.gmra.mxu0 %v4044
      %v4106 = vpop.f32.mrf.mxu0
      %v4107 = vadd.f32 0.0, %v4106
      %v4108 = vpop.f32.mrf.mxu0
      %v4109 = vpop.f32.mrf.mxu0
      %v4110 = vadd.f32 0.0, %v4109
      %v4111 = vpop.f32.mrf.mxu0
      %4112 = vmatprep.mubr.bf16.mxu0 0
      %4113 = vmatmul.mubr.bf16.gmra.mxu0 %v4047
      %v4114 = vpop.f32.mrf.mxu0
      %v4115 = vadd.f32 0.0, %v4114
      %v4116 = vpop.f32.mrf.mxu0
      %v4117 = vpop.f32.mrf.mxu0
      %v4118 = vadd.f32 0.0, %v4117
      %v4119 = vpop.f32.mrf.mxu0
      %4120 = vmatprep.mubr.bf16.mxu0 0
      %4121 = vmatmul.mubr.bf16.gmra.mxu0 %v4050
      %v4122 = vpop.f32.mrf.mxu0
      %v4123 = vadd.f32 0.0, %v4122
      %v4124 = vpop.f32.mrf.mxu0
      %v4125 = vpop.f32.mrf.mxu0
      %v4126 = vadd.f32 0.0, %v4125
      %v4127 = vpop.f32.mrf.mxu0
      %4128 = vmatprep.mubr.bf16.mxu0 0
      %4129 = vmatmul.mubr.bf16.gmra.mxu0 %v4053
      %v4130 = vpop.f32.mrf.mxu0
      %v4131 = vadd.f32 0.0, %v4130
      %v4132 = vpop.f32.mrf.mxu0
      %v4133 = vpop.f32.mrf.mxu0
      %v4134 = vadd.f32 0.0, %v4133
      %v4135 = vpop.f32.mrf.mxu0
      %4136 = vmatprep.mubr.bf16.mxu0 0
      %4137 = vmatmul.mubr.bf16.gmra.mxu0 %v4056
      %v4138 = vpop.f32.mrf.mxu0
      %v4139 = vadd.f32 0.0, %v4138
      %v4140 = vpop.f32.mrf.mxu0
      %v4141 = vpop.f32.mrf.mxu0
      %v4142 = vadd.f32 0.0, %v4141
      %v4143 = vpop.f32.mrf.mxu0
      %4144 = vmatprep.mubr.bf16.mxu0 0
      %4145 = vmatmul.mubr.bf16.gmra.mxu0 %v4059
      %v4146 = vpop.f32.mrf.mxu0
      %v4147 = vadd.f32 0.0, %v4146
      %v4148 = vpop.f32.mrf.mxu0
      %v4149 = vpop.f32.mrf.mxu0
      %v4150 = vadd.f32 0.0, %v4149
      %v4151 = vpop.f32.mrf.mxu0
      %4152 = vmatprep.mubr.bf16.mxu0 0
      %4153 = vmatmul.mubr.bf16.gmra.mxu0 %v4062
      %v4154 = vpop.f32.mrf.mxu0
      %v4155 = vadd.f32 0.0, %v4154
      %v4156 = vpop.f32.mrf.mxu0
      %v4157 = vpop.f32.mrf.mxu0
      %v4158 = vadd.f32 0.0, %v4157
      %v4159 = vpop.f32.mrf.mxu0
      %4160 = vdwg.mxu0
      %v4161 = vadd.f32 %v3880, %v4099
      %v4162 = vadd.f32 %v3881, %v4102
      %v4163 = vadd.f32 %v3882, %v4107
      %v4164 = vadd.f32 %v3883, %v4110
      %v4165 = vadd.f32 %v3884, %v4115
      %v4166 = vadd.f32 %v3885, %v4118
      %v4167 = vadd.f32 %v3886, %v4123
      %v4168 = vadd.f32 %v3887, %v4126
      %v4169 = vadd.f32 %v3888, %v4131
      %v4170 = vadd.f32 %v3889, %v4134
      %v4171 = vadd.f32 %v3890, %v4139
      %v4172 = vadd.f32 %v3891, %v4142
      %v4173 = vadd.f32 %v3892, %v4147
      %v4174 = vadd.f32 %v3893, %v4150
      %v4175 = vadd.f32 %v3894, %v4155
      %v4176 = vadd.f32 %v3895, %v4158
      %v4177 = vld [vmem:[#allocation2 + $0x14] sm:$0x8]
      %v4178 = vld [vmem:[#allocation2 + $0x18] sm:$0xf]
      %v4179 = vld [vmem:[#allocation2 + $0x1c] sm:$0xf]
      %v4180 = vld [vmem:[#allocation2 + $0x20] sm:$0xf]
      %v4181 = vld [vmem:[#allocation2 + $0x24] sm:$0xf]
      %v4182 = vld [vmem:[#allocation2 + $0x28] sm:$0xf]
      %v4183 = vld [vmem:[#allocation2 + $0x2c] sm:$0xf]
      %v4184 = vld [vmem:[#allocation2 + $0x30] sm:$0xf]
      %v4185 = vld [vmem:[#allocation2 + $0x34] sm:$0xf]
      %v4186 = vld [vmem:[#allocation2 + $0x38] sm:$0xf]
      %v4187 = vld [vmem:[#allocation2 + $0x3c] sm:$0xf]
      %v4188 = vld [vmem:[#allocation2 + $0x40] sm:$0xf]
      %v4189 = vld [vmem:[#allocation2 + $0x44] sm:$0xf]
      %v4190 = vld [vmem:[#allocation2 + $0x48] sm:$0xf]
      %v4191 = vld [vmem:[#allocation2 + $0x4c] sm:$0xf]
      %v4192 = vld [vmem:[#allocation2 + $0x50] sm:$0xf]
      %v4193 = vld [vmem:[#allocation2 + $0x54] sm:$0xf]
      %v4194 = vld [vmem:[%s4 + $0x60] sm:$0xf]
      %v4195 = vld [vmem:[%s4 + $0x64] sm:$0xf]
      %v4196 = vld [vmem:[%s4 + $0x68] sm:$0xf]
      %v4197 = vld [vmem:[%s4 + $0x6c] sm:$0xf]
      %v4215 = vunpack.c.l.b16 %v4177
      %v4216 = vunpack.c.l.b16 %v4178
      %v4217 = vunpack.c.l.b16 %v4179
      %v4218 = vunpack.c.l.b16 %v4180
      %v4219 = vunpack.c.l.b16 %v4181
      %v4220 = vunpack.c.l.b16 %v4182
      %v4221 = vunpack.c.l.b16 %v4183
      %v4222 = vunpack.c.l.b16 %v4184
      %v4223 = vunpack.c.l.b16 %v4185
      %v4224 = vunpack.c.l.b16 %v4186
      %v4225 = vunpack.c.l.b16 %v4187
      %v4226 = vunpack.c.l.b16 %v4188
      %v4227 = vunpack.c.l.b16 %v4189
      %v4228 = vunpack.c.l.b16 %v4190
      %v4229 = vunpack.c.l.b16 %v4191
      %v4230 = vunpack.c.l.b16 %v4192
      %v4231 = vunpack.c.l.b16 %v4193
      %v4232 = vpack.c.b16 %v4216, %v4215
      %v4233 = vpack.c.b16 %v4218, %v4217
      %v4234 = vpack.c.b16 %v4220, %v4219
      %v4235 = vpack.c.b16 %v4222, %v4221
      %v4236 = vpack.c.b16 %v4224, %v4223
      %v4237 = vpack.c.b16 %v4226, %v4225
      %v4238 = vpack.c.b16 %v4228, %v4227
      %v4239 = vpack.c.b16 %v4230, %v4229
      %v4240 = vpack.c.b16 %v4231, %v4231
      %v4242 = vshrl.u32 %v4232, 16
      %v4244 = vrot.slane %v4242, 3
      %v4245 = vshll.u32 %v4232, 16
      %v4247 = vrot.slane %v4245, 4
      %v4248 = vor.u32 %v4244, %v4247
      %v4250 = vshrl.u32 %v4233, 16
      %v4252 = vrot.slane %v4250, 3
      %v4253 = vshll.u32 %v4233, 16
      %v4255 = vrot.slane %v4253, 4
      %v4256 = vor.u32 %v4252, %v4255
      %v4257 = vsel %vm533, %v4248, %v4256
      %v4259 = vshrl.u32 %v4234, 16
      %v4261 = vrot.slane %v4259, 3
      %v4262 = vshll.u32 %v4234, 16
      %v4264 = vrot.slane %v4262, 4
      %v4265 = vor.u32 %v4261, %v4264
      %v4266 = vsel %vm533, %v4256, %v4265
      %v4268 = vshrl.u32 %v4235, 16
      %v4270 = vrot.slane %v4268, 3
      %v4271 = vshll.u32 %v4235, 16
      %v4273 = vrot.slane %v4271, 4
      %v4274 = vor.u32 %v4270, %v4273
      %v4275 = vsel %vm533, %v4265, %v4274
      %v4277 = vshrl.u32 %v4236, 16
      %v4279 = vrot.slane %v4277, 3
      %v4280 = vshll.u32 %v4236, 16
      %v4282 = vrot.slane %v4280, 4
      %v4283 = vor.u32 %v4279, %v4282
      %v4284 = vsel %vm533, %v4274, %v4283
      %v4286 = vshrl.u32 %v4237, 16
      %v4288 = vrot.slane %v4286, 3
      %v4289 = vshll.u32 %v4237, 16
      %v4291 = vrot.slane %v4289, 4
      %v4292 = vor.u32 %v4288, %v4291
      %v4293 = vsel %vm533, %v4283, %v4292
      %v4295 = vshrl.u32 %v4238, 16
      %v4297 = vrot.slane %v4295, 3
      %v4298 = vshll.u32 %v4238, 16
      %v4300 = vrot.slane %v4298, 4
      %v4301 = vor.u32 %v4297, %v4300
      %v4302 = vsel %vm533, %v4292, %v4301
      %v4304 = vshrl.u32 %v4239, 16
      %v4306 = vrot.slane %v4304, 3
      %v4307 = vshll.u32 %v4239, 16
      %v4309 = vrot.slane %v4307, 4
      %v4310 = vor.u32 %v4306, %v4309
      %v4311 = vsel %vm533, %v4301, %v4310
      %v4313 = vshrl.u32 %v4240, 16
      %v4315 = vrot.slane %v4313, 3
      %v4316 = vshll.u32 %v4240, 16
      %v4318 = vrot.slane %v4316, 4
      %v4319 = vor.u32 %v4315, %v4318
      %v4320 = vsel %vm533, %v4310, %v4319
      %v4325 = vunpack.c.l.b16 %v4194
      %v4326 = vunpack.c.l.b16 %v4195
      %v4327 = vunpack.c.l.b16 %v4196
      %v4328 = vunpack.c.l.b16 %v4197
      %v4329 = vpack.c.b16 %v4326, %v4325
      %v4330 = vpack.c.b16 %v4328, %v4327
      %v4334 = vsel %vm400, %v4257, 0
      %v4337 = vsel %vm400, %v4266, 0
      %v4340 = vsel %vm400, %v4275, 0
      %v4343 = vsel %vm400, %v4284, 0
      %v4346 = vsel %vm400, %v4293, 0
      %v4349 = vsel %vm400, %v4302, 0
      %v4352 = vsel %vm400, %v4311, 0
      %v4355 = vsel %vm400, %v4320, 0
      %4357 = vmatprep.subr.bf16.mxu0 0
      %4358 = vmatpush1.bf16.msra.mxu0 0
      %4359 = vmatprep.subr.bf16.mxu0 0
      %4360 = vmatpush1.bf16.msra.mxu0 0
      %4361 = vmatprep.subr.bf16.mxu0 0
      %4362 = vmatpush1.bf16.msra.mxu0 0
      %4363 = vmatprep.subr.bf16.mxu0 0
      %4364 = vmatpush1.bf16.msra.mxu0 0
      %4365 = vmatprep.subr.bf16.mxu0 0
      %4366 = vmatpush1.bf16.msra.mxu0 0
      %4367 = vmatprep.subr.bf16.mxu0 0
      %4368 = vmatpush1.bf16.msra.mxu0 0
      %4369 = vmatprep.subr.bf16.mxu0 0
      %4370 = vmatpush1.bf16.msra.mxu0 %v4330
      %4371 = vmatprep.subr.bf16.mxu0 0
      %4372 = vmatpush1.bf16.msra.mxu0 %v4329
      %4373 = vmatprep.subr.bf16.mxu0 0
      %4374 = vmatpush2.bf16.msra.mxu0 0
      %4375 = vmatprep.subr.bf16.mxu0 0
      %4376 = vmatpush2.bf16.msra.mxu0 0
      %4377 = vmatprep.subr.bf16.mxu0 0
      %4378 = vmatpush2.bf16.msra.mxu0 0
      %4379 = vmatprep.subr.bf16.mxu0 0
      %4380 = vmatpush2.bf16.msra.mxu0 0
      %4381 = vmatprep.subr.bf16.mxu0 0
      %4382 = vmatpush2.bf16.msra.mxu0 0
      %4383 = vmatprep.subr.bf16.mxu0 0
      %4384 = vmatpush2.bf16.msra.mxu0 0
      %4385 = vmatprep.subr.bf16.mxu0 0
      %4386 = vmatpush2.bf16.msra.mxu0 0
      %4387 = vmatprep.subr.bf16.mxu0 0
      %4388 = vmatpush2.bf16.msra.mxu0 0
      %4389 = vmatprep.mubr.bf16.mxu0 0
      %4390 = vmatmul.mubr.bf16.gmra.mxu0 %v4334
      %v4391 = vpop.f32.mrf.mxu0
      %v4392 = vadd.f32 0.0, %v4391
      %v4393 = vpop.f32.mrf.mxu0
      %v4394 = vpop.f32.mrf.mxu0
      %v4395 = vadd.f32 0.0, %v4394
      %v4396 = vpop.f32.mrf.mxu0
      %4397 = vmatprep.mubr.bf16.mxu0 0
      %4398 = vmatmul.mubr.bf16.gmra.mxu0 %v4337
      %v4399 = vpop.f32.mrf.mxu0
      %v4400 = vadd.f32 0.0, %v4399
      %v4401 = vpop.f32.mrf.mxu0
      %v4402 = vpop.f32.mrf.mxu0
      %v4403 = vadd.f32 0.0, %v4402
      %v4404 = vpop.f32.mrf.mxu0
      %4405 = vmatprep.mubr.bf16.mxu0 0
      %4406 = vmatmul.mubr.bf16.gmra.mxu0 %v4340
      %v4407 = vpop.f32.mrf.mxu0
      %v4408 = vadd.f32 0.0, %v4407
      %v4409 = vpop.f32.mrf.mxu0
      %v4410 = vpop.f32.mrf.mxu0
      %v4411 = vadd.f32 0.0, %v4410
      %v4412 = vpop.f32.mrf.mxu0
      %4413 = vmatprep.mubr.bf16.mxu0 0
      %4414 = vmatmul.mubr.bf16.gmra.mxu0 %v4343
      %v4415 = vpop.f32.mrf.mxu0
      %v4416 = vadd.f32 0.0, %v4415
      %v4417 = vpop.f32.mrf.mxu0
      %v4418 = vpop.f32.mrf.mxu0
      %v4419 = vadd.f32 0.0, %v4418
      %v4420 = vpop.f32.mrf.mxu0
      %4421 = vmatprep.mubr.bf16.mxu0 0
      %4422 = vmatmul.mubr.bf16.gmra.mxu0 %v4346
      %v4423 = vpop.f32.mrf.mxu0
      %v4424 = vadd.f32 0.0, %v4423
      %v4425 = vpop.f32.mrf.mxu0
      %v4426 = vpop.f32.mrf.mxu0
      %v4427 = vadd.f32 0.0, %v4426
      %v4428 = vpop.f32.mrf.mxu0
      %4429 = vmatprep.mubr.bf16.mxu0 0
      %4430 = vmatmul.mubr.bf16.gmra.mxu0 %v4349
      %v4431 = vpop.f32.mrf.mxu0
      %v4432 = vadd.f32 0.0, %v4431
      %v4433 = vpop.f32.mrf.mxu0
      %v4434 = vpop.f32.mrf.mxu0
      %v4435 = vadd.f32 0.0, %v4434
      %v4436 = vpop.f32.mrf.mxu0
      %4437 = vmatprep.mubr.bf16.mxu0 0
      %4438 = vmatmul.mubr.bf16.gmra.mxu0 %v4352
      %v4439 = vpop.f32.mrf.mxu0
      %v4440 = vadd.f32 0.0, %v4439
      %v4441 = vpop.f32.mrf.mxu0
      %v4442 = vpop.f32.mrf.mxu0
      %v4443 = vadd.f32 0.0, %v4442
      %v4444 = vpop.f32.mrf.mxu0
      %4445 = vmatprep.mubr.bf16.mxu0 0
      %4446 = vmatmul.mubr.bf16.gmra.mxu0 %v4355
      %v4447 = vpop.f32.mrf.mxu0
      %v4448 = vadd.f32 0.0, %v4447
      %v4449 = vpop.f32.mrf.mxu0
      %v4450 = vpop.f32.mrf.mxu0
      %v4451 = vadd.f32 0.0, %v4450
      %v4452 = vpop.f32.mrf.mxu0
      %4453 = vdwg.mxu0
      %v4454 = vadd.f32 %v4161, %v4392
      %v4455 = vadd.f32 %v4162, %v4395
      %v4456 = vadd.f32 %v4163, %v4400
      %v4457 = vadd.f32 %v4164, %v4403
      %v4458 = vadd.f32 %v4165, %v4408
      %v4459 = vadd.f32 %v4166, %v4411
      %v4460 = vadd.f32 %v4167, %v4416
      %v4461 = vadd.f32 %v4168, %v4419
      %v4462 = vadd.f32 %v4169, %v4424
      %v4463 = vadd.f32 %v4170, %v4427
      %v4464 = vadd.f32 %v4171, %v4432
      %v4465 = vadd.f32 %v4172, %v4435
      %v4466 = vadd.f32 %v4173, %v4440
      %v4467 = vadd.f32 %v4174, %v4443
      %v4468 = vadd.f32 %v4175, %v4448
      %v4469 = vadd.f32 %v4176, %v4451
      %v4470 = vld [vmem:[%s4 + $0x70] sm:$0xf]
      %v4471 = vld [vmem:[%s4 + $0x74] sm:$0xf]
      %v4472 = vld [vmem:[%s4 + $0x78] sm:$0xf]
      %v4473 = vld [vmem:[%s4 + $0x7c] sm:$0xf]
      %v4474 = vpack.c.b16 %v4217, %v4216
      %v4475 = vpack.c.b16 %v4219, %v4218
      %v4476 = vpack.c.b16 %v4221, %v4220
      %v4477 = vpack.c.b16 %v4223, %v4222
      %v4478 = vpack.c.b16 %v4225, %v4224
      %v4479 = vpack.c.b16 %v4227, %v4226
      %v4480 = vpack.c.b16 %v4229, %v4228
      %v4481 = vpack.c.b16 %v4231, %v4230
      %v4486 = vunpack.c.l.b16 %v4470
      %v4487 = vunpack.c.l.b16 %v4471
      %v4488 = vunpack.c.l.b16 %v4472
      %v4489 = vunpack.c.l.b16 %v4473
      %v4490 = vpack.c.b16 %v4487, %v4486
      %v4491 = vpack.c.b16 %v4489, %v4488
      %v4495 = vsel %vm400, %v4474, 0
      %v4498 = vsel %vm400, %v4475, 0
      %v4501 = vsel %vm400, %v4476, 0
      %v4504 = vsel %vm400, %v4477, 0
      %v4507 = vsel %vm400, %v4478, 0
      %v4510 = vsel %vm400, %v4479, 0
      %v4513 = vsel %vm400, %v4480, 0
      %v4516 = vsel %vm400, %v4481, 0
      %4518 = vmatprep.subr.bf16.mxu0 0
      %4519 = vmatpush1.bf16.msra.mxu0 0
      %4520 = vmatprep.subr.bf16.mxu0 0
      %4521 = vmatpush1.bf16.msra.mxu0 0
      %4522 = vmatprep.subr.bf16.mxu0 0
      %4523 = vmatpush1.bf16.msra.mxu0 0
      %4524 = vmatprep.subr.bf16.mxu0 0
      %4525 = vmatpush1.bf16.msra.mxu0 0
      %4526 = vmatprep.subr.bf16.mxu0 0
      %4527 = vmatpush1.bf16.msra.mxu0 0
      %4528 = vmatprep.subr.bf16.mxu0 0
      %4529 = vmatpush1.bf16.msra.mxu0 0
      %4530 = vmatprep.subr.bf16.mxu0 0
      %4531 = vmatpush1.bf16.msra.mxu0 %v4491
      %4532 = vmatprep.subr.bf16.mxu0 0
      %4533 = vmatpush1.bf16.msra.mxu0 %v4490
      %4534 = vmatprep.subr.bf16.mxu0 0
      %4535 = vmatpush2.bf16.msra.mxu0 0
      %4536 = vmatprep.subr.bf16.mxu0 0
      %4537 = vmatpush2.bf16.msra.mxu0 0
      %4538 = vmatprep.subr.bf16.mxu0 0
      %4539 = vmatpush2.bf16.msra.mxu0 0
      %4540 = vmatprep.subr.bf16.mxu0 0
      %4541 = vmatpush2.bf16.msra.mxu0 0
      %4542 = vmatprep.subr.bf16.mxu0 0
      %4543 = vmatpush2.bf16.msra.mxu0 0
      %4544 = vmatprep.subr.bf16.mxu0 0
      %4545 = vmatpush2.bf16.msra.mxu0 0
      %4546 = vmatprep.subr.bf16.mxu0 0
      %4547 = vmatpush2.bf16.msra.mxu0 0
      %4548 = vmatprep.subr.bf16.mxu0 0
      %4549 = vmatpush2.bf16.msra.mxu0 0
      %4550 = vmatprep.mubr.bf16.mxu0 0
      %4551 = vmatmul.mubr.bf16.gmra.mxu0 %v4495
      %v4552 = vpop.f32.mrf.mxu0
      %v4553 = vadd.f32 0.0, %v4552
      %v4554 = vpop.f32.mrf.mxu0
      %v4555 = vpop.f32.mrf.mxu0
      %v4556 = vadd.f32 0.0, %v4555
      %v4557 = vpop.f32.mrf.mxu0
      %4558 = vmatprep.mubr.bf16.mxu0 0
      %4559 = vmatmul.mubr.bf16.gmra.mxu0 %v4498
      %v4560 = vpop.f32.mrf.mxu0
      %v4561 = vadd.f32 0.0, %v4560
      %v4562 = vpop.f32.mrf.mxu0
      %v4563 = vpop.f32.mrf.mxu0
      %v4564 = vadd.f32 0.0, %v4563
      %v4565 = vpop.f32.mrf.mxu0
      %4566 = vmatprep.mubr.bf16.mxu0 0
      %4567 = vmatmul.mubr.bf16.gmra.mxu0 %v4501
      %v4568 = vpop.f32.mrf.mxu0
      %v4569 = vadd.f32 0.0, %v4568
      %v4570 = vpop.f32.mrf.mxu0
      %v4571 = vpop.f32.mrf.mxu0
      %v4572 = vadd.f32 0.0, %v4571
      %v4573 = vpop.f32.mrf.mxu0
      %4574 = vmatprep.mubr.bf16.mxu0 0
      %4575 = vmatmul.mubr.bf16.gmra.mxu0 %v4504
      %v4576 = vpop.f32.mrf.mxu0
      %v4577 = vadd.f32 0.0, %v4576
      %v4578 = vpop.f32.mrf.mxu0
      %v4579 = vpop.f32.mrf.mxu0
      %v4580 = vadd.f32 0.0, %v4579
      %v4581 = vpop.f32.mrf.mxu0
      %4582 = vmatprep.mubr.bf16.mxu0 0
      %4583 = vmatmul.mubr.bf16.gmra.mxu0 %v4507
      %v4584 = vpop.f32.mrf.mxu0
      %v4585 = vadd.f32 0.0, %v4584
      %v4586 = vpop.f32.mrf.mxu0
      %v4587 = vpop.f32.mrf.mxu0
      %v4588 = vadd.f32 0.0, %v4587
      %v4589 = vpop.f32.mrf.mxu0
      %4590 = vmatprep.mubr.bf16.mxu0 0
      %4591 = vmatmul.mubr.bf16.gmra.mxu0 %v4510
      %v4592 = vpop.f32.mrf.mxu0
      %v4593 = vadd.f32 0.0, %v4592
      %v4594 = vpop.f32.mrf.mxu0
      %v4595 = vpop.f32.mrf.mxu0
      %v4596 = vadd.f32 0.0, %v4595
      %v4597 = vpop.f32.mrf.mxu0
      %4598 = vmatprep.mubr.bf16.mxu0 0
      %4599 = vmatmul.mubr.bf16.gmra.mxu0 %v4513
      %v4600 = vpop.f32.mrf.mxu0
      %v4601 = vadd.f32 0.0, %v4600
      %v4602 = vpop.f32.mrf.mxu0
      %v4603 = vpop.f32.mrf.mxu0
      %v4604 = vadd.f32 0.0, %v4603
      %v4605 = vpop.f32.mrf.mxu0
      %4606 = vmatprep.mubr.bf16.mxu0 0
      %4607 = vmatmul.mubr.bf16.gmra.mxu0 %v4516
      %v4608 = vpop.f32.mrf.mxu0
      %v4609 = vadd.f32 0.0, %v4608
      %v4610 = vpop.f32.mrf.mxu0
      %v4611 = vpop.f32.mrf.mxu0
      %v4612 = vadd.f32 0.0, %v4611
      %v4613 = vpop.f32.mrf.mxu0
      %4614 = vdwg.mxu0
      %v4615 = vadd.f32 %v4454, %v4553
      %v4616 = vadd.f32 %v4455, %v4556
      %v4617 = vadd.f32 %v4456, %v4561
      %v4618 = vadd.f32 %v4457, %v4564
      %v4619 = vadd.f32 %v4458, %v4569
      %v4620 = vadd.f32 %v4459, %v4572
      %v4621 = vadd.f32 %v4460, %v4577
      %v4622 = vadd.f32 %v4461, %v4580
      %v4623 = vadd.f32 %v4462, %v4585
      %v4624 = vadd.f32 %v4463, %v4588
      %v4625 = vadd.f32 %v4464, %v4593
      %v4626 = vadd.f32 %v4465, %v4596
      %v4627 = vadd.f32 %v4466, %v4601
      %v4628 = vadd.f32 %v4467, %v4604
      %v4629 = vadd.f32 %v4468, %v4609
      %v4630 = vadd.f32 %v4469, %v4612
      %v4631 = vld [vmem:[#allocation2 + $0x18] sm:$0xf]
      %v4632 = vld [vmem:[#allocation2 + $0x1c] sm:$0xf]
      %v4633 = vld [vmem:[#allocation2 + $0x20] sm:$0xf]
      %v4634 = vld [vmem:[#allocation2 + $0x24] sm:$0xf]
      %v4635 = vld [vmem:[#allocation2 + $0x28] sm:$0xf]
      %v4636 = vld [vmem:[#allocation2 + $0x2c] sm:$0xf]
      %v4637 = vld [vmem:[#allocation2 + $0x30] sm:$0xf]
      %v4638 = vld [vmem:[#allocation2 + $0x34] sm:$0xf]
      %v4639 = vld [vmem:[#allocation2 + $0x38] sm:$0xf]
      %v4640 = vld [vmem:[#allocation2 + $0x3c] sm:$0xf]
      %v4641 = vld [vmem:[#allocation2 + $0x40] sm:$0xf]
      %v4642 = vld [vmem:[#allocation2 + $0x44] sm:$0xf]
      %v4643 = vld [vmem:[#allocation2 + $0x48] sm:$0xf]
      %v4644 = vld [vmem:[#allocation2 + $0x4c] sm:$0xf]
      %v4645 = vld [vmem:[#allocation2 + $0x50] sm:$0xf]
      %v4646 = vld [vmem:[#allocation2 + $0x54] sm:$0xf]
      %v4647 = vld [vmem:[#allocation2 + $0x58] sm:$0x1]
      %v4648 = vld [vmem:[%s4 + $0x80] sm:$0xf]
      %v4649 = vld [vmem:[%s4 + $0x84] sm:$0xf]
      %v4650 = vld [vmem:[%s4 + $0x88] sm:$0xf]
      %v4651 = vld [vmem:[%s4 + $0x8c] sm:$0xf]
      %v4669 = vunpack.c.l.b16 %v4631
      %v4670 = vunpack.c.l.b16 %v4632
      %v4671 = vunpack.c.l.b16 %v4633
      %v4672 = vunpack.c.l.b16 %v4634
      %v4673 = vunpack.c.l.b16 %v4635
      %v4674 = vunpack.c.l.b16 %v4636
      %v4675 = vunpack.c.l.b16 %v4637
      %v4676 = vunpack.c.l.b16 %v4638
      %v4677 = vunpack.c.l.b16 %v4639
      %v4678 = vunpack.c.l.b16 %v4640
      %v4679 = vunpack.c.l.b16 %v4641
      %v4680 = vunpack.c.l.b16 %v4642
      %v4681 = vunpack.c.l.b16 %v4643
      %v4682 = vunpack.c.l.b16 %v4644
      %v4683 = vunpack.c.l.b16 %v4645
      %v4684 = vunpack.c.l.b16 %v4646
      %v4685 = vunpack.c.l.b16 %v4647
      %v4686 = vpack.c.b16 %v4670, %v4669
      %v4687 = vpack.c.b16 %v4672, %v4671
      %v4688 = vpack.c.b16 %v4674, %v4673
      %v4689 = vpack.c.b16 %v4676, %v4675
      %v4690 = vpack.c.b16 %v4678, %v4677
      %v4691 = vpack.c.b16 %v4680, %v4679
      %v4692 = vpack.c.b16 %v4682, %v4681
      %v4693 = vpack.c.b16 %v4684, %v4683
      %v4694 = vpack.c.b16 %v4685, %v4685
      %v4696 = vshrl.u32 %v4686, 16
      %v4698 = vshll.u32 %v4686, 16
      %v4700 = vrot.slane %v4698, 1
      %v4701 = vor.u32 %v4696, %v4700
      %v4703 = vshll.u32 %v4687, 16
      %v4705 = vrot.slane %v4703, 1
      %v4706 = vsel %vm811, %v4701, %v4705
      %v4707 = vshrl.u32 %v4687, 16
      %v4709 = vor.u32 %v4707, %v4705
      %v4711 = vshll.u32 %v4688, 16
      %v4713 = vrot.slane %v4711, 1
      %v4714 = vsel %vm811, %v4709, %v4713
      %v4715 = vshrl.u32 %v4688, 16
      %v4717 = vor.u32 %v4715, %v4713
      %v4719 = vshll.u32 %v4689, 16
      %v4721 = vrot.slane %v4719, 1
      %v4722 = vsel %vm811, %v4717, %v4721
      %v4723 = vshrl.u32 %v4689, 16
      %v4725 = vor.u32 %v4723, %v4721
      %v4727 = vshll.u32 %v4690, 16
      %v4729 = vrot.slane %v4727, 1
      %v4730 = vsel %vm811, %v4725, %v4729
      %v4731 = vshrl.u32 %v4690, 16
      %v4733 = vor.u32 %v4731, %v4729
      %v4735 = vshll.u32 %v4691, 16
      %v4737 = vrot.slane %v4735, 1
      %v4738 = vsel %vm811, %v4733, %v4737
      %v4739 = vshrl.u32 %v4691, 16
      %v4741 = vor.u32 %v4739, %v4737
      %v4743 = vshll.u32 %v4692, 16
      %v4745 = vrot.slane %v4743, 1
      %v4746 = vsel %vm811, %v4741, %v4745
      %v4747 = vshrl.u32 %v4692, 16
      %v4749 = vor.u32 %v4747, %v4745
      %v4751 = vshll.u32 %v4693, 16
      %v4753 = vrot.slane %v4751, 1
      %v4754 = vsel %vm811, %v4749, %v4753
      %v4755 = vshrl.u32 %v4693, 16
      %v4757 = vor.u32 %v4755, %v4753
      %v4759 = vshll.u32 %v4694, 16
      %v4761 = vrot.slane %v4759, 1
      %v4762 = vsel %vm811, %v4757, %v4761
      %v4767 = vunpack.c.l.b16 %v4648
      %v4768 = vunpack.c.l.b16 %v4649
      %v4769 = vunpack.c.l.b16 %v4650
      %v4770 = vunpack.c.l.b16 %v4651
      %v4771 = vpack.c.b16 %v4768, %v4767
      %v4772 = vpack.c.b16 %v4770, %v4769
      %v4776 = vsel %vm400, %v4706, 0
      %v4779 = vsel %vm400, %v4714, 0
      %v4782 = vsel %vm400, %v4722, 0
      %v4785 = vsel %vm400, %v4730, 0
      %v4788 = vsel %vm400, %v4738, 0
      %v4791 = vsel %vm400, %v4746, 0
      %v4794 = vsel %vm400, %v4754, 0
      %v4797 = vsel %vm400, %v4762, 0
      %4799 = vmatprep.subr.bf16.mxu0 0
      %4800 = vmatpush1.bf16.msra.mxu0 0
      %4801 = vmatprep.subr.bf16.mxu0 0
      %4802 = vmatpush1.bf16.msra.mxu0 0
      %4803 = vmatprep.subr.bf16.mxu0 0
      %4804 = vmatpush1.bf16.msra.mxu0 0
      %4805 = vmatprep.subr.bf16.mxu0 0
      %4806 = vmatpush1.bf16.msra.mxu0 0
      %4807 = vmatprep.subr.bf16.mxu0 0
      %4808 = vmatpush1.bf16.msra.mxu0 0
      %4809 = vmatprep.subr.bf16.mxu0 0
      %4810 = vmatpush1.bf16.msra.mxu0 0
      %4811 = vmatprep.subr.bf16.mxu0 0
      %4812 = vmatpush1.bf16.msra.mxu0 %v4772
      %4813 = vmatprep.subr.bf16.mxu0 0
      %4814 = vmatpush1.bf16.msra.mxu0 %v4771
      %4815 = vmatprep.subr.bf16.mxu0 0
      %4816 = vmatpush2.bf16.msra.mxu0 0
      %4817 = vmatprep.subr.bf16.mxu0 0
      %4818 = vmatpush2.bf16.msra.mxu0 0
      %4819 = vmatprep.subr.bf16.mxu0 0
      %4820 = vmatpush2.bf16.msra.mxu0 0
      %4821 = vmatprep.subr.bf16.mxu0 0
      %4822 = vmatpush2.bf16.msra.mxu0 0
      %4823 = vmatprep.subr.bf16.mxu0 0
      %4824 = vmatpush2.bf16.msra.mxu0 0
      %4825 = vmatprep.subr.bf16.mxu0 0
      %4826 = vmatpush2.bf16.msra.mxu0 0
      %4827 = vmatprep.subr.bf16.mxu0 0
      %4828 = vmatpush2.bf16.msra.mxu0 0
      %4829 = vmatprep.subr.bf16.mxu0 0
      %4830 = vmatpush2.bf16.msra.mxu0 0
      %4831 = vmatprep.mubr.bf16.mxu0 0
      %4832 = vmatmul.mubr.bf16.gmra.mxu0 %v4776
      %v4833 = vpop.f32.mrf.mxu0
      %v4834 = vadd.f32 0.0, %v4833
      %v4835 = vpop.f32.mrf.mxu0
      %v4836 = vpop.f32.mrf.mxu0
      %v4837 = vadd.f32 0.0, %v4836
      %v4838 = vpop.f32.mrf.mxu0
      %4839 = vmatprep.mubr.bf16.mxu0 0
      %4840 = vmatmul.mubr.bf16.gmra.mxu0 %v4779
      %v4841 = vpop.f32.mrf.mxu0
      %v4842 = vadd.f32 0.0, %v4841
      %v4843 = vpop.f32.mrf.mxu0
      %v4844 = vpop.f32.mrf.mxu0
      %v4845 = vadd.f32 0.0, %v4844
      %v4846 = vpop.f32.mrf.mxu0
      %4847 = vmatprep.mubr.bf16.mxu0 0
      %4848 = vmatmul.mubr.bf16.gmra.mxu0 %v4782
      %v4849 = vpop.f32.mrf.mxu0
      %v4850 = vadd.f32 0.0, %v4849
      %v4851 = vpop.f32.mrf.mxu0
      %v4852 = vpop.f32.mrf.mxu0
      %v4853 = vadd.f32 0.0, %v4852
      %v4854 = vpop.f32.mrf.mxu0
      %4855 = vmatprep.mubr.bf16.mxu0 0
      %4856 = vmatmul.mubr.bf16.gmra.mxu0 %v4785
      %v4857 = vpop.f32.mrf.mxu0
      %v4858 = vadd.f32 0.0, %v4857
      %v4859 = vpop.f32.mrf.mxu0
      %v4860 = vpop.f32.mrf.mxu0
      %v4861 = vadd.f32 0.0, %v4860
      %v4862 = vpop.f32.mrf.mxu0
      %4863 = vmatprep.mubr.bf16.mxu0 0
      %4864 = vmatmul.mubr.bf16.gmra.mxu0 %v4788
      %v4865 = vpop.f32.mrf.mxu0
      %v4866 = vadd.f32 0.0, %v4865
      %v4867 = vpop.f32.mrf.mxu0
      %v4868 = vpop.f32.mrf.mxu0
      %v4869 = vadd.f32 0.0, %v4868
      %v4870 = vpop.f32.mrf.mxu0
      %4871 = vmatprep.mubr.bf16.mxu0 0
      %4872 = vmatmul.mubr.bf16.gmra.mxu0 %v4791
      %v4873 = vpop.f32.mrf.mxu0
      %v4874 = vadd.f32 0.0, %v4873
      %v4875 = vpop.f32.mrf.mxu0
      %v4876 = vpop.f32.mrf.mxu0
      %v4877 = vadd.f32 0.0, %v4876
      %v4878 = vpop.f32.mrf.mxu0
      %4879 = vmatprep.mubr.bf16.mxu0 0
      %4880 = vmatmul.mubr.bf16.gmra.mxu0 %v4794
      %v4881 = vpop.f32.mrf.mxu0
      %v4882 = vadd.f32 0.0, %v4881
      %v4883 = vpop.f32.mrf.mxu0
      %v4884 = vpop.f32.mrf.mxu0
      %v4885 = vadd.f32 0.0, %v4884
      %v4886 = vpop.f32.mrf.mxu0
      %4887 = vmatprep.mubr.bf16.mxu0 0
      %4888 = vmatmul.mubr.bf16.gmra.mxu0 %v4797
      %v4889 = vpop.f32.mrf.mxu0
      %v4890 = vadd.f32 0.0, %v4889
      %v4891 = vpop.f32.mrf.mxu0
      %v4892 = vpop.f32.mrf.mxu0
      %v4893 = vadd.f32 0.0, %v4892
      %v4894 = vpop.f32.mrf.mxu0
      %4895 = vdwg.mxu0
      %v4896 = vadd.f32 %v4615, %v4834
      %v4897 = vadd.f32 %v4616, %v4837
      %v4898 = vadd.f32 %v4617, %v4842
      %v4899 = vadd.f32 %v4618, %v4845
      %v4900 = vadd.f32 %v4619, %v4850
      %v4901 = vadd.f32 %v4620, %v4853
      %v4902 = vadd.f32 %v4621, %v4858
      %v4903 = vadd.f32 %v4622, %v4861
      %v4904 = vadd.f32 %v4623, %v4866
      %v4905 = vadd.f32 %v4624, %v4869
      %v4906 = vadd.f32 %v4625, %v4874
      %v4907 = vadd.f32 %v4626, %v4877
      %v4908 = vadd.f32 %v4627, %v4882
      %v4909 = vadd.f32 %v4628, %v4885
      %v4910 = vadd.f32 %v4629, %v4890
      %v4911 = vadd.f32 %v4630, %v4893
      %v4912 = vld [vmem:[%s5] sm:$0x1]
      %v4914 = vlaneseq
      %v4915 = vshrl.u32 %v4914, 7
      %v4916 = vsub.s32 0, %v4915
      %v4917 = vrot.slane %v4912, %v4916
      %v4919 = vadd.f32 %v4896, %v4917
      %v4920 = vadd.f32 %v4897, %v4917
      %v4921 = vadd.f32 %v4898, %v4917
      %v4922 = vadd.f32 %v4899, %v4917
      %v4923 = vadd.f32 %v4900, %v4917
      %v4924 = vadd.f32 %v4901, %v4917
      %v4925 = vadd.f32 %v4902, %v4917
      %v4926 = vadd.f32 %v4903, %v4917
      %v4927 = vadd.f32 %v4904, %v4917
      %v4928 = vadd.f32 %v4905, %v4917
      %v4929 = vadd.f32 %v4906, %v4917
      %v4930 = vadd.f32 %v4907, %v4917
      %v4931 = vadd.f32 %v4908, %v4917
      %v4932 = vadd.f32 %v4909, %v4917
      %v4933 = vadd.f32 %v4910, %v4917
      %v4934 = vadd.f32 %v4911, %v4917
      %v4935 = vmax.f32 %v4919, 0.0
      %v4936 = vmax.f32 %v4920, 0.0
      %v4937 = vmax.f32 %v4921, 0.0
      %v4938 = vmax.f32 %v4922, 0.0
      %v4939 = vmax.f32 %v4923, 0.0
      %v4940 = vmax.f32 %v4924, 0.0
      %v4941 = vmax.f32 %v4925, 0.0
      %v4942 = vmax.f32 %v4926, 0.0
      %v4943 = vmax.f32 %v4927, 0.0
      %v4944 = vmax.f32 %v4928, 0.0
      %v4945 = vmax.f32 %v4929, 0.0
      %v4946 = vmax.f32 %v4930, 0.0
      %v4947 = vmax.f32 %v4931, 0.0
      %v4948 = vmax.f32 %v4932, 0.0
      %v4949 = vmax.f32 %v4933, 0.0
      %v4950 = vmax.f32 %v4934, 0.0
      %v4951 = vmul.f32 %v4935, %v2541
      %v4952 = vmul.f32 %v4936, %v2546
      %v4953 = vmul.f32 %v4937, %v2551
      %v4954 = vmul.f32 %v4938, %v2556
      %v4955 = vmul.f32 %v4939, %v2561
      %v4956 = vmul.f32 %v4940, %v2566
      %v4957 = vmul.f32 %v4941, %v2571
      %v4958 = vmul.f32 %v4942, %v2576
      %v4959 = vmul.f32 %v4943, %v2581
      %v4960 = vmul.f32 %v4944, %v2586
      %v4961 = vmul.f32 %v4945, %v2591
      %v4962 = vmul.f32 %v4946, %v2596
      %v4963 = vmul.f32 %v4947, %v2601
      %v4964 = vmul.f32 %v4948, %v2606
      %v4965 = vmul.f32 %v4949, %v2611
      %v4966 = vmul.f32 %v4950, %v2616
      %4967 = vst.msk [vmem:[#allocation3] sm:$0xf] %vm2634, 0
      %4968 = vst.msk [vmem:[#allocation3 + $0x4] sm:$0xf] %vm2634, 0
      %4969 = vst.msk [vmem:[#allocation3 + $0x8] sm:$0xf] %vm2634, 0
      %4970 = vst.msk [vmem:[#allocation3 + $0xc] sm:$0xf] %vm2634, 0
      %4971 = vst.msk [vmem:[#allocation3 + $0x10] sm:$0xf] %vm2634, 0
      %4972 = vst.msk [vmem:[#allocation3 + $0x14] sm:$0xf] %vm2634, 0
      %4973 = vst.msk [vmem:[#allocation3 + $0x18] sm:$0xf] %vm2634, 0
      %4974 = vst.msk [vmem:[#allocation3 + $0x1c] sm:$0xf] %vm2634, 0
      %4975 = vst.msk [vmem:[#allocation3 + $0x20] sm:$0xf] %vm2634, 0
      %4976 = vst.msk [vmem:[#allocation3 + $0x24] sm:$0xf] %vm2634, 0
      %4977 = vst.msk [vmem:[#allocation3 + $0x28] sm:$0xf] %vm2634, 0
      %4978 = vst.msk [vmem:[#allocation3 + $0x2c] sm:$0xf] %vm2634, 0
      %4979 = vst.msk [vmem:[#allocation3 + $0x30] sm:$0xf] %vm2634, 0
      %4980 = vst.msk [vmem:[#allocation3 + $0x34] sm:$0xf] %vm2634, 0
      %4981 = vst.msk [vmem:[#allocation3 + $0x38] sm:$0xf] %vm2634, 0
      %4982 = vst.msk [vmem:[#allocation3 + $0x3c] sm:$0xf] %vm2634, 0
      %4983 = vst.msk [vmem:[#allocation3 + $0x40] sm:$0xf] %vm2634, 0
      %4984 = vst.msk [vmem:[#allocation3 + $0x44] sm:$0xf] %vm2634, 0
      %4985 = vst.msk [vmem:[#allocation3 + $0x48] sm:$0xf] %vm2634, 0
      %4986 = vst.msk [vmem:[#allocation3 + $0x4c] sm:$0xf] %vm2634, 0
      %4987 = vst.msk [vmem:[#allocation3 + $0x50] sm:$0xf] %vm2634, 0
      %4988 = vst.msk [vmem:[#allocation3 + $0x54] sm:$0xf] %vm2634, 0
      %4989 = vst.msk [vmem:[#allocation3 + $0x58] sm:$0xf] %vm2634, 0
      %4990 = vst.msk [vmem:[#allocation3 + $0x5c] sm:$0xf] %vm2634, 0
      %v4991 = vpack.c.bf16 %v4952, %v4951
      %v4992 = vpack.c.bf16 %v4954, %v4953
      %v4993 = vpack.c.bf16 %v4956, %v4955
      %v4994 = vpack.c.bf16 %v4958, %v4957
      %v4995 = vpack.c.bf16 %v4960, %v4959
      %v4996 = vpack.c.bf16 %v4962, %v4961
      %v4997 = vpack.c.bf16 %v4964, %v4963
      %v4998 = vpack.c.bf16 %v4966, %v4965
      %v5007 = vunpack.c.l.b16 %v4991
      %v5008 = vunpack.c.h.b16 %v4991
      %v5009 = vunpack.c.l.b16 %v4992
      %v5010 = vunpack.c.h.b16 %v4992
      %v5011 = vunpack.c.l.b16 %v4993
      %v5012 = vunpack.c.h.b16 %v4993
      %v5013 = vunpack.c.l.b16 %v4994
      %v5014 = vunpack.c.h.b16 %v4994
      %v5015 = vunpack.c.l.b16 %v4995
      %v5016 = vunpack.c.h.b16 %v4995
      %v5017 = vunpack.c.l.b16 %v4996
      %v5018 = vunpack.c.h.b16 %v4996
      %v5019 = vunpack.c.l.b16 %v4997
      %v5020 = vunpack.c.h.b16 %v4997
      %v5021 = vunpack.c.l.b16 %v4998
      %v5022 = vunpack.c.h.b16 %v4998
      %v5023 = vpack.c.b16 %v5007, %v5007
      %v5024 = vpack.c.b16 %v5008, %v5008
      %v5025 = vpack.c.b16 %v5009, %v5009
      %v5026 = vpack.c.b16 %v5010, %v5010
      %v5027 = vpack.c.b16 %v5011, %v5011
      %v5028 = vpack.c.b16 %v5012, %v5012
      %v5029 = vpack.c.b16 %v5013, %v5013
      %v5030 = vpack.c.b16 %v5014, %v5014
      %v5031 = vpack.c.b16 %v5015, %v5015
      %v5032 = vpack.c.b16 %v5016, %v5016
      %v5033 = vpack.c.b16 %v5017, %v5017
      %v5034 = vpack.c.b16 %v5018, %v5018
      %v5035 = vpack.c.b16 %v5019, %v5019
      %v5036 = vpack.c.b16 %v5020, %v5020
      %v5037 = vpack.c.b16 %v5021, %v5021
      %v5038 = vpack.c.b16 %v5022, %v5022
      %5055 = vst.msk [vmem:[#allocation3 + $0x10] sm:$0xf] %vm2634, %v5023
      %5056 = vst.msk [vmem:[#allocation3 + $0x14] sm:$0xf] %vm2634, %v5024
      %5057 = vst.msk [vmem:[#allocation3 + $0x18] sm:$0xf] %vm2634, %v5025
      %5058 = vst.msk [vmem:[#allocation3 + $0x1c] sm:$0xf] %vm2634, %v5026
      %5059 = vst.msk [vmem:[#allocation3 + $0x20] sm:$0xf] %vm2634, %v5027
      %5060 = vst.msk [vmem:[#allocation3 + $0x24] sm:$0xf] %vm2634, %v5028
      %5061 = vst.msk [vmem:[#allocation3 + $0x28] sm:$0xf] %vm2634, %v5029
      %5062 = vst.msk [vmem:[#allocation3 + $0x2c] sm:$0xf] %vm2634, %v5030
      %5063 = vst.msk [vmem:[#allocation3 + $0x30] sm:$0xf] %vm2634, %v5031
      %5064 = vst.msk [vmem:[#allocation3 + $0x34] sm:$0xf] %vm2634, %v5032
      %5065 = vst.msk [vmem:[#allocation3 + $0x38] sm:$0xf] %vm2634, %v5033
      %5066 = vst.msk [vmem:[#allocation3 + $0x3c] sm:$0xf] %vm2634, %v5034
      %5067 = vst.msk [vmem:[#allocation3 + $0x40] sm:$0xf] %vm2634, %v5035
      %5068 = vst.msk [vmem:[#allocation3 + $0x44] sm:$0xf] %vm2634, %v5036
      %5069 = vst.msk [vmem:[#allocation3 + $0x48] sm:$0xf] %vm2634, %v5037
      %5070 = vst.msk [vmem:[#allocation3 + $0x4c] sm:$0xf] %vm2634, %v5038
      %v5071 = vld [vmem:[#allocation3 + $0x4] sm:$0x8]
      %v5072 = vld [vmem:[#allocation3 + $0x8] sm:$0xf]
      %v5073 = vld [vmem:[#allocation3 + $0xc] sm:$0xf]
      %v5074 = vld [vmem:[#allocation3 + $0x10] sm:$0xf]
      %v5075 = vld [vmem:[#allocation3 + $0x14] sm:$0xf]
      %v5076 = vld [vmem:[#allocation3 + $0x18] sm:$0xf]
      %v5077 = vld [vmem:[#allocation3 + $0x1c] sm:$0xf]
      %v5078 = vld [vmem:[#allocation3 + $0x20] sm:$0xf]
      %v5079 = vld [vmem:[#allocation3 + $0x24] sm:$0xf]
      %v5080 = vld [vmem:[#allocation3 + $0x28] sm:$0xf]
      %v5081 = vld [vmem:[#allocation3 + $0x2c] sm:$0xf]
      %v5082 = vld [vmem:[#allocation3 + $0x30] sm:$0xf]
      %v5083 = vld [vmem:[#allocation3 + $0x34] sm:$0xf]
      %v5084 = vld [vmem:[#allocation3 + $0x38] sm:$0xf]
      %v5085 = vld [vmem:[#allocation3 + $0x3c] sm:$0xf]
      %v5086 = vld [vmem:[#allocation3 + $0x40] sm:$0xf]
      %v5087 = vld [vmem:[#allocation3 + $0x44] sm:$0xf]
      %v5088 = vld [vmem:[%s6] sm:$0xf]
      %v5089 = vld [vmem:[%s6 + $0x4] sm:$0xf]
      %v5090 = vld [vmem:[%s6 + $0x8] sm:$0xf]
      %v5091 = vld [vmem:[%s6 + $0xc] sm:$0xf]
      %v5092 = vld [vmem:[%s6 + $0x10] sm:$0xf]
      %v5093 = vld [vmem:[%s6 + $0x14] sm:$0xf]
      %v5094 = vld [vmem:[%s6 + $0x18] sm:$0xf]
      %v5095 = vld [vmem:[%s6 + $0x1c] sm:$0xf]
      %v5112 = vunpack.c.l.b16 %v5072
      %v5113 = vunpack.c.l.b16 %v5073
      %v5114 = vunpack.c.l.b16 %v5074
      %v5115 = vunpack.c.l.b16 %v5075
      %v5116 = vunpack.c.l.b16 %v5076
      %v5117 = vunpack.c.l.b16 %v5077
      %v5118 = vunpack.c.l.b16 %v5078
      %v5119 = vunpack.c.l.b16 %v5079
      %v5120 = vunpack.c.l.b16 %v5080
      %v5121 = vunpack.c.l.b16 %v5081
      %v5122 = vunpack.c.l.b16 %v5082
      %v5123 = vunpack.c.l.b16 %v5083
      %v5124 = vunpack.c.l.b16 %v5084
      %v5125 = vunpack.c.l.b16 %v5085
      %v5126 = vunpack.c.l.b16 %v5086
      %v5127 = vunpack.c.l.b16 %v5087
      %v5128 = vpack.c.b16 %v5113, %v5112
      %v5129 = vpack.c.b16 %v5115, %v5114
      %v5130 = vpack.c.b16 %v5117, %v5116
      %v5131 = vpack.c.b16 %v5119, %v5118
      %v5132 = vpack.c.b16 %v5121, %v5120
      %v5133 = vpack.c.b16 %v5123, %v5122
      %v5134 = vpack.c.b16 %v5125, %v5124
      %v5135 = vpack.c.b16 %v5127, %v5126
      %v5140 = vunpack.c.l.b16 %v5092
      %v5141 = vunpack.c.l.b16 %v5093
      %v5142 = vunpack.c.l.b16 %v5094
      %v5143 = vunpack.c.l.b16 %v5095
      %v5144 = vpack.c.b16 %v5141, %v5140
      %v5145 = vpack.c.b16 %v5143, %v5142
      %v5149 = vsel %vm400, %v5128, 0
      %v5152 = vsel %vm400, %v5129, 0
      %v5155 = vsel %vm400, %v5130, 0
      %v5158 = vsel %vm400, %v5131, 0
      %v5161 = vsel %vm400, %v5132, 0
      %v5164 = vsel %vm400, %v5133, 0
      %v5167 = vsel %vm400, %v5134, 0
      %v5170 = vsel %vm400, %v5135, 0
      %5172 = vmatprep.subr.bf16.mxu0 0
      %5173 = vmatpush1.bf16.msra.mxu0 0
      %5174 = vmatprep.subr.bf16.mxu0 0
      %5175 = vmatpush1.bf16.msra.mxu0 0
      %5176 = vmatprep.subr.bf16.mxu0 0
      %5177 = vmatpush1.bf16.msra.mxu0 0
      %5178 = vmatprep.subr.bf16.mxu0 0
      %5179 = vmatpush1.bf16.msra.mxu0 0
      %5180 = vmatprep.subr.bf16.mxu0 0
      %5181 = vmatpush1.bf16.msra.mxu0 0
      %5182 = vmatprep.subr.bf16.mxu0 0
      %5183 = vmatpush1.bf16.msra.mxu0 0
      %5184 = vmatprep.subr.bf16.mxu0 0
      %5185 = vmatpush1.bf16.msra.mxu0 %v5145
      %5186 = vmatprep.subr.bf16.mxu0 0
      %5187 = vmatpush1.bf16.msra.mxu0 %v5144
      %5188 = vmatprep.subr.bf16.mxu0 0
      %5189 = vmatpush2.bf16.msra.mxu0 0
      %5190 = vmatprep.subr.bf16.mxu0 0
      %5191 = vmatpush2.bf16.msra.mxu0 0
      %5192 = vmatprep.subr.bf16.mxu0 0
      %5193 = vmatpush2.bf16.msra.mxu0 0
      %5194 = vmatprep.subr.bf16.mxu0 0
      %5195 = vmatpush2.bf16.msra.mxu0 0
      %5196 = vmatprep.subr.bf16.mxu0 0
      %5197 = vmatpush2.bf16.msra.mxu0 0
      %5198 = vmatprep.subr.bf16.mxu0 0
      %5199 = vmatpush2.bf16.msra.mxu0 0
      %5200 = vmatprep.subr.bf16.mxu0 0
      %5201 = vmatpush2.bf16.msra.mxu0 0
      %5202 = vmatprep.subr.bf16.mxu0 0
      %5203 = vmatpush2.bf16.msra.mxu0 0
      %5204 = vmatprep.mubr.bf16.mxu0 0
      %5205 = vmatmul.mubr.bf16.gmra.mxu0 %v5149
      %v5206 = vpop.f32.mrf.mxu0
      %v5207 = vadd.f32 0.0, %v5206
      %v5208 = vpop.f32.mrf.mxu0
      %v5209 = vpop.f32.mrf.mxu0
      %v5210 = vadd.f32 0.0, %v5209
      %v5211 = vpop.f32.mrf.mxu0
      %5212 = vmatprep.mubr.bf16.mxu0 0
      %5213 = vmatmul.mubr.bf16.gmra.mxu0 %v5152
      %v5214 = vpop.f32.mrf.mxu0
      %v5215 = vadd.f32 0.0, %v5214
      %v5216 = vpop.f32.mrf.mxu0
      %v5217 = vpop.f32.mrf.mxu0
      %v5218 = vadd.f32 0.0, %v5217
      %v5219 = vpop.f32.mrf.mxu0
      %5220 = vmatprep.mubr.bf16.mxu0 0
      %5221 = vmatmul.mubr.bf16.gmra.mxu0 %v5155
      %v5222 = vpop.f32.mrf.mxu0
      %v5223 = vadd.f32 0.0, %v5222
      %v5224 = vpop.f32.mrf.mxu0
      %v5225 = vpop.f32.mrf.mxu0
      %v5226 = vadd.f32 0.0, %v5225
      %v5227 = vpop.f32.mrf.mxu0
      %5228 = vmatprep.mubr.bf16.mxu0 0
      %5229 = vmatmul.mubr.bf16.gmra.mxu0 %v5158
      %v5230 = vpop.f32.mrf.mxu0
      %v5231 = vadd.f32 0.0, %v5230
      %v5232 = vpop.f32.mrf.mxu0
      %v5233 = vpop.f32.mrf.mxu0
      %v5234 = vadd.f32 0.0, %v5233
      %v5235 = vpop.f32.mrf.mxu0
      %5236 = vmatprep.mubr.bf16.mxu0 0
      %5237 = vmatmul.mubr.bf16.gmra.mxu0 %v5161
      %v5238 = vpop.f32.mrf.mxu0
      %v5239 = vadd.f32 0.0, %v5238
      %v5240 = vpop.f32.mrf.mxu0
      %v5241 = vpop.f32.mrf.mxu0
      %v5242 = vadd.f32 0.0, %v5241
      %v5243 = vpop.f32.mrf.mxu0
      %5244 = vmatprep.mubr.bf16.mxu0 0
      %5245 = vmatmul.mubr.bf16.gmra.mxu0 %v5164
      %v5246 = vpop.f32.mrf.mxu0
      %v5247 = vadd.f32 0.0, %v5246
      %v5248 = vpop.f32.mrf.mxu0
      %v5249 = vpop.f32.mrf.mxu0
      %v5250 = vadd.f32 0.0, %v5249
      %v5251 = vpop.f32.mrf.mxu0
      %5252 = vmatprep.mubr.bf16.mxu0 0
      %5253 = vmatmul.mubr.bf16.gmra.mxu0 %v5167
      %v5254 = vpop.f32.mrf.mxu0
      %v5255 = vadd.f32 0.0, %v5254
      %v5256 = vpop.f32.mrf.mxu0
      %v5257 = vpop.f32.mrf.mxu0
      %v5258 = vadd.f32 0.0, %v5257
      %v5259 = vpop.f32.mrf.mxu0
      %5260 = vmatprep.mubr.bf16.mxu0 0
      %5261 = vmatmul.mubr.bf16.gmra.mxu0 %v5170
      %v5262 = vpop.f32.mrf.mxu0
      %v5263 = vadd.f32 0.0, %v5262
      %v5264 = vpop.f32.mrf.mxu0
      %v5265 = vpop.f32.mrf.mxu0
      %v5266 = vadd.f32 0.0, %v5265
      %v5267 = vpop.f32.mrf.mxu0
      %5268 = vdwg.mxu0
      %v5270 = vunpack.c.l.b16 %v5071
      %v5271 = vpack.c.b16 %v5112, %v5270
      %v5272 = vpack.c.b16 %v5114, %v5113
      %v5273 = vpack.c.b16 %v5116, %v5115
      %v5274 = vpack.c.b16 %v5118, %v5117
      %v5275 = vpack.c.b16 %v5120, %v5119
      %v5276 = vpack.c.b16 %v5122, %v5121
      %v5277 = vpack.c.b16 %v5124, %v5123
      %v5278 = vpack.c.b16 %v5126, %v5125
      %v5279 = vpack.c.b16 %v5127, %v5127
      %v5281 = vshrl.u32 %v5271, 16
      %v5283 = vrot.slane %v5281, 3
      %v5284 = vshll.u32 %v5271, 16
      %v5286 = vrot.slane %v5284, 4
      %v5287 = vor.u32 %v5283, %v5286
      %v5289 = vshrl.u32 %v5272, 16
      %v5291 = vrot.slane %v5289, 3
      %v5292 = vshll.u32 %v5272, 16
      %v5294 = vrot.slane %v5292, 4
      %v5295 = vor.u32 %v5291, %v5294
      %v5296 = vsel %vm533, %v5287, %v5295
      %v5298 = vshrl.u32 %v5273, 16
      %v5300 = vrot.slane %v5298, 3
      %v5301 = vshll.u32 %v5273, 16
      %v5303 = vrot.slane %v5301, 4
      %v5304 = vor.u32 %v5300, %v5303
      %v5305 = vsel %vm533, %v5295, %v5304
      %v5307 = vshrl.u32 %v5274, 16
      %v5309 = vrot.slane %v5307, 3
      %v5310 = vshll.u32 %v5274, 16
      %v5312 = vrot.slane %v5310, 4
      %v5313 = vor.u32 %v5309, %v5312
      %v5314 = vsel %vm533, %v5304, %v5313
      %v5316 = vshrl.u32 %v5275, 16
      %v5318 = vrot.slane %v5316, 3
      %v5319 = vshll.u32 %v5275, 16
      %v5321 = vrot.slane %v5319, 4
      %v5322 = vor.u32 %v5318, %v5321
      %v5323 = vsel %vm533, %v5313, %v5322
      %v5325 = vshrl.u32 %v5276, 16
      %v5327 = vrot.slane %v5325, 3
      %v5328 = vshll.u32 %v5276, 16
      %v5330 = vrot.slane %v5328, 4
      %v5331 = vor.u32 %v5327, %v5330
      %v5332 = vsel %vm533, %v5322, %v5331
      %v5334 = vshrl.u32 %v5277, 16
      %v5336 = vrot.slane %v5334, 3
      %v5337 = vshll.u32 %v5277, 16
      %v5339 = vrot.slane %v5337, 4
      %v5340 = vor.u32 %v5336, %v5339
      %v5341 = vsel %vm533, %v5331, %v5340
      %v5343 = vshrl.u32 %v5278, 16
      %v5345 = vrot.slane %v5343, 3
      %v5346 = vshll.u32 %v5278, 16
      %v5348 = vrot.slane %v5346, 4
      %v5349 = vor.u32 %v5345, %v5348
      %v5350 = vsel %vm533, %v5340, %v5349
      %v5352 = vshrl.u32 %v5279, 16
      %v5354 = vrot.slane %v5352, 3
      %v5355 = vshll.u32 %v5279, 16
      %v5357 = vrot.slane %v5355, 4
      %v5358 = vor.u32 %v5354, %v5357
      %v5359 = vsel %vm533, %v5349, %v5358
      %v5364 = vunpack.c.l.b16 %v5088
      %v5365 = vunpack.c.l.b16 %v5089
      %v5366 = vunpack.c.l.b16 %v5090
      %v5367 = vunpack.c.l.b16 %v5091
      %v5368 = vpack.c.b16 %v5365, %v5364
      %v5369 = vpack.c.b16 %v5367, %v5366
      %v5373 = vsel %vm400, %v5296, 0
      %v5376 = vsel %vm400, %v5305, 0
      %v5379 = vsel %vm400, %v5314, 0
      %v5382 = vsel %vm400, %v5323, 0
      %v5385 = vsel %vm400, %v5332, 0
      %v5388 = vsel %vm400, %v5341, 0
      %v5391 = vsel %vm400, %v5350, 0
      %v5394 = vsel %vm400, %v5359, 0
      %5396 = vmatprep.subr.bf16.mxu0 0
      %5397 = vmatpush1.bf16.msra.mxu0 0
      %5398 = vmatprep.subr.bf16.mxu0 0
      %5399 = vmatpush1.bf16.msra.mxu0 0
      %5400 = vmatprep.subr.bf16.mxu0 0
      %5401 = vmatpush1.bf16.msra.mxu0 0
      %5402 = vmatprep.subr.bf16.mxu0 0
      %5403 = vmatpush1.bf16.msra.mxu0 0
      %5404 = vmatprep.subr.bf16.mxu0 0
      %5405 = vmatpush1.bf16.msra.mxu0 0
      %5406 = vmatprep.subr.bf16.mxu0 0
      %5407 = vmatpush1.bf16.msra.mxu0 0
      %5408 = vmatprep.subr.bf16.mxu0 0
      %5409 = vmatpush1.bf16.msra.mxu0 %v5369
      %5410 = vmatprep.subr.bf16.mxu0 0
      %5411 = vmatpush1.bf16.msra.mxu0 %v5368
      %5412 = vmatprep.subr.bf16.mxu0 0
      %5413 = vmatpush2.bf16.msra.mxu0 0
      %5414 = vmatprep.subr.bf16.mxu0 0
      %5415 = vmatpush2.bf16.msra.mxu0 0
      %5416 = vmatprep.subr.bf16.mxu0 0
      %5417 = vmatpush2.bf16.msra.mxu0 0
      %5418 = vmatprep.subr.bf16.mxu0 0
      %5419 = vmatpush2.bf16.msra.mxu0 0
      %5420 = vmatprep.subr.bf16.mxu0 0
      %5421 = vmatpush2.bf16.msra.mxu0 0
      %5422 = vmatprep.subr.bf16.mxu0 0
      %5423 = vmatpush2.bf16.msra.mxu0 0
      %5424 = vmatprep.subr.bf16.mxu0 0
      %5425 = vmatpush2.bf16.msra.mxu0 0
      %5426 = vmatprep.subr.bf16.mxu0 0
      %5427 = vmatpush2.bf16.msra.mxu0 0
      %5428 = vmatprep.mubr.bf16.mxu0 0
      %5429 = vmatmul.mubr.bf16.gmra.mxu0 %v5373
      %v5430 = vpop.f32.mrf.mxu0
      %v5431 = vadd.f32 %v5207, %v5430
      %v5432 = vpop.f32.mrf.mxu0
      %v5433 = vpop.f32.mrf.mxu0
      %v5434 = vadd.f32 %v5210, %v5433
      %v5435 = vpop.f32.mrf.mxu0
      %5436 = vmatprep.mubr.bf16.mxu0 0
      %5437 = vmatmul.mubr.bf16.gmra.mxu0 %v5376
      %v5438 = vpop.f32.mrf.mxu0
      %v5439 = vadd.f32 %v5215, %v5438
      %v5440 = vpop.f32.mrf.mxu0
      %v5441 = vpop.f32.mrf.mxu0
      %v5442 = vadd.f32 %v5218, %v5441
      %v5443 = vpop.f32.mrf.mxu0
      %5444 = vmatprep.mubr.bf16.mxu0 0
      %5445 = vmatmul.mubr.bf16.gmra.mxu0 %v5379
      %v5446 = vpop.f32.mrf.mxu0
      %v5447 = vadd.f32 %v5223, %v5446
      %v5448 = vpop.f32.mrf.mxu0
      %v5449 = vpop.f32.mrf.mxu0
      %v5450 = vadd.f32 %v5226, %v5449
      %v5451 = vpop.f32.mrf.mxu0
      %5452 = vmatprep.mubr.bf16.mxu0 0
      %5453 = vmatmul.mubr.bf16.gmra.mxu0 %v5382
      %v5454 = vpop.f32.mrf.mxu0
      %v5455 = vadd.f32 %v5231, %v5454
      %v5456 = vpop.f32.mrf.mxu0
      %v5457 = vpop.f32.mrf.mxu0
      %v5458 = vadd.f32 %v5234, %v5457
      %v5459 = vpop.f32.mrf.mxu0
      %5460 = vmatprep.mubr.bf16.mxu0 0
      %5461 = vmatmul.mubr.bf16.gmra.mxu0 %v5385
      %v5462 = vpop.f32.mrf.mxu0
      %v5463 = vadd.f32 %v5239, %v5462
      %v5464 = vpop.f32.mrf.mxu0
      %v5465 = vpop.f32.mrf.mxu0
      %v5466 = vadd.f32 %v5242, %v5465
      %v5467 = vpop.f32.mrf.mxu0
      %5468 = vmatprep.mubr.bf16.mxu0 0
      %5469 = vmatmul.mubr.bf16.gmra.mxu0 %v5388
      %v5470 = vpop.f32.mrf.mxu0
      %v5471 = vadd.f32 %v5247, %v5470
      %v5472 = vpop.f32.mrf.mxu0
      %v5473 = vpop.f32.mrf.mxu0
      %v5474 = vadd.f32 %v5250, %v5473
      %v5475 = vpop.f32.mrf.mxu0
      %5476 = vmatprep.mubr.bf16.mxu0 0
      %5477 = vmatmul.mubr.bf16.gmra.mxu0 %v5391
      %v5478 = vpop.f32.mrf.mxu0
      %v5479 = vadd.f32 %v5255, %v5478
      %v5480 = vpop.f32.mrf.mxu0
      %v5481 = vpop.f32.mrf.mxu0
      %v5482 = vadd.f32 %v5258, %v5481
      %v5483 = vpop.f32.mrf.mxu0
      %5484 = vmatprep.mubr.bf16.mxu0 0
      %5485 = vmatmul.mubr.bf16.gmra.mxu0 %v5394
      %v5486 = vpop.f32.mrf.mxu0
      %v5487 = vadd.f32 %v5263, %v5486
      %v5488 = vpop.f32.mrf.mxu0
      %v5489 = vpop.f32.mrf.mxu0
      %v5490 = vadd.f32 %v5266, %v5489
      %v5491 = vpop.f32.mrf.mxu0
      %5492 = vdwg.mxu0
      %v5493 = vld [vmem:[#allocation3 + $0x8] sm:$0xf]
      %v5494 = vld [vmem:[#allocation3 + $0xc] sm:$0xf]
      %v5495 = vld [vmem:[#allocation3 + $0x10] sm:$0xf]
      %v5496 = vld [vmem:[#allocation3 + $0x14] sm:$0xf]
      %v5497 = vld [vmem:[#allocation3 + $0x18] sm:$0xf]
      %v5498 = vld [vmem:[#allocation3 + $0x1c] sm:$0xf]
      %v5499 = vld [vmem:[#allocation3 + $0x20] sm:$0xf]
      %v5500 = vld [vmem:[#allocation3 + $0x24] sm:$0xf]
      %v5501 = vld [vmem:[#allocation3 + $0x28] sm:$0xf]
      %v5502 = vld [vmem:[#allocation3 + $0x2c] sm:$0xf]
      %v5503 = vld [vmem:[#allocation3 + $0x30] sm:$0xf]
      %v5504 = vld [vmem:[#allocation3 + $0x34] sm:$0xf]
      %v5505 = vld [vmem:[#allocation3 + $0x38] sm:$0xf]
      %v5506 = vld [vmem:[#allocation3 + $0x3c] sm:$0xf]
      %v5507 = vld [vmem:[#allocation3 + $0x40] sm:$0xf]
      %v5508 = vld [vmem:[#allocation3 + $0x44] sm:$0xf]
      %v5509 = vld [vmem:[#allocation3 + $0x48] sm:$0x1]
      %v5510 = vld [vmem:[%s6 + $0x20] sm:$0xf]
      %v5511 = vld [vmem:[%s6 + $0x24] sm:$0xf]
      %v5512 = vld [vmem:[%s6 + $0x28] sm:$0xf]
      %v5513 = vld [vmem:[%s6 + $0x2c] sm:$0xf]
      %v5531 = vunpack.c.l.b16 %v5493
      %v5532 = vunpack.c.l.b16 %v5494
      %v5533 = vunpack.c.l.b16 %v5495
      %v5534 = vunpack.c.l.b16 %v5496
      %v5535 = vunpack.c.l.b16 %v5497
      %v5536 = vunpack.c.l.b16 %v5498
      %v5537 = vunpack.c.l.b16 %v5499
      %v5538 = vunpack.c.l.b16 %v5500
      %v5539 = vunpack.c.l.b16 %v5501
      %v5540 = vunpack.c.l.b16 %v5502
      %v5541 = vunpack.c.l.b16 %v5503
      %v5542 = vunpack.c.l.b16 %v5504
      %v5543 = vunpack.c.l.b16 %v5505
      %v5544 = vunpack.c.l.b16 %v5506
      %v5545 = vunpack.c.l.b16 %v5507
      %v5546 = vunpack.c.l.b16 %v5508
      %v5547 = vunpack.c.l.b16 %v5509
      %v5548 = vpack.c.b16 %v5532, %v5531
      %v5549 = vpack.c.b16 %v5534, %v5533
      %v5550 = vpack.c.b16 %v5536, %v5535
      %v5551 = vpack.c.b16 %v5538, %v5537
      %v5552 = vpack.c.b16 %v5540, %v5539
      %v5553 = vpack.c.b16 %v5542, %v5541
      %v5554 = vpack.c.b16 %v5544, %v5543
      %v5555 = vpack.c.b16 %v5546, %v5545
      %v5556 = vpack.c.b16 %v5547, %v5547
      %v5558 = vshrl.u32 %v5548, 16
      %v5560 = vshll.u32 %v5548, 16
      %v5562 = vrot.slane %v5560, 1
      %v5563 = vor.u32 %v5558, %v5562
      %v5565 = vshll.u32 %v5549, 16
      %v5567 = vrot.slane %v5565, 1
      %v5568 = vsel %vm811, %v5563, %v5567
      %v5569 = vshrl.u32 %v5549, 16
      %v5571 = vor.u32 %v5569, %v5567
      %v5573 = vshll.u32 %v5550, 16
      %v5575 = vrot.slane %v5573, 1
      %v5576 = vsel %vm811, %v5571, %v5575
      %v5577 = vshrl.u32 %v5550, 16
      %v5579 = vor.u32 %v5577, %v5575
      %v5581 = vshll.u32 %v5551, 16
      %v5583 = vrot.slane %v5581, 1
      %v5584 = vsel %vm811, %v5579, %v5583
      %v5585 = vshrl.u32 %v5551, 16
      %v5587 = vor.u32 %v5585, %v5583
      %v5589 = vshll.u32 %v5552, 16
      %v5591 = vrot.slane %v5589, 1
      %v5592 = vsel %vm811, %v5587, %v5591
      %v5593 = vshrl.u32 %v5552, 16
      %v5595 = vor.u32 %v5593, %v5591
      %v5597 = vshll.u32 %v5553, 16
      %v5599 = vrot.slane %v5597, 1
      %v5600 = vsel %vm811, %v5595, %v5599
      %v5601 = vshrl.u32 %v5553, 16
      %v5603 = vor.u32 %v5601, %v5599
      %v5605 = vshll.u32 %v5554, 16
      %v5607 = vrot.slane %v5605, 1
      %v5608 = vsel %vm811, %v5603, %v5607
      %v5609 = vshrl.u32 %v5554, 16
      %v5611 = vor.u32 %v5609, %v5607
      %v5613 = vshll.u32 %v5555, 16
      %v5615 = vrot.slane %v5613, 1
      %v5616 = vsel %vm811, %v5611, %v5615
      %v5617 = vshrl.u32 %v5555, 16
      %v5619 = vor.u32 %v5617, %v5615
      %v5621 = vshll.u32 %v5556, 16
      %v5623 = vrot.slane %v5621, 1
      %v5624 = vsel %vm811, %v5619, %v5623
      %v5629 = vunpack.c.l.b16 %v5510
      %v5630 = vunpack.c.l.b16 %v5511
      %v5631 = vunpack.c.l.b16 %v5512
      %v5632 = vunpack.c.l.b16 %v5513
      %v5633 = vpack.c.b16 %v5630, %v5629
      %v5634 = vpack.c.b16 %v5632, %v5631
      %v5638 = vsel %vm400, %v5568, 0
      %v5641 = vsel %vm400, %v5576, 0
      %v5644 = vsel %vm400, %v5584, 0
      %v5647 = vsel %vm400, %v5592, 0
      %v5650 = vsel %vm400, %v5600, 0
      %v5653 = vsel %vm400, %v5608, 0
      %v5656 = vsel %vm400, %v5616, 0
      %v5659 = vsel %vm400, %v5624, 0
      %5661 = vmatprep.subr.bf16.mxu0 0
      %5662 = vmatpush1.bf16.msra.mxu0 0
      %5663 = vmatprep.subr.bf16.mxu0 0
      %5664 = vmatpush1.bf16.msra.mxu0 0
      %5665 = vmatprep.subr.bf16.mxu0 0
      %5666 = vmatpush1.bf16.msra.mxu0 0
      %5667 = vmatprep.subr.bf16.mxu0 0
      %5668 = vmatpush1.bf16.msra.mxu0 0
      %5669 = vmatprep.subr.bf16.mxu0 0
      %5670 = vmatpush1.bf16.msra.mxu0 0
      %5671 = vmatprep.subr.bf16.mxu0 0
      %5672 = vmatpush1.bf16.msra.mxu0 0
      %5673 = vmatprep.subr.bf16.mxu0 0
      %5674 = vmatpush1.bf16.msra.mxu0 %v5634
      %5675 = vmatprep.subr.bf16.mxu0 0
      %5676 = vmatpush1.bf16.msra.mxu0 %v5633
      %5677 = vmatprep.subr.bf16.mxu0 0
      %5678 = vmatpush2.bf16.msra.mxu0 0
      %5679 = vmatprep.subr.bf16.mxu0 0
      %5680 = vmatpush2.bf16.msra.mxu0 0
      %5681 = vmatprep.subr.bf16.mxu0 0
      %5682 = vmatpush2.bf16.msra.mxu0 0
      %5683 = vmatprep.subr.bf16.mxu0 0
      %5684 = vmatpush2.bf16.msra.mxu0 0
      %5685 = vmatprep.subr.bf16.mxu0 0
      %5686 = vmatpush2.bf16.msra.mxu0 0
      %5687 = vmatprep.subr.bf16.mxu0 0
      %5688 = vmatpush2.bf16.msra.mxu0 0
      %5689 = vmatprep.subr.bf16.mxu0 0
      %5690 = vmatpush2.bf16.msra.mxu0 0
      %5691 = vmatprep.subr.bf16.mxu0 0
      %5692 = vmatpush2.bf16.msra.mxu0 0
      %5693 = vmatprep.mubr.bf16.mxu0 0
      %5694 = vmatmul.mubr.bf16.gmra.mxu0 %v5638
      %v5695 = vpop.f32.mrf.mxu0
      %v5696 = vadd.f32 0.0, %v5695
      %v5697 = vpop.f32.mrf.mxu0
      %v5698 = vpop.f32.mrf.mxu0
      %v5699 = vadd.f32 0.0, %v5698
      %v5700 = vpop.f32.mrf.mxu0
      %5701 = vmatprep.mubr.bf16.mxu0 0
      %5702 = vmatmul.mubr.bf16.gmra.mxu0 %v5641
      %v5703 = vpop.f32.mrf.mxu0
      %v5704 = vadd.f32 0.0, %v5703
      %v5705 = vpop.f32.mrf.mxu0
      %v5706 = vpop.f32.mrf.mxu0
      %v5707 = vadd.f32 0.0, %v5706
      %v5708 = vpop.f32.mrf.mxu0
      %5709 = vmatprep.mubr.bf16.mxu0 0
      %5710 = vmatmul.mubr.bf16.gmra.mxu0 %v5644
      %v5711 = vpop.f32.mrf.mxu0
      %v5712 = vadd.f32 0.0, %v5711
      %v5713 = vpop.f32.mrf.mxu0
      %v5714 = vpop.f32.mrf.mxu0
      %v5715 = vadd.f32 0.0, %v5714
      %v5716 = vpop.f32.mrf.mxu0
      %5717 = vmatprep.mubr.bf16.mxu0 0
      %5718 = vmatmul.mubr.bf16.gmra.mxu0 %v5647
      %v5719 = vpop.f32.mrf.mxu0
      %v5720 = vadd.f32 0.0, %v5719
      %v5721 = vpop.f32.mrf.mxu0
      %v5722 = vpop.f32.mrf.mxu0
      %v5723 = vadd.f32 0.0, %v5722
      %v5724 = vpop.f32.mrf.mxu0
      %5725 = vmatprep.mubr.bf16.mxu0 0
      %5726 = vmatmul.mubr.bf16.gmra.mxu0 %v5650
      %v5727 = vpop.f32.mrf.mxu0
      %v5728 = vadd.f32 0.0, %v5727
      %v5729 = vpop.f32.mrf.mxu0
      %v5730 = vpop.f32.mrf.mxu0
      %v5731 = vadd.f32 0.0, %v5730
      %v5732 = vpop.f32.mrf.mxu0
      %5733 = vmatprep.mubr.bf16.mxu0 0
      %5734 = vmatmul.mubr.bf16.gmra.mxu0 %v5653
      %v5735 = vpop.f32.mrf.mxu0
      %v5736 = vadd.f32 0.0, %v5735
      %v5737 = vpop.f32.mrf.mxu0
      %v5738 = vpop.f32.mrf.mxu0
      %v5739 = vadd.f32 0.0, %v5738
      %v5740 = vpop.f32.mrf.mxu0
      %5741 = vmatprep.mubr.bf16.mxu0 0
      %5742 = vmatmul.mubr.bf16.gmra.mxu0 %v5656
      %v5743 = vpop.f32.mrf.mxu0
      %v5744 = vadd.f32 0.0, %v5743
      %v5745 = vpop.f32.mrf.mxu0
      %v5746 = vpop.f32.mrf.mxu0
      %v5747 = vadd.f32 0.0, %v5746
      %v5748 = vpop.f32.mrf.mxu0
      %5749 = vmatprep.mubr.bf16.mxu0 0
      %5750 = vmatmul.mubr.bf16.gmra.mxu0 %v5659
      %v5751 = vpop.f32.mrf.mxu0
      %v5752 = vadd.f32 0.0, %v5751
      %v5753 = vpop.f32.mrf.mxu0
      %v5754 = vpop.f32.mrf.mxu0
      %v5755 = vadd.f32 0.0, %v5754
      %v5756 = vpop.f32.mrf.mxu0
      %5757 = vdwg.mxu0
      %v5758 = vadd.f32 %v5431, %v5696
      %v5759 = vadd.f32 %v5434, %v5699
      %v5760 = vadd.f32 %v5439, %v5704
      %v5761 = vadd.f32 %v5442, %v5707
      %v5762 = vadd.f32 %v5447, %v5712
      %v5763 = vadd.f32 %v5450, %v5715
      %v5764 = vadd.f32 %v5455, %v5720
      %v5765 = vadd.f32 %v5458, %v5723
      %v5766 = vadd.f32 %v5463, %v5728
      %v5767 = vadd.f32 %v5466, %v5731
      %v5768 = vadd.f32 %v5471, %v5736
      %v5769 = vadd.f32 %v5474, %v5739
      %v5770 = vadd.f32 %v5479, %v5744
      %v5771 = vadd.f32 %v5482, %v5747
      %v5772 = vadd.f32 %v5487, %v5752
      %v5773 = vadd.f32 %v5490, %v5755
      %v5774 = vld [vmem:[#allocation3 + $0xc] sm:$0x8]
      %v5775 = vld [vmem:[#allocation3 + $0x10] sm:$0xf]
      %v5776 = vld [vmem:[#allocation3 + $0x14] sm:$0xf]
      %v5777 = vld [vmem:[#allocation3 + $0x18] sm:$0xf]
      %v5778 = vld [vmem:[#allocation3 + $0x1c] sm:$0xf]
      %v5779 = vld [vmem:[#allocation3 + $0x20] sm:$0xf]
      %v5780 = vld [vmem:[#allocation3 + $0x24] sm:$0xf]
      %v5781 = vld [vmem:[#allocation3 + $0x28] sm:$0xf]
      %v5782 = vld [vmem:[#allocation3 + $0x2c] sm:$0xf]
      %v5783 = vld [vmem:[#allocation3 + $0x30] sm:$0xf]
      %v5784 = vld [vmem:[#allocation3 + $0x34] sm:$0xf]
      %v5785 = vld [vmem:[#allocation3 + $0x38] sm:$0xf]
      %v5786 = vld [vmem:[#allocation3 + $0x3c] sm:$0xf]
      %v5787 = vld [vmem:[#allocation3 + $0x40] sm:$0xf]
      %v5788 = vld [vmem:[#allocation3 + $0x44] sm:$0xf]
      %v5789 = vld [vmem:[#allocation3 + $0x48] sm:$0xf]
      %v5790 = vld [vmem:[#allocation3 + $0x4c] sm:$0xf]
      %v5791 = vld [vmem:[%s6 + $0x30] sm:$0xf]
      %v5792 = vld [vmem:[%s6 + $0x34] sm:$0xf]
      %v5793 = vld [vmem:[%s6 + $0x38] sm:$0xf]
      %v5794 = vld [vmem:[%s6 + $0x3c] sm:$0xf]
      %v5812 = vunpack.c.l.b16 %v5774
      %v5813 = vunpack.c.l.b16 %v5775
      %v5814 = vunpack.c.l.b16 %v5776
      %v5815 = vunpack.c.l.b16 %v5777
      %v5816 = vunpack.c.l.b16 %v5778
      %v5817 = vunpack.c.l.b16 %v5779
      %v5818 = vunpack.c.l.b16 %v5780
      %v5819 = vunpack.c.l.b16 %v5781
      %v5820 = vunpack.c.l.b16 %v5782
      %v5821 = vunpack.c.l.b16 %v5783
      %v5822 = vunpack.c.l.b16 %v5784
      %v5823 = vunpack.c.l.b16 %v5785
      %v5824 = vunpack.c.l.b16 %v5786
      %v5825 = vunpack.c.l.b16 %v5787
      %v5826 = vunpack.c.l.b16 %v5788
      %v5827 = vunpack.c.l.b16 %v5789
      %v5828 = vunpack.c.l.b16 %v5790
      %v5829 = vpack.c.b16 %v5813, %v5812
      %v5830 = vpack.c.b16 %v5815, %v5814
      %v5831 = vpack.c.b16 %v5817, %v5816
      %v5832 = vpack.c.b16 %v5819, %v5818
      %v5833 = vpack.c.b16 %v5821, %v5820
      %v5834 = vpack.c.b16 %v5823, %v5822
      %v5835 = vpack.c.b16 %v5825, %v5824
      %v5836 = vpack.c.b16 %v5827, %v5826
      %v5837 = vpack.c.b16 %v5828, %v5828
      %v5839 = vshrl.u32 %v5829, 16
      %v5841 = vrot.slane %v5839, 3
      %v5842 = vshll.u32 %v5829, 16
      %v5844 = vrot.slane %v5842, 4
      %v5845 = vor.u32 %v5841, %v5844
      %v5847 = vshrl.u32 %v5830, 16
      %v5849 = vrot.slane %v5847, 3
      %v5850 = vshll.u32 %v5830, 16
      %v5852 = vrot.slane %v5850, 4
      %v5853 = vor.u32 %v5849, %v5852
      %v5854 = vsel %vm533, %v5845, %v5853
      %v5856 = vshrl.u32 %v5831, 16
      %v5858 = vrot.slane %v5856, 3
      %v5859 = vshll.u32 %v5831, 16
      %v5861 = vrot.slane %v5859, 4
      %v5862 = vor.u32 %v5858, %v5861
      %v5863 = vsel %vm533, %v5853, %v5862
      %v5865 = vshrl.u32 %v5832, 16
      %v5867 = vrot.slane %v5865, 3
      %v5868 = vshll.u32 %v5832, 16
      %v5870 = vrot.slane %v5868, 4
      %v5871 = vor.u32 %v5867, %v5870
      %v5872 = vsel %vm533, %v5862, %v5871
      %v5874 = vshrl.u32 %v5833, 16
      %v5876 = vrot.slane %v5874, 3
      %v5877 = vshll.u32 %v5833, 16
      %v5879 = vrot.slane %v5877, 4
      %v5880 = vor.u32 %v5876, %v5879
      %v5881 = vsel %vm533, %v5871, %v5880
      %v5883 = vshrl.u32 %v5834, 16
      %v5885 = vrot.slane %v5883, 3
      %v5886 = vshll.u32 %v5834, 16
      %v5888 = vrot.slane %v5886, 4
      %v5889 = vor.u32 %v5885, %v5888
      %v5890 = vsel %vm533, %v5880, %v5889
      %v5892 = vshrl.u32 %v5835, 16
      %v5894 = vrot.slane %v5892, 3
      %v5895 = vshll.u32 %v5835, 16
      %v5897 = vrot.slane %v5895, 4
      %v5898 = vor.u32 %v5894, %v5897
      %v5899 = vsel %vm533, %v5889, %v5898
      %v5901 = vshrl.u32 %v5836, 16
      %v5903 = vrot.slane %v5901, 3
      %v5904 = vshll.u32 %v5836, 16
      %v5906 = vrot.slane %v5904, 4
      %v5907 = vor.u32 %v5903, %v5906
      %v5908 = vsel %vm533, %v5898, %v5907
      %v5910 = vshrl.u32 %v5837, 16
      %v5912 = vrot.slane %v5910, 3
      %v5913 = vshll.u32 %v5837, 16
      %v5915 = vrot.slane %v5913, 4
      %v5916 = vor.u32 %v5912, %v5915
      %v5917 = vsel %vm533, %v5907, %v5916
      %v5922 = vunpack.c.l.b16 %v5791
      %v5923 = vunpack.c.l.b16 %v5792
      %v5924 = vunpack.c.l.b16 %v5793
      %v5925 = vunpack.c.l.b16 %v5794
      %v5926 = vpack.c.b16 %v5923, %v5922
      %v5927 = vpack.c.b16 %v5925, %v5924
      %v5931 = vsel %vm400, %v5854, 0
      %v5934 = vsel %vm400, %v5863, 0
      %v5937 = vsel %vm400, %v5872, 0
      %v5940 = vsel %vm400, %v5881, 0
      %v5943 = vsel %vm400, %v5890, 0
      %v5946 = vsel %vm400, %v5899, 0
      %v5949 = vsel %vm400, %v5908, 0
      %v5952 = vsel %vm400, %v5917, 0
      %5954 = vmatprep.subr.bf16.mxu0 0
      %5955 = vmatpush1.bf16.msra.mxu0 0
      %5956 = vmatprep.subr.bf16.mxu0 0
      %5957 = vmatpush1.bf16.msra.mxu0 0
      %5958 = vmatprep.subr.bf16.mxu0 0
      %5959 = vmatpush1.bf16.msra.mxu0 0
      %5960 = vmatprep.subr.bf16.mxu0 0
      %5961 = vmatpush1.bf16.msra.mxu0 0
      %5962 = vmatprep.subr.bf16.mxu0 0
      %5963 = vmatpush1.bf16.msra.mxu0 0
      %5964 = vmatprep.subr.bf16.mxu0 0
      %5965 = vmatpush1.bf16.msra.mxu0 0
      %5966 = vmatprep.subr.bf16.mxu0 0
      %5967 = vmatpush1.bf16.msra.mxu0 %v5927
      %5968 = vmatprep.subr.bf16.mxu0 0
      %5969 = vmatpush1.bf16.msra.mxu0 %v5926
      %5970 = vmatprep.subr.bf16.mxu0 0
      %5971 = vmatpush2.bf16.msra.mxu0 0
      %5972 = vmatprep.subr.bf16.mxu0 0
      %5973 = vmatpush2.bf16.msra.mxu0 0
      %5974 = vmatprep.subr.bf16.mxu0 0
      %5975 = vmatpush2.bf16.msra.mxu0 0
      %5976 = vmatprep.subr.bf16.mxu0 0
      %5977 = vmatpush2.bf16.msra.mxu0 0
      %5978 = vmatprep.subr.bf16.mxu0 0
      %5979 = vmatpush2.bf16.msra.mxu0 0
      %5980 = vmatprep.subr.bf16.mxu0 0
      %5981 = vmatpush2.bf16.msra.mxu0 0
      %5982 = vmatprep.subr.bf16.mxu0 0
      %5983 = vmatpush2.bf16.msra.mxu0 0
      %5984 = vmatprep.subr.bf16.mxu0 0
      %5985 = vmatpush2.bf16.msra.mxu0 0
      %5986 = vmatprep.mubr.bf16.mxu0 0
      %5987 = vmatmul.mubr.bf16.gmra.mxu0 %v5931
      %v5988 = vpop.f32.mrf.mxu0
      %v5989 = vadd.f32 0.0, %v5988
      %v5990 = vpop.f32.mrf.mxu0
      %v5991 = vpop.f32.mrf.mxu0
      %v5992 = vadd.f32 0.0, %v5991
      %v5993 = vpop.f32.mrf.mxu0
      %5994 = vmatprep.mubr.bf16.mxu0 0
      %5995 = vmatmul.mubr.bf16.gmra.mxu0 %v5934
      %v5996 = vpop.f32.mrf.mxu0
      %v5997 = vadd.f32 0.0, %v5996
      %v5998 = vpop.f32.mrf.mxu0
      %v5999 = vpop.f32.mrf.mxu0
      %v6000 = vadd.f32 0.0, %v5999
      %v6001 = vpop.f32.mrf.mxu0
      %6002 = vmatprep.mubr.bf16.mxu0 0
      %6003 = vmatmul.mubr.bf16.gmra.mxu0 %v5937
      %v6004 = vpop.f32.mrf.mxu0
      %v6005 = vadd.f32 0.0, %v6004
      %v6006 = vpop.f32.mrf.mxu0
      %v6007 = vpop.f32.mrf.mxu0
      %v6008 = vadd.f32 0.0, %v6007
      %v6009 = vpop.f32.mrf.mxu0
      %6010 = vmatprep.mubr.bf16.mxu0 0
      %6011 = vmatmul.mubr.bf16.gmra.mxu0 %v5940
      %v6012 = vpop.f32.mrf.mxu0
      %v6013 = vadd.f32 0.0, %v6012
      %v6014 = vpop.f32.mrf.mxu0
      %v6015 = vpop.f32.mrf.mxu0
      %v6016 = vadd.f32 0.0, %v6015
      %v6017 = vpop.f32.mrf.mxu0
      %6018 = vmatprep.mubr.bf16.mxu0 0
      %6019 = vmatmul.mubr.bf16.gmra.mxu0 %v5943
      %v6020 = vpop.f32.mrf.mxu0
      %v6021 = vadd.f32 0.0, %v6020
      %v6022 = vpop.f32.mrf.mxu0
      %v6023 = vpop.f32.mrf.mxu0
      %v6024 = vadd.f32 0.0, %v6023
      %v6025 = vpop.f32.mrf.mxu0
      %6026 = vmatprep.mubr.bf16.mxu0 0
      %6027 = vmatmul.mubr.bf16.gmra.mxu0 %v5946
      %v6028 = vpop.f32.mrf.mxu0
      %v6029 = vadd.f32 0.0, %v6028
      %v6030 = vpop.f32.mrf.mxu0
      %v6031 = vpop.f32.mrf.mxu0
      %v6032 = vadd.f32 0.0, %v6031
      %v6033 = vpop.f32.mrf.mxu0
      %6034 = vmatprep.mubr.bf16.mxu0 0
      %6035 = vmatmul.mubr.bf16.gmra.mxu0 %v5949
      %v6036 = vpop.f32.mrf.mxu0
      %v6037 = vadd.f32 0.0, %v6036
      %v6038 = vpop.f32.mrf.mxu0
      %v6039 = vpop.f32.mrf.mxu0
      %v6040 = vadd.f32 0.0, %v6039
      %v6041 = vpop.f32.mrf.mxu0
      %6042 = vmatprep.mubr.bf16.mxu0 0
      %6043 = vmatmul.mubr.bf16.gmra.mxu0 %v5952
      %v6044 = vpop.f32.mrf.mxu0
      %v6045 = vadd.f32 0.0, %v6044
      %v6046 = vpop.f32.mrf.mxu0
      %v6047 = vpop.f32.mrf.mxu0
      %v6048 = vadd.f32 0.0, %v6047
      %v6049 = vpop.f32.mrf.mxu0
      %6050 = vdwg.mxu0
      %v6051 = vadd.f32 %v5758, %v5989
      %v6052 = vadd.f32 %v5759, %v5992
      %v6053 = vadd.f32 %v5760, %v5997
      %v6054 = vadd.f32 %v5761, %v6000
      %v6055 = vadd.f32 %v5762, %v6005
      %v6056 = vadd.f32 %v5763, %v6008
      %v6057 = vadd.f32 %v5764, %v6013
      %v6058 = vadd.f32 %v5765, %v6016
      %v6059 = vadd.f32 %v5766, %v6021
      %v6060 = vadd.f32 %v5767, %v6024
      %v6061 = vadd.f32 %v5768, %v6029
      %v6062 = vadd.f32 %v5769, %v6032
      %v6063 = vadd.f32 %v5770, %v6037
      %v6064 = vadd.f32 %v5771, %v6040
      %v6065 = vadd.f32 %v5772, %v6045
      %v6066 = vadd.f32 %v5773, %v6048
      %v6067 = vld [vmem:[%s6 + $0x40] sm:$0xf]
      %v6068 = vld [vmem:[%s6 + $0x44] sm:$0xf]
      %v6069 = vld [vmem:[%s6 + $0x48] sm:$0xf]
      %v6070 = vld [vmem:[%s6 + $0x4c] sm:$0xf]
      %v6071 = vpack.c.b16 %v5814, %v5813
      %v6072 = vpack.c.b16 %v5816, %v5815
      %v6073 = vpack.c.b16 %v5818, %v5817
      %v6074 = vpack.c.b16 %v5820, %v5819
      %v6075 = vpack.c.b16 %v5822, %v5821
      %v6076 = vpack.c.b16 %v5824, %v5823
      %v6077 = vpack.c.b16 %v5826, %v5825
      %v6078 = vpack.c.b16 %v5828, %v5827
      %v6083 = vunpack.c.l.b16 %v6067
      %v6084 = vunpack.c.l.b16 %v6068
      %v6085 = vunpack.c.l.b16 %v6069
      %v6086 = vunpack.c.l.b16 %v6070
      %v6087 = vpack.c.b16 %v6084, %v6083
      %v6088 = vpack.c.b16 %v6086, %v6085
      %v6092 = vsel %vm400, %v6071, 0
      %v6095 = vsel %vm400, %v6072, 0
      %v6098 = vsel %vm400, %v6073, 0
      %v6101 = vsel %vm400, %v6074, 0
      %v6104 = vsel %vm400, %v6075, 0
      %v6107 = vsel %vm400, %v6076, 0
      %v6110 = vsel %vm400, %v6077, 0
      %v6113 = vsel %vm400, %v6078, 0
      %6115 = vmatprep.subr.bf16.mxu0 0
      %6116 = vmatpush1.bf16.msra.mxu0 0
      %6117 = vmatprep.subr.bf16.mxu0 0
      %6118 = vmatpush1.bf16.msra.mxu0 0
      %6119 = vmatprep.subr.bf16.mxu0 0
      %6120 = vmatpush1.bf16.msra.mxu0 0
      %6121 = vmatprep.subr.bf16.mxu0 0
      %6122 = vmatpush1.bf16.msra.mxu0 0
      %6123 = vmatprep.subr.bf16.mxu0 0
      %6124 = vmatpush1.bf16.msra.mxu0 0
      %6125 = vmatprep.subr.bf16.mxu0 0
      %6126 = vmatpush1.bf16.msra.mxu0 0
      %6127 = vmatprep.subr.bf16.mxu0 0
      %6128 = vmatpush1.bf16.msra.mxu0 %v6088
      %6129 = vmatprep.subr.bf16.mxu0 0
      %6130 = vmatpush1.bf16.msra.mxu0 %v6087
      %6131 = vmatprep.subr.bf16.mxu0 0
      %6132 = vmatpush2.bf16.msra.mxu0 0
      %6133 = vmatprep.subr.bf16.mxu0 0
      %6134 = vmatpush2.bf16.msra.mxu0 0
      %6135 = vmatprep.subr.bf16.mxu0 0
      %6136 = vmatpush2.bf16.msra.mxu0 0
      %6137 = vmatprep.subr.bf16.mxu0 0
      %6138 = vmatpush2.bf16.msra.mxu0 0
      %6139 = vmatprep.subr.bf16.mxu0 0
      %6140 = vmatpush2.bf16.msra.mxu0 0
      %6141 = vmatprep.subr.bf16.mxu0 0
      %6142 = vmatpush2.bf16.msra.mxu0 0
      %6143 = vmatprep.subr.bf16.mxu0 0
      %6144 = vmatpush2.bf16.msra.mxu0 0
      %6145 = vmatprep.subr.bf16.mxu0 0
      %6146 = vmatpush2.bf16.msra.mxu0 0
      %6147 = vmatprep.mubr.bf16.mxu0 0
      %6148 = vmatmul.mubr.bf16.gmra.mxu0 %v6092
      %v6149 = vpop.f32.mrf.mxu0
      %v6150 = vadd.f32 0.0, %v6149
      %v6151 = vpop.f32.mrf.mxu0
      %v6152 = vpop.f32.mrf.mxu0
      %v6153 = vadd.f32 0.0, %v6152
      %v6154 = vpop.f32.mrf.mxu0
      %6155 = vmatprep.mubr.bf16.mxu0 0
      %6156 = vmatmul.mubr.bf16.gmra.mxu0 %v6095
      %v6157 = vpop.f32.mrf.mxu0
      %v6158 = vadd.f32 0.0, %v6157
      %v6159 = vpop.f32.mrf.mxu0
      %v6160 = vpop.f32.mrf.mxu0
      %v6161 = vadd.f32 0.0, %v6160
      %v6162 = vpop.f32.mrf.mxu0
      %6163 = vmatprep.mubr.bf16.mxu0 0
      %6164 = vmatmul.mubr.bf16.gmra.mxu0 %v6098
      %v6165 = vpop.f32.mrf.mxu0
      %v6166 = vadd.f32 0.0, %v6165
      %v6167 = vpop.f32.mrf.mxu0
      %v6168 = vpop.f32.mrf.mxu0
      %v6169 = vadd.f32 0.0, %v6168
      %v6170 = vpop.f32.mrf.mxu0
      %6171 = vmatprep.mubr.bf16.mxu0 0
      %6172 = vmatmul.mubr.bf16.gmra.mxu0 %v6101
      %v6173 = vpop.f32.mrf.mxu0
      %v6174 = vadd.f32 0.0, %v6173
      %v6175 = vpop.f32.mrf.mxu0
      %v6176 = vpop.f32.mrf.mxu0
      %v6177 = vadd.f32 0.0, %v6176
      %v6178 = vpop.f32.mrf.mxu0
      %6179 = vmatprep.mubr.bf16.mxu0 0
      %6180 = vmatmul.mubr.bf16.gmra.mxu0 %v6104
      %v6181 = vpop.f32.mrf.mxu0
      %v6182 = vadd.f32 0.0, %v6181
      %v6183 = vpop.f32.mrf.mxu0
      %v6184 = vpop.f32.mrf.mxu0
      %v6185 = vadd.f32 0.0, %v6184
      %v6186 = vpop.f32.mrf.mxu0
      %6187 = vmatprep.mubr.bf16.mxu0 0
      %6188 = vmatmul.mubr.bf16.gmra.mxu0 %v6107
      %v6189 = vpop.f32.mrf.mxu0
      %v6190 = vadd.f32 0.0, %v6189
      %v6191 = vpop.f32.mrf.mxu0
      %v6192 = vpop.f32.mrf.mxu0
      %v6193 = vadd.f32 0.0, %v6192
      %v6194 = vpop.f32.mrf.mxu0
      %6195 = vmatprep.mubr.bf16.mxu0 0
      %6196 = vmatmul.mubr.bf16.gmra.mxu0 %v6110
      %v6197 = vpop.f32.mrf.mxu0
      %v6198 = vadd.f32 0.0, %v6197
      %v6199 = vpop.f32.mrf.mxu0
      %v6200 = vpop.f32.mrf.mxu0
      %v6201 = vadd.f32 0.0, %v6200
      %v6202 = vpop.f32.mrf.mxu0
      %6203 = vmatprep.mubr.bf16.mxu0 0
      %6204 = vmatmul.mubr.bf16.gmra.mxu0 %v6113
      %v6205 = vpop.f32.mrf.mxu0
      %v6206 = vadd.f32 0.0, %v6205
      %v6207 = vpop.f32.mrf.mxu0
      %v6208 = vpop.f32.mrf.mxu0
      %v6209 = vadd.f32 0.0, %v6208
      %v6210 = vpop.f32.mrf.mxu0
      %6211 = vdwg.mxu0
      %v6212 = vadd.f32 %v6051, %v6150
      %v6213 = vadd.f32 %v6052, %v6153
      %v6214 = vadd.f32 %v6053, %v6158
      %v6215 = vadd.f32 %v6054, %v6161
      %v6216 = vadd.f32 %v6055, %v6166
      %v6217 = vadd.f32 %v6056, %v6169
      %v6218 = vadd.f32 %v6057, %v6174
      %v6219 = vadd.f32 %v6058, %v6177
      %v6220 = vadd.f32 %v6059, %v6182
      %v6221 = vadd.f32 %v6060, %v6185
      %v6222 = vadd.f32 %v6061, %v6190
      %v6223 = vadd.f32 %v6062, %v6193
      %v6224 = vadd.f32 %v6063, %v6198
      %v6225 = vadd.f32 %v6064, %v6201
      %v6226 = vadd.f32 %v6065, %v6206
      %v6227 = vadd.f32 %v6066, %v6209
      %v6228 = vld [vmem:[#allocation3 + $0x10] sm:$0xf]
      %v6229 = vld [vmem:[#allocation3 + $0x14] sm:$0xf]
      %v6230 = vld [vmem:[#allocation3 + $0x18] sm:$0xf]
      %v6231 = vld [vmem:[#allocation3 + $0x1c] sm:$0xf]
      %v6232 = vld [vmem:[#allocation3 + $0x20] sm:$0xf]
      %v6233 = vld [vmem:[#allocation3 + $0x24] sm:$0xf]
      %v6234 = vld [vmem:[#allocation3 + $0x28] sm:$0xf]
      %v6235 = vld [vmem:[#allocation3 + $0x2c] sm:$0xf]
      %v6236 = vld [vmem:[#allocation3 + $0x30] sm:$0xf]
      %v6237 = vld [vmem:[#allocation3 + $0x34] sm:$0xf]
      %v6238 = vld [vmem:[#allocation3 + $0x38] sm:$0xf]
      %v6239 = vld [vmem:[#allocation3 + $0x3c] sm:$0xf]
      %v6240 = vld [vmem:[#allocation3 + $0x40] sm:$0xf]
      %v6241 = vld [vmem:[#allocation3 + $0x44] sm:$0xf]
      %v6242 = vld [vmem:[#allocation3 + $0x48] sm:$0xf]
      %v6243 = vld [vmem:[#allocation3 + $0x4c] sm:$0xf]
      %v6244 = vld [vmem:[#allocation3 + $0x50] sm:$0x1]
      %v6245 = vld [vmem:[%s6 + $0x50] sm:$0xf]
      %v6246 = vld [vmem:[%s6 + $0x54] sm:$0xf]
      %v6247 = vld [vmem:[%s6 + $0x58] sm:$0xf]
      %v6248 = vld [vmem:[%s6 + $0x5c] sm:$0xf]
      %v6266 = vunpack.c.l.b16 %v6228
      %v6267 = vunpack.c.l.b16 %v6229
      %v6268 = vunpack.c.l.b16 %v6230
      %v6269 = vunpack.c.l.b16 %v6231
      %v6270 = vunpack.c.l.b16 %v6232
      %v6271 = vunpack.c.l.b16 %v6233
      %v6272 = vunpack.c.l.b16 %v6234
      %v6273 = vunpack.c.l.b16 %v6235
      %v6274 = vunpack.c.l.b16 %v6236
      %v6275 = vunpack.c.l.b16 %v6237
      %v6276 = vunpack.c.l.b16 %v6238
      %v6277 = vunpack.c.l.b16 %v6239
      %v6278 = vunpack.c.l.b16 %v6240
      %v6279 = vunpack.c.l.b16 %v6241
      %v6280 = vunpack.c.l.b16 %v6242
      %v6281 = vunpack.c.l.b16 %v6243
      %v6282 = vunpack.c.l.b16 %v6244
      %v6283 = vpack.c.b16 %v6267, %v6266
      %v6284 = vpack.c.b16 %v6269, %v6268
      %v6285 = vpack.c.b16 %v6271, %v6270
      %v6286 = vpack.c.b16 %v6273, %v6272
      %v6287 = vpack.c.b16 %v6275, %v6274
      %v6288 = vpack.c.b16 %v6277, %v6276
      %v6289 = vpack.c.b16 %v6279, %v6278
      %v6290 = vpack.c.b16 %v6281, %v6280
      %v6291 = vpack.c.b16 %v6282, %v6282
      %v6293 = vshrl.u32 %v6283, 16
      %v6295 = vshll.u32 %v6283, 16
      %v6297 = vrot.slane %v6295, 1
      %v6298 = vor.u32 %v6293, %v6297
      %v6300 = vshll.u32 %v6284, 16
      %v6302 = vrot.slane %v6300, 1
      %v6303 = vsel %vm811, %v6298, %v6302
      %v6304 = vshrl.u32 %v6284, 16
      %v6306 = vor.u32 %v6304, %v6302
      %v6308 = vshll.u32 %v6285, 16
      %v6310 = vrot.slane %v6308, 1
      %v6311 = vsel %vm811, %v6306, %v6310
      %v6312 = vshrl.u32 %v6285, 16
      %v6314 = vor.u32 %v6312, %v6310
      %v6316 = vshll.u32 %v6286, 16
      %v6318 = vrot.slane %v6316, 1
      %v6319 = vsel %vm811, %v6314, %v6318
      %v6320 = vshrl.u32 %v6286, 16
      %v6322 = vor.u32 %v6320, %v6318
      %v6324 = vshll.u32 %v6287, 16
      %v6326 = vrot.slane %v6324, 1
      %v6327 = vsel %vm811, %v6322, %v6326
      %v6328 = vshrl.u32 %v6287, 16
      %v6330 = vor.u32 %v6328, %v6326
      %v6332 = vshll.u32 %v6288, 16
      %v6334 = vrot.slane %v6332, 1
      %v6335 = vsel %vm811, %v6330, %v6334
      %v6336 = vshrl.u32 %v6288, 16
      %v6338 = vor.u32 %v6336, %v6334
      %v6340 = vshll.u32 %v6289, 16
      %v6342 = vrot.slane %v6340, 1
      %v6343 = vsel %vm811, %v6338, %v6342
      %v6344 = vshrl.u32 %v6289, 16
      %v6346 = vor.u32 %v6344, %v6342
      %v6348 = vshll.u32 %v6290, 16
      %v6350 = vrot.slane %v6348, 1
      %v6351 = vsel %vm811, %v6346, %v6350
      %v6352 = vshrl.u32 %v6290, 16
      %v6354 = vor.u32 %v6352, %v6350
      %v6356 = vshll.u32 %v6291, 16
      %v6358 = vrot.slane %v6356, 1
      %v6359 = vsel %vm811, %v6354, %v6358
      %v6364 = vunpack.c.l.b16 %v6245
      %v6365 = vunpack.c.l.b16 %v6246
      %v6366 = vunpack.c.l.b16 %v6247
      %v6367 = vunpack.c.l.b16 %v6248
      %v6368 = vpack.c.b16 %v6365, %v6364
      %v6369 = vpack.c.b16 %v6367, %v6366
      %v6373 = vsel %vm400, %v6303, 0
      %v6376 = vsel %vm400, %v6311, 0
      %v6379 = vsel %vm400, %v6319, 0
      %v6382 = vsel %vm400, %v6327, 0
      %v6385 = vsel %vm400, %v6335, 0
      %v6388 = vsel %vm400, %v6343, 0
      %v6391 = vsel %vm400, %v6351, 0
      %v6394 = vsel %vm400, %v6359, 0
      %6396 = vmatprep.subr.bf16.mxu0 0
      %6397 = vmatpush1.bf16.msra.mxu0 0
      %6398 = vmatprep.subr.bf16.mxu0 0
      %6399 = vmatpush1.bf16.msra.mxu0 0
      %6400 = vmatprep.subr.bf16.mxu0 0
      %6401 = vmatpush1.bf16.msra.mxu0 0
      %6402 = vmatprep.subr.bf16.mxu0 0
      %6403 = vmatpush1.bf16.msra.mxu0 0
      %6404 = vmatprep.subr.bf16.mxu0 0
      %6405 = vmatpush1.bf16.msra.mxu0 0
      %6406 = vmatprep.subr.bf16.mxu0 0
      %6407 = vmatpush1.bf16.msra.mxu0 0
      %6408 = vmatprep.subr.bf16.mxu0 0
      %6409 = vmatpush1.bf16.msra.mxu0 %v6369
      %6410 = vmatprep.subr.bf16.mxu0 0
      %6411 = vmatpush1.bf16.msra.mxu0 %v6368
      %6412 = vmatprep.subr.bf16.mxu0 0
      %6413 = vmatpush2.bf16.msra.mxu0 0
      %6414 = vmatprep.subr.bf16.mxu0 0
      %6415 = vmatpush2.bf16.msra.mxu0 0
      %6416 = vmatprep.subr.bf16.mxu0 0
      %6417 = vmatpush2.bf16.msra.mxu0 0
      %6418 = vmatprep.subr.bf16.mxu0 0
      %6419 = vmatpush2.bf16.msra.mxu0 0
      %6420 = vmatprep.subr.bf16.mxu0 0
      %6421 = vmatpush2.bf16.msra.mxu0 0
      %6422 = vmatprep.subr.bf16.mxu0 0
      %6423 = vmatpush2.bf16.msra.mxu0 0
      %6424 = vmatprep.subr.bf16.mxu0 0
      %6425 = vmatpush2.bf16.msra.mxu0 0
      %6426 = vmatprep.subr.bf16.mxu0 0
      %6427 = vmatpush2.bf16.msra.mxu0 0
      %6428 = vmatprep.mubr.bf16.mxu0 0
      %6429 = vmatmul.mubr.bf16.gmra.mxu0 %v6373
      %v6430 = vpop.f32.mrf.mxu0
      %v6431 = vadd.f32 0.0, %v6430
      %v6432 = vpop.f32.mrf.mxu0
      %v6433 = vpop.f32.mrf.mxu0
      %v6434 = vadd.f32 0.0, %v6433
      %v6435 = vpop.f32.mrf.mxu0
      %6436 = vmatprep.mubr.bf16.mxu0 0
      %6437 = vmatmul.mubr.bf16.gmra.mxu0 %v6376
      %v6438 = vpop.f32.mrf.mxu0
      %v6439 = vadd.f32 0.0, %v6438
      %v6440 = vpop.f32.mrf.mxu0
      %v6441 = vpop.f32.mrf.mxu0
      %v6442 = vadd.f32 0.0, %v6441
      %v6443 = vpop.f32.mrf.mxu0
      %6444 = vmatprep.mubr.bf16.mxu0 0
      %6445 = vmatmul.mubr.bf16.gmra.mxu0 %v6379
      %v6446 = vpop.f32.mrf.mxu0
      %v6447 = vadd.f32 0.0, %v6446
      %v6448 = vpop.f32.mrf.mxu0
      %v6449 = vpop.f32.mrf.mxu0
      %v6450 = vadd.f32 0.0, %v6449
      %v6451 = vpop.f32.mrf.mxu0
      %6452 = vmatprep.mubr.bf16.mxu0 0
      %6453 = vmatmul.mubr.bf16.gmra.mxu0 %v6382
      %v6454 = vpop.f32.mrf.mxu0
      %v6455 = vadd.f32 0.0, %v6454
      %v6456 = vpop.f32.mrf.mxu0
      %v6457 = vpop.f32.mrf.mxu0
      %v6458 = vadd.f32 0.0, %v6457
      %v6459 = vpop.f32.mrf.mxu0
      %6460 = vmatprep.mubr.bf16.mxu0 0
      %6461 = vmatmul.mubr.bf16.gmra.mxu0 %v6385
      %v6462 = vpop.f32.mrf.mxu0
      %v6463 = vadd.f32 0.0, %v6462
      %v6464 = vpop.f32.mrf.mxu0
      %v6465 = vpop.f32.mrf.mxu0
      %v6466 = vadd.f32 0.0, %v6465
      %v6467 = vpop.f32.mrf.mxu0
      %6468 = vmatprep.mubr.bf16.mxu0 0
      %6469 = vmatmul.mubr.bf16.gmra.mxu0 %v6388
      %v6470 = vpop.f32.mrf.mxu0
      %v6471 = vadd.f32 0.0, %v6470
      %v6472 = vpop.f32.mrf.mxu0
      %v6473 = vpop.f32.mrf.mxu0
      %v6474 = vadd.f32 0.0, %v6473
      %v6475 = vpop.f32.mrf.mxu0
      %6476 = vmatprep.mubr.bf16.mxu0 0
      %6477 = vmatmul.mubr.bf16.gmra.mxu0 %v6391
      %v6478 = vpop.f32.mrf.mxu0
      %v6479 = vadd.f32 0.0, %v6478
      %v6480 = vpop.f32.mrf.mxu0
      %v6481 = vpop.f32.mrf.mxu0
      %v6482 = vadd.f32 0.0, %v6481
      %v6483 = vpop.f32.mrf.mxu0
      %6484 = vmatprep.mubr.bf16.mxu0 0
      %6485 = vmatmul.mubr.bf16.gmra.mxu0 %v6394
      %v6486 = vpop.f32.mrf.mxu0
      %v6487 = vadd.f32 0.0, %v6486
      %v6488 = vpop.f32.mrf.mxu0
      %v6489 = vpop.f32.mrf.mxu0
      %v6490 = vadd.f32 0.0, %v6489
      %v6491 = vpop.f32.mrf.mxu0
      %6492 = vdwg.mxu0
      %v6493 = vadd.f32 %v6212, %v6431
      %v6494 = vadd.f32 %v6213, %v6434
      %v6495 = vadd.f32 %v6214, %v6439
      %v6496 = vadd.f32 %v6215, %v6442
      %v6497 = vadd.f32 %v6216, %v6447
      %v6498 = vadd.f32 %v6217, %v6450
      %v6499 = vadd.f32 %v6218, %v6455
      %v6500 = vadd.f32 %v6219, %v6458
      %v6501 = vadd.f32 %v6220, %v6463
      %v6502 = vadd.f32 %v6221, %v6466
      %v6503 = vadd.f32 %v6222, %v6471
      %v6504 = vadd.f32 %v6223, %v6474
      %v6505 = vadd.f32 %v6224, %v6479
      %v6506 = vadd.f32 %v6225, %v6482
      %v6507 = vadd.f32 %v6226, %v6487
      %v6508 = vadd.f32 %v6227, %v6490
      %v6509 = vld [vmem:[#allocation3 + $0x14] sm:$0x8]
      %v6510 = vld [vmem:[#allocation3 + $0x18] sm:$0xf]
      %v6511 = vld [vmem:[#allocation3 + $0x1c] sm:$0xf]
      %v6512 = vld [vmem:[#allocation3 + $0x20] sm:$0xf]
      %v6513 = vld [vmem:[#allocation3 + $0x24] sm:$0xf]
      %v6514 = vld [vmem:[#allocation3 + $0x28] sm:$0xf]
      %v6515 = vld [vmem:[#allocation3 + $0x2c] sm:$0xf]
      %v6516 = vld [vmem:[#allocation3 + $0x30] sm:$0xf]
      %v6517 = vld [vmem:[#allocation3 + $0x34] sm:$0xf]
      %v6518 = vld [vmem:[#allocation3 + $0x38] sm:$0xf]
      %v6519 = vld [vmem:[#allocation3 + $0x3c] sm:$0xf]
      %v6520 = vld [vmem:[#allocation3 + $0x40] sm:$0xf]
      %v6521 = vld [vmem:[#allocation3 + $0x44] sm:$0xf]
      %v6522 = vld [vmem:[#allocation3 + $0x48] sm:$0xf]
      %v6523 = vld [vmem:[#allocation3 + $0x4c] sm:$0xf]
      %v6524 = vld [vmem:[#allocation3 + $0x50] sm:$0xf]
      %v6525 = vld [vmem:[#allocation3 + $0x54] sm:$0xf]
      %v6526 = vld [vmem:[%s6 + $0x60] sm:$0xf]
      %v6527 = vld [vmem:[%s6 + $0x64] sm:$0xf]
      %v6528 = vld [vmem:[%s6 + $0x68] sm:$0xf]
      %v6529 = vld [vmem:[%s6 + $0x6c] sm:$0xf]
      %v6547 = vunpack.c.l.b16 %v6509
      %v6548 = vunpack.c.l.b16 %v6510
      %v6549 = vunpack.c.l.b16 %v6511
      %v6550 = vunpack.c.l.b16 %v6512
      %v6551 = vunpack.c.l.b16 %v6513
      %v6552 = vunpack.c.l.b16 %v6514
      %v6553 = vunpack.c.l.b16 %v6515
      %v6554 = vunpack.c.l.b16 %v6516
      %v6555 = vunpack.c.l.b16 %v6517
      %v6556 = vunpack.c.l.b16 %v6518
      %v6557 = vunpack.c.l.b16 %v6519
      %v6558 = vunpack.c.l.b16 %v6520
      %v6559 = vunpack.c.l.b16 %v6521
      %v6560 = vunpack.c.l.b16 %v6522
      %v6561 = vunpack.c.l.b16 %v6523
      %v6562 = vunpack.c.l.b16 %v6524
      %v6563 = vunpack.c.l.b16 %v6525
      %v6564 = vpack.c.b16 %v6548, %v6547
      %v6565 = vpack.c.b16 %v6550, %v6549
      %v6566 = vpack.c.b16 %v6552, %v6551
      %v6567 = vpack.c.b16 %v6554, %v6553
      %v6568 = vpack.c.b16 %v6556, %v6555
      %v6569 = vpack.c.b16 %v6558, %v6557
      %v6570 = vpack.c.b16 %v6560, %v6559
      %v6571 = vpack.c.b16 %v6562, %v6561
      %v6572 = vpack.c.b16 %v6563, %v6563
      %v6574 = vshrl.u32 %v6564, 16
      %v6576 = vrot.slane %v6574, 3
      %v6577 = vshll.u32 %v6564, 16
      %v6579 = vrot.slane %v6577, 4
      %v6580 = vor.u32 %v6576, %v6579
      %v6582 = vshrl.u32 %v6565, 16
      %v6584 = vrot.slane %v6582, 3
      %v6585 = vshll.u32 %v6565, 16
      %v6587 = vrot.slane %v6585, 4
      %v6588 = vor.u32 %v6584, %v6587
      %v6589 = vsel %vm533, %v6580, %v6588
      %v6591 = vshrl.u32 %v6566, 16
      %v6593 = vrot.slane %v6591, 3
      %v6594 = vshll.u32 %v6566, 16
      %v6596 = vrot.slane %v6594, 4
      %v6597 = vor.u32 %v6593, %v6596
      %v6598 = vsel %vm533, %v6588, %v6597
      %v6600 = vshrl.u32 %v6567, 16
      %v6602 = vrot.slane %v6600, 3
      %v6603 = vshll.u32 %v6567, 16
      %v6605 = vrot.slane %v6603, 4
      %v6606 = vor.u32 %v6602, %v6605
      %v6607 = vsel %vm533, %v6597, %v6606
      %v6609 = vshrl.u32 %v6568, 16
      %v6611 = vrot.slane %v6609, 3
      %v6612 = vshll.u32 %v6568, 16
      %v6614 = vrot.slane %v6612, 4
      %v6615 = vor.u32 %v6611, %v6614
      %v6616 = vsel %vm533, %v6606, %v6615
      %v6618 = vshrl.u32 %v6569, 16
      %v6620 = vrot.slane %v6618, 3
      %v6621 = vshll.u32 %v6569, 16
      %v6623 = vrot.slane %v6621, 4
      %v6624 = vor.u32 %v6620, %v6623
      %v6625 = vsel %vm533, %v6615, %v6624
      %v6627 = vshrl.u32 %v6570, 16
      %v6629 = vrot.slane %v6627, 3
      %v6630 = vshll.u32 %v6570, 16
      %v6632 = vrot.slane %v6630, 4
      %v6633 = vor.u32 %v6629, %v6632
      %v6634 = vsel %vm533, %v6624, %v6633
      %v6636 = vshrl.u32 %v6571, 16
      %v6638 = vrot.slane %v6636, 3
      %v6639 = vshll.u32 %v6571, 16
      %v6641 = vrot.slane %v6639, 4
      %v6642 = vor.u32 %v6638, %v6641
      %v6643 = vsel %vm533, %v6633, %v6642
      %v6645 = vshrl.u32 %v6572, 16
      %v6647 = vrot.slane %v6645, 3
      %v6648 = vshll.u32 %v6572, 16
      %v6650 = vrot.slane %v6648, 4
      %v6651 = vor.u32 %v6647, %v6650
      %v6652 = vsel %vm533, %v6642, %v6651
      %v6657 = vunpack.c.l.b16 %v6526
      %v6658 = vunpack.c.l.b16 %v6527
      %v6659 = vunpack.c.l.b16 %v6528
      %v6660 = vunpack.c.l.b16 %v6529
      %v6661 = vpack.c.b16 %v6658, %v6657
      %v6662 = vpack.c.b16 %v6660, %v6659
      %v6666 = vsel %vm400, %v6589, 0
      %v6669 = vsel %vm400, %v6598, 0
      %v6672 = vsel %vm400, %v6607, 0
      %v6675 = vsel %vm400, %v6616, 0
      %v6678 = vsel %vm400, %v6625, 0
      %v6681 = vsel %vm400, %v6634, 0
      %v6684 = vsel %vm400, %v6643, 0
      %v6687 = vsel %vm400, %v6652, 0
      %6689 = vmatprep.subr.bf16.mxu0 0
      %6690 = vmatpush1.bf16.msra.mxu0 0
      %6691 = vmatprep.subr.bf16.mxu0 0
      %6692 = vmatpush1.bf16.msra.mxu0 0
      %6693 = vmatprep.subr.bf16.mxu0 0
      %6694 = vmatpush1.bf16.msra.mxu0 0
      %6695 = vmatprep.subr.bf16.mxu0 0
      %6696 = vmatpush1.bf16.msra.mxu0 0
      %6697 = vmatprep.subr.bf16.mxu0 0
      %6698 = vmatpush1.bf16.msra.mxu0 0
      %6699 = vmatprep.subr.bf16.mxu0 0
      %6700 = vmatpush1.bf16.msra.mxu0 0
      %6701 = vmatprep.subr.bf16.mxu0 0
      %6702 = vmatpush1.bf16.msra.mxu0 %v6662
      %6703 = vmatprep.subr.bf16.mxu0 0
      %6704 = vmatpush1.bf16.msra.mxu0 %v6661
      %6705 = vmatprep.subr.bf16.mxu0 0
      %6706 = vmatpush2.bf16.msra.mxu0 0
      %6707 = vmatprep.subr.bf16.mxu0 0
      %6708 = vmatpush2.bf16.msra.mxu0 0
      %6709 = vmatprep.subr.bf16.mxu0 0
      %6710 = vmatpush2.bf16.msra.mxu0 0
      %6711 = vmatprep.subr.bf16.mxu0 0
      %6712 = vmatpush2.bf16.msra.mxu0 0
      %6713 = vmatprep.subr.bf16.mxu0 0
      %6714 = vmatpush2.bf16.msra.mxu0 0
      %6715 = vmatprep.subr.bf16.mxu0 0
      %6716 = vmatpush2.bf16.msra.mxu0 0
      %6717 = vmatprep.subr.bf16.mxu0 0
      %6718 = vmatpush2.bf16.msra.mxu0 0
      %6719 = vmatprep.subr.bf16.mxu0 0
      %6720 = vmatpush2.bf16.msra.mxu0 0
      %6721 = vmatprep.mubr.bf16.mxu0 0
      %6722 = vmatmul.mubr.bf16.gmra.mxu0 %v6666
      %v6723 = vpop.f32.mrf.mxu0
      %v6724 = vadd.f32 0.0, %v6723
      %v6725 = vpop.f32.mrf.mxu0
      %v6726 = vpop.f32.mrf.mxu0
      %v6727 = vadd.f32 0.0, %v6726
      %v6728 = vpop.f32.mrf.mxu0
      %6729 = vmatprep.mubr.bf16.mxu0 0
      %6730 = vmatmul.mubr.bf16.gmra.mxu0 %v6669
      %v6731 = vpop.f32.mrf.mxu0
      %v6732 = vadd.f32 0.0, %v6731
      %v6733 = vpop.f32.mrf.mxu0
      %v6734 = vpop.f32.mrf.mxu0
      %v6735 = vadd.f32 0.0, %v6734
      %v6736 = vpop.f32.mrf.mxu0
      %6737 = vmatprep.mubr.bf16.mxu0 0
      %6738 = vmatmul.mubr.bf16.gmra.mxu0 %v6672
      %v6739 = vpop.f32.mrf.mxu0
      %v6740 = vadd.f32 0.0, %v6739
      %v6741 = vpop.f32.mrf.mxu0
      %v6742 = vpop.f32.mrf.mxu0
      %v6743 = vadd.f32 0.0, %v6742
      %v6744 = vpop.f32.mrf.mxu0
      %6745 = vmatprep.mubr.bf16.mxu0 0
      %6746 = vmatmul.mubr.bf16.gmra.mxu0 %v6675
      %v6747 = vpop.f32.mrf.mxu0
      %v6748 = vadd.f32 0.0, %v6747
      %v6749 = vpop.f32.mrf.mxu0
      %v6750 = vpop.f32.mrf.mxu0
      %v6751 = vadd.f32 0.0, %v6750
      %v6752 = vpop.f32.mrf.mxu0
      %6753 = vmatprep.mubr.bf16.mxu0 0
      %6754 = vmatmul.mubr.bf16.gmra.mxu0 %v6678
      %v6755 = vpop.f32.mrf.mxu0
      %v6756 = vadd.f32 0.0, %v6755
      %v6757 = vpop.f32.mrf.mxu0
      %v6758 = vpop.f32.mrf.mxu0
      %v6759 = vadd.f32 0.0, %v6758
      %v6760 = vpop.f32.mrf.mxu0
      %6761 = vmatprep.mubr.bf16.mxu0 0
      %6762 = vmatmul.mubr.bf16.gmra.mxu0 %v6681
      %v6763 = vpop.f32.mrf.mxu0
      %v6764 = vadd.f32 0.0, %v6763
      %v6765 = vpop.f32.mrf.mxu0
      %v6766 = vpop.f32.mrf.mxu0
      %v6767 = vadd.f32 0.0, %v6766
      %v6768 = vpop.f32.mrf.mxu0
      %6769 = vmatprep.mubr.bf16.mxu0 0
      %6770 = vmatmul.mubr.bf16.gmra.mxu0 %v6684
      %v6771 = vpop.f32.mrf.mxu0
      %v6772 = vadd.f32 0.0, %v6771
      %v6773 = vpop.f32.mrf.mxu0
      %v6774 = vpop.f32.mrf.mxu0
      %v6775 = vadd.f32 0.0, %v6774
      %v6776 = vpop.f32.mrf.mxu0
      %6777 = vmatprep.mubr.bf16.mxu0 0
      %6778 = vmatmul.mubr.bf16.gmra.mxu0 %v6687
      %v6779 = vpop.f32.mrf.mxu0
      %v6780 = vadd.f32 0.0, %v6779
      %v6781 = vpop.f32.mrf.mxu0
      %v6782 = vpop.f32.mrf.mxu0
      %v6783 = vadd.f32 0.0, %v6782
      %v6784 = vpop.f32.mrf.mxu0
      %6785 = vdwg.mxu0
      %v6786 = vadd.f32 %v6493, %v6724
      %v6787 = vadd.f32 %v6494, %v6727
      %v6788 = vadd.f32 %v6495, %v6732
      %v6789 = vadd.f32 %v6496, %v6735
      %v6790 = vadd.f32 %v6497, %v6740
      %v6791 = vadd.f32 %v6498, %v6743
      %v6792 = vadd.f32 %v6499, %v6748
      %v6793 = vadd.f32 %v6500, %v6751
      %v6794 = vadd.f32 %v6501, %v6756
      %v6795 = vadd.f32 %v6502, %v6759
      %v6796 = vadd.f32 %v6503, %v6764
      %v6797 = vadd.f32 %v6504, %v6767
      %v6798 = vadd.f32 %v6505, %v6772
      %v6799 = vadd.f32 %v6506, %v6775
      %v6800 = vadd.f32 %v6507, %v6780
      %v6801 = vadd.f32 %v6508, %v6783
      %v6802 = vld [vmem:[%s6 + $0x70] sm:$0xf]
      %v6803 = vld [vmem:[%s6 + $0x74] sm:$0xf]
      %v6804 = vld [vmem:[%s6 + $0x78] sm:$0xf]
      %v6805 = vld [vmem:[%s6 + $0x7c] sm:$0xf]
      %v6806 = vpack.c.b16 %v6549, %v6548
      %v6807 = vpack.c.b16 %v6551, %v6550
      %v6808 = vpack.c.b16 %v6553, %v6552
      %v6809 = vpack.c.b16 %v6555, %v6554
      %v6810 = vpack.c.b16 %v6557, %v6556
      %v6811 = vpack.c.b16 %v6559, %v6558
      %v6812 = vpack.c.b16 %v6561, %v6560
      %v6813 = vpack.c.b16 %v6563, %v6562
      %v6818 = vunpack.c.l.b16 %v6802
      %v6819 = vunpack.c.l.b16 %v6803
      %v6820 = vunpack.c.l.b16 %v6804
      %v6821 = vunpack.c.l.b16 %v6805
      %v6822 = vpack.c.b16 %v6819, %v6818
      %v6823 = vpack.c.b16 %v6821, %v6820
      %v6827 = vsel %vm400, %v6806, 0
      %v6830 = vsel %vm400, %v6807, 0
      %v6833 = vsel %vm400, %v6808, 0
      %v6836 = vsel %vm400, %v6809, 0
      %v6839 = vsel %vm400, %v6810, 0
      %v6842 = vsel %vm400, %v6811, 0
      %v6845 = vsel %vm400, %v6812, 0
      %v6848 = vsel %vm400, %v6813, 0
      %6850 = vmatprep.subr.bf16.mxu0 0
      %6851 = vmatpush1.bf16.msra.mxu0 0
      %6852 = vmatprep.subr.bf16.mxu0 0
      %6853 = vmatpush1.bf16.msra.mxu0 0
      %6854 = vmatprep.subr.bf16.mxu0 0
      %6855 = vmatpush1.bf16.msra.mxu0 0
      %6856 = vmatprep.subr.bf16.mxu0 0
      %6857 = vmatpush1.bf16.msra.mxu0 0
      %6858 = vmatprep.subr.bf16.mxu0 0
      %6859 = vmatpush1.bf16.msra.mxu0 0
      %6860 = vmatprep.subr.bf16.mxu0 0
      %6861 = vmatpush1.bf16.msra.mxu0 0
      %6862 = vmatprep.subr.bf16.mxu0 0
      %6863 = vmatpush1.bf16.msra.mxu0 %v6823
      %6864 = vmatprep.subr.bf16.mxu0 0
      %6865 = vmatpush1.bf16.msra.mxu0 %v6822
      %6866 = vmatprep.subr.bf16.mxu0 0
      %6867 = vmatpush2.bf16.msra.mxu0 0
      %6868 = vmatprep.subr.bf16.mxu0 0
      %6869 = vmatpush2.bf16.msra.mxu0 0
      %6870 = vmatprep.subr.bf16.mxu0 0
      %6871 = vmatpush2.bf16.msra.mxu0 0
      %6872 = vmatprep.subr.bf16.mxu0 0
      %6873 = vmatpush2.bf16.msra.mxu0 0
      %6874 = vmatprep.subr.bf16.mxu0 0
      %6875 = vmatpush2.bf16.msra.mxu0 0
      %6876 = vmatprep.subr.bf16.mxu0 0
      %6877 = vmatpush2.bf16.msra.mxu0 0
      %6878 = vmatprep.subr.bf16.mxu0 0
      %6879 = vmatpush2.bf16.msra.mxu0 0
      %6880 = vmatprep.subr.bf16.mxu0 0
      %6881 = vmatpush2.bf16.msra.mxu0 0
      %6882 = vmatprep.mubr.bf16.mxu0 0
      %6883 = vmatmul.mubr.bf16.gmra.mxu0 %v6827
      %v6884 = vpop.f32.mrf.mxu0
      %v6885 = vadd.f32 0.0, %v6884
      %v6886 = vpop.f32.mrf.mxu0
      %v6887 = vpop.f32.mrf.mxu0
      %v6888 = vadd.f32 0.0, %v6887
      %v6889 = vpop.f32.mrf.mxu0
      %6890 = vmatprep.mubr.bf16.mxu0 0
      %6891 = vmatmul.mubr.bf16.gmra.mxu0 %v6830
      %v6892 = vpop.f32.mrf.mxu0
      %v6893 = vadd.f32 0.0, %v6892
      %v6894 = vpop.f32.mrf.mxu0
      %v6895 = vpop.f32.mrf.mxu0
      %v6896 = vadd.f32 0.0, %v6895
      %v6897 = vpop.f32.mrf.mxu0
      %6898 = vmatprep.mubr.bf16.mxu0 0
      %6899 = vmatmul.mubr.bf16.gmra.mxu0 %v6833
      %v6900 = vpop.f32.mrf.mxu0
      %v6901 = vadd.f32 0.0, %v6900
      %v6902 = vpop.f32.mrf.mxu0
      %v6903 = vpop.f32.mrf.mxu0
      %v6904 = vadd.f32 0.0, %v6903
      %v6905 = vpop.f32.mrf.mxu0
      %6906 = vmatprep.mubr.bf16.mxu0 0
      %6907 = vmatmul.mubr.bf16.gmra.mxu0 %v6836
      %v6908 = vpop.f32.mrf.mxu0
      %v6909 = vadd.f32 0.0, %v6908
      %v6910 = vpop.f32.mrf.mxu0
      %v6911 = vpop.f32.mrf.mxu0
      %v6912 = vadd.f32 0.0, %v6911
      %v6913 = vpop.f32.mrf.mxu0
      %6914 = vmatprep.mubr.bf16.mxu0 0
      %6915 = vmatmul.mubr.bf16.gmra.mxu0 %v6839
      %v6916 = vpop.f32.mrf.mxu0
      %v6917 = vadd.f32 0.0, %v6916
      %v6918 = vpop.f32.mrf.mxu0
      %v6919 = vpop.f32.mrf.mxu0
      %v6920 = vadd.f32 0.0, %v6919
      %v6921 = vpop.f32.mrf.mxu0
      %6922 = vmatprep.mubr.bf16.mxu0 0
      %6923 = vmatmul.mubr.bf16.gmra.mxu0 %v6842
      %v6924 = vpop.f32.mrf.mxu0
      %v6925 = vadd.f32 0.0, %v6924
      %v6926 = vpop.f32.mrf.mxu0
      %v6927 = vpop.f32.mrf.mxu0
      %v6928 = vadd.f32 0.0, %v6927
      %v6929 = vpop.f32.mrf.mxu0
      %6930 = vmatprep.mubr.bf16.mxu0 0
      %6931 = vmatmul.mubr.bf16.gmra.mxu0 %v6845
      %v6932 = vpop.f32.mrf.mxu0
      %v6933 = vadd.f32 0.0, %v6932
      %v6934 = vpop.f32.mrf.mxu0
      %v6935 = vpop.f32.mrf.mxu0
      %v6936 = vadd.f32 0.0, %v6935
      %v6937 = vpop.f32.mrf.mxu0
      %6938 = vmatprep.mubr.bf16.mxu0 0
      %6939 = vmatmul.mubr.bf16.gmra.mxu0 %v6848
      %v6940 = vpop.f32.mrf.mxu0
      %v6941 = vadd.f32 0.0, %v6940
      %v6942 = vpop.f32.mrf.mxu0
      %v6943 = vpop.f32.mrf.mxu0
      %v6944 = vadd.f32 0.0, %v6943
      %v6945 = vpop.f32.mrf.mxu0
      %6946 = vdwg.mxu0
      %v6947 = vadd.f32 %v6786, %v6885
      %v6948 = vadd.f32 %v6787, %v6888
      %v6949 = vadd.f32 %v6788, %v6893
      %v6950 = vadd.f32 %v6789, %v6896
      %v6951 = vadd.f32 %v6790, %v6901
      %v6952 = vadd.f32 %v6791, %v6904
      %v6953 = vadd.f32 %v6792, %v6909
      %v6954 = vadd.f32 %v6793, %v6912
      %v6955 = vadd.f32 %v6794, %v6917
      %v6956 = vadd.f32 %v6795, %v6920
      %v6957 = vadd.f32 %v6796, %v6925
      %v6958 = vadd.f32 %v6797, %v6928
      %v6959 = vadd.f32 %v6798, %v6933
      %v6960 = vadd.f32 %v6799, %v6936
      %v6961 = vadd.f32 %v6800, %v6941
      %v6962 = vadd.f32 %v6801, %v6944
      %v6963 = vld [vmem:[#allocation3 + $0x18] sm:$0xf]
      %v6964 = vld [vmem:[#allocation3 + $0x1c] sm:$0xf]
      %v6965 = vld [vmem:[#allocation3 + $0x20] sm:$0xf]
      %v6966 = vld [vmem:[#allocation3 + $0x24] sm:$0xf]
      %v6967 = vld [vmem:[#allocation3 + $0x28] sm:$0xf]
      %v6968 = vld [vmem:[#allocation3 + $0x2c] sm:$0xf]
      %v6969 = vld [vmem:[#allocation3 + $0x30] sm:$0xf]
      %v6970 = vld [vmem:[#allocation3 + $0x34] sm:$0xf]
      %v6971 = vld [vmem:[#allocation3 + $0x38] sm:$0xf]
      %v6972 = vld [vmem:[#allocation3 + $0x3c] sm:$0xf]
      %v6973 = vld [vmem:[#allocation3 + $0x40] sm:$0xf]
      %v6974 = vld [vmem:[#allocation3 + $0x44] sm:$0xf]
      %v6975 = vld [vmem:[#allocation3 + $0x48] sm:$0xf]
      %v6976 = vld [vmem:[#allocation3 + $0x4c] sm:$0xf]
      %v6977 = vld [vmem:[#allocation3 + $0x50] sm:$0xf]
      %v6978 = vld [vmem:[#allocation3 + $0x54] sm:$0xf]
      %v6979 = vld [vmem:[#allocation3 + $0x58] sm:$0x1]
      %v6980 = vld [vmem:[%s6 + $0x80] sm:$0xf]
      %v6981 = vld [vmem:[%s6 + $0x84] sm:$0xf]
      %v6982 = vld [vmem:[%s6 + $0x88] sm:$0xf]
      %v6983 = vld [vmem:[%s6 + $0x8c] sm:$0xf]
      %v7001 = vunpack.c.l.b16 %v6963
      %v7002 = vunpack.c.l.b16 %v6964
      %v7003 = vunpack.c.l.b16 %v6965
      %v7004 = vunpack.c.l.b16 %v6966
      %v7005 = vunpack.c.l.b16 %v6967
      %v7006 = vunpack.c.l.b16 %v6968
      %v7007 = vunpack.c.l.b16 %v6969
      %v7008 = vunpack.c.l.b16 %v6970
      %v7009 = vunpack.c.l.b16 %v6971
      %v7010 = vunpack.c.l.b16 %v6972
      %v7011 = vunpack.c.l.b16 %v6973
      %v7012 = vunpack.c.l.b16 %v6974
      %v7013 = vunpack.c.l.b16 %v6975
      %v7014 = vunpack.c.l.b16 %v6976
      %v7015 = vunpack.c.l.b16 %v6977
      %v7016 = vunpack.c.l.b16 %v6978
      %v7017 = vunpack.c.l.b16 %v6979
      %v7018 = vpack.c.b16 %v7002, %v7001
      %v7019 = vpack.c.b16 %v7004, %v7003
      %v7020 = vpack.c.b16 %v7006, %v7005
      %v7021 = vpack.c.b16 %v7008, %v7007
      %v7022 = vpack.c.b16 %v7010, %v7009
      %v7023 = vpack.c.b16 %v7012, %v7011
      %v7024 = vpack.c.b16 %v7014, %v7013
      %v7025 = vpack.c.b16 %v7016, %v7015
      %v7026 = vpack.c.b16 %v7017, %v7017
      %v7028 = vshrl.u32 %v7018, 16
      %v7030 = vshll.u32 %v7018, 16
      %v7032 = vrot.slane %v7030, 1
      %v7033 = vor.u32 %v7028, %v7032
      %v7035 = vshll.u32 %v7019, 16
      %v7037 = vrot.slane %v7035, 1
      %v7038 = vsel %vm811, %v7033, %v7037
      %v7039 = vshrl.u32 %v7019, 16
      %v7041 = vor.u32 %v7039, %v7037
      %v7043 = vshll.u32 %v7020, 16
      %v7045 = vrot.slane %v7043, 1
      %v7046 = vsel %vm811, %v7041, %v7045
      %v7047 = vshrl.u32 %v7020, 16
      %v7049 = vor.u32 %v7047, %v7045
      %v7051 = vshll.u32 %v7021, 16
      %v7053 = vrot.slane %v7051, 1
      %v7054 = vsel %vm811, %v7049, %v7053
      %v7055 = vshrl.u32 %v7021, 16
      %v7057 = vor.u32 %v7055, %v7053
      %v7059 = vshll.u32 %v7022, 16
      %v7061 = vrot.slane %v7059, 1
      %v7062 = vsel %vm811, %v7057, %v7061
      %v7063 = vshrl.u32 %v7022, 16
      %v7065 = vor.u32 %v7063, %v7061
      %v7067 = vshll.u32 %v7023, 16
      %v7069 = vrot.slane %v7067, 1
      %v7070 = vsel %vm811, %v7065, %v7069
      %v7071 = vshrl.u32 %v7023, 16
      %v7073 = vor.u32 %v7071, %v7069
      %v7075 = vshll.u32 %v7024, 16
      %v7077 = vrot.slane %v7075, 1
      %v7078 = vsel %vm811, %v7073, %v7077
      %v7079 = vshrl.u32 %v7024, 16
      %v7081 = vor.u32 %v7079, %v7077
      %v7083 = vshll.u32 %v7025, 16
      %v7085 = vrot.slane %v7083, 1
      %v7086 = vsel %vm811, %v7081, %v7085
      %v7087 = vshrl.u32 %v7025, 16
      %v7089 = vor.u32 %v7087, %v7085
      %v7091 = vshll.u32 %v7026, 16
      %v7093 = vrot.slane %v7091, 1
      %v7094 = vsel %vm811, %v7089, %v7093
      %v7099 = vunpack.c.l.b16 %v6980
      %v7100 = vunpack.c.l.b16 %v6981
      %v7101 = vunpack.c.l.b16 %v6982
      %v7102 = vunpack.c.l.b16 %v6983
      %v7103 = vpack.c.b16 %v7100, %v7099
      %v7104 = vpack.c.b16 %v7102, %v7101
      %v7108 = vsel %vm400, %v7038, 0
      %v7111 = vsel %vm400, %v7046, 0
      %v7114 = vsel %vm400, %v7054, 0
      %v7117 = vsel %vm400, %v7062, 0
      %v7120 = vsel %vm400, %v7070, 0
      %v7123 = vsel %vm400, %v7078, 0
      %v7126 = vsel %vm400, %v7086, 0
      %v7129 = vsel %vm400, %v7094, 0
      %7131 = vmatprep.subr.bf16.mxu0 0
      %7132 = vmatpush1.bf16.msra.mxu0 0
      %7133 = vmatprep.subr.bf16.mxu0 0
      %7134 = vmatpush1.bf16.msra.mxu0 0
      %7135 = vmatprep.subr.bf16.mxu0 0
      %7136 = vmatpush1.bf16.msra.mxu0 0
      %7137 = vmatprep.subr.bf16.mxu0 0
      %7138 = vmatpush1.bf16.msra.mxu0 0
      %7139 = vmatprep.subr.bf16.mxu0 0
      %7140 = vmatpush1.bf16.msra.mxu0 0
      %7141 = vmatprep.subr.bf16.mxu0 0
      %7142 = vmatpush1.bf16.msra.mxu0 0
      %7143 = vmatprep.subr.bf16.mxu0 0
      %7144 = vmatpush1.bf16.msra.mxu0 %v7104
      %7145 = vmatprep.subr.bf16.mxu0 0
      %7146 = vmatpush1.bf16.msra.mxu0 %v7103
      %7147 = vmatprep.subr.bf16.mxu0 0
      %7148 = vmatpush2.bf16.msra.mxu0 0
      %7149 = vmatprep.subr.bf16.mxu0 0
      %7150 = vmatpush2.bf16.msra.mxu0 0
      %7151 = vmatprep.subr.bf16.mxu0 0
      %7152 = vmatpush2.bf16.msra.mxu0 0
      %7153 = vmatprep.subr.bf16.mxu0 0
      %7154 = vmatpush2.bf16.msra.mxu0 0
      %7155 = vmatprep.subr.bf16.mxu0 0
      %7156 = vmatpush2.bf16.msra.mxu0 0
      %7157 = vmatprep.subr.bf16.mxu0 0
      %7158 = vmatpush2.bf16.msra.mxu0 0
      %7159 = vmatprep.subr.bf16.mxu0 0
      %7160 = vmatpush2.bf16.msra.mxu0 0
      %7161 = vmatprep.subr.bf16.mxu0 0
      %7162 = vmatpush2.bf16.msra.mxu0 0
      %7163 = vmatprep.mubr.bf16.mxu0 0
      %7164 = vmatmul.mubr.bf16.gmra.mxu0 %v7108
      %v7165 = vpop.f32.mrf.mxu0
      %v7166 = vadd.f32 0.0, %v7165
      %v7167 = vpop.f32.mrf.mxu0
      %v7168 = vpop.f32.mrf.mxu0
      %v7169 = vadd.f32 0.0, %v7168
      %v7170 = vpop.f32.mrf.mxu0
      %7171 = vmatprep.mubr.bf16.mxu0 0
      %7172 = vmatmul.mubr.bf16.gmra.mxu0 %v7111
      %v7173 = vpop.f32.mrf.mxu0
      %v7174 = vadd.f32 0.0, %v7173
      %v7175 = vpop.f32.mrf.mxu0
      %v7176 = vpop.f32.mrf.mxu0
      %v7177 = vadd.f32 0.0, %v7176
      %v7178 = vpop.f32.mrf.mxu0
      %7179 = vmatprep.mubr.bf16.mxu0 0
      %7180 = vmatmul.mubr.bf16.gmra.mxu0 %v7114
      %v7181 = vpop.f32.mrf.mxu0
      %v7182 = vadd.f32 0.0, %v7181
      %v7183 = vpop.f32.mrf.mxu0
      %v7184 = vpop.f32.mrf.mxu0
      %v7185 = vadd.f32 0.0, %v7184
      %v7186 = vpop.f32.mrf.mxu0
      %7187 = vmatprep.mubr.bf16.mxu0 0
      %7188 = vmatmul.mubr.bf16.gmra.mxu0 %v7117
      %v7189 = vpop.f32.mrf.mxu0
      %v7190 = vadd.f32 0.0, %v7189
      %v7191 = vpop.f32.mrf.mxu0
      %v7192 = vpop.f32.mrf.mxu0
      %v7193 = vadd.f32 0.0, %v7192
      %v7194 = vpop.f32.mrf.mxu0
      %7195 = vmatprep.mubr.bf16.mxu0 0
      %7196 = vmatmul.mubr.bf16.gmra.mxu0 %v7120
      %v7197 = vpop.f32.mrf.mxu0
      %v7198 = vadd.f32 0.0, %v7197
      %v7199 = vpop.f32.mrf.mxu0
      %v7200 = vpop.f32.mrf.mxu0
      %v7201 = vadd.f32 0.0, %v7200
      %v7202 = vpop.f32.mrf.mxu0
      %7203 = vmatprep.mubr.bf16.mxu0 0
      %7204 = vmatmul.mubr.bf16.gmra.mxu0 %v7123
      %v7205 = vpop.f32.mrf.mxu0
      %v7206 = vadd.f32 0.0, %v7205
      %v7207 = vpop.f32.mrf.mxu0
      %v7208 = vpop.f32.mrf.mxu0
      %v7209 = vadd.f32 0.0, %v7208
      %v7210 = vpop.f32.mrf.mxu0
      %7211 = vmatprep.mubr.bf16.mxu0 0
      %7212 = vmatmul.mubr.bf16.gmra.mxu0 %v7126
      %v7213 = vpop.f32.mrf.mxu0
      %v7214 = vadd.f32 0.0, %v7213
      %v7215 = vpop.f32.mrf.mxu0
      %v7216 = vpop.f32.mrf.mxu0
      %v7217 = vadd.f32 0.0, %v7216
      %v7218 = vpop.f32.mrf.mxu0
      %7219 = vmatprep.mubr.bf16.mxu0 0
      %7220 = vmatmul.mubr.bf16.gmra.mxu0 %v7129
      %v7221 = vpop.f32.mrf.mxu0
      %v7222 = vadd.f32 0.0, %v7221
      %v7223 = vpop.f32.mrf.mxu0
      %v7224 = vpop.f32.mrf.mxu0
      %v7225 = vadd.f32 0.0, %v7224
      %v7226 = vpop.f32.mrf.mxu0
      %7227 = vdwg.mxu0
      %v7228 = vadd.f32 %v6947, %v7166
      %v7229 = vadd.f32 %v6948, %v7169
      %v7230 = vadd.f32 %v6949, %v7174
      %v7231 = vadd.f32 %v6950, %v7177
      %v7232 = vadd.f32 %v6951, %v7182
      %v7233 = vadd.f32 %v6952, %v7185
      %v7234 = vadd.f32 %v6953, %v7190
      %v7235 = vadd.f32 %v6954, %v7193
      %v7236 = vadd.f32 %v6955, %v7198
      %v7237 = vadd.f32 %v6956, %v7201
      %v7238 = vadd.f32 %v6957, %v7206
      %v7239 = vadd.f32 %v6958, %v7209
      %v7240 = vadd.f32 %v6959, %v7214
      %v7241 = vadd.f32 %v6960, %v7217
      %v7242 = vadd.f32 %v6961, %v7222
      %v7243 = vadd.f32 %v6962, %v7225
      %v7244 = vld [vmem:[%s7] sm:$0x1]
      %v7246 = vlaneseq
      %v7247 = vshrl.u32 %v7246, 7
      %v7248 = vsub.s32 0, %v7247
      %v7249 = vrot.slane %v7244, %v7248
      %v7251 = vadd.f32 %v7228, %v7249
      %v7252 = vadd.f32 %v7229, %v7249
      %v7253 = vadd.f32 %v7230, %v7249
      %v7254 = vadd.f32 %v7231, %v7249
      %v7255 = vadd.f32 %v7232, %v7249
      %v7256 = vadd.f32 %v7233, %v7249
      %v7257 = vadd.f32 %v7234, %v7249
      %v7258 = vadd.f32 %v7235, %v7249
      %v7259 = vadd.f32 %v7236, %v7249
      %v7260 = vadd.f32 %v7237, %v7249
      %v7261 = vadd.f32 %v7238, %v7249
      %v7262 = vadd.f32 %v7239, %v7249
      %v7263 = vadd.f32 %v7240, %v7249
      %v7264 = vadd.f32 %v7241, %v7249
      %v7265 = vadd.f32 %v7242, %v7249
      %v7266 = vadd.f32 %v7243, %v7249
      %v7267 = vmax.f32 %v7251, 0.0
      %v7268 = vmax.f32 %v7252, 0.0
      %v7269 = vmax.f32 %v7253, 0.0
      %v7270 = vmax.f32 %v7254, 0.0
      %v7271 = vmax.f32 %v7255, 0.0
      %v7272 = vmax.f32 %v7256, 0.0
      %v7273 = vmax.f32 %v7257, 0.0
      %v7274 = vmax.f32 %v7258, 0.0
      %v7275 = vmax.f32 %v7259, 0.0
      %v7276 = vmax.f32 %v7260, 0.0
      %v7277 = vmax.f32 %v7261, 0.0
      %v7278 = vmax.f32 %v7262, 0.0
      %v7279 = vmax.f32 %v7263, 0.0
      %v7280 = vmax.f32 %v7264, 0.0
      %v7281 = vmax.f32 %v7265, 0.0
      %v7282 = vmax.f32 %v7266, 0.0
      %v7283 = vpack.c.bf16 %v7268, %v7267
      %v7284 = vpack.c.bf16 %v7270, %v7269
      %v7285 = vpack.c.bf16 %v7272, %v7271
      %v7286 = vpack.c.bf16 %v7274, %v7273
      %v7287 = vpack.c.bf16 %v7276, %v7275
      %v7288 = vpack.c.bf16 %v7278, %v7277
      %v7289 = vpack.c.bf16 %v7280, %v7279
      %v7290 = vpack.c.bf16 %v7282, %v7281
      %v7299 = vunpack.c.l.b16 %v7283
      %v7300 = vunpack.c.h.b16 %v7283
      %v7301 = vunpack.c.l.b16 %v7284
      %v7302 = vunpack.c.h.b16 %v7284
      %v7303 = vunpack.c.l.b16 %v7285
      %v7304 = vunpack.c.h.b16 %v7285
      %v7305 = vunpack.c.l.b16 %v7286
      %v7306 = vunpack.c.h.b16 %v7286
      %v7307 = vunpack.c.l.b16 %v7287
      %v7308 = vunpack.c.h.b16 %v7287
      %v7309 = vunpack.c.l.b16 %v7288
      %v7310 = vunpack.c.h.b16 %v7288
      %v7311 = vunpack.c.l.b16 %v7289
      %v7312 = vunpack.c.h.b16 %v7289
      %v7313 = vunpack.c.l.b16 %v7290
      %v7314 = vunpack.c.h.b16 %v7290
      %v7315 = vpack.c.b16 %v7299, %v7299
      %v7316 = vpack.c.b16 %v7300, %v7300
      %v7317 = vpack.c.b16 %v7301, %v7301
      %v7318 = vpack.c.b16 %v7302, %v7302
      %v7319 = vpack.c.b16 %v7303, %v7303
      %v7320 = vpack.c.b16 %v7304, %v7304
      %v7321 = vpack.c.b16 %v7305, %v7305
      %v7322 = vpack.c.b16 %v7306, %v7306
      %v7323 = vpack.c.b16 %v7307, %v7307
      %v7324 = vpack.c.b16 %v7308, %v7308
      %v7325 = vpack.c.b16 %v7309, %v7309
      %v7326 = vpack.c.b16 %v7310, %v7310
      %v7327 = vpack.c.b16 %v7311, %v7311
      %v7328 = vpack.c.b16 %v7312, %v7312
      %v7329 = vpack.c.b16 %v7313, %v7313
      %v7330 = vpack.c.b16 %v7314, %v7314
      %7347 = vst.msk [vmem:[%s305] sm:$0xf] %vm2634, %v7315
      %7348 = vst.msk [vmem:[%s305 + $0x4] sm:$0xf] %vm2634, %v7316
      %7349 = vst.msk [vmem:[%s305 + $0x8] sm:$0xf] %vm2634, %v7317
      %7350 = vst.msk [vmem:[%s305 + $0xc] sm:$0xf] %vm2634, %v7318
      %7351 = vst.msk [vmem:[%s305 + $0x10] sm:$0xf] %vm2634, %v7319
      %7352 = vst.msk [vmem:[%s305 + $0x14] sm:$0xf] %vm2634, %v7320
      %7353 = vst.msk [vmem:[%s305 + $0x18] sm:$0xf] %vm2634, %v7321
      %7354 = vst.msk [vmem:[%s305 + $0x1c] sm:$0xf] %vm2634, %v7322
      %7355 = vst.msk [vmem:[%s305 + $0x20] sm:$0xf] %vm2634, %v7323
      %7356 = vst.msk [vmem:[%s305 + $0x24] sm:$0xf] %vm2634, %v7324
      %7357 = vst.msk [vmem:[%s305 + $0x28] sm:$0xf] %vm2634, %v7325
      %7358 = vst.msk [vmem:[%s305 + $0x2c] sm:$0xf] %vm2634, %v7326
      %7359 = vst.msk [vmem:[%s305 + $0x30] sm:$0xf] %vm2634, %v7327
      %7360 = vst.msk [vmem:[%s305 + $0x34] sm:$0xf] %vm2634, %v7328
      %7361 = vst.msk [vmem:[%s305 + $0x38] sm:$0xf] %vm2634, %v7329
      %7362 = vst.msk [vmem:[%s305 + $0x3c] sm:$0xf] %vm2634, %v7330
      %p7363 = scmp.lt.s32.totalorder %s19, 1
      %s7364 = scalar_select %p7363, %s19, 1
      %s7365 = smul.addr %s7364, 16
      %s7366 = smul.addr %s7365, 4
      %s7367 = scalar_lea.vmem %s8, %s7366
      // Predicated region
      $region53: #{feature_extractor_forward.2} parent=51 // pred_check
        %p7368 = pneg %p210
      $region54: #{feature_extractor_forward.2} parent=51 // pred_check_branch
        %7370 = sbr.rel (%p7368) target = $region56
      $region55: #{feature_extractor_forward.2} parent=51 // pred_region
        _
      $region56: #{feature_extractor_forward.2} parent=51 // pred_fallthru
        _
    $region52: #{feature_extractor_forward.2} parent=5 // pred_fallthru
      _
    %p7371 = scmp.le.s32.totalorder 2, %s14
    // Predicated region
    $region57: #{feature_extractor_forward.2} parent=5 // pred_check
      %p7372 = pneg %p7371
    $region58: #{feature_extractor_forward.2} parent=5 // pred_check_branch
      %7374 = sbr.rel (%p7372) target = $region60
    $region59: #{feature_extractor_forward.2} parent=5 // pred_region
      %s7375 = ssub.s32 %s14, 2
      // Predicated region
      $region61: #{feature_extractor_forward.2} parent=59 // pred_check
        %p7376 = pneg %p216
      $region62: #{feature_extractor_forward.2} parent=59 // pred_check_branch
        %7378 = sbr.rel (%p7376) target = $region64
      $region63: #{feature_extractor_forward.2} parent=59 // pred_region
        %p7379 = scmp.lt.s32.totalorder %s20, 1
        %s7380 = scalar_select %p7379, %s20, 1
        %s7381 = smul.addr %s7380, 16
        %s7382 = smul.addr %s7381, 4
        %s7383 = scalar_lea.vmem %s8, %s7382
      $region64: #{feature_extractor_forward.2} parent=59 // pred_fallthru
        _
    $region60: #{feature_extractor_forward.2} parent=5 // pred_fallthru
      _
  $region6: #{feature_extractor_forward.2} parent=0 // loop_footer
    %s18 = sadd.s32 1, %s14
  $region7: #{feature_extractor_forward.2} parent=0 // loop_footer_branch
    %13 = sbr.rel target = $region3
  $region8: #{feature_extractor_forward.2} parent=0 // loop_exit
    _

</llo_original>
